<compile_context>
chip_gen: v7x
topology: tpu7x:2x2x1
jax: 0.10.0
libtpu: 0.0.40
codegen_flags: <defaults>
</compile_context>

<pallas_src>
import functools

import jax
import jax.numpy as jnp
from jax.experimental import pallas as pl
from jax.experimental.pallas import tpu as pltpu


# ------------------------------ sizing helpers -------------------------------

def _vmem_limit_bytes():
    """Generation-aware VMEM budget: ~3/4 of physical, capped at 100 MiB.

    v5e/v6e have 128 MiB of VMEM per core, v7x only 64 MiB; asking for the full
    amount leaves no headroom for compiler scratch / double buffers.
    """
    try:
        cap = pltpu.get_tpu_info().vmem_capacity_bytes
    except Exception:
        cap = 64 << 20                       # conservative (v7x-sized) fallback
    return int(min(cap * 3 // 4, 100 << 20))


def _row_tile(n_nodes, vmem_limit):
    """Destination-row tile for the streamed bf16 adjacency (the only O(N^2) operand)."""
    budget = vmem_limit // 3                 # share for the adj double-buffer
    tm = budget // max(1, 2 * 2 * n_nodes)   # 2 buffers x 2 bytes/elem x N cols
    tm = max(8, min(tm, 512, n_nodes))       # >=512 rows reaches ~HBM roofline
    return max(8, (tm // 8) * 8)             # sublane (8) alignment


# ------------------------------ graph build ----------------------------------

def build_graph(edge_index, num_nodes):
    """Densify edge_index into (bf16 edge-count matrix, f32 1/in-degree).

    A[i, j] = #edges j -> i.  (counts @ h) * (1/deg) reproduces PyG SAGEConv's
    default "mean" aggregation; isolated nodes correctly get a zero aggregate.
    Build once per (static) graph and reuse across forward calls.
    """
    # TODO(synk): for large sparse graphs skip the dense O(N^2) matrix and do the
    # mean aggregation in-kernel from scalar-prefetched CSR offsets/indices.
    src, dst = edge_index[0], edge_index[1]
    counts = jnp.zeros((num_nodes, num_nodes), jnp.float32).at[dst, src].add(1.0)
    deg = jnp.sum(counts, axis=1, keepdims=True)
    inv_deg = 1.0 / jnp.maximum(deg, 1.0)
    return counts.astype(jnp.bfloat16), inv_deg


# ------------------------------ kernels ---------------------------------------

def _proj1_kernel(hid, x_ref, w1_ref, p_agg_ref, p_self_ref):
    # one MXU pass: x @ [W1_l | W1_r]
    p = jnp.dot(x_ref[...], w1_ref[...], preferred_element_type=jnp.float32)
    p_agg_ref[...] = p[:, :hid].astype(jnp.bfloat16)   # goes through A (bf16 MXU)
    p_self_ref[...] = p[:, hid:]                        # self/root term (f32)


def _sage1_kernel(ncls, adj_ref, invd_ref, p_agg_full_ref, p_self_ref, b1_ref,
                  w2_ref, q_agg_ref, q_self_ref):
    # mean aggregation, reassociated: (counts @ (x @ W1l)) * (1/deg)
    agg = jnp.dot(adj_ref[...], p_agg_full_ref[...],
                  preferred_element_type=jnp.float32)
    h1 = agg * invd_ref[...] + p_self_ref[...] + b1_ref[...]
    h1 = jnp.maximum(h1, 0.0)                            # ReLU
    # F.dropout(training=False) is the identity in eval mode.
    # TODO(synk): training-mode dropout would use pltpu.prng_seed / prng_random_bits.
    q = jnp.dot(h1, w2_ref[...], preferred_element_type=jnp.float32)  # h1 @ [W2l|W2r]
    q_agg_ref[...] = q[:, :ncls].astype(jnp.bfloat16)
    q_self_ref[...] = q[:, ncls:]


def _sage2_kernel(adj_ref, invd_ref, q_agg_full_ref, q_self_ref, b2_ref, out_ref):
    agg = jnp.dot(adj_ref[...], q_agg_full_ref[...],
                  preferred_element_type=jnp.float32)
    h2 = agg * invd_ref[...] + q_self_ref[...] + b2_ref[...]
    # numerically stable log_softmax over dim=1
    m = jnp.max(h2, axis=1, keepdims=True)
    z = h2 - m
    lse = jnp.log(jnp.sum(jnp.exp(z), axis=1, keepdims=True))
    out_ref[...] = z - lse


# ------------------------------ forward ---------------------------------------

def graphsage_forward(x, adj_counts, inv_deg, params):
    """x: [N,F] f32; adj_counts: [N,N] bf16 (edge counts); inv_deg: [N,1] f32."""
    w1l, w1r, b1, w2l, w2r, b2 = params
    n, f = x.shape
    hid = w1l.shape[1]
    ncls = w2l.shape[1]

    w1 = jnp.concatenate([w1l, w1r], axis=1)       # [F, 2H]
    w2 = jnp.concatenate([w2l, w2r], axis=1)       # [H, 2C]

    vmem_limit = _vmem_limit_bytes()
    tm = _row_tile(n, vmem_limit)
    grid = (pl.cdiv(n, tm),)
    cparams = pltpu.CompilerParams(
        dimension_semantics=("parallel",),         # v7x: two TCs split the row tiles
        vmem_limit_bytes=vmem_limit,
    )

    row = lambda i: (i, 0)                         # tiled over dst-node rows
    rep = lambda i: (0, 0)                         # resident whole-array block

    # ---- stage 1: p = x @ [W1l | W1r] ------------------------------------------
    p_agg, p_self = pl.pallas_call(
        functools.partial(_proj1_kernel, hid),
        grid=grid,
        in_specs=[pl.BlockSpec((tm, f), row),
                  pl.BlockSpec((f, 2 * hid), rep)],
        out_specs=(pl.BlockSpec((tm, hid), row),
                   pl.BlockSpec((tm, hid), row)),
        out_shape=(jax.ShapeDtypeStruct((n, hid), jnp.bfloat16),
                   jax.ShapeDtypeStruct((n, hid), jnp.float32)),
        compiler_params=cparams,
        cost_estimate=pl.CostEstimate(
            flops=2 * n * f * 2 * hid, transcendentals=0,
            bytes_accessed=4 * (n * f + f * 2 * hid + n * 2 * hid)),
    )(x, w1)

    # ---- stage 2: h1 = relu(mean-agg + self + b1);  q = h1 @ [W2l | W2r] --------
    q_agg, q_self = pl.pallas_call(
        functools.partial(_sage1_kernel, ncls),
        grid=grid,
        in_specs=[pl.BlockSpec((tm, n), row),      # adj row tile (streamed, bf16)
                  pl.BlockSpec((tm, 1), row),      # 1/deg for these rows
                  pl.BlockSpec((n, hid), rep),     # full x@W1l (resident)
                  pl.BlockSpec((tm, hid), row),    # x@W1r for these rows
                  pl.BlockSpec((1, hid), rep),     # b1
                  pl.BlockSpec((hid, 2 * ncls), rep)],
        out_specs=(pl.BlockSpec((tm, ncls), row),
                   pl.BlockSpec((tm, ncls), row)),
        out_shape=(jax.ShapeDtypeStruct((n, ncls), jnp.bfloat16),
                   jax.ShapeDtypeStruct((n, ncls), jnp.float32)),
        compiler_params=cparams,
        cost_estimate=pl.CostEstimate(
            flops=2 * n * n * hid + 2 * n * hid * 2 * ncls, transcendentals=0,
            bytes_accessed=2 * n * n + 4 * n * (2 * hid + 2 * ncls)),
    )(adj_counts, inv_deg, p_agg, p_self, b1, w2)

    # ---- stage 3: h2 = mean-agg + self + b2;  log_softmax -----------------------
    out = pl.pallas_call(
        _sage2_kernel,
        grid=grid,
        in_specs=[pl.BlockSpec((tm, n), row),
                  pl.BlockSpec((tm, 1), row),
                  pl.BlockSpec((n, ncls), rep),    # full h1@W2l (resident)
                  pl.BlockSpec((tm, ncls), row),
                  pl.BlockSpec((1, ncls), rep)],
        out_specs=pl.BlockSpec((tm, ncls), row),
        out_shape=jax.ShapeDtypeStruct((n, ncls), jnp.float32),
        compiler_params=cparams,
        cost_estimate=pl.CostEstimate(
            flops=2 * n * n * ncls, transcendentals=n * ncls,
            bytes_accessed=2 * n * n + 4 * n * 3 * ncls),
    )(adj_counts, inv_deg, q_agg, q_self, b2)

    return out


# ------------------------------ params / reference ----------------------------

def init_params(key, num_features, num_classes, hidden=16):
    ks = jax.random.split(key, 4)

    def glorot(k, fan_in, fan_out):
        lim = (6.0 / (fan_in + fan_out)) ** 0.5
        return jax.random.uniform(k, (fan_in, fan_out), jnp.float32, -lim, lim)

    w1l = glorot(ks[0], num_features, hidden)    # lin_l of conv1 (applied to agg)
    w1r = glorot(ks[1], num_features, hidden)    # lin_r of conv1 (applied to self)
    b1 = jnp.zeros((1, hidden), jnp.float32)
    w2l = glorot(ks[2], hidden, num_classes)
    w2r = glorot(ks[3], hidden, num_classes)
    b2 = jnp.zeros((1, num_classes), jnp.float32)
    return (w1l, w1r, b1, w2l, w2r, b2)


def graphsage_reference(x, edge_index, params):
    """Pure-JAX f32 reference (eval-mode semantics of the PyTorch module)."""
    w1l, w1r, b1, w2l, w2r, b2 = params
    n = x.shape[0]
    src, dst = edge_index[0], edge_index[1]
    adj = jnp.zeros((n, n), jnp.float32).at[dst, src].add(1.0)
    adjn = adj / jnp.maximum(jnp.sum(adj, axis=1, keepdims=True), 1.0)
    h1 = jax.nn.relu(adjn @ (x @ w1l) + x @ w1r + b1)
    h2 = adjn @ (h1 @ w2l) + h1 @ w2r + b2
    return jax.nn.log_softmax(h2, axis=1)


# ------------------------------ demo -------------------------------------------

if __name__ == "__main__":
    key = jax.random.PRNGKey(0)
    k_x, k_src, k_dst, k_p = jax.random.split(key, 4)

    N, F_IN, C, E = 1024, 64, 8, 4096       # nodes, num_features, num_classes, edges

    x = jax.random.normal(k_x, (N, F_IN), jnp.float32)
    src = jax.random.randint(k_src, (E,), 0, N, jnp.int32)
    dst = jax.random.randint(k_dst, (E,), 0, N, jnp.int32)
    edge_index = jnp.stack([src, dst], axis=0)

    params = init_params(k_p, F_IN, C)

    adj_counts, inv_deg = build_graph(edge_index, N)
    out = jax.jit(graphsage_forward)(x, adj_counts, inv_deg, params)
    out = jax.block_until_ready(out)

    assert out.shape == (N, C), out.shape
    # rows of a log_softmax exponentiate-sum to 1
    assert bool(jnp.all(jnp.abs(jnp.sum(jnp.exp(out), axis=1) - 1.0) < 1e-3))
    # loose check vs the pure-JAX f32 reference (kernel streams a bf16 adjacency)
    ref = graphsage_reference(x, edge_index, params)
    max_err = float(jnp.max(jnp.abs(out - ref)))
    assert max_err < 0.25, max_err
    print("KERNEL_OK")
</pallas_src>

<mosaic_0001>
module attributes {stable_mosaic.version = 11 : i64} {
  func.func @_proj1_kernel(%arg0: i32, %arg1: memref<512x64xf32, #tpu.memory_space<vmem>>, %arg2: memref<64x32xf32, #tpu.memory_space<vmem>>, %arg3: memref<512x16xbf16, #tpu.memory_space<vmem>>, %arg4: memref<512x16xf32, #tpu.memory_space<vmem>>) attributes {dimension_semantics = [#tpu.dimension_semantics<parallel>], iteration_bounds = array<i64: 2>, scalar_prefetch = 0 : i64, scratch_operands = 0 : i64, tpu.core_type = #tpu.core_type<tc>, window_params = [{transform_indices = @transform_0, window_bounds = array<i64: 512, 64>}, {pipeline_mode = #tpu.pipeline_mode<synchronous>, transform_indices = @transform_1, window_bounds = array<i64: 64, 32>}, {transform_indices = @transform_2, window_bounds = array<i64: 512, 16>}, {transform_indices = @transform_3, window_bounds = array<i64: 512, 16>}]} {
    %c0 = arith.constant 0 : index
    %c0_0 = arith.constant 0 : index
    %0 = vector.load %arg1[%c0, %c0_0] : memref<512x64xf32, #tpu.memory_space<vmem>>, vector<512x64xf32>
    %c0_1 = arith.constant 0 : index
    %c0_2 = arith.constant 0 : index
    %1 = vector.load %arg2[%c0_1, %c0_2] : memref<64x32xf32, #tpu.memory_space<vmem>>, vector<64x32xf32>
    %cst = arith.constant dense<0.000000e+00> : vector<512x32xf32>
    %2 = tpu.matmul %0, %1, %cst {dimension_numbers = #tpu.dot_dimension_numbers<[1], [0], [0], [1], [0, 0, 1, 1], [], []>} : vector<512x64xf32>, vector<64x32xf32>, vector<512x32xf32> -> vector<512x32xf32>
    %3 = vector.extract_strided_slice %2 {offsets = [0, 0], sizes = [512, 16], strides = [1, 1]} : vector<512x32xf32> to vector<512x16xf32>
    %4 = arith.truncf %3 : vector<512x16xf32> to vector<512x16xbf16>
    %c0_3 = arith.constant 0 : index
    %c0_4 = arith.constant 0 : index
    %5 = vector.load %arg3[%c0_3, %c0_4] : memref<512x16xbf16, #tpu.memory_space<vmem>>, vector<512x16xbf16>
    tpu.vector_store %arg3[%c0_3, %c0_4], %4 {strides = array<i32>} : memref<512x16xbf16, #tpu.memory_space<vmem>>, vector<512x16xbf16>,
    %6 = vector.extract_strided_slice %2 {offsets = [0, 16], sizes = [512, 16], strides = [1, 1]} : vector<512x32xf32> to vector<512x16xf32>
    %c0_5 = arith.constant 0 : index
    %c0_6 = arith.constant 0 : index
    %7 = vector.load %arg4[%c0_5, %c0_6] : memref<512x16xf32, #tpu.memory_space<vmem>>, vector<512x16xf32>
    tpu.vector_store %arg4[%c0_5, %c0_6], %6 {strides = array<i32>} : memref<512x16xf32, #tpu.memory_space<vmem>>, vector<512x16xf32>,
    return
  }
  func.func @transform_0(%arg0: i32) -> (i32, i32) {
    %c0_i32 = arith.constant 0 : i32
    %c0_i32_0 = arith.constant 0 : i32
    return %arg0, %c0_i32 : i32, i32
  }
  func.func @transform_1(%arg0: i32) -> (i32, i32) {
    %c0_i32 = arith.constant 0 : i32
    %c0_i32_0 = arith.constant 0 : i32
    %c0_i32_1 = arith.constant 0 : i32
    return %c0_i32, %c0_i32_0 : i32, i32
  }
  func.func @transform_2(%arg0: i32) -> (i32, i32) {
    %c0_i32 = arith.constant 0 : i32
    %c0_i32_0 = arith.constant 0 : i32
    return %arg0, %c0_i32 : i32, i32
  }
  func.func @transform_3(%arg0: i32) -> (i32, i32) {
    %c0_i32 = arith.constant 0 : i32
    %c0_i32_0 = arith.constant 0 : i32
    return %arg0, %c0_i32 : i32, i32
  }
}

module attributes {stable_mosaic.version = 11 : i64} {
  func.func @_sage1_kernel(%arg0: i32, %arg1: memref<512x1024xbf16, #tpu.memory_space<vmem>>, %arg2: memref<512x1xf32, #tpu.memory_space<vmem>>, %arg3: memref<1024x16xbf16, #tpu.memory_space<vmem>>, %arg4: memref<512x16xf32, #tpu.memory_space<vmem>>, %arg5: memref<1x16xf32, #tpu.memory_space<vmem>>, %arg6: memref<16x16xf32, #tpu.memory_space<vmem>>, %arg7: memref<512x8xbf16, #tpu.memory_space<vmem>>, %arg8: memref<512x8xf32, #tpu.memory_space<vmem>>) attributes {dimension_semantics = [#tpu.dimension_semantics<parallel>], iteration_bounds = array<i64: 2>, scalar_prefetch = 0 : i64, scratch_operands = 0 : i64, tpu.core_type = #tpu.core_type<tc>, window_params = [{transform_indices = @transform_0, window_bounds = array<i64: 512, 1024>}, {transform_indices = @transform_1, window_bounds = array<i64: 512, 1>}, {pipeline_mode = #tpu.pipeline_mode<synchronous>, transform_indices = @transform_2, window_bounds = array<i64: 1024, 16>}, {transform_indices = @transform_3, window_bounds = array<i64: 512, 16>}, {pipeline_mode = #tpu.pipeline_mode<synchronous>, transform_indices = @transform_4, window_bounds = array<i64: 1, 16>}, {pipeline_mode = #tpu.pipeline_mode<synchronous>, transform_indices = @transform_5, window_bounds = array<i64: 16, 16>}, {transform_indices = @transform_6, window_bounds = array<i64: 512, 8>}, {transform_indices = @transform_7, window_bounds = array<i64: 512, 8>}]} {
    %c0 = arith.constant 0 : index
    %c0_0 = arith.constant 0 : index
    %0 = vector.load %arg1[%c0, %c0_0] : memref<512x1024xbf16, #tpu.memory_space<vmem>>, vector<512x1024xbf16>
    %c0_1 = arith.constant 0 : index
    %c0_2 = arith.constant 0 : index
    %1 = vector.load %arg3[%c0_1, %c0_2] : memref<1024x16xbf16, #tpu.memory_space<vmem>>, vector<1024x16xbf16>
    %cst = arith.constant dense<0.000000e+00> : vector<512x16xf32>
    %2 = tpu.matmul %0, %1, %cst {dimension_numbers = #tpu.dot_dimension_numbers<[1], [0], [0], [1], [0, 0, 1, 1], [], []>} : vector<512x1024xbf16>, vector<1024x16xbf16>, vector<512x16xf32> -> vector<512x16xf32>
    %c0_3 = arith.constant 0 : index
    %c0_4 = arith.constant 0 : index
    %3 = vector.load %arg2[%c0_3, %c0_4] : memref<512x1xf32, #tpu.memory_space<vmem>>, vector<512x1xf32>
    %4 = vector.broadcast %3 : vector<512x1xf32> to vector<512x16xf32>
    %5 = arith.mulf %2, %4 : vector<512x16xf32>
    %c0_5 = arith.constant 0 : index
    %c0_6 = arith.constant 0 : index
    %6 = vector.load %arg4[%c0_5, %c0_6] : memref<512x16xf32, #tpu.memory_space<vmem>>, vector<512x16xf32>
    %7 = arith.addf %5, %6 : vector<512x16xf32>
    %c0_7 = arith.constant 0 : index
    %c0_8 = arith.constant 0 : index
    %8 = vector.load %arg5[%c0_7, %c0_8] : memref<1x16xf32, #tpu.memory_space<vmem>>, vector<1x16xf32>
    %9 = vector.broadcast %8 : vector<1x16xf32> to vector<512x16xf32>
    %10 = arith.addf %7, %9 : vector<512x16xf32>
    %cst_9 = arith.constant 0.000000e+00 : f32
    %11 = vector.broadcast %cst_9 : f32 to vector<512x16xf32>
    %12 = arith.maximumf %10, %11 : vector<512x16xf32>
    %c0_10 = arith.constant 0 : index
    %c0_11 = arith.constant 0 : index
    %13 = vector.load %arg6[%c0_10, %c0_11] : memref<16x16xf32, #tpu.memory_space<vmem>>, vector<16x16xf32>
    %cst_12 = arith.constant dense<0.000000e+00> : vector<512x16xf32>
    %14 = tpu.matmul %12, %13, %cst_12 {dimension_numbers = #tpu.dot_dimension_numbers<[1], [0], [0], [1], [0, 0, 1, 1], [], []>} : vector<512x16xf32>, vector<16x16xf32>, vector<512x16xf32> -> vector<512x16xf32>
    %15 = vector.extract_strided_slice %14 {offsets = [0, 0], sizes = [512, 8], strides = [1, 1]} : vector<512x16xf32> to vector<512x8xf32>
    %16 = arith.truncf %15 : vector<512x8xf32> to vector<512x8xbf16>
    %c0_13 = arith.constant 0 : index
    %c0_14 = arith.constant 0 : index
    %17 = vector.load %arg7[%c0_13, %c0_14] : memref<512x8xbf16, #tpu.memory_space<vmem>>, vector<512x8xbf16>
    tpu.vector_store %arg7[%c0_13, %c0_14], %16 {strides = array<i32>} : memref<512x8xbf16, #tpu.memory_space<vmem>>, vector<512x8xbf16>,
    %18 = vector.extract_strided_slice %14 {offsets = [0, 8], sizes = [512, 8], strides = [1, 1]} : vector<512x16xf32> to vector<512x8xf32>
    %c0_15 = arith.constant 0 : index
    %c0_16 = arith.constant 0 : index
    %19 = vector.load %arg8[%c0_15, %c0_16] : memref<512x8xf32, #tpu.memory_space<vmem>>, vector<512x8xf32>
    tpu.vector_store %arg8[%c0_15, %c0_16], %18 {strides = array<i32>} : memref<512x8xf32, #tpu.memory_space<vmem>>, vector<512x8xf32>,
    return
  }
  func.func @transform_0(%arg0: i32) -> (i32, i32) {
    %c0_i32 = arith.constant 0 : i32
    %c0_i32_0 = arith.constant 0 : i32
    return %arg0, %c0_i32 : i32, i32
  }
  func.func @transform_1(%arg0: i32) -> (i32, i32) {
    %c0_i32 = arith.constant 0 : i32
    %c0_i32_0 = arith.constant 0 : i32
    return %arg0, %c0_i32 : i32, i32
  }
  func.func @transform_2(%arg0: i32) -> (i32, i32) {
    %c0_i32 = arith.constant 0 : i32
    %c0_i32_0 = arith.constant 0 : i32
    %c0_i32_1 = arith.constant 0 : i32
    return %c0_i32, %c0_i32_0 : i32, i32
  }
  func.func @transform_3(%arg0: i32) -> (i32, i32) {
    %c0_i32 = arith.constant 0 : i32
    %c0_i32_0 = arith.constant 0 : i32
    return %arg0, %c0_i32 : i32, i32
  }
  func.func @transform_4(%arg0: i32) -> (i32, i32) {
    %c0_i32 = arith.constant 0 : i32
    %c0_i32_0 = arith.constant 0 : i32
    %c0_i32_1 = arith.constant 0 : i32
    return %c0_i32, %c0_i32_0 : i32, i32
  }
  func.func @transform_5(%arg0: i32) -> (i32, i32) {
    %c0_i32 = arith.constant 0 : i32
    %c0_i32_0 = arith.constant 0 : i32
    %c0_i32_1 = arith.constant 0 : i32
    return %c0_i32, %c0_i32_0 : i32, i32
  }
  func.func @transform_6(%arg0: i32) -> (i32, i32) {
    %c0_i32 = arith.constant 0 : i32
    %c0_i32_0 = arith.constant 0 : i32
    return %arg0, %c0_i32 : i32, i32
  }
  func.func @transform_7(%arg0: i32) -> (i32, i32) {
    %c0_i32 = arith.constant 0 : i32
    %c0_i32_0 = arith.constant 0 : i32
    return %arg0, %c0_i32 : i32, i32
  }
}

module attributes {stable_mosaic.version = 11 : i64} {
  func.func @_sage2_kernel(%arg0: i32, %arg1: memref<512x1024xbf16, #tpu.memory_space<vmem>>, %arg2: memref<512x1xf32, #tpu.memory_space<vmem>>, %arg3: memref<1024x8xbf16, #tpu.memory_space<vmem>>, %arg4: memref<512x8xf32, #tpu.memory_space<vmem>>, %arg5: memref<1x8xf32, #tpu.memory_space<vmem>>, %arg6: memref<512x8xf32, #tpu.memory_space<vmem>>) attributes {dimension_semantics = [#tpu.dimension_semantics<parallel>], iteration_bounds = array<i64: 2>, scalar_prefetch = 0 : i64, scratch_operands = 0 : i64, tpu.core_type = #tpu.core_type<tc>, window_params = [{transform_indices = @transform_0, window_bounds = array<i64: 512, 1024>}, {transform_indices = @transform_1, window_bounds = array<i64: 512, 1>}, {pipeline_mode = #tpu.pipeline_mode<synchronous>, transform_indices = @transform_2, window_bounds = array<i64: 1024, 8>}, {transform_indices = @transform_3, window_bounds = array<i64: 512, 8>}, {pipeline_mode = #tpu.pipeline_mode<synchronous>, transform_indices = @transform_4, window_bounds = array<i64: 1, 8>}, {transform_indices = @transform_5, window_bounds = array<i64: 512, 8>}]} {
    %c0 = arith.constant 0 : index
    %c0_0 = arith.constant 0 : index
    %0 = vector.load %arg1[%c0, %c0_0] : memref<512x1024xbf16, #tpu.memory_space<vmem>>, vector<512x1024xbf16>
    %c0_1 = arith.constant 0 : index
    %c0_2 = arith.constant 0 : index
    %1 = vector.load %arg3[%c0_1, %c0_2] : memref<1024x8xbf16, #tpu.memory_space<vmem>>, vector<1024x8xbf16>
    %cst = arith.constant dense<0.000000e+00> : vector<512x8xf32>
    %2 = tpu.matmul %0, %1, %cst {dimension_numbers = #tpu.dot_dimension_numbers<[1], [0], [0], [1], [0, 0, 1, 1], [], []>} : vector<512x1024xbf16>, vector<1024x8xbf16>, vector<512x8xf32> -> vector<512x8xf32>
    %c0_3 = arith.constant 0 : index
    %c0_4 = arith.constant 0 : index
    %3 = vector.load %arg2[%c0_3, %c0_4] : memref<512x1xf32, #tpu.memory_space<vmem>>, vector<512x1xf32>
    %4 = vector.broadcast %3 : vector<512x1xf32> to vector<512x8xf32>
    %5 = arith.mulf %2, %4 : vector<512x8xf32>
    %c0_5 = arith.constant 0 : index
    %c0_6 = arith.constant 0 : index
    %6 = vector.load %arg4[%c0_5, %c0_6] : memref<512x8xf32, #tpu.memory_space<vmem>>, vector<512x8xf32>
    %7 = arith.addf %5, %6 : vector<512x8xf32>
    %c0_7 = arith.constant 0 : index
    %c0_8 = arith.constant 0 : index
    %8 = vector.load %arg5[%c0_7, %c0_8] : memref<1x8xf32, #tpu.memory_space<vmem>>, vector<1x8xf32>
    %9 = vector.broadcast %8 : vector<1x8xf32> to vector<512x8xf32>
    %10 = arith.addf %7, %9 : vector<512x8xf32>
    %cst_9 = arith.constant dense<0xFF800000> : vector<512xf32>
    %11 = vector.multi_reduction <maximumf>, %10, %cst_9 [1] : vector<512x8xf32> to vector<512xf32>
    %12 = vector.shape_cast %11 : vector<512xf32> to vector<512x1xf32>
    %13 = vector.broadcast %12 : vector<512x1xf32> to vector<512x8xf32>
    %14 = arith.subf %10, %13 : vector<512x8xf32>
    %15 = math.exp %14 : vector<512x8xf32>
    %cst_10 = arith.constant dense<0.000000e+00> : vector<512xf32>
    %16 = vector.multi_reduction <add>, %15, %cst_10 [1] : vector<512x8xf32> to vector<512xf32>
    %17 = vector.shape_cast %16 : vector<512xf32> to vector<512x1xf32>
    %18 = math.log %17 : vector<512x1xf32>
    %19 = vector.broadcast %18 : vector<512x1xf32> to vector<512x8xf32>
    %20 = arith.subf %14, %19 : vector<512x8xf32>
    %c0_11 = arith.constant 0 : index
    %c0_12 = arith.constant 0 : index
    %21 = vector.load %arg6[%c0_11, %c0_12] : memref<512x8xf32, #tpu.memory_space<vmem>>, vector<512x8xf32>
    tpu.vector_store %arg6[%c0_11, %c0_12], %20 {strides = array<i32>} : memref<512x8xf32, #tpu.memory_space<vmem>>, vector<512x8xf32>,
    return
  }
  func.func @transform_0(%arg0: i32) -> (i32, i32) {
    %c0_i32 = arith.constant 0 : i32
    %c0_i32_0 = arith.constant 0 : i32
    return %arg0, %c0_i32 : i32, i32
  }
  func.func @transform_1(%arg0: i32) -> (i32, i32) {
    %c0_i32 = arith.constant 0 : i32
    %c0_i32_0 = arith.constant 0 : i32
    return %arg0, %c0_i32 : i32, i32
  }
  func.func @transform_2(%arg0: i32) -> (i32, i32) {
    %c0_i32 = arith.constant 0 : i32
    %c0_i32_0 = arith.constant 0 : i32
    %c0_i32_1 = arith.constant 0 : i32
    return %c0_i32, %c0_i32_0 : i32, i32
  }
  func.func @transform_3(%arg0: i32) -> (i32, i32) {
    %c0_i32 = arith.constant 0 : i32
    %c0_i32_0 = arith.constant 0 : i32
    return %arg0, %c0_i32 : i32, i32
  }
  func.func @transform_4(%arg0: i32) -> (i32, i32) {
    %c0_i32 = arith.constant 0 : i32
    %c0_i32_0 = arith.constant 0 : i32
    %c0_i32_1 = arith.constant 0 : i32
    return %c0_i32, %c0_i32_0 : i32, i32
  }
  func.func @transform_5(%arg0: i32) -> (i32, i32) {
    %c0_i32 = arith.constant 0 : i32
    %c0_i32_0 = arith.constant 0 : i32
    return %arg0, %c0_i32 : i32, i32
  }
}

</mosaic_0001>

<llo_original>
// kernel: graphsage_forward.3
$region0: #{graphsage_forward.3}
  #allocation0 [shape = 'u32[]', space=smem, size = 0x4, offset = 0x4, fixed_abs, tag = 'smem constant byte address 0x4 - core index']
  #allocation1 [shape = 'u32[144,128]{1,0:T(1,128)}', space=vmem, size = 0x12000, scoped, tag = 'internal scratch']
  %s0 = inlined_call_operand.vmem [shape: f32[1024,64], index: 0, kind: input, shape index: {}]
  %s1 = inlined_call_operand.vmem [shape: f32[64,32], index: 1, kind: input, shape index: {}]
  %s2 = inlined_call_operand.vmem [shape: bf16[1024,16], index: 2, kind: output, shape index: {0}]
  %s3 = inlined_call_operand.vmem [shape: f32[1024,16], index: 3, kind: output, shape index: {1}]
  %4 = xla_tuple %s2, %s3
  %s5 = sld [smem:[#allocation0]]
  $region49: #{graphsage_forward.3} parent=0
    _
  %s7 = ssub.s32 1, %s5
  %s8 = scalar_select 0, %s7, %s5
  loop: start=0, step=1, limit=4
  $region2: #{graphsage_forward.3} parent=0 // loop_pre_header
    _
  $region3: #{graphsage_forward.3} parent=0 // loop_header
    %s10 = sphi 0, %s14
    %p11 = scmp.ge.s32.totalorder %s10, 4
    %s20 = sphi 0, %s22
    %s23 = sphi 0, %s20
    %s24 = sphi 0, %s23
    %s40 = sphi 0, %s24
    %s44 = sphi 0, %s44
    %s46 = sphi 0, %s44
    %s47 = sphi 0, %s46
    %s61 = sphi 0, %s47
    %s67 = sphi 0, %s69
    %s70 = sphi 0, %s67
    %s71 = sphi 0, %s70
    %s87 = sphi 0, %s71
    %s93 = sphi 0, %s95
    %s96 = sphi 0, %s93
    %s97 = sphi 0, %s96
    %s113 = sphi 0, %s97
  $region4: #{graphsage_forward.3} parent=0 // loop_header_branch
    %13 = sbr.rel (%p11) target = $region8
  $region5: #{graphsage_forward.3} parent=0 // loop_body
    %s15 = ssub.s32 %s10, 1
    %s16 = ssub.s32 %s10, 2
    %s17 = sadd.s32 %s10, 1
    %s18 = ssub.s32 %s10, %s17
    %p19 = scmp.eq.s32.totalorder %s18, 0
    %s21 = sadd.s32 %s20, 1
    %s22 = scalar_select %p19, %s20, %s21
    %p25 = pneg %p19
    %p26 = scmp.eq.s32.totalorder %s10, 1
    %p27 = por %p25, %p26
    %p28 = scmp.ne.s32.totalorder %s20, %s23
    %p29 = scmp.eq.s32.totalorder %s10, 0
    %p30 = por %p28, %p29
    %p31 = scmp.ne.s32.totalorder %s20, %s23
    %p32 = scmp.eq.s32.totalorder %s15, 1
    %p33 = por %p31, %p32
    %p34 = scmp.ne.s32.totalorder %s23, %s24
    %p35 = scmp.eq.s32.totalorder %s15, 0
    %p36 = por %p34, %p35
    %p37 = scmp.ne.s32.totalorder %s23, %s24
    %p38 = scmp.eq.s32.totalorder %s16, 1
    %p39 = por %p37, %p38
    %p41 = scmp.ne.s32.totalorder %s24, %s40
    %p42 = scmp.eq.s32.totalorder %s16, 0
    %p43 = por %p41, %p42
    %s45 = sadd.s32 %s44, 1
    %p48 = scmp.eq.s32.totalorder %s10, 1
    %p49 = scmp.ne.s32.totalorder %s44, %s46
    %p50 = scmp.eq.s32.totalorder %s10, 0
    %p51 = por %p49, %p50
    %p52 = scmp.ne.s32.totalorder %s44, %s46
    %p53 = scmp.eq.s32.totalorder %s15, 1
    %p54 = por %p52, %p53
    %p55 = scmp.ne.s32.totalorder %s46, %s47
    %p56 = scmp.eq.s32.totalorder %s15, 0
    %p57 = por %p55, %p56
    %p58 = scmp.ne.s32.totalorder %s46, %s47
    %p59 = scmp.eq.s32.totalorder %s16, 1
    %p60 = por %p58, %p59
    %p62 = scmp.ne.s32.totalorder %s47, %s61
    %p63 = scmp.eq.s32.totalorder %s16, 0
    %p64 = por %p62, %p63
    %s65 = ssub.s32 %s10, %s17
    %p66 = scmp.eq.s32.totalorder %s65, 0
    %s68 = sadd.s32 %s67, 1
    %s69 = scalar_select %p66, %s67, %s68
    %p72 = pneg %p66
    %p73 = scmp.eq.s32.totalorder %s10, 1
    %p74 = por %p72, %p73
    %p75 = scmp.ne.s32.totalorder %s67, %s70
    %p76 = scmp.eq.s32.totalorder %s10, 0
    %p77 = por %p75, %p76
    %p78 = scmp.ne.s32.totalorder %s67, %s70
    %p79 = scmp.eq.s32.totalorder %s15, 1
    %p80 = por %p78, %p79
    %p81 = scmp.ne.s32.totalorder %s70, %s71
    %p82 = scmp.eq.s32.totalorder %s15, 0
    %p83 = por %p81, %p82
    %p84 = scmp.ne.s32.totalorder %s70, %s71
    %p85 = scmp.eq.s32.totalorder %s16, 1
    %p86 = por %p84, %p85
    %p88 = scmp.ne.s32.totalorder %s71, %s87
    %p89 = scmp.eq.s32.totalorder %s16, 0
    %p90 = por %p88, %p89
    %s91 = ssub.s32 %s10, %s17
    %p92 = scmp.eq.s32.totalorder %s91, 0
    %s94 = sadd.s32 %s93, 1
    %s95 = scalar_select %p92, %s93, %s94
    %p98 = pneg %p92
    %p99 = scmp.eq.s32.totalorder %s10, 1
    %p100 = por %p98, %p99
    %p101 = scmp.ne.s32.totalorder %s93, %s96
    %p102 = scmp.eq.s32.totalorder %s10, 0
    %p103 = por %p101, %p102
    %p104 = scmp.ne.s32.totalorder %s93, %s96
    %p105 = scmp.eq.s32.totalorder %s15, 1
    %p106 = por %p104, %p105
    %p107 = scmp.ne.s32.totalorder %s96, %s97
    %p108 = scmp.eq.s32.totalorder %s15, 0
    %p109 = por %p107, %p108
    %p110 = scmp.ne.s32.totalorder %s96, %s97
    %p111 = scmp.eq.s32.totalorder %s16, 1
    %p112 = por %p110, %p111
    %p114 = scmp.ne.s32.totalorder %s97, %s113
    %p115 = scmp.eq.s32.totalorder %s16, 0
    %p116 = por %p114, %p115
    %p117 = scmp.le.s32.totalorder 1, %s10
    %p118 = scmp.lt.s32.totalorder %s10, 3
    %p119 = pnand %p117, %p118
    %p120 = pneg %p119
    // Predicated region
    $region9: #{graphsage_forward.3} parent=5 // pred_check
      _
    $region10: #{graphsage_forward.3} parent=5 // pred_check_branch
      %122 = sbr.rel (%p119) target = $region12
    $region11: #{graphsage_forward.3} parent=5 // pred_region
      %s123 = ssub.s32 %s10, 1
      // Predicated region
      $region13: #{graphsage_forward.3} parent=11 // pred_check
        %p124 = pneg %p57
      $region14: #{graphsage_forward.3} parent=11 // pred_check_branch
        %126 = sbr.rel (%p124) target = $region16
      $region15: #{graphsage_forward.3} parent=11 // pred_region
        _
      $region16: #{graphsage_forward.3} parent=11 // pred_fallthru
        _
    $region12: #{graphsage_forward.3} parent=5 // pred_fallthru
      _
    %p127 = scmp.lt.s32.totalorder %s10, 2
    // Predicated region
    $region17: #{graphsage_forward.3} parent=5 // pred_check
      %p128 = pneg %p127
    $region18: #{graphsage_forward.3} parent=5 // pred_check_branch
      %130 = sbr.rel (%p128) target = $region20
    $region19: #{graphsage_forward.3} parent=5 // pred_region
      // Predicated region
      $region21: #{graphsage_forward.3} parent=19 // pred_check
        %p131 = pneg %p30
      $region22: #{graphsage_forward.3} parent=19 // pred_check_branch
        %133 = sbr.rel (%p131) target = $region24
      $region23: #{graphsage_forward.3} parent=19 // pred_region
        %s134 = smul.u32 64, %s10
        %p135 = scmp.lt.s32.totalorder %s134, 127
        %s136 = scalar_select %p135, %s134, 127
        %s137 = smul.addr %s136, 8
        %s138 = scalar_lea.vmem %s0, %s137
        %s139 = smul.u32 64, %s10
      $region24: #{graphsage_forward.3} parent=19 // pred_fallthru
        _
    $region20: #{graphsage_forward.3} parent=5 // pred_fallthru
      _
    %p140 = scmp.le.s32.totalorder 1, %s10
    %p141 = scmp.lt.s32.totalorder %s10, 3
    %p142 = pnand %p140, %p141
    %p143 = pneg %p142
    // Predicated region
    $region25: #{graphsage_forward.3} parent=5 // pred_check
      _
    $region26: #{graphsage_forward.3} parent=5 // pred_check_branch
      %145 = sbr.rel (%p142) target = $region28
    $region27: #{graphsage_forward.3} parent=5 // pred_region
      %s146 = ssub.s32 %s10, 1
      %s147 = smul.u32 64, %s15
      %p148 = scmp.lt.s32.totalorder %s147, 127
      %s149 = scalar_select %p148, %s147, 127
      %s150 = smul.addr %s149, 8
      %s151 = scalar_lea.vmem %s0, %s150
      %p152 = pneg %p36
      %p153 = pneg %p33
      %p154 = pneg %p57
      %p155 = pneg %p54
      %p156 = pneg %p83
      %p157 = pneg %p80
      %s158 = smul.u32 64, %s15
      %p159 = scmp.lt.s32.totalorder %s158, 127
      %s160 = scalar_select %p159, %s158, 127
      %s161 = smul.addr %s160, 4
      %s162 = scalar_lea.vmem %s2, %s161
      %p163 = pneg %p109
      %p164 = pneg %p106
      %s165 = smul.u32 64, %s15
      %p166 = scmp.lt.s32.totalorder %s165, 127
      %s167 = scalar_select %p166, %s165, 127
      %s168 = smul.addr %s167, 8
      %s169 = scalar_lea.vmem %s3, %s168
      %s170 = smul.u32 64, %s15
      %p171 = scmp.lt.s32.totalorder %s170, 127
      %s172 = scalar_select %p171, %s170, 127
      %s173 = smul.addr %s172, 8
      %s174 = scalar_lea.vmem %s0, %s173
      %s175 = smul.u32 64, %s15
      %s176 = smul.u32 64, %s15
      %p177 = scmp.lt.s32.totalorder %s176, 127
      %s178 = scalar_select %p177, %s176, 127
      %s179 = smul.addr %s178, 4
      %s180 = scalar_lea.vmem %s2, %s179
      %s181 = smul.u32 64, %s15
      %s182 = smul.u32 64, %s15
      %p183 = scmp.lt.s32.totalorder %s182, 127
      %s184 = scalar_select %p183, %s182, 127
      %s185 = smul.addr %s184, 8
      %s186 = scalar_lea.vmem %s3, %s185
      %s187 = smul.u32 64, %s15
      %v188 = vld [vmem:[%s174] sm:$0xff]
      %v189 = vld [vmem:[%s174 + $0x8] sm:$0xff]
      %v190 = vld [vmem:[%s174 + $0x10] sm:$0xff]
      %v191 = vld [vmem:[%s174 + $0x18] sm:$0xff]
      %v192 = vld [vmem:[%s174 + $0x20] sm:$0xff]
      %v193 = vld [vmem:[%s174 + $0x28] sm:$0xff]
      %v194 = vld [vmem:[%s174 + $0x30] sm:$0xff]
      %v195 = vld [vmem:[%s174 + $0x38] sm:$0xff]
      %v196 = vld [vmem:[%s174 + $0x40] sm:$0xff]
      %v197 = vld [vmem:[%s174 + $0x48] sm:$0xff]
      %v198 = vld [vmem:[%s174 + $0x50] sm:$0xff]
      %v199 = vld [vmem:[%s174 + $0x58] sm:$0xff]
      %v200 = vld [vmem:[%s174 + $0x60] sm:$0xff]
      %v201 = vld [vmem:[%s174 + $0x68] sm:$0xff]
      %v202 = vld [vmem:[%s174 + $0x70] sm:$0xff]
      %v203 = vld [vmem:[%s174 + $0x78] sm:$0xff]
      %v204 = vld [vmem:[%s174 + $0x80] sm:$0xff]
      %v205 = vld [vmem:[%s174 + $0x88] sm:$0xff]
      %v206 = vld [vmem:[%s174 + $0x90] sm:$0xff]
      %v207 = vld [vmem:[%s174 + $0x98] sm:$0xff]
      %v208 = vld [vmem:[%s174 + $0xa0] sm:$0xff]
      %v209 = vld [vmem:[%s174 + $0xa8] sm:$0xff]
      %v210 = vld [vmem:[%s174 + $0xb0] sm:$0xff]
      %v211 = vld [vmem:[%s174 + $0xb8] sm:$0xff]
      %v212 = vld [vmem:[%s174 + $0xc0] sm:$0xff]
      %v213 = vld [vmem:[%s174 + $0xc8] sm:$0xff]
      %v214 = vld [vmem:[%s174 + $0xd0] sm:$0xff]
      %v215 = vld [vmem:[%s174 + $0xd8] sm:$0xff]
      %v216 = vld [vmem:[%s174 + $0xe0] sm:$0xff]
      %v217 = vld [vmem:[%s174 + $0xe8] sm:$0xff]
      %v218 = vld [vmem:[%s174 + $0xf0] sm:$0xff]
      %v219 = vld [vmem:[%s174 + $0xf8] sm:$0xff]
      %v220 = vld [vmem:[%s174 + $0x100] sm:$0xff]
      %v221 = vld [vmem:[%s174 + $0x108] sm:$0xff]
      %v222 = vld [vmem:[%s174 + $0x110] sm:$0xff]
      %v223 = vld [vmem:[%s174 + $0x118] sm:$0xff]
      %v224 = vld [vmem:[%s174 + $0x120] sm:$0xff]
      %v225 = vld [vmem:[%s174 + $0x128] sm:$0xff]
      %v226 = vld [vmem:[%s174 + $0x130] sm:$0xff]
      %v227 = vld [vmem:[%s174 + $0x138] sm:$0xff]
      %v228 = vld [vmem:[%s174 + $0x140] sm:$0xff]
      %v229 = vld [vmem:[%s174 + $0x148] sm:$0xff]
      %v230 = vld [vmem:[%s174 + $0x150] sm:$0xff]
      %v231 = vld [vmem:[%s174 + $0x158] sm:$0xff]
      %v232 = vld [vmem:[%s174 + $0x160] sm:$0xff]
      %v233 = vld [vmem:[%s174 + $0x168] sm:$0xff]
      %v234 = vld [vmem:[%s174 + $0x170] sm:$0xff]
      %v235 = vld [vmem:[%s174 + $0x178] sm:$0xff]
      %v236 = vld [vmem:[%s174 + $0x180] sm:$0xff]
      %v237 = vld [vmem:[%s174 + $0x188] sm:$0xff]
      %v238 = vld [vmem:[%s174 + $0x190] sm:$0xff]
      %v239 = vld [vmem:[%s174 + $0x198] sm:$0xff]
      %v240 = vld [vmem:[%s174 + $0x1a0] sm:$0xff]
      %v241 = vld [vmem:[%s174 + $0x1a8] sm:$0xff]
      %v242 = vld [vmem:[%s174 + $0x1b0] sm:$0xff]
      %v243 = vld [vmem:[%s174 + $0x1b8] sm:$0xff]
      %v244 = vld [vmem:[%s174 + $0x1c0] sm:$0xff]
      %v245 = vld [vmem:[%s174 + $0x1c8] sm:$0xff]
      %v246 = vld [vmem:[%s174 + $0x1d0] sm:$0xff]
      %v247 = vld [vmem:[%s174 + $0x1d8] sm:$0xff]
      %v248 = vld [vmem:[%s174 + $0x1e0] sm:$0xff]
      %v249 = vld [vmem:[%s174 + $0x1e8] sm:$0xff]
      %v250 = vld [vmem:[%s174 + $0x1f0] sm:$0xff]
      %v251 = vld [vmem:[%s174 + $0x1f8] sm:$0xff]
      %v252 = vld [vmem:[%s1] sm:$0xff]
      %v253 = vld [vmem:[%s1 + $0x8] sm:$0xff]
      %v254 = vld [vmem:[%s1 + $0x10] sm:$0xff]
      %v255 = vld [vmem:[%s1 + $0x18] sm:$0xff]
      %v256 = vld [vmem:[%s1 + $0x20] sm:$0xff]
      %v257 = vld [vmem:[%s1 + $0x28] sm:$0xff]
      %v258 = vld [vmem:[%s1 + $0x30] sm:$0xff]
      %v259 = vld [vmem:[%s1 + $0x38] sm:$0xff]
      %vm260 = vcmask 523264
      %v262 = vsel %vm260, %v188, 0
      %v265 = vsel %vm260, %v189, 0
      %v268 = vsel %vm260, %v190, 0
      %v271 = vsel %vm260, %v191, 0
      %v274 = vsel %vm260, %v192, 0
      %v277 = vsel %vm260, %v193, 0
      %v280 = vsel %vm260, %v194, 0
      %v283 = vsel %vm260, %v195, 0
      %v286 = vsel %vm260, %v196, 0
      %v289 = vsel %vm260, %v197, 0
      %v292 = vsel %vm260, %v198, 0
      %v295 = vsel %vm260, %v199, 0
      %v298 = vsel %vm260, %v200, 0
      %v301 = vsel %vm260, %v201, 0
      %v304 = vsel %vm260, %v202, 0
      %v307 = vsel %vm260, %v203, 0
      %v310 = vsel %vm260, %v204, 0
      %v313 = vsel %vm260, %v205, 0
      %v316 = vsel %vm260, %v206, 0
      %v319 = vsel %vm260, %v207, 0
      %v322 = vsel %vm260, %v208, 0
      %v325 = vsel %vm260, %v209, 0
      %v328 = vsel %vm260, %v210, 0
      %v331 = vsel %vm260, %v211, 0
      %v334 = vsel %vm260, %v212, 0
      %v337 = vsel %vm260, %v213, 0
      %v340 = vsel %vm260, %v214, 0
      %v343 = vsel %vm260, %v215, 0
      %v346 = vsel %vm260, %v216, 0
      %v349 = vsel %vm260, %v217, 0
      %v352 = vsel %vm260, %v218, 0
      %v355 = vsel %vm260, %v219, 0
      %v358 = vsel %vm260, %v220, 0
      %v361 = vsel %vm260, %v221, 0
      %v364 = vsel %vm260, %v222, 0
      %v367 = vsel %vm260, %v223, 0
      %v370 = vsel %vm260, %v224, 0
      %v373 = vsel %vm260, %v225, 0
      %v376 = vsel %vm260, %v226, 0
      %v379 = vsel %vm260, %v227, 0
      %v382 = vsel %vm260, %v228, 0
      %v385 = vsel %vm260, %v229, 0
      %v388 = vsel %vm260, %v230, 0
      %v391 = vsel %vm260, %v231, 0
      %v394 = vsel %vm260, %v232, 0
      %v397 = vsel %vm260, %v233, 0
      %v400 = vsel %vm260, %v234, 0
      %v403 = vsel %vm260, %v235, 0
      %v406 = vsel %vm260, %v236, 0
      %v409 = vsel %vm260, %v237, 0
      %v412 = vsel %vm260, %v238, 0
      %v415 = vsel %vm260, %v239, 0
      %v418 = vsel %vm260, %v240, 0
      %v421 = vsel %vm260, %v241, 0
      %v424 = vsel %vm260, %v242, 0
      %v427 = vsel %vm260, %v243, 0
      %v430 = vsel %vm260, %v244, 0
      %v433 = vsel %vm260, %v245, 0
      %v436 = vsel %vm260, %v246, 0
      %v439 = vsel %vm260, %v247, 0
      %v442 = vsel %vm260, %v248, 0
      %v445 = vsel %vm260, %v249, 0
      %v448 = vsel %vm260, %v250, 0
      %v451 = vsel %vm260, %v251, 0
      %453 = vmatprep.subr.mxu0 0.0
      %454 = vmatpush1.msra.mxu0 %v252
      %455 = vmatprep.subr.mxu0 0.0
      %456 = vmatpush1.msra.mxu0 %v253
      %457 = vmatprep.subr.mxu0 0.0
      %458 = vmatpush1.msra.mxu0 %v254
      %459 = vmatprep.subr.mxu0 0.0
      %460 = vmatpush1.msra.mxu0 %v255
      %461 = vmatprep.subr.mxu0 0.0
      %462 = vmatpush1.msra.mxu0 %v256
      %463 = vmatprep.subr.mxu0 0.0
      %464 = vmatpush1.msra.mxu0 %v257
      %465 = vmatprep.subr.mxu0 0.0
      %466 = vmatpush1.msra.mxu0 %v258
      %467 = vmatprep.subr.mxu0 0.0
      %468 = vmatpush1.msra.mxu0 %v259
      %469 = vmatprep.subr.mxu0 0.0
      %470 = vmatpush1.msra.mxu0 0.0
      %471 = vmatprep.subr.mxu0 0.0
      %472 = vmatpush1.msra.mxu0 0.0
      %473 = vmatprep.subr.mxu0 0.0
      %474 = vmatpush1.msra.mxu0 0.0
      %475 = vmatprep.subr.mxu0 0.0
      %476 = vmatpush1.msra.mxu0 0.0
      %477 = vmatprep.subr.mxu0 0.0
      %478 = vmatpush1.msra.mxu0 0.0
      %479 = vmatprep.subr.mxu0 0.0
      %480 = vmatpush1.msra.mxu0 0.0
      %481 = vmatprep.subr.mxu0 0.0
      %482 = vmatpush1.msra.mxu0 0.0
      %483 = vmatprep.subr.mxu0 0.0
      %484 = vmatpush1.msra.mxu0 0.0
      %485 = vmatprep.subr.mxu0 0.0
      %486 = vmatpush1.msra.mxu0 0.0
      %487 = vmatprep.subr.mxu0 0.0
      %488 = vmatpush1.msra.mxu0 0.0
      %489 = vmatprep.subr.mxu0 0.0
      %490 = vmatpush1.msra.mxu0 0.0
      %491 = vmatprep.subr.mxu0 0.0
      %492 = vmatpush1.msra.mxu0 0.0
      %493 = vmatprep.subr.mxu0 0.0
      %494 = vmatpush1.msra.mxu0 0.0
      %495 = vmatprep.subr.mxu0 0.0
      %496 = vmatpush1.msra.mxu0 0.0
      %497 = vmatprep.subr.mxu0 0.0
      %498 = vmatpush1.msra.mxu0 0.0
      %499 = vmatprep.subr.mxu0 0.0
      %500 = vmatpush1.msra.mxu0 0.0
      %501 = vmatprep.subr.mxu0 0.0
      %502 = vmatpush1.msra.mxu0 0.0
      %503 = vmatprep.subr.mxu0 0.0
      %504 = vmatpush1.msra.mxu0 0.0
      %505 = vmatprep.subr.mxu0 0.0
      %506 = vmatpush1.msra.mxu0 0.0
      %507 = vmatprep.subr.mxu0 0.0
      %508 = vmatpush1.msra.mxu0 0.0
      %509 = vmatprep.subr.mxu0 0.0
      %510 = vmatpush1.msra.mxu0 0.0
      %511 = vmatprep.subr.mxu0 0.0
      %512 = vmatpush1.msra.mxu0 0.0
      %513 = vmatprep.subr.mxu0 0.0
      %514 = vmatpush1.msra.mxu0 0.0
      %515 = vmatprep.subr.mxu0 0.0
      %516 = vmatpush1.msra.mxu0 0.0
      %517 = vmatprep.mubr.f32.mxu0 0.0
      %518 = vmatmul.mubr.f32.gmra.mrb[0].mxu0 %v262
      %v519 = vpop.f32.mrb[0].mxu0
      %v520 = vadd.f32 0.0, %v519
      %v521 = vpop.f32.mrb[0].mxu0
      %522 = vmatprep.mubr.f32.mxu0 0.0
      %523 = vmatmul.mubr.f32.gmra.mrb[0].mxu0 %v265
      %v524 = vpop.f32.mrb[0].mxu0
      %v525 = vadd.f32 0.0, %v524
      %v526 = vpop.f32.mrb[0].mxu0
      %527 = vmatprep.mubr.f32.mxu0 0.0
      %528 = vmatmul.mubr.f32.gmra.mrb[0].mxu0 %v268
      %v529 = vpop.f32.mrb[0].mxu0
      %v530 = vadd.f32 0.0, %v529
      %v531 = vpop.f32.mrb[0].mxu0
      %532 = vmatprep.mubr.f32.mxu0 0.0
      %533 = vmatmul.mubr.f32.gmra.mrb[0].mxu0 %v271
      %v534 = vpop.f32.mrb[0].mxu0
      %v535 = vadd.f32 0.0, %v534
      %v536 = vpop.f32.mrb[0].mxu0
      %537 = vmatprep.mubr.f32.mxu0 0.0
      %538 = vmatmul.mubr.f32.gmra.mrb[0].mxu0 %v274
      %v539 = vpop.f32.mrb[0].mxu0
      %v540 = vadd.f32 0.0, %v539
      %v541 = vpop.f32.mrb[0].mxu0
      %542 = vmatprep.mubr.f32.mxu0 0.0
      %543 = vmatmul.mubr.f32.gmra.mrb[0].mxu0 %v277
      %v544 = vpop.f32.mrb[0].mxu0
      %v545 = vadd.f32 0.0, %v544
      %v546 = vpop.f32.mrb[0].mxu0
      %547 = vmatprep.mubr.f32.mxu0 0.0
      %548 = vmatmul.mubr.f32.gmra.mrb[0].mxu0 %v280
      %v549 = vpop.f32.mrb[0].mxu0
      %v550 = vadd.f32 0.0, %v549
      %v551 = vpop.f32.mrb[0].mxu0
      %552 = vmatprep.mubr.f32.mxu0 0.0
      %553 = vmatmul.mubr.f32.gmra.mrb[0].mxu0 %v283
      %v554 = vpop.f32.mrb[0].mxu0
      %v555 = vadd.f32 0.0, %v554
      %v556 = vpop.f32.mrb[0].mxu0
      %557 = vmatprep.mubr.f32.mxu0 0.0
      %558 = vmatmul.mubr.f32.gmra.mrb[0].mxu0 %v286
      %v559 = vpop.f32.mrb[0].mxu0
      %v560 = vadd.f32 0.0, %v559
      %v561 = vpop.f32.mrb[0].mxu0
      %562 = vmatprep.mubr.f32.mxu0 0.0
      %563 = vmatmul.mubr.f32.gmra.mrb[0].mxu0 %v289
      %v564 = vpop.f32.mrb[0].mxu0
      %v565 = vadd.f32 0.0, %v564
      %v566 = vpop.f32.mrb[0].mxu0
      %567 = vmatprep.mubr.f32.mxu0 0.0
      %568 = vmatmul.mubr.f32.gmra.mrb[0].mxu0 %v292
      %v569 = vpop.f32.mrb[0].mxu0
      %v570 = vadd.f32 0.0, %v569
      %v571 = vpop.f32.mrb[0].mxu0
      %572 = vmatprep.mubr.f32.mxu0 0.0
      %573 = vmatmul.mubr.f32.gmra.mrb[0].mxu0 %v295
      %v574 = vpop.f32.mrb[0].mxu0
      %v575 = vadd.f32 0.0, %v574
      %v576 = vpop.f32.mrb[0].mxu0
      %577 = vmatprep.mubr.f32.mxu0 0.0
      %578 = vmatmul.mubr.f32.gmra.mrb[0].mxu0 %v298
      %v579 = vpop.f32.mrb[0].mxu0
      %v580 = vadd.f32 0.0, %v579
      %v581 = vpop.f32.mrb[0].mxu0
      %582 = vmatprep.mubr.f32.mxu0 0.0
      %583 = vmatmul.mubr.f32.gmra.mrb[0].mxu0 %v301
      %v584 = vpop.f32.mrb[0].mxu0
      %v585 = vadd.f32 0.0, %v584
      %v586 = vpop.f32.mrb[0].mxu0
      %587 = vmatprep.mubr.f32.mxu0 0.0
      %588 = vmatmul.mubr.f32.gmra.mrb[0].mxu0 %v304
      %v589 = vpop.f32.mrb[0].mxu0
      %v590 = vadd.f32 0.0, %v589
      %v591 = vpop.f32.mrb[0].mxu0
      %592 = vmatprep.mubr.f32.mxu0 0.0
      %593 = vmatmul.mubr.f32.gmra.mrb[0].mxu0 %v307
      %v594 = vpop.f32.mrb[0].mxu0
      %v595 = vadd.f32 0.0, %v594
      %v596 = vpop.f32.mrb[0].mxu0
      %597 = vmatprep.mubr.f32.mxu0 0.0
      %598 = vmatmul.mubr.f32.gmra.mrb[0].mxu0 %v310
      %v599 = vpop.f32.mrb[0].mxu0
      %v600 = vadd.f32 0.0, %v599
      %v601 = vpop.f32.mrb[0].mxu0
      %602 = vmatprep.mubr.f32.mxu0 0.0
      %603 = vmatmul.mubr.f32.gmra.mrb[0].mxu0 %v313
      %v604 = vpop.f32.mrb[0].mxu0
      %v605 = vadd.f32 0.0, %v604
      %v606 = vpop.f32.mrb[0].mxu0
      %607 = vmatprep.mubr.f32.mxu0 0.0
      %608 = vmatmul.mubr.f32.gmra.mrb[0].mxu0 %v316
      %v609 = vpop.f32.mrb[0].mxu0
      %v610 = vadd.f32 0.0, %v609
      %v611 = vpop.f32.mrb[0].mxu0
      %612 = vmatprep.mubr.f32.mxu0 0.0
      %613 = vmatmul.mubr.f32.gmra.mrb[0].mxu0 %v319
      %v614 = vpop.f32.mrb[0].mxu0
      %v615 = vadd.f32 0.0, %v614
      %v616 = vpop.f32.mrb[0].mxu0
      %617 = vmatprep.mubr.f32.mxu0 0.0
      %618 = vmatmul.mubr.f32.gmra.mrb[0].mxu0 %v322
      %v619 = vpop.f32.mrb[0].mxu0
      %v620 = vadd.f32 0.0, %v619
      %v621 = vpop.f32.mrb[0].mxu0
      %622 = vmatprep.mubr.f32.mxu0 0.0
      %623 = vmatmul.mubr.f32.gmra.mrb[0].mxu0 %v325
      %v624 = vpop.f32.mrb[0].mxu0
      %v625 = vadd.f32 0.0, %v624
      %v626 = vpop.f32.mrb[0].mxu0
      %627 = vmatprep.mubr.f32.mxu0 0.0
      %628 = vmatmul.mubr.f32.gmra.mrb[0].mxu0 %v328
      %v629 = vpop.f32.mrb[0].mxu0
      %v630 = vadd.f32 0.0, %v629
      %v631 = vpop.f32.mrb[0].mxu0
      %632 = vmatprep.mubr.f32.mxu0 0.0
      %633 = vmatmul.mubr.f32.gmra.mrb[0].mxu0 %v331
      %v634 = vpop.f32.mrb[0].mxu0
      %v635 = vadd.f32 0.0, %v634
      %v636 = vpop.f32.mrb[0].mxu0
      %637 = vmatprep.mubr.f32.mxu0 0.0
      %638 = vmatmul.mubr.f32.gmra.mrb[0].mxu0 %v334
      %v639 = vpop.f32.mrb[0].mxu0
      %v640 = vadd.f32 0.0, %v639
      %v641 = vpop.f32.mrb[0].mxu0
      %642 = vmatprep.mubr.f32.mxu0 0.0
      %643 = vmatmul.mubr.f32.gmra.mrb[0].mxu0 %v337
      %v644 = vpop.f32.mrb[0].mxu0
      %v645 = vadd.f32 0.0, %v644
      %v646 = vpop.f32.mrb[0].mxu0
      %647 = vmatprep.mubr.f32.mxu0 0.0
      %648 = vmatmul.mubr.f32.gmra.mrb[0].mxu0 %v340
      %v649 = vpop.f32.mrb[0].mxu0
      %v650 = vadd.f32 0.0, %v649
      %v651 = vpop.f32.mrb[0].mxu0
      %652 = vmatprep.mubr.f32.mxu0 0.0
      %653 = vmatmul.mubr.f32.gmra.mrb[0].mxu0 %v343
      %v654 = vpop.f32.mrb[0].mxu0
      %v655 = vadd.f32 0.0, %v654
      %v656 = vpop.f32.mrb[0].mxu0
      %657 = vmatprep.mubr.f32.mxu0 0.0
      %658 = vmatmul.mubr.f32.gmra.mrb[0].mxu0 %v346
      %v659 = vpop.f32.mrb[0].mxu0
      %v660 = vadd.f32 0.0, %v659
      %v661 = vpop.f32.mrb[0].mxu0
      %662 = vmatprep.mubr.f32.mxu0 0.0
      %663 = vmatmul.mubr.f32.gmra.mrb[0].mxu0 %v349
      %v664 = vpop.f32.mrb[0].mxu0
      %v665 = vadd.f32 0.0, %v664
      %v666 = vpop.f32.mrb[0].mxu0
      %667 = vmatprep.mubr.f32.mxu0 0.0
      %668 = vmatmul.mubr.f32.gmra.mrb[0].mxu0 %v352
      %v669 = vpop.f32.mrb[0].mxu0
      %v670 = vadd.f32 0.0, %v669
      %v671 = vpop.f32.mrb[0].mxu0
      %672 = vmatprep.mubr.f32.mxu0 0.0
      %673 = vmatmul.mubr.f32.gmra.mrb[0].mxu0 %v355
      %v674 = vpop.f32.mrb[0].mxu0
      %v675 = vadd.f32 0.0, %v674
      %v676 = vpop.f32.mrb[0].mxu0
      %677 = vmatprep.mubr.f32.mxu0 0.0
      %678 = vmatmul.mubr.f32.gmra.mrb[0].mxu0 %v358
      %v679 = vpop.f32.mrb[0].mxu0
      %v680 = vadd.f32 0.0, %v679
      %v681 = vpop.f32.mrb[0].mxu0
      %682 = vmatprep.mubr.f32.mxu0 0.0
      %683 = vmatmul.mubr.f32.gmra.mrb[0].mxu0 %v361
      %v684 = vpop.f32.mrb[0].mxu0
      %v685 = vadd.f32 0.0, %v684
      %v686 = vpop.f32.mrb[0].mxu0
      %687 = vmatprep.mubr.f32.mxu0 0.0
      %688 = vmatmul.mubr.f32.gmra.mrb[0].mxu0 %v364
      %v689 = vpop.f32.mrb[0].mxu0
      %v690 = vadd.f32 0.0, %v689
      %v691 = vpop.f32.mrb[0].mxu0
      %692 = vmatprep.mubr.f32.mxu0 0.0
      %693 = vmatmul.mubr.f32.gmra.mrb[0].mxu0 %v367
      %v694 = vpop.f32.mrb[0].mxu0
      %v695 = vadd.f32 0.0, %v694
      %v696 = vpop.f32.mrb[0].mxu0
      %697 = vmatprep.mubr.f32.mxu0 0.0
      %698 = vmatmul.mubr.f32.gmra.mrb[0].mxu0 %v370
      %v699 = vpop.f32.mrb[0].mxu0
      %v700 = vadd.f32 0.0, %v699
      %v701 = vpop.f32.mrb[0].mxu0
      %702 = vmatprep.mubr.f32.mxu0 0.0
      %703 = vmatmul.mubr.f32.gmra.mrb[0].mxu0 %v373
      %v704 = vpop.f32.mrb[0].mxu0
      %v705 = vadd.f32 0.0, %v704
      %v706 = vpop.f32.mrb[0].mxu0
      %707 = vmatprep.mubr.f32.mxu0 0.0
      %708 = vmatmul.mubr.f32.gmra.mrb[0].mxu0 %v376
      %v709 = vpop.f32.mrb[0].mxu0
      %v710 = vadd.f32 0.0, %v709
      %v711 = vpop.f32.mrb[0].mxu0
      %712 = vmatprep.mubr.f32.mxu0 0.0
      %713 = vmatmul.mubr.f32.gmra.mrb[0].mxu0 %v379
      %v714 = vpop.f32.mrb[0].mxu0
      %v715 = vadd.f32 0.0, %v714
      %v716 = vpop.f32.mrb[0].mxu0
      %717 = vmatprep.mubr.f32.mxu0 0.0
      %718 = vmatmul.mubr.f32.gmra.mrb[0].mxu0 %v382
      %v719 = vpop.f32.mrb[0].mxu0
      %v720 = vadd.f32 0.0, %v719
      %v721 = vpop.f32.mrb[0].mxu0
      %722 = vmatprep.mubr.f32.mxu0 0.0
      %723 = vmatmul.mubr.f32.gmra.mrb[0].mxu0 %v385
      %v724 = vpop.f32.mrb[0].mxu0
      %v725 = vadd.f32 0.0, %v724
      %v726 = vpop.f32.mrb[0].mxu0
      %727 = vmatprep.mubr.f32.mxu0 0.0
      %728 = vmatmul.mubr.f32.gmra.mrb[0].mxu0 %v388
      %v729 = vpop.f32.mrb[0].mxu0
      %v730 = vadd.f32 0.0, %v729
      %v731 = vpop.f32.mrb[0].mxu0
      %732 = vmatprep.mubr.f32.mxu0 0.0
      %733 = vmatmul.mubr.f32.gmra.mrb[0].mxu0 %v391
      %v734 = vpop.f32.mrb[0].mxu0
      %v735 = vadd.f32 0.0, %v734
      %v736 = vpop.f32.mrb[0].mxu0
      %737 = vmatprep.mubr.f32.mxu0 0.0
      %738 = vmatmul.mubr.f32.gmra.mrb[0].mxu0 %v394
      %v739 = vpop.f32.mrb[0].mxu0
      %v740 = vadd.f32 0.0, %v739
      %v741 = vpop.f32.mrb[0].mxu0
      %742 = vmatprep.mubr.f32.mxu0 0.0
      %743 = vmatmul.mubr.f32.gmra.mrb[0].mxu0 %v397
      %v744 = vpop.f32.mrb[0].mxu0
      %v745 = vadd.f32 0.0, %v744
      %v746 = vpop.f32.mrb[0].mxu0
      %747 = vmatprep.mubr.f32.mxu0 0.0
      %748 = vmatmul.mubr.f32.gmra.mrb[0].mxu0 %v400
      %v749 = vpop.f32.mrb[0].mxu0
      %v750 = vadd.f32 0.0, %v749
      %v751 = vpop.f32.mrb[0].mxu0
      %752 = vmatprep.mubr.f32.mxu0 0.0
      %753 = vmatmul.mubr.f32.gmra.mrb[0].mxu0 %v403
      %v754 = vpop.f32.mrb[0].mxu0
      %v755 = vadd.f32 0.0, %v754
      %v756 = vpop.f32.mrb[0].mxu0
      %757 = vmatprep.mubr.f32.mxu0 0.0
      %758 = vmatmul.mubr.f32.gmra.mrb[0].mxu0 %v406
      %v759 = vpop.f32.mrb[0].mxu0
      %v760 = vadd.f32 0.0, %v759
      %v761 = vpop.f32.mrb[0].mxu0
      %762 = vmatprep.mubr.f32.mxu0 0.0
      %763 = vmatmul.mubr.f32.gmra.mrb[0].mxu0 %v409
      %v764 = vpop.f32.mrb[0].mxu0
      %v765 = vadd.f32 0.0, %v764
      %v766 = vpop.f32.mrb[0].mxu0
      %767 = vmatprep.mubr.f32.mxu0 0.0
      %768 = vmatmul.mubr.f32.gmra.mrb[0].mxu0 %v412
      %v769 = vpop.f32.mrb[0].mxu0
      %v770 = vadd.f32 0.0, %v769
      %v771 = vpop.f32.mrb[0].mxu0
      %772 = vmatprep.mubr.f32.mxu0 0.0
      %773 = vmatmul.mubr.f32.gmra.mrb[0].mxu0 %v415
      %v774 = vpop.f32.mrb[0].mxu0
      %v775 = vadd.f32 0.0, %v774
      %v776 = vpop.f32.mrb[0].mxu0
      %777 = vmatprep.mubr.f32.mxu0 0.0
      %778 = vmatmul.mubr.f32.gmra.mrb[0].mxu0 %v418
      %v779 = vpop.f32.mrb[0].mxu0
      %v780 = vadd.f32 0.0, %v779
      %v781 = vpop.f32.mrb[0].mxu0
      %782 = vmatprep.mubr.f32.mxu0 0.0
      %783 = vmatmul.mubr.f32.gmra.mrb[0].mxu0 %v421
      %v784 = vpop.f32.mrb[0].mxu0
      %v785 = vadd.f32 0.0, %v784
      %v786 = vpop.f32.mrb[0].mxu0
      %787 = vmatprep.mubr.f32.mxu0 0.0
      %788 = vmatmul.mubr.f32.gmra.mrb[0].mxu0 %v424
      %v789 = vpop.f32.mrb[0].mxu0
      %v790 = vadd.f32 0.0, %v789
      %v791 = vpop.f32.mrb[0].mxu0
      %792 = vmatprep.mubr.f32.mxu0 0.0
      %793 = vmatmul.mubr.f32.gmra.mrb[0].mxu0 %v427
      %v794 = vpop.f32.mrb[0].mxu0
      %v795 = vadd.f32 0.0, %v794
      %v796 = vpop.f32.mrb[0].mxu0
      %797 = vmatprep.mubr.f32.mxu0 0.0
      %798 = vmatmul.mubr.f32.gmra.mrb[0].mxu0 %v430
      %v799 = vpop.f32.mrb[0].mxu0
      %v800 = vadd.f32 0.0, %v799
      %v801 = vpop.f32.mrb[0].mxu0
      %802 = vmatprep.mubr.f32.mxu0 0.0
      %803 = vmatmul.mubr.f32.gmra.mrb[0].mxu0 %v433
      %v804 = vpop.f32.mrb[0].mxu0
      %v805 = vadd.f32 0.0, %v804
      %v806 = vpop.f32.mrb[0].mxu0
      %807 = vmatprep.mubr.f32.mxu0 0.0
      %808 = vmatmul.mubr.f32.gmra.mrb[0].mxu0 %v436
      %v809 = vpop.f32.mrb[0].mxu0
      %v810 = vadd.f32 0.0, %v809
      %v811 = vpop.f32.mrb[0].mxu0
      %812 = vmatprep.mubr.f32.mxu0 0.0
      %813 = vmatmul.mubr.f32.gmra.mrb[0].mxu0 %v439
      %v814 = vpop.f32.mrb[0].mxu0
      %v815 = vadd.f32 0.0, %v814
      %v816 = vpop.f32.mrb[0].mxu0
      %817 = vmatprep.mubr.f32.mxu0 0.0
      %818 = vmatmul.mubr.f32.gmra.mrb[0].mxu0 %v442
      %v819 = vpop.f32.mrb[0].mxu0
      %v820 = vadd.f32 0.0, %v819
      %v821 = vpop.f32.mrb[0].mxu0
      %822 = vmatprep.mubr.f32.mxu0 0.0
      %823 = vmatmul.mubr.f32.gmra.mrb[0].mxu0 %v445
      %v824 = vpop.f32.mrb[0].mxu0
      %v825 = vadd.f32 0.0, %v824
      %v826 = vpop.f32.mrb[0].mxu0
      %827 = vmatprep.mubr.f32.mxu0 0.0
      %828 = vmatmul.mubr.f32.gmra.mrb[0].mxu0 %v448
      %v829 = vpop.f32.mrb[0].mxu0
      %v830 = vadd.f32 0.0, %v829
      %v831 = vpop.f32.mrb[0].mxu0
      %832 = vmatprep.mubr.f32.mxu0 0.0
      %833 = vmatmul.mubr.f32.gmra.mrb[0].mxu0 %v451
      %v834 = vpop.f32.mrb[0].mxu0
      %v835 = vadd.f32 0.0, %v834
      %v836 = vpop.f32.mrb[0].mxu0
      %837 = vdwg.mxu0
      %v838 = vpack.c.bf16 %v525, %v520
      %v839 = vpack.c.bf16 %v535, %v530
      %v840 = vpack.c.bf16 %v545, %v540
      %v841 = vpack.c.bf16 %v555, %v550
      %v842 = vpack.c.bf16 %v565, %v560
      %v843 = vpack.c.bf16 %v575, %v570
      %v844 = vpack.c.bf16 %v585, %v580
      %v845 = vpack.c.bf16 %v595, %v590
      %v846 = vpack.c.bf16 %v605, %v600
      %v847 = vpack.c.bf16 %v615, %v610
      %v848 = vpack.c.bf16 %v625, %v620
      %v849 = vpack.c.bf16 %v635, %v630
      %v850 = vpack.c.bf16 %v645, %v640
      %v851 = vpack.c.bf16 %v655, %v650
      %v852 = vpack.c.bf16 %v665, %v660
      %v853 = vpack.c.bf16 %v675, %v670
      %v854 = vpack.c.bf16 %v685, %v680
      %v855 = vpack.c.bf16 %v695, %v690
      %v856 = vpack.c.bf16 %v705, %v700
      %v857 = vpack.c.bf16 %v715, %v710
      %v858 = vpack.c.bf16 %v725, %v720
      %v859 = vpack.c.bf16 %v735, %v730
      %v860 = vpack.c.bf16 %v745, %v740
      %v861 = vpack.c.bf16 %v755, %v750
      %v862 = vpack.c.bf16 %v765, %v760
      %v863 = vpack.c.bf16 %v775, %v770
      %v864 = vpack.c.bf16 %v785, %v780
      %v865 = vpack.c.bf16 %v795, %v790
      %v866 = vpack.c.bf16 %v805, %v800
      %v867 = vpack.c.bf16 %v815, %v810
      %v868 = vpack.c.bf16 %v825, %v820
      %v869 = vpack.c.bf16 %v835, %v830
      %v902 = vunpack.c.l.b16 %v838
      %v903 = vunpack.c.h.b16 %v838
      %v904 = vunpack.c.l.b16 %v839
      %v905 = vunpack.c.h.b16 %v839
      %v906 = vunpack.c.l.b16 %v840
      %v907 = vunpack.c.h.b16 %v840
      %v908 = vunpack.c.l.b16 %v841
      %v909 = vunpack.c.h.b16 %v841
      %v910 = vunpack.c.l.b16 %v842
      %v911 = vunpack.c.h.b16 %v842
      %v912 = vunpack.c.l.b16 %v843
      %v913 = vunpack.c.h.b16 %v843
      %v914 = vunpack.c.l.b16 %v844
      %v915 = vunpack.c.h.b16 %v844
      %v916 = vunpack.c.l.b16 %v845
      %v917 = vunpack.c.h.b16 %v845
      %v918 = vunpack.c.l.b16 %v846
      %v919 = vunpack.c.h.b16 %v846
      %v920 = vunpack.c.l.b16 %v847
      %v921 = vunpack.c.h.b16 %v847
      %v922 = vunpack.c.l.b16 %v848
      %v923 = vunpack.c.h.b16 %v848
      %v924 = vunpack.c.l.b16 %v849
      %v925 = vunpack.c.h.b16 %v849
      %v926 = vunpack.c.l.b16 %v850
      %v927 = vunpack.c.h.b16 %v850
      %v928 = vunpack.c.l.b16 %v851
      %v929 = vunpack.c.h.b16 %v851
      %v930 = vunpack.c.l.b16 %v852
      %v931 = vunpack.c.h.b16 %v852
      %v932 = vunpack.c.l.b16 %v853
      %v933 = vunpack.c.h.b16 %v853
      %v934 = vunpack.c.l.b16 %v854
      %v935 = vunpack.c.h.b16 %v854
      %v936 = vunpack.c.l.b16 %v855
      %v937 = vunpack.c.h.b16 %v855
      %v938 = vunpack.c.l.b16 %v856
      %v939 = vunpack.c.h.b16 %v856
      %v940 = vunpack.c.l.b16 %v857
      %v941 = vunpack.c.h.b16 %v857
      %v942 = vunpack.c.l.b16 %v858
      %v943 = vunpack.c.h.b16 %v858
      %v944 = vunpack.c.l.b16 %v859
      %v945 = vunpack.c.h.b16 %v859
      %v946 = vunpack.c.l.b16 %v860
      %v947 = vunpack.c.h.b16 %v860
      %v948 = vunpack.c.l.b16 %v861
      %v949 = vunpack.c.h.b16 %v861
      %v950 = vunpack.c.l.b16 %v862
      %v951 = vunpack.c.h.b16 %v862
      %v952 = vunpack.c.l.b16 %v863
      %v953 = vunpack.c.h.b16 %v863
      %v954 = vunpack.c.l.b16 %v864
      %v955 = vunpack.c.h.b16 %v864
      %v956 = vunpack.c.l.b16 %v865
      %v957 = vunpack.c.h.b16 %v865
      %v958 = vunpack.c.l.b16 %v866
      %v959 = vunpack.c.h.b16 %v866
      %v960 = vunpack.c.l.b16 %v867
      %v961 = vunpack.c.h.b16 %v867
      %v962 = vunpack.c.l.b16 %v868
      %v963 = vunpack.c.h.b16 %v868
      %v964 = vunpack.c.l.b16 %v869
      %v965 = vunpack.c.h.b16 %v869
      %v966 = vpack.c.b16 %v902, %v902
      %v967 = vpack.c.b16 %v903, %v903
      %v968 = vpack.c.b16 %v904, %v904
      %v969 = vpack.c.b16 %v905, %v905
      %v970 = vpack.c.b16 %v906, %v906
      %v971 = vpack.c.b16 %v907, %v907
      %v972 = vpack.c.b16 %v908, %v908
      %v973 = vpack.c.b16 %v909, %v909
      %v974 = vpack.c.b16 %v910, %v910
      %v975 = vpack.c.b16 %v911, %v911
      %v976 = vpack.c.b16 %v912, %v912
      %v977 = vpack.c.b16 %v913, %v913
      %v978 = vpack.c.b16 %v914, %v914
      %v979 = vpack.c.b16 %v915, %v915
      %v980 = vpack.c.b16 %v916, %v916
      %v981 = vpack.c.b16 %v917, %v917
      %v982 = vpack.c.b16 %v918, %v918
      %v983 = vpack.c.b16 %v919, %v919
      %v984 = vpack.c.b16 %v920, %v920
      %v985 = vpack.c.b16 %v921, %v921
      %v986 = vpack.c.b16 %v922, %v922
      %v987 = vpack.c.b16 %v923, %v923
      %v988 = vpack.c.b16 %v924, %v924
      %v989 = vpack.c.b16 %v925, %v925
      %v990 = vpack.c.b16 %v926, %v926
      %v991 = vpack.c.b16 %v927, %v927
      %v992 = vpack.c.b16 %v928, %v928
      %v993 = vpack.c.b16 %v929, %v929
      %v994 = vpack.c.b16 %v930, %v930
      %v995 = vpack.c.b16 %v931, %v931
      %v996 = vpack.c.b16 %v932, %v932
      %v997 = vpack.c.b16 %v933, %v933
      %v998 = vpack.c.b16 %v934, %v934
      %v999 = vpack.c.b16 %v935, %v935
      %v1000 = vpack.c.b16 %v936, %v936
      %v1001 = vpack.c.b16 %v937, %v937
      %v1002 = vpack.c.b16 %v938, %v938
      %v1003 = vpack.c.b16 %v939, %v939
      %v1004 = vpack.c.b16 %v940, %v940
      %v1005 = vpack.c.b16 %v941, %v941
      %v1006 = vpack.c.b16 %v942, %v942
      %v1007 = vpack.c.b16 %v943, %v943
      %v1008 = vpack.c.b16 %v944, %v944
      %v1009 = vpack.c.b16 %v945, %v945
      %v1010 = vpack.c.b16 %v946, %v946
      %v1011 = vpack.c.b16 %v947, %v947
      %v1012 = vpack.c.b16 %v948, %v948
      %v1013 = vpack.c.b16 %v949, %v949
      %v1014 = vpack.c.b16 %v950, %v950
      %v1015 = vpack.c.b16 %v951, %v951
      %v1016 = vpack.c.b16 %v952, %v952
      %v1017 = vpack.c.b16 %v953, %v953
      %v1018 = vpack.c.b16 %v954, %v954
      %v1019 = vpack.c.b16 %v955, %v955
      %v1020 = vpack.c.b16 %v956, %v956
      %v1021 = vpack.c.b16 %v957, %v957
      %v1022 = vpack.c.b16 %v958, %v958
      %v1023 = vpack.c.b16 %v959, %v959
      %v1024 = vpack.c.b16 %v960, %v960
      %v1025 = vpack.c.b16 %v961, %v961
      %v1026 = vpack.c.b16 %v962, %v962
      %v1027 = vpack.c.b16 %v963, %v963
      %v1028 = vpack.c.b16 %v964, %v964
      %v1029 = vpack.c.b16 %v965, %v965
      %vm1094 = vcmask 125952
      %1095 = vst.msk [vmem:[%s180] sm:$0xf] %vm1094, %v966
      %1096 = vst.msk [vmem:[%s180 + $0x4] sm:$0xf] %vm1094, %v967
      %1097 = vst.msk [vmem:[%s180 + $0x8] sm:$0xf] %vm1094, %v968
      %1098 = vst.msk [vmem:[%s180 + $0xc] sm:$0xf] %vm1094, %v969
      %1099 = vst.msk [vmem:[%s180 + $0x10] sm:$0xf] %vm1094, %v970
      %1100 = vst.msk [vmem:[%s180 + $0x14] sm:$0xf] %vm1094, %v971
      %1101 = vst.msk [vmem:[%s180 + $0x18] sm:$0xf] %vm1094, %v972
      %1102 = vst.msk [vmem:[%s180 + $0x1c] sm:$0xf] %vm1094, %v973
      %1103 = vst.msk [vmem:[%s180 + $0x20] sm:$0xf] %vm1094, %v974
      %1104 = vst.msk [vmem:[%s180 + $0x24] sm:$0xf] %vm1094, %v975
      %1105 = vst.msk [vmem:[%s180 + $0x28] sm:$0xf] %vm1094, %v976
      %1106 = vst.msk [vmem:[%s180 + $0x2c] sm:$0xf] %vm1094, %v977
      %1107 = vst.msk [vmem:[%s180 + $0x30] sm:$0xf] %vm1094, %v978
      %1108 = vst.msk [vmem:[%s180 + $0x34] sm:$0xf] %vm1094, %v979
      %1109 = vst.msk [vmem:[%s180 + $0x38] sm:$0xf] %vm1094, %v980
      %1110 = vst.msk [vmem:[%s180 + $0x3c] sm:$0xf] %vm1094, %v981
      %1111 = vst.msk [vmem:[%s180 + $0x40] sm:$0xf] %vm1094, %v982
      %1112 = vst.msk [vmem:[%s180 + $0x44] sm:$0xf] %vm1094, %v983
      %1113 = vst.msk [vmem:[%s180 + $0x48] sm:$0xf] %vm1094, %v984
      %1114 = vst.msk [vmem:[%s180 + $0x4c] sm:$0xf] %vm1094, %v985
      %1115 = vst.msk [vmem:[%s180 + $0x50] sm:$0xf] %vm1094, %v986
      %1116 = vst.msk [vmem:[%s180 + $0x54] sm:$0xf] %vm1094, %v987
      %1117 = vst.msk [vmem:[%s180 + $0x58] sm:$0xf] %vm1094, %v988
      %1118 = vst.msk [vmem:[%s180 + $0x5c] sm:$0xf] %vm1094, %v989
      %1119 = vst.msk [vmem:[%s180 + $0x60] sm:$0xf] %vm1094, %v990
      %1120 = vst.msk [vmem:[%s180 + $0x64] sm:$0xf] %vm1094, %v991
      %1121 = vst.msk [vmem:[%s180 + $0x68] sm:$0xf] %vm1094, %v992
      %1122 = vst.msk [vmem:[%s180 + $0x6c] sm:$0xf] %vm1094, %v993
      %1123 = vst.msk [vmem:[%s180 + $0x70] sm:$0xf] %vm1094, %v994
      %1124 = vst.msk [vmem:[%s180 + $0x74] sm:$0xf] %vm1094, %v995
      %1125 = vst.msk [vmem:[%s180 + $0x78] sm:$0xf] %vm1094, %v996
      %1126 = vst.msk [vmem:[%s180 + $0x7c] sm:$0xf] %vm1094, %v997
      %1127 = vst.msk [vmem:[%s180 + $0x80] sm:$0xf] %vm1094, %v998
      %1128 = vst.msk [vmem:[%s180 + $0x84] sm:$0xf] %vm1094, %v999
      %1129 = vst.msk [vmem:[%s180 + $0x88] sm:$0xf] %vm1094, %v1000
      %1130 = vst.msk [vmem:[%s180 + $0x8c] sm:$0xf] %vm1094, %v1001
      %1131 = vst.msk [vmem:[%s180 + $0x90] sm:$0xf] %vm1094, %v1002
      %1132 = vst.msk [vmem:[%s180 + $0x94] sm:$0xf] %vm1094, %v1003
      %1133 = vst.msk [vmem:[%s180 + $0x98] sm:$0xf] %vm1094, %v1004
      %1134 = vst.msk [vmem:[%s180 + $0x9c] sm:$0xf] %vm1094, %v1005
      %1135 = vst.msk [vmem:[%s180 + $0xa0] sm:$0xf] %vm1094, %v1006
      %1136 = vst.msk [vmem:[%s180 + $0xa4] sm:$0xf] %vm1094, %v1007
      %1137 = vst.msk [vmem:[%s180 + $0xa8] sm:$0xf] %vm1094, %v1008
      %1138 = vst.msk [vmem:[%s180 + $0xac] sm:$0xf] %vm1094, %v1009
      %1139 = vst.msk [vmem:[%s180 + $0xb0] sm:$0xf] %vm1094, %v1010
      %1140 = vst.msk [vmem:[%s180 + $0xb4] sm:$0xf] %vm1094, %v1011
      %1141 = vst.msk [vmem:[%s180 + $0xb8] sm:$0xf] %vm1094, %v1012
      %1142 = vst.msk [vmem:[%s180 + $0xbc] sm:$0xf] %vm1094, %v1013
      %1143 = vst.msk [vmem:[%s180 + $0xc0] sm:$0xf] %vm1094, %v1014
      %1144 = vst.msk [vmem:[%s180 + $0xc4] sm:$0xf] %vm1094, %v1015
      %1145 = vst.msk [vmem:[%s180 + $0xc8] sm:$0xf] %vm1094, %v1016
      %1146 = vst.msk [vmem:[%s180 + $0xcc] sm:$0xf] %vm1094, %v1017
      %1147 = vst.msk [vmem:[%s180 + $0xd0] sm:$0xf] %vm1094, %v1018
      %1148 = vst.msk [vmem:[%s180 + $0xd4] sm:$0xf] %vm1094, %v1019
      %1149 = vst.msk [vmem:[%s180 + $0xd8] sm:$0xf] %vm1094, %v1020
      %1150 = vst.msk [vmem:[%s180 + $0xdc] sm:$0xf] %vm1094, %v1021
      %1151 = vst.msk [vmem:[%s180 + $0xe0] sm:$0xf] %vm1094, %v1022
      %1152 = vst.msk [vmem:[%s180 + $0xe4] sm:$0xf] %vm1094, %v1023
      %1153 = vst.msk [vmem:[%s180 + $0xe8] sm:$0xf] %vm1094, %v1024
      %1154 = vst.msk [vmem:[%s180 + $0xec] sm:$0xf] %vm1094, %v1025
      %1155 = vst.msk [vmem:[%s180 + $0xf0] sm:$0xf] %vm1094, %v1026
      %1156 = vst.msk [vmem:[%s180 + $0xf4] sm:$0xf] %vm1094, %v1027
      %1157 = vst.msk [vmem:[%s180 + $0xf8] sm:$0xf] %vm1094, %v1028
      %1158 = vst.msk [vmem:[%s180 + $0xfc] sm:$0xf] %vm1094, %v1029
      %1223 = vrot.lane.b32.xlu0 %v520, 112
      %v1224 = vpop.permute.xlu0 %1223
      %1225 = vrot.lane.b32.xlu0 %v525, 112
      %v1226 = vpop.permute.xlu0 %1225
      %1227 = vrot.lane.b32.xlu0 %v530, 112
      %v1228 = vpop.permute.xlu0 %1227
      %1229 = vrot.lane.b32.xlu0 %v535, 112
      %v1230 = vpop.permute.xlu0 %1229
      %1231 = vrot.lane.b32.xlu0 %v540, 112
      %v1232 = vpop.permute.xlu0 %1231
      %1233 = vrot.lane.b32.xlu0 %v545, 112
      %v1234 = vpop.permute.xlu0 %1233
      %1235 = vrot.lane.b32.xlu0 %v550, 112
      %v1236 = vpop.permute.xlu0 %1235
      %1237 = vrot.lane.b32.xlu0 %v555, 112
      %v1238 = vpop.permute.xlu0 %1237
      %1239 = vrot.lane.b32.xlu0 %v560, 112
      %v1240 = vpop.permute.xlu0 %1239
      %1241 = vrot.lane.b32.xlu0 %v565, 112
      %v1242 = vpop.permute.xlu0 %1241
      %1243 = vrot.lane.b32.xlu0 %v570, 112
      %v1244 = vpop.permute.xlu0 %1243
      %1245 = vrot.lane.b32.xlu0 %v575, 112
      %v1246 = vpop.permute.xlu0 %1245
      %1247 = vrot.lane.b32.xlu0 %v580, 112
      %v1248 = vpop.permute.xlu0 %1247
      %1249 = vrot.lane.b32.xlu0 %v585, 112
      %v1250 = vpop.permute.xlu0 %1249
      %1251 = vrot.lane.b32.xlu0 %v590, 112
      %v1252 = vpop.permute.xlu0 %1251
      %1253 = vrot.lane.b32.xlu0 %v595, 112
      %v1254 = vpop.permute.xlu0 %1253
      %1255 = vrot.lane.b32.xlu0 %v600, 112
      %v1256 = vpop.permute.xlu0 %1255
      %1257 = vrot.lane.b32.xlu0 %v605, 112
      %v1258 = vpop.permute.xlu0 %1257
      %1259 = vrot.lane.b32.xlu0 %v610, 112
      %v1260 = vpop.permute.xlu0 %1259
      %1261 = vrot.lane.b32.xlu0 %v615, 112
      %v1262 = vpop.permute.xlu0 %1261
      %1263 = vrot.lane.b32.xlu0 %v620, 112
      %v1264 = vpop.permute.xlu0 %1263
      %1265 = vrot.lane.b32.xlu0 %v625, 112
      %v1266 = vpop.permute.xlu0 %1265
      %1267 = vrot.lane.b32.xlu0 %v630, 112
      %v1268 = vpop.permute.xlu0 %1267
      %1269 = vrot.lane.b32.xlu0 %v635, 112
      %v1270 = vpop.permute.xlu0 %1269
      %1271 = vrot.lane.b32.xlu0 %v640, 112
      %v1272 = vpop.permute.xlu0 %1271
      %1273 = vrot.lane.b32.xlu0 %v645, 112
      %v1274 = vpop.permute.xlu0 %1273
      %1275 = vrot.lane.b32.xlu0 %v650, 112
      %v1276 = vpop.permute.xlu0 %1275
      %1277 = vrot.lane.b32.xlu0 %v655, 112
      %v1278 = vpop.permute.xlu0 %1277
      %1279 = vrot.lane.b32.xlu0 %v660, 112
      %v1280 = vpop.permute.xlu0 %1279
      %1281 = vrot.lane.b32.xlu0 %v665, 112
      %v1282 = vpop.permute.xlu0 %1281
      %1283 = vrot.lane.b32.xlu0 %v670, 112
      %v1284 = vpop.permute.xlu0 %1283
      %1285 = vrot.lane.b32.xlu0 %v675, 112
      %v1286 = vpop.permute.xlu0 %1285
      %1287 = vrot.lane.b32.xlu0 %v680, 112
      %v1288 = vpop.permute.xlu0 %1287
      %1289 = vrot.lane.b32.xlu0 %v685, 112
      %v1290 = vpop.permute.xlu0 %1289
      %1291 = vrot.lane.b32.xlu0 %v690, 112
      %v1292 = vpop.permute.xlu0 %1291
      %1293 = vrot.lane.b32.xlu0 %v695, 112
      %v1294 = vpop.permute.xlu0 %1293
      %1295 = vrot.lane.b32.xlu0 %v700, 112
      %v1296 = vpop.permute.xlu0 %1295
      %1297 = vrot.lane.b32.xlu0 %v705, 112
      %v1298 = vpop.permute.xlu0 %1297
      %1299 = vrot.lane.b32.xlu0 %v710, 112
      %v1300 = vpop.permute.xlu0 %1299
      %1301 = vrot.lane.b32.xlu0 %v715, 112
      %v1302 = vpop.permute.xlu0 %1301
      %1303 = vrot.lane.b32.xlu0 %v720, 112
      %v1304 = vpop.permute.xlu0 %1303
      %1305 = vrot.lane.b32.xlu0 %v725, 112
      %v1306 = vpop.permute.xlu0 %1305
      %1307 = vrot.lane.b32.xlu0 %v730, 112
      %v1308 = vpop.permute.xlu0 %1307
      %1309 = vrot.lane.b32.xlu0 %v735, 112
      %v1310 = vpop.permute.xlu0 %1309
      %1311 = vrot.lane.b32.xlu0 %v740, 112
      %v1312 = vpop.permute.xlu0 %1311
      %1313 = vrot.lane.b32.xlu0 %v745, 112
      %v1314 = vpop.permute.xlu0 %1313
      %1315 = vrot.lane.b32.xlu0 %v750, 112
      %v1316 = vpop.permute.xlu0 %1315
      %1317 = vrot.lane.b32.xlu0 %v755, 112
      %v1318 = vpop.permute.xlu0 %1317
      %1319 = vrot.lane.b32.xlu0 %v760, 112
      %v1320 = vpop.permute.xlu0 %1319
      %1321 = vrot.lane.b32.xlu0 %v765, 112
      %v1322 = vpop.permute.xlu0 %1321
      %1323 = vrot.lane.b32.xlu0 %v770, 112
      %v1324 = vpop.permute.xlu0 %1323
      %1325 = vrot.lane.b32.xlu0 %v775, 112
      %v1326 = vpop.permute.xlu0 %1325
      %1327 = vrot.lane.b32.xlu0 %v780, 112
      %v1328 = vpop.permute.xlu0 %1327
      %1329 = vrot.lane.b32.xlu0 %v785, 112
      %v1330 = vpop.permute.xlu0 %1329
      %1331 = vrot.lane.b32.xlu0 %v790, 112
      %v1332 = vpop.permute.xlu0 %1331
      %1333 = vrot.lane.b32.xlu0 %v795, 112
      %v1334 = vpop.permute.xlu0 %1333
      %1335 = vrot.lane.b32.xlu0 %v800, 112
      %v1336 = vpop.permute.xlu0 %1335
      %1337 = vrot.lane.b32.xlu0 %v805, 112
      %v1338 = vpop.permute.xlu0 %1337
      %1339 = vrot.lane.b32.xlu0 %v810, 112
      %v1340 = vpop.permute.xlu0 %1339
      %1341 = vrot.lane.b32.xlu0 %v815, 112
      %v1342 = vpop.permute.xlu0 %1341
      %1343 = vrot.lane.b32.xlu0 %v820, 112
      %v1344 = vpop.permute.xlu0 %1343
      %1345 = vrot.lane.b32.xlu0 %v825, 112
      %v1346 = vpop.permute.xlu0 %1345
      %1347 = vrot.lane.b32.xlu0 %v830, 112
      %v1348 = vpop.permute.xlu0 %1347
      %1349 = vrot.lane.b32.xlu0 %v835, 112
      %v1350 = vpop.permute.xlu0 %1349
      %vm1415 = vcmask 130048
      %1416 = vst.msk [vmem:[%s186] sm:$0xff] %vm1415, %v1224
      %1417 = vst.msk [vmem:[%s186 + $0x8] sm:$0xff] %vm1415, %v1226
      %1418 = vst.msk [vmem:[%s186 + $0x10] sm:$0xff] %vm1415, %v1228
      %1419 = vst.msk [vmem:[%s186 + $0x18] sm:$0xff] %vm1415, %v1230
      %1420 = vst.msk [vmem:[%s186 + $0x20] sm:$0xff] %vm1415, %v1232
      %1421 = vst.msk [vmem:[%s186 + $0x28] sm:$0xff] %vm1415, %v1234
      %1422 = vst.msk [vmem:[%s186 + $0x30] sm:$0xff] %vm1415, %v1236
      %1423 = vst.msk [vmem:[%s186 + $0x38] sm:$0xff] %vm1415, %v1238
      %1424 = vst.msk [vmem:[%s186 + $0x40] sm:$0xff] %vm1415, %v1240
      %1425 = vst.msk [vmem:[%s186 + $0x48] sm:$0xff] %vm1415, %v1242
      %1426 = vst.msk [vmem:[%s186 + $0x50] sm:$0xff] %vm1415, %v1244
      %1427 = vst.msk [vmem:[%s186 + $0x58] sm:$0xff] %vm1415, %v1246
      %1428 = vst.msk [vmem:[%s186 + $0x60] sm:$0xff] %vm1415, %v1248
      %1429 = vst.msk [vmem:[%s186 + $0x68] sm:$0xff] %vm1415, %v1250
      %1430 = vst.msk [vmem:[%s186 + $0x70] sm:$0xff] %vm1415, %v1252
      %1431 = vst.msk [vmem:[%s186 + $0x78] sm:$0xff] %vm1415, %v1254
      %1432 = vst.msk [vmem:[%s186 + $0x80] sm:$0xff] %vm1415, %v1256
      %1433 = vst.msk [vmem:[%s186 + $0x88] sm:$0xff] %vm1415, %v1258
      %1434 = vst.msk [vmem:[%s186 + $0x90] sm:$0xff] %vm1415, %v1260
      %1435 = vst.msk [vmem:[%s186 + $0x98] sm:$0xff] %vm1415, %v1262
      %1436 = vst.msk [vmem:[%s186 + $0xa0] sm:$0xff] %vm1415, %v1264
      %1437 = vst.msk [vmem:[%s186 + $0xa8] sm:$0xff] %vm1415, %v1266
      %1438 = vst.msk [vmem:[%s186 + $0xb0] sm:$0xff] %vm1415, %v1268
      %1439 = vst.msk [vmem:[%s186 + $0xb8] sm:$0xff] %vm1415, %v1270
      %1440 = vst.msk [vmem:[%s186 + $0xc0] sm:$0xff] %vm1415, %v1272
      %1441 = vst.msk [vmem:[%s186 + $0xc8] sm:$0xff] %vm1415, %v1274
      %1442 = vst.msk [vmem:[%s186 + $0xd0] sm:$0xff] %vm1415, %v1276
      %1443 = vst.msk [vmem:[%s186 + $0xd8] sm:$0xff] %vm1415, %v1278
      %1444 = vst.msk [vmem:[%s186 + $0xe0] sm:$0xff] %vm1415, %v1280
      %1445 = vst.msk [vmem:[%s186 + $0xe8] sm:$0xff] %vm1415, %v1282
      %1446 = vst.msk [vmem:[%s186 + $0xf0] sm:$0xff] %vm1415, %v1284
      %1447 = vst.msk [vmem:[%s186 + $0xf8] sm:$0xff] %vm1415, %v1286
      %1448 = vst.msk [vmem:[%s186 + $0x100] sm:$0xff] %vm1415, %v1288
      %1449 = vst.msk [vmem:[%s186 + $0x108] sm:$0xff] %vm1415, %v1290
      %1450 = vst.msk [vmem:[%s186 + $0x110] sm:$0xff] %vm1415, %v1292
      %1451 = vst.msk [vmem:[%s186 + $0x118] sm:$0xff] %vm1415, %v1294
      %1452 = vst.msk [vmem:[%s186 + $0x120] sm:$0xff] %vm1415, %v1296
      %1453 = vst.msk [vmem:[%s186 + $0x128] sm:$0xff] %vm1415, %v1298
      %1454 = vst.msk [vmem:[%s186 + $0x130] sm:$0xff] %vm1415, %v1300
      %1455 = vst.msk [vmem:[%s186 + $0x138] sm:$0xff] %vm1415, %v1302
      %1456 = vst.msk [vmem:[%s186 + $0x140] sm:$0xff] %vm1415, %v1304
      %1457 = vst.msk [vmem:[%s186 + $0x148] sm:$0xff] %vm1415, %v1306
      %1458 = vst.msk [vmem:[%s186 + $0x150] sm:$0xff] %vm1415, %v1308
      %1459 = vst.msk [vmem:[%s186 + $0x158] sm:$0xff] %vm1415, %v1310
      %1460 = vst.msk [vmem:[%s186 + $0x160] sm:$0xff] %vm1415, %v1312
      %1461 = vst.msk [vmem:[%s186 + $0x168] sm:$0xff] %vm1415, %v1314
      %1462 = vst.msk [vmem:[%s186 + $0x170] sm:$0xff] %vm1415, %v1316
      %1463 = vst.msk [vmem:[%s186 + $0x178] sm:$0xff] %vm1415, %v1318
      %1464 = vst.msk [vmem:[%s186 + $0x180] sm:$0xff] %vm1415, %v1320
      %1465 = vst.msk [vmem:[%s186 + $0x188] sm:$0xff] %vm1415, %v1322
      %1466 = vst.msk [vmem:[%s186 + $0x190] sm:$0xff] %vm1415, %v1324
      %1467 = vst.msk [vmem:[%s186 + $0x198] sm:$0xff] %vm1415, %v1326
      %1468 = vst.msk [vmem:[%s186 + $0x1a0] sm:$0xff] %vm1415, %v1328
      %1469 = vst.msk [vmem:[%s186 + $0x1a8] sm:$0xff] %vm1415, %v1330
      %1470 = vst.msk [vmem:[%s186 + $0x1b0] sm:$0xff] %vm1415, %v1332
      %1471 = vst.msk [vmem:[%s186 + $0x1b8] sm:$0xff] %vm1415, %v1334
      %1472 = vst.msk [vmem:[%s186 + $0x1c0] sm:$0xff] %vm1415, %v1336
      %1473 = vst.msk [vmem:[%s186 + $0x1c8] sm:$0xff] %vm1415, %v1338
      %1474 = vst.msk [vmem:[%s186 + $0x1d0] sm:$0xff] %vm1415, %v1340
      %1475 = vst.msk [vmem:[%s186 + $0x1d8] sm:$0xff] %vm1415, %v1342
      %1476 = vst.msk [vmem:[%s186 + $0x1e0] sm:$0xff] %vm1415, %v1344
      %1477 = vst.msk [vmem:[%s186 + $0x1e8] sm:$0xff] %vm1415, %v1346
      %1478 = vst.msk [vmem:[%s186 + $0x1f0] sm:$0xff] %vm1415, %v1348
      %1479 = vst.msk [vmem:[%s186 + $0x1f8] sm:$0xff] %vm1415, %v1350
      %s1480 = smul.u32 64, %s15
      %p1481 = scmp.lt.s32.totalorder %s1480, 127
      %s1482 = scalar_select %p1481, %s1480, 127
      %s1483 = smul.addr %s1482, 4
      %s1484 = scalar_lea.vmem %s2, %s1483
      %s1485 = smul.u32 64, %s15
      %p1486 = scmp.lt.s32.totalorder %s1485, 127
      %s1487 = scalar_select %p1486, %s1485, 127
      %s1488 = smul.addr %s1487, 8
      %s1489 = scalar_lea.vmem %s3, %s1488
      // Predicated region
      $region29: #{graphsage_forward.3} parent=27 // pred_check
        %p1490 = pneg %p80
      $region30: #{graphsage_forward.3} parent=27 // pred_check_branch
        %1492 = sbr.rel (%p1490) target = $region32
      $region31: #{graphsage_forward.3} parent=27 // pred_region
        %s1493 = smul.u32 64, %s15
      $region32: #{graphsage_forward.3} parent=27 // pred_fallthru
        _
      // Predicated region
      $region33: #{graphsage_forward.3} parent=27 // pred_check
        %p1494 = pneg %p106
      $region34: #{graphsage_forward.3} parent=27 // pred_check_branch
        %1496 = sbr.rel (%p1494) target = $region36
      $region35: #{graphsage_forward.3} parent=27 // pred_region
        %s1497 = smul.u32 64, %s15
      $region36: #{graphsage_forward.3} parent=27 // pred_fallthru
        _
    $region28: #{graphsage_forward.3} parent=5 // pred_fallthru
      _
    %p1498 = scmp.le.s32.totalorder 2, %s10
    // Predicated region
    $region37: #{graphsage_forward.3} parent=5 // pred_check
      %p1499 = pneg %p1498
    $region38: #{graphsage_forward.3} parent=5 // pred_check_branch
      %1501 = sbr.rel (%p1499) target = $region40
    $region39: #{graphsage_forward.3} parent=5 // pred_region
      %s1502 = ssub.s32 %s10, 2
      // Predicated region
      $region41: #{graphsage_forward.3} parent=39 // pred_check
        %p1503 = pneg %p86
      $region42: #{graphsage_forward.3} parent=39 // pred_check_branch
        %1505 = sbr.rel (%p1503) target = $region44
      $region43: #{graphsage_forward.3} parent=39 // pred_region
        %s1506 = smul.u32 64, %s16
        %p1507 = scmp.lt.s32.totalorder %s1506, 127
        %s1508 = scalar_select %p1507, %s1506, 127
        %s1509 = smul.addr %s1508, 4
        %s1510 = scalar_lea.vmem %s2, %s1509
      $region44: #{graphsage_forward.3} parent=39 // pred_fallthru
        _
      // Predicated region
      $region45: #{graphsage_forward.3} parent=39 // pred_check
        %p1511 = pneg %p112
      $region46: #{graphsage_forward.3} parent=39 // pred_check_branch
        %1513 = sbr.rel (%p1511) target = $region48
      $region47: #{graphsage_forward.3} parent=39 // pred_region
        %s1514 = smul.u32 64, %s16
        %p1515 = scmp.lt.s32.totalorder %s1514, 127
        %s1516 = scalar_select %p1515, %s1514, 127
        %s1517 = smul.addr %s1516, 8
        %s1518 = scalar_lea.vmem %s3, %s1517
      $region48: #{graphsage_forward.3} parent=39 // pred_fallthru
        _
    $region40: #{graphsage_forward.3} parent=5 // pred_fallthru
      _
  $region6: #{graphsage_forward.3} parent=0 // loop_footer
    %s14 = sadd.s32 1, %s10
  $region7: #{graphsage_forward.3} parent=0 // loop_footer_branch
    %9 = sbr.rel target = $region3
  $region8: #{graphsage_forward.3} parent=0 // loop_exit
    _

// kernel: graphsage_forward.5
$region0: #{graphsage_forward.5}
  #allocation0 [shape = 'u32[]', space=smem, size = 0x4, offset = 0x4, fixed_abs, tag = 'smem constant byte address 0x4 - core index']
  #allocation1 [shape = 'u32[144,128]{1,0:T(1,128)}', space=vmem, size = 0x12000, scoped, tag = 'internal scratch']
  %s0 = inlined_call_operand.vmem [shape: bf16[1024,1024], index: 0, kind: input, shape index: {}]
  %s1 = inlined_call_operand.vmem [shape: f32[1024,1], index: 1, kind: input, shape index: {}]
  %s2 = inlined_call_operand.vmem [shape: bf16[1024,8], index: 2, kind: input, shape index: {}]
  %s3 = inlined_call_operand.vmem [shape: f32[1024,8], index: 3, kind: input, shape index: {}]
  %s4 = inlined_call_operand.vmem [shape: f32[1,8], index: 4, kind: input, shape index: {}]
  %s5 = inlined_call_operand.vmem [shape: f32[1024,8], index: 5, kind: output, shape index: {}]
  %s6 = sld [smem:[#allocation0]]
  $region53: #{graphsage_forward.5} parent=0
    _
  %s8 = ssub.s32 1, %s6
  %s9 = scalar_select 0, %s8, %s6
  loop: start=0, step=1, limit=4
  $region2: #{graphsage_forward.5} parent=0 // loop_pre_header
    _
  $region3: #{graphsage_forward.5} parent=0 // loop_header
    %s11 = sphi 0, %s15
    %p12 = scmp.ge.s32.totalorder %s11, 4
    %s21 = sphi 0, %s23
    %s24 = sphi 0, %s21
    %s25 = sphi 0, %s24
    %s41 = sphi 0, %s25
    %s47 = sphi 0, %s49
    %s50 = sphi 0, %s47
    %s51 = sphi 0, %s50
    %s67 = sphi 0, %s51
    %s71 = sphi 0, %s71
    %s73 = sphi 0, %s71
    %s74 = sphi 0, %s73
    %s88 = sphi 0, %s74
    %s94 = sphi 0, %s96
    %s97 = sphi 0, %s94
    %s98 = sphi 0, %s97
    %s114 = sphi 0, %s98
    %s118 = sphi 0, %s118
    %s120 = sphi 0, %s118
    %s121 = sphi 0, %s120
    %s135 = sphi 0, %s121
    %s141 = sphi 0, %s143
    %s144 = sphi 0, %s141
    %s145 = sphi 0, %s144
    %s161 = sphi 0, %s145
  $region4: #{graphsage_forward.5} parent=0 // loop_header_branch
    %14 = sbr.rel (%p12) target = $region8
  $region5: #{graphsage_forward.5} parent=0 // loop_body
    %s16 = ssub.s32 %s11, 1
    %s17 = ssub.s32 %s11, 2
    %s18 = sadd.s32 %s11, 1
    %s19 = ssub.s32 %s11, %s18
    %p20 = scmp.eq.s32.totalorder %s19, 0
    %s22 = sadd.s32 %s21, 1
    %s23 = scalar_select %p20, %s21, %s22
    %p26 = pneg %p20
    %p27 = scmp.eq.s32.totalorder %s11, 1
    %p28 = por %p26, %p27
    %p29 = scmp.ne.s32.totalorder %s21, %s24
    %p30 = scmp.eq.s32.totalorder %s11, 0
    %p31 = por %p29, %p30
    %p32 = scmp.ne.s32.totalorder %s21, %s24
    %p33 = scmp.eq.s32.totalorder %s16, 1
    %p34 = por %p32, %p33
    %p35 = scmp.ne.s32.totalorder %s24, %s25
    %p36 = scmp.eq.s32.totalorder %s16, 0
    %p37 = por %p35, %p36
    %p38 = scmp.ne.s32.totalorder %s24, %s25
    %p39 = scmp.eq.s32.totalorder %s17, 1
    %p40 = por %p38, %p39
    %p42 = scmp.ne.s32.totalorder %s25, %s41
    %p43 = scmp.eq.s32.totalorder %s17, 0
    %p44 = por %p42, %p43
    %s45 = ssub.s32 %s11, %s18
    %p46 = scmp.eq.s32.totalorder %s45, 0
    %s48 = sadd.s32 %s47, 1
    %s49 = scalar_select %p46, %s47, %s48
    %p52 = pneg %p46
    %p53 = scmp.eq.s32.totalorder %s11, 1
    %p54 = por %p52, %p53
    %p55 = scmp.ne.s32.totalorder %s47, %s50
    %p56 = scmp.eq.s32.totalorder %s11, 0
    %p57 = por %p55, %p56
    %p58 = scmp.ne.s32.totalorder %s47, %s50
    %p59 = scmp.eq.s32.totalorder %s16, 1
    %p60 = por %p58, %p59
    %p61 = scmp.ne.s32.totalorder %s50, %s51
    %p62 = scmp.eq.s32.totalorder %s16, 0
    %p63 = por %p61, %p62
    %p64 = scmp.ne.s32.totalorder %s50, %s51
    %p65 = scmp.eq.s32.totalorder %s17, 1
    %p66 = por %p64, %p65
    %p68 = scmp.ne.s32.totalorder %s51, %s67
    %p69 = scmp.eq.s32.totalorder %s17, 0
    %p70 = por %p68, %p69
    %s72 = sadd.s32 %s71, 1
    %p75 = scmp.eq.s32.totalorder %s11, 1
    %p76 = scmp.ne.s32.totalorder %s71, %s73
    %p77 = scmp.eq.s32.totalorder %s11, 0
    %p78 = por %p76, %p77
    %p79 = scmp.ne.s32.totalorder %s71, %s73
    %p80 = scmp.eq.s32.totalorder %s16, 1
    %p81 = por %p79, %p80
    %p82 = scmp.ne.s32.totalorder %s73, %s74
    %p83 = scmp.eq.s32.totalorder %s16, 0
    %p84 = por %p82, %p83
    %p85 = scmp.ne.s32.totalorder %s73, %s74
    %p86 = scmp.eq.s32.totalorder %s17, 1
    %p87 = por %p85, %p86
    %p89 = scmp.ne.s32.totalorder %s74, %s88
    %p90 = scmp.eq.s32.totalorder %s17, 0
    %p91 = por %p89, %p90
    %s92 = ssub.s32 %s11, %s18
    %p93 = scmp.eq.s32.totalorder %s92, 0
    %s95 = sadd.s32 %s94, 1
    %s96 = scalar_select %p93, %s94, %s95
    %p99 = pneg %p93
    %p100 = scmp.eq.s32.totalorder %s11, 1
    %p101 = por %p99, %p100
    %p102 = scmp.ne.s32.totalorder %s94, %s97
    %p103 = scmp.eq.s32.totalorder %s11, 0
    %p104 = por %p102, %p103
    %p105 = scmp.ne.s32.totalorder %s94, %s97
    %p106 = scmp.eq.s32.totalorder %s16, 1
    %p107 = por %p105, %p106
    %p108 = scmp.ne.s32.totalorder %s97, %s98
    %p109 = scmp.eq.s32.totalorder %s16, 0
    %p110 = por %p108, %p109
    %p111 = scmp.ne.s32.totalorder %s97, %s98
    %p112 = scmp.eq.s32.totalorder %s17, 1
    %p113 = por %p111, %p112
    %p115 = scmp.ne.s32.totalorder %s98, %s114
    %p116 = scmp.eq.s32.totalorder %s17, 0
    %p117 = por %p115, %p116
    %s119 = sadd.s32 %s118, 1
    %p122 = scmp.eq.s32.totalorder %s11, 1
    %p123 = scmp.ne.s32.totalorder %s118, %s120
    %p124 = scmp.eq.s32.totalorder %s11, 0
    %p125 = por %p123, %p124
    %p126 = scmp.ne.s32.totalorder %s118, %s120
    %p127 = scmp.eq.s32.totalorder %s16, 1
    %p128 = por %p126, %p127
    %p129 = scmp.ne.s32.totalorder %s120, %s121
    %p130 = scmp.eq.s32.totalorder %s16, 0
    %p131 = por %p129, %p130
    %p132 = scmp.ne.s32.totalorder %s120, %s121
    %p133 = scmp.eq.s32.totalorder %s17, 1
    %p134 = por %p132, %p133
    %p136 = scmp.ne.s32.totalorder %s121, %s135
    %p137 = scmp.eq.s32.totalorder %s17, 0
    %p138 = por %p136, %p137
    %s139 = ssub.s32 %s11, %s18
    %p140 = scmp.eq.s32.totalorder %s139, 0
    %s142 = sadd.s32 %s141, 1
    %s143 = scalar_select %p140, %s141, %s142
    %p146 = pneg %p140
    %p147 = scmp.eq.s32.totalorder %s11, 1
    %p148 = por %p146, %p147
    %p149 = scmp.ne.s32.totalorder %s141, %s144
    %p150 = scmp.eq.s32.totalorder %s11, 0
    %p151 = por %p149, %p150
    %p152 = scmp.ne.s32.totalorder %s141, %s144
    %p153 = scmp.eq.s32.totalorder %s16, 1
    %p154 = por %p152, %p153
    %p155 = scmp.ne.s32.totalorder %s144, %s145
    %p156 = scmp.eq.s32.totalorder %s16, 0
    %p157 = por %p155, %p156
    %p158 = scmp.ne.s32.totalorder %s144, %s145
    %p159 = scmp.eq.s32.totalorder %s17, 1
    %p160 = por %p158, %p159
    %p162 = scmp.ne.s32.totalorder %s145, %s161
    %p163 = scmp.eq.s32.totalorder %s17, 0
    %p164 = por %p162, %p163
    %p165 = scmp.le.s32.totalorder 1, %s11
    %p166 = scmp.lt.s32.totalorder %s11, 3
    %p167 = pnand %p165, %p166
    %p168 = pneg %p167
    // Predicated region
    $region9: #{graphsage_forward.5} parent=5 // pred_check
      _
    $region10: #{graphsage_forward.5} parent=5 // pred_check_branch
      %170 = sbr.rel (%p167) target = $region12
    $region11: #{graphsage_forward.5} parent=5 // pred_region
      %s171 = ssub.s32 %s11, 1
      // Predicated region
      $region13: #{graphsage_forward.5} parent=11 // pred_check
        %p172 = pneg %p84
      $region14: #{graphsage_forward.5} parent=11 // pred_check_branch
        %174 = sbr.rel (%p172) target = $region16
      $region15: #{graphsage_forward.5} parent=11 // pred_region
        _
      $region16: #{graphsage_forward.5} parent=11 // pred_fallthru
        _
      // Predicated region
      $region17: #{graphsage_forward.5} parent=11 // pred_check
        %p175 = pneg %p131
      $region18: #{graphsage_forward.5} parent=11 // pred_check_branch
        %177 = sbr.rel (%p175) target = $region20
      $region19: #{graphsage_forward.5} parent=11 // pred_region
        _
      $region20: #{graphsage_forward.5} parent=11 // pred_fallthru
        _
    $region12: #{graphsage_forward.5} parent=5 // pred_fallthru
      _
    %p178 = scmp.lt.s32.totalorder %s11, 2
    // Predicated region
    $region21: #{graphsage_forward.5} parent=5 // pred_check
      %p179 = pneg %p178
    $region22: #{graphsage_forward.5} parent=5 // pred_check_branch
      %181 = sbr.rel (%p179) target = $region24
    $region23: #{graphsage_forward.5} parent=5 // pred_region
      // Predicated region
      $region25: #{graphsage_forward.5} parent=23 // pred_check
        %p182 = pneg %p31
      $region26: #{graphsage_forward.5} parent=23 // pred_check_branch
        %184 = sbr.rel (%p182) target = $region28
      $region27: #{graphsage_forward.5} parent=23 // pred_region
        %s185 = smul.u32 64, %s11
        %p186 = scmp.lt.s32.totalorder %s185, 127
        %s187 = scalar_select %p186, %s185, 127
        %s188 = smul.addr %s187, 8
        %s189 = smul.addr %s188, 4
        %s190 = scalar_lea.vmem %s0, %s189
        %s191 = smul.u32 64, %s11
      $region28: #{graphsage_forward.5} parent=23 // pred_fallthru
        _
      // Predicated region
      $region29: #{graphsage_forward.5} parent=23 // pred_check
        %p192 = pneg %p57
      $region30: #{graphsage_forward.5} parent=23 // pred_check_branch
        %194 = sbr.rel (%p192) target = $region32
      $region31: #{graphsage_forward.5} parent=23 // pred_region
        %s195 = smul.u32 64, %s11
        %p196 = scmp.lt.s32.totalorder %s195, 127
        %s197 = scalar_select %p196, %s195, 127
        %s198 = smul.addr %s197, 8
        %s199 = scalar_lea.vmem %s1, %s198
        %s200 = smul.u32 64, %s11
      $region32: #{graphsage_forward.5} parent=23 // pred_fallthru
        _
      // Predicated region
      $region33: #{graphsage_forward.5} parent=23 // pred_check
        %p201 = pneg %p104
      $region34: #{graphsage_forward.5} parent=23 // pred_check_branch
        %203 = sbr.rel (%p201) target = $region36
      $region35: #{graphsage_forward.5} parent=23 // pred_region
        %s204 = smul.u32 64, %s11
        %p205 = scmp.lt.s32.totalorder %s204, 127
        %s206 = scalar_select %p205, %s204, 127
        %s207 = smul.addr %s206, 8
        %s208 = scalar_lea.vmem %s3, %s207
        %s209 = smul.u32 64, %s11
      $region36: #{graphsage_forward.5} parent=23 // pred_fallthru
        _
    $region24: #{graphsage_forward.5} parent=5 // pred_fallthru
      _
    %p210 = scmp.le.s32.totalorder 1, %s11
    %p211 = scmp.lt.s32.totalorder %s11, 3
    %p212 = pnand %p210, %p211
    %p213 = pneg %p212
    // Predicated region
    $region37: #{graphsage_forward.5} parent=5 // pred_check
      _
    $region38: #{graphsage_forward.5} parent=5 // pred_check_branch
      %215 = sbr.rel (%p212) target = $region40
    $region39: #{graphsage_forward.5} parent=5 // pred_region
      %s216 = ssub.s32 %s11, 1
      %s217 = smul.u32 64, %s16
      %p218 = scmp.lt.s32.totalorder %s217, 127
      %s219 = scalar_select %p218, %s217, 127
      %s220 = smul.addr %s219, 8
      %s221 = smul.addr %s220, 4
      %s222 = scalar_lea.vmem %s0, %s221
      %p223 = pneg %p37
      %p224 = pneg %p34
      %s225 = smul.u32 64, %s16
      %p226 = scmp.lt.s32.totalorder %s225, 127
      %s227 = scalar_select %p226, %s225, 127
      %s228 = smul.addr %s227, 8
      %s229 = scalar_lea.vmem %s1, %s228
      %p230 = pneg %p63
      %p231 = pneg %p60
      %p232 = pneg %p84
      %p233 = pneg %p81
      %s234 = smul.u32 64, %s16
      %p235 = scmp.lt.s32.totalorder %s234, 127
      %s236 = scalar_select %p235, %s234, 127
      %s237 = smul.addr %s236, 8
      %s238 = scalar_lea.vmem %s3, %s237
      %p239 = pneg %p110
      %p240 = pneg %p107
      %p241 = pneg %p131
      %p242 = pneg %p128
      %p243 = pneg %p157
      %p244 = pneg %p154
      %s245 = smul.u32 64, %s16
      %p246 = scmp.lt.s32.totalorder %s245, 127
      %s247 = scalar_select %p246, %s245, 127
      %s248 = smul.addr %s247, 8
      %s249 = scalar_lea.vmem %s5, %s248
      %s250 = smul.u32 64, %s16
      %p251 = scmp.lt.s32.totalorder %s250, 127
      %s252 = scalar_select %p251, %s250, 127
      %s253 = smul.addr %s252, 8
      %s254 = smul.addr %s253, 4
      %s255 = scalar_lea.vmem %s0, %s254
      %s256 = smul.u32 64, %s16
      %s257 = smul.u32 64, %s16
      %p258 = scmp.lt.s32.totalorder %s257, 127
      %s259 = scalar_select %p258, %s257, 127
      %s260 = smul.addr %s259, 8
      %s261 = scalar_lea.vmem %s1, %s260
      %s262 = smul.u32 64, %s16
      %s263 = smul.u32 64, %s16
      %p264 = scmp.lt.s32.totalorder %s263, 127
      %s265 = scalar_select %p264, %s263, 127
      %s266 = smul.addr %s265, 8
      %s267 = scalar_lea.vmem %s3, %s266
      %s268 = smul.u32 64, %s16
      %s269 = smul.u32 64, %s16
      %p270 = scmp.lt.s32.totalorder %s269, 127
      %s271 = scalar_select %p270, %s269, 127
      %s272 = smul.addr %s271, 8
      %s273 = scalar_lea.vmem %s5, %s272
      %s274 = smul.u32 64, %s16
      %v276 = vld [vmem:[%s255] sm:$0xff]
      %v277 = vld [vmem:[%s255 + $0x8] sm:$0xff]
      %v278 = vld [vmem:[%s255 + $0x10] sm:$0xff]
      %v279 = vld [vmem:[%s255 + $0x18] sm:$0xff]
      %v280 = vld [vmem:[%s255 + $0x20] sm:$0xff]
      %v281 = vld [vmem:[%s255 + $0x28] sm:$0xff]
      %v282 = vld [vmem:[%s255 + $0x30] sm:$0xff]
      %v283 = vld [vmem:[%s255 + $0x38] sm:$0xff]
      %v284 = vld [vmem:[%s255 + $0x40] sm:$0xff]
      %v285 = vld [vmem:[%s255 + $0x48] sm:$0xff]
      %v286 = vld [vmem:[%s255 + $0x50] sm:$0xff]
      %v287 = vld [vmem:[%s255 + $0x58] sm:$0xff]
      %v288 = vld [vmem:[%s255 + $0x60] sm:$0xff]
      %v289 = vld [vmem:[%s255 + $0x68] sm:$0xff]
      %v290 = vld [vmem:[%s255 + $0x70] sm:$0xff]
      %v291 = vld [vmem:[%s255 + $0x78] sm:$0xff]
      %v292 = vld [vmem:[%s255 + $0x80] sm:$0xff]
      %v293 = vld [vmem:[%s255 + $0x88] sm:$0xff]
      %v294 = vld [vmem:[%s255 + $0x90] sm:$0xff]
      %v295 = vld [vmem:[%s255 + $0x98] sm:$0xff]
      %v296 = vld [vmem:[%s255 + $0xa0] sm:$0xff]
      %v297 = vld [vmem:[%s255 + $0xa8] sm:$0xff]
      %v298 = vld [vmem:[%s255 + $0xb0] sm:$0xff]
      %v299 = vld [vmem:[%s255 + $0xb8] sm:$0xff]
      %v300 = vld [vmem:[%s255 + $0xc0] sm:$0xff]
      %v301 = vld [vmem:[%s255 + $0xc8] sm:$0xff]
      %v302 = vld [vmem:[%s255 + $0xd0] sm:$0xff]
      %v303 = vld [vmem:[%s255 + $0xd8] sm:$0xff]
      %v304 = vld [vmem:[%s255 + $0xe0] sm:$0xff]
      %v305 = vld [vmem:[%s255 + $0xe8] sm:$0xff]
      %v306 = vld [vmem:[%s255 + $0xf0] sm:$0xff]
      %v307 = vld [vmem:[%s255 + $0xf8] sm:$0xff]
      %v308 = vld [vmem:[%s255 + $0x100] sm:$0xff]
      %v309 = vld [vmem:[%s255 + $0x108] sm:$0xff]
      %v310 = vld [vmem:[%s255 + $0x110] sm:$0xff]
      %v311 = vld [vmem:[%s255 + $0x118] sm:$0xff]
      %v312 = vld [vmem:[%s255 + $0x120] sm:$0xff]
      %v313 = vld [vmem:[%s255 + $0x128] sm:$0xff]
      %v314 = vld [vmem:[%s255 + $0x130] sm:$0xff]
      %v315 = vld [vmem:[%s255 + $0x138] sm:$0xff]
      %v316 = vld [vmem:[%s255 + $0x140] sm:$0xff]
      %v317 = vld [vmem:[%s255 + $0x148] sm:$0xff]
      %v318 = vld [vmem:[%s255 + $0x150] sm:$0xff]
      %v319 = vld [vmem:[%s255 + $0x158] sm:$0xff]
      %v320 = vld [vmem:[%s255 + $0x160] sm:$0xff]
      %v321 = vld [vmem:[%s255 + $0x168] sm:$0xff]
      %v322 = vld [vmem:[%s255 + $0x170] sm:$0xff]
      %v323 = vld [vmem:[%s255 + $0x178] sm:$0xff]
      %v324 = vld [vmem:[%s255 + $0x180] sm:$0xff]
      %v325 = vld [vmem:[%s255 + $0x188] sm:$0xff]
      %v326 = vld [vmem:[%s255 + $0x190] sm:$0xff]
      %v327 = vld [vmem:[%s255 + $0x198] sm:$0xff]
      %v328 = vld [vmem:[%s255 + $0x1a0] sm:$0xff]
      %v329 = vld [vmem:[%s255 + $0x1a8] sm:$0xff]
      %v330 = vld [vmem:[%s255 + $0x1b0] sm:$0xff]
      %v331 = vld [vmem:[%s255 + $0x1b8] sm:$0xff]
      %v332 = vld [vmem:[%s255 + $0x1c0] sm:$0xff]
      %v333 = vld [vmem:[%s255 + $0x1c8] sm:$0xff]
      %v334 = vld [vmem:[%s255 + $0x1d0] sm:$0xff]
      %v335 = vld [vmem:[%s255 + $0x1d8] sm:$0xff]
      %v336 = vld [vmem:[%s255 + $0x1e0] sm:$0xff]
      %v337 = vld [vmem:[%s255 + $0x1e8] sm:$0xff]
      %v338 = vld [vmem:[%s255 + $0x1f0] sm:$0xff]
      %v339 = vld [vmem:[%s255 + $0x1f8] sm:$0xff]
      %v340 = vld [vmem:[%s255 + $0x200] sm:$0xff]
      %v341 = vld [vmem:[%s255 + $0x208] sm:$0xff]
      %v342 = vld [vmem:[%s255 + $0x210] sm:$0xff]
      %v343 = vld [vmem:[%s255 + $0x218] sm:$0xff]
      %v344 = vld [vmem:[%s255 + $0x220] sm:$0xff]
      %v345 = vld [vmem:[%s255 + $0x228] sm:$0xff]
      %v346 = vld [vmem:[%s255 + $0x230] sm:$0xff]
      %v347 = vld [vmem:[%s255 + $0x238] sm:$0xff]
      %v348 = vld [vmem:[%s255 + $0x240] sm:$0xff]
      %v349 = vld [vmem:[%s255 + $0x248] sm:$0xff]
      %v350 = vld [vmem:[%s255 + $0x250] sm:$0xff]
      %v351 = vld [vmem:[%s255 + $0x258] sm:$0xff]
      %v352 = vld [vmem:[%s255 + $0x260] sm:$0xff]
      %v353 = vld [vmem:[%s255 + $0x268] sm:$0xff]
      %v354 = vld [vmem:[%s255 + $0x270] sm:$0xff]
      %v355 = vld [vmem:[%s255 + $0x278] sm:$0xff]
      %v356 = vld [vmem:[%s255 + $0x280] sm:$0xff]
      %v357 = vld [vmem:[%s255 + $0x288] sm:$0xff]
      %v358 = vld [vmem:[%s255 + $0x290] sm:$0xff]
      %v359 = vld [vmem:[%s255 + $0x298] sm:$0xff]
      %v360 = vld [vmem:[%s255 + $0x2a0] sm:$0xff]
      %v361 = vld [vmem:[%s255 + $0x2a8] sm:$0xff]
      %v362 = vld [vmem:[%s255 + $0x2b0] sm:$0xff]
      %v363 = vld [vmem:[%s255 + $0x2b8] sm:$0xff]
      %v364 = vld [vmem:[%s255 + $0x2c0] sm:$0xff]
      %v365 = vld [vmem:[%s255 + $0x2c8] sm:$0xff]
      %v366 = vld [vmem:[%s255 + $0x2d0] sm:$0xff]
      %v367 = vld [vmem:[%s255 + $0x2d8] sm:$0xff]
      %v368 = vld [vmem:[%s255 + $0x2e0] sm:$0xff]
      %v369 = vld [vmem:[%s255 + $0x2e8] sm:$0xff]
      %v370 = vld [vmem:[%s255 + $0x2f0] sm:$0xff]
      %v371 = vld [vmem:[%s255 + $0x2f8] sm:$0xff]
      %v372 = vld [vmem:[%s255 + $0x300] sm:$0xff]
      %v373 = vld [vmem:[%s255 + $0x308] sm:$0xff]
      %v374 = vld [vmem:[%s255 + $0x310] sm:$0xff]
      %v375 = vld [vmem:[%s255 + $0x318] sm:$0xff]
      %v376 = vld [vmem:[%s255 + $0x320] sm:$0xff]
      %v377 = vld [vmem:[%s255 + $0x328] sm:$0xff]
      %v378 = vld [vmem:[%s255 + $0x330] sm:$0xff]
      %v379 = vld [vmem:[%s255 + $0x338] sm:$0xff]
      %v380 = vld [vmem:[%s255 + $0x340] sm:$0xff]
      %v381 = vld [vmem:[%s255 + $0x348] sm:$0xff]
      %v382 = vld [vmem:[%s255 + $0x350] sm:$0xff]
      %v383 = vld [vmem:[%s255 + $0x358] sm:$0xff]
      %v384 = vld [vmem:[%s255 + $0x360] sm:$0xff]
      %v385 = vld [vmem:[%s255 + $0x368] sm:$0xff]
      %v386 = vld [vmem:[%s255 + $0x370] sm:$0xff]
      %v387 = vld [vmem:[%s255 + $0x378] sm:$0xff]
      %v388 = vld [vmem:[%s255 + $0x380] sm:$0xff]
      %v389 = vld [vmem:[%s255 + $0x388] sm:$0xff]
      %v390 = vld [vmem:[%s255 + $0x390] sm:$0xff]
      %v391 = vld [vmem:[%s255 + $0x398] sm:$0xff]
      %v392 = vld [vmem:[%s255 + $0x3a0] sm:$0xff]
      %v393 = vld [vmem:[%s255 + $0x3a8] sm:$0xff]
      %v394 = vld [vmem:[%s255 + $0x3b0] sm:$0xff]
      %v395 = vld [vmem:[%s255 + $0x3b8] sm:$0xff]
      %v396 = vld [vmem:[%s255 + $0x3c0] sm:$0xff]
      %v397 = vld [vmem:[%s255 + $0x3c8] sm:$0xff]
      %v398 = vld [vmem:[%s255 + $0x3d0] sm:$0xff]
      %v399 = vld [vmem:[%s255 + $0x3d8] sm:$0xff]
      %v400 = vld [vmem:[%s255 + $0x3e0] sm:$0xff]
      %v401 = vld [vmem:[%s255 + $0x3e8] sm:$0xff]
      %v402 = vld [vmem:[%s255 + $0x3f0] sm:$0xff]
      %v403 = vld [vmem:[%s255 + $0x3f8] sm:$0xff]
      %v404 = vld [vmem:[%s255 + $0x400] sm:$0xff]
      %v405 = vld [vmem:[%s255 + $0x408] sm:$0xff]
      %v406 = vld [vmem:[%s255 + $0x410] sm:$0xff]
      %v407 = vld [vmem:[%s255 + $0x418] sm:$0xff]
      %v408 = vld [vmem:[%s255 + $0x420] sm:$0xff]
      %v409 = vld [vmem:[%s255 + $0x428] sm:$0xff]
      %v410 = vld [vmem:[%s255 + $0x430] sm:$0xff]
      %v411 = vld [vmem:[%s255 + $0x438] sm:$0xff]
      %v412 = vld [vmem:[%s255 + $0x440] sm:$0xff]
      %v413 = vld [vmem:[%s255 + $0x448] sm:$0xff]
      %v414 = vld [vmem:[%s255 + $0x450] sm:$0xff]
      %v415 = vld [vmem:[%s255 + $0x458] sm:$0xff]
      %v416 = vld [vmem:[%s255 + $0x460] sm:$0xff]
      %v417 = vld [vmem:[%s255 + $0x468] sm:$0xff]
      %v418 = vld [vmem:[%s255 + $0x470] sm:$0xff]
      %v419 = vld [vmem:[%s255 + $0x478] sm:$0xff]
      %v420 = vld [vmem:[%s255 + $0x480] sm:$0xff]
      %v421 = vld [vmem:[%s255 + $0x488] sm:$0xff]
      %v422 = vld [vmem:[%s255 + $0x490] sm:$0xff]
      %v423 = vld [vmem:[%s255 + $0x498] sm:$0xff]
      %v424 = vld [vmem:[%s255 + $0x4a0] sm:$0xff]
      %v425 = vld [vmem:[%s255 + $0x4a8] sm:$0xff]
      %v426 = vld [vmem:[%s255 + $0x4b0] sm:$0xff]
      %v427 = vld [vmem:[%s255 + $0x4b8] sm:$0xff]
      %v428 = vld [vmem:[%s255 + $0x4c0] sm:$0xff]
      %v429 = vld [vmem:[%s255 + $0x4c8] sm:$0xff]
      %v430 = vld [vmem:[%s255 + $0x4d0] sm:$0xff]
      %v431 = vld [vmem:[%s255 + $0x4d8] sm:$0xff]
      %v432 = vld [vmem:[%s255 + $0x4e0] sm:$0xff]
      %v433 = vld [vmem:[%s255 + $0x4e8] sm:$0xff]
      %v434 = vld [vmem:[%s255 + $0x4f0] sm:$0xff]
      %v435 = vld [vmem:[%s255 + $0x4f8] sm:$0xff]
      %v436 = vld [vmem:[%s255 + $0x500] sm:$0xff]
      %v437 = vld [vmem:[%s255 + $0x508] sm:$0xff]
      %v438 = vld [vmem:[%s255 + $0x510] sm:$0xff]
      %v439 = vld [vmem:[%s255 + $0x518] sm:$0xff]
      %v440 = vld [vmem:[%s255 + $0x520] sm:$0xff]
      %v441 = vld [vmem:[%s255 + $0x528] sm:$0xff]
      %v442 = vld [vmem:[%s255 + $0x530] sm:$0xff]
      %v443 = vld [vmem:[%s255 + $0x538] sm:$0xff]
      %v444 = vld [vmem:[%s255 + $0x540] sm:$0xff]
      %v445 = vld [vmem:[%s255 + $0x548] sm:$0xff]
      %v446 = vld [vmem:[%s255 + $0x550] sm:$0xff]
      %v447 = vld [vmem:[%s255 + $0x558] sm:$0xff]
      %v448 = vld [vmem:[%s255 + $0x560] sm:$0xff]
      %v449 = vld [vmem:[%s255 + $0x568] sm:$0xff]
      %v450 = vld [vmem:[%s255 + $0x570] sm:$0xff]
      %v451 = vld [vmem:[%s255 + $0x578] sm:$0xff]
      %v452 = vld [vmem:[%s255 + $0x580] sm:$0xff]
      %v453 = vld [vmem:[%s255 + $0x588] sm:$0xff]
      %v454 = vld [vmem:[%s255 + $0x590] sm:$0xff]
      %v455 = vld [vmem:[%s255 + $0x598] sm:$0xff]
      %v456 = vld [vmem:[%s255 + $0x5a0] sm:$0xff]
      %v457 = vld [vmem:[%s255 + $0x5a8] sm:$0xff]
      %v458 = vld [vmem:[%s255 + $0x5b0] sm:$0xff]
      %v459 = vld [vmem:[%s255 + $0x5b8] sm:$0xff]
      %v460 = vld [vmem:[%s255 + $0x5c0] sm:$0xff]
      %v461 = vld [vmem:[%s255 + $0x5c8] sm:$0xff]
      %v462 = vld [vmem:[%s255 + $0x5d0] sm:$0xff]
      %v463 = vld [vmem:[%s255 + $0x5d8] sm:$0xff]
      %v464 = vld [vmem:[%s255 + $0x5e0] sm:$0xff]
      %v465 = vld [vmem:[%s255 + $0x5e8] sm:$0xff]
      %v466 = vld [vmem:[%s255 + $0x5f0] sm:$0xff]
      %v467 = vld [vmem:[%s255 + $0x5f8] sm:$0xff]
      %v468 = vld [vmem:[%s255 + $0x600] sm:$0xff]
      %v469 = vld [vmem:[%s255 + $0x608] sm:$0xff]
      %v470 = vld [vmem:[%s255 + $0x610] sm:$0xff]
      %v471 = vld [vmem:[%s255 + $0x618] sm:$0xff]
      %v472 = vld [vmem:[%s255 + $0x620] sm:$0xff]
      %v473 = vld [vmem:[%s255 + $0x628] sm:$0xff]
      %v474 = vld [vmem:[%s255 + $0x630] sm:$0xff]
      %v475 = vld [vmem:[%s255 + $0x638] sm:$0xff]
      %v476 = vld [vmem:[%s255 + $0x640] sm:$0xff]
      %v477 = vld [vmem:[%s255 + $0x648] sm:$0xff]
      %v478 = vld [vmem:[%s255 + $0x650] sm:$0xff]
      %v479 = vld [vmem:[%s255 + $0x658] sm:$0xff]
      %v480 = vld [vmem:[%s255 + $0x660] sm:$0xff]
      %v481 = vld [vmem:[%s255 + $0x668] sm:$0xff]
      %v482 = vld [vmem:[%s255 + $0x670] sm:$0xff]
      %v483 = vld [vmem:[%s255 + $0x678] sm:$0xff]
      %v484 = vld [vmem:[%s255 + $0x680] sm:$0xff]
      %v485 = vld [vmem:[%s255 + $0x688] sm:$0xff]
      %v486 = vld [vmem:[%s255 + $0x690] sm:$0xff]
      %v487 = vld [vmem:[%s255 + $0x698] sm:$0xff]
      %v488 = vld [vmem:[%s255 + $0x6a0] sm:$0xff]
      %v489 = vld [vmem:[%s255 + $0x6a8] sm:$0xff]
      %v490 = vld [vmem:[%s255 + $0x6b0] sm:$0xff]
      %v491 = vld [vmem:[%s255 + $0x6b8] sm:$0xff]
      %v492 = vld [vmem:[%s255 + $0x6c0] sm:$0xff]
      %v493 = vld [vmem:[%s255 + $0x6c8] sm:$0xff]
      %v494 = vld [vmem:[%s255 + $0x6d0] sm:$0xff]
      %v495 = vld [vmem:[%s255 + $0x6d8] sm:$0xff]
      %v496 = vld [vmem:[%s255 + $0x6e0] sm:$0xff]
      %v497 = vld [vmem:[%s255 + $0x6e8] sm:$0xff]
      %v498 = vld [vmem:[%s255 + $0x6f0] sm:$0xff]
      %v499 = vld [vmem:[%s255 + $0x6f8] sm:$0xff]
      %v500 = vld [vmem:[%s255 + $0x700] sm:$0xff]
      %v501 = vld [vmem:[%s255 + $0x708] sm:$0xff]
      %v502 = vld [vmem:[%s255 + $0x710] sm:$0xff]
      %v503 = vld [vmem:[%s255 + $0x718] sm:$0xff]
      %v504 = vld [vmem:[%s255 + $0x720] sm:$0xff]
      %v505 = vld [vmem:[%s255 + $0x728] sm:$0xff]
      %v506 = vld [vmem:[%s255 + $0x730] sm:$0xff]
      %v507 = vld [vmem:[%s255 + $0x738] sm:$0xff]
      %v508 = vld [vmem:[%s255 + $0x740] sm:$0xff]
      %v509 = vld [vmem:[%s255 + $0x748] sm:$0xff]
      %v510 = vld [vmem:[%s255 + $0x750] sm:$0xff]
      %v511 = vld [vmem:[%s255 + $0x758] sm:$0xff]
      %v512 = vld [vmem:[%s255 + $0x760] sm:$0xff]
      %v513 = vld [vmem:[%s255 + $0x768] sm:$0xff]
      %v514 = vld [vmem:[%s255 + $0x770] sm:$0xff]
      %v515 = vld [vmem:[%s255 + $0x778] sm:$0xff]
      %v516 = vld [vmem:[%s255 + $0x780] sm:$0xff]
      %v517 = vld [vmem:[%s255 + $0x788] sm:$0xff]
      %v518 = vld [vmem:[%s255 + $0x790] sm:$0xff]
      %v519 = vld [vmem:[%s255 + $0x798] sm:$0xff]
      %v520 = vld [vmem:[%s255 + $0x7a0] sm:$0xff]
      %v521 = vld [vmem:[%s255 + $0x7a8] sm:$0xff]
      %v522 = vld [vmem:[%s255 + $0x7b0] sm:$0xff]
      %v523 = vld [vmem:[%s255 + $0x7b8] sm:$0xff]
      %v524 = vld [vmem:[%s255 + $0x7c0] sm:$0xff]
      %v525 = vld [vmem:[%s255 + $0x7c8] sm:$0xff]
      %v526 = vld [vmem:[%s255 + $0x7d0] sm:$0xff]
      %v527 = vld [vmem:[%s255 + $0x7d8] sm:$0xff]
      %v528 = vld [vmem:[%s255 + $0x7e0] sm:$0xff]
      %v529 = vld [vmem:[%s255 + $0x7e8] sm:$0xff]
      %v530 = vld [vmem:[%s255 + $0x7f0] sm:$0xff]
      %v531 = vld [vmem:[%s255 + $0x7f8] sm:$0xff]
      %v532 = vld [vmem:[%s2] sm:$0xf]
      %v533 = vld [vmem:[%s2 + $0x4] sm:$0xf]
      %v534 = vld [vmem:[%s2 + $0x8] sm:$0xf]
      %v535 = vld [vmem:[%s2 + $0xc] sm:$0xf]
      %v536 = vld [vmem:[%s2 + $0x10] sm:$0xf]
      %v537 = vld [vmem:[%s2 + $0x14] sm:$0xf]
      %v538 = vld [vmem:[%s2 + $0x18] sm:$0xf]
      %v539 = vld [vmem:[%s2 + $0x1c] sm:$0xf]
      %v540 = vld [vmem:[%s2 + $0x20] sm:$0xf]
      %v541 = vld [vmem:[%s2 + $0x24] sm:$0xf]
      %v542 = vld [vmem:[%s2 + $0x28] sm:$0xf]
      %v543 = vld [vmem:[%s2 + $0x2c] sm:$0xf]
      %v544 = vld [vmem:[%s2 + $0x30] sm:$0xf]
      %v545 = vld [vmem:[%s2 + $0x34] sm:$0xf]
      %v546 = vld [vmem:[%s2 + $0x38] sm:$0xf]
      %v547 = vld [vmem:[%s2 + $0x3c] sm:$0xf]
      %v548 = vld [vmem:[%s2 + $0x40] sm:$0xf]
      %v549 = vld [vmem:[%s2 + $0x44] sm:$0xf]
      %v550 = vld [vmem:[%s2 + $0x48] sm:$0xf]
      %v551 = vld [vmem:[%s2 + $0x4c] sm:$0xf]
      %v552 = vld [vmem:[%s2 + $0x50] sm:$0xf]
      %v553 = vld [vmem:[%s2 + $0x54] sm:$0xf]
      %v554 = vld [vmem:[%s2 + $0x58] sm:$0xf]
      %v555 = vld [vmem:[%s2 + $0x5c] sm:$0xf]
      %v556 = vld [vmem:[%s2 + $0x60] sm:$0xf]
      %v557 = vld [vmem:[%s2 + $0x64] sm:$0xf]
      %v558 = vld [vmem:[%s2 + $0x68] sm:$0xf]
      %v559 = vld [vmem:[%s2 + $0x6c] sm:$0xf]
      %v560 = vld [vmem:[%s2 + $0x70] sm:$0xf]
      %v561 = vld [vmem:[%s2 + $0x74] sm:$0xf]
      %v562 = vld [vmem:[%s2 + $0x78] sm:$0xf]
      %v563 = vld [vmem:[%s2 + $0x7c] sm:$0xf]
      %v564 = vld [vmem:[%s2 + $0x80] sm:$0xf]
      %v565 = vld [vmem:[%s2 + $0x84] sm:$0xf]
      %v566 = vld [vmem:[%s2 + $0x88] sm:$0xf]
      %v567 = vld [vmem:[%s2 + $0x8c] sm:$0xf]
      %v568 = vld [vmem:[%s2 + $0x90] sm:$0xf]
      %v569 = vld [vmem:[%s2 + $0x94] sm:$0xf]
      %v570 = vld [vmem:[%s2 + $0x98] sm:$0xf]
      %v571 = vld [vmem:[%s2 + $0x9c] sm:$0xf]
      %v572 = vld [vmem:[%s2 + $0xa0] sm:$0xf]
      %v573 = vld [vmem:[%s2 + $0xa4] sm:$0xf]
      %v574 = vld [vmem:[%s2 + $0xa8] sm:$0xf]
      %v575 = vld [vmem:[%s2 + $0xac] sm:$0xf]
      %v576 = vld [vmem:[%s2 + $0xb0] sm:$0xf]
      %v577 = vld [vmem:[%s2 + $0xb4] sm:$0xf]
      %v578 = vld [vmem:[%s2 + $0xb8] sm:$0xf]
      %v579 = vld [vmem:[%s2 + $0xbc] sm:$0xf]
      %v580 = vld [vmem:[%s2 + $0xc0] sm:$0xf]
      %v581 = vld [vmem:[%s2 + $0xc4] sm:$0xf]
      %v582 = vld [vmem:[%s2 + $0xc8] sm:$0xf]
      %v583 = vld [vmem:[%s2 + $0xcc] sm:$0xf]
      %v584 = vld [vmem:[%s2 + $0xd0] sm:$0xf]
      %v585 = vld [vmem:[%s2 + $0xd4] sm:$0xf]
      %v586 = vld [vmem:[%s2 + $0xd8] sm:$0xf]
      %v587 = vld [vmem:[%s2 + $0xdc] sm:$0xf]
      %v588 = vld [vmem:[%s2 + $0xe0] sm:$0xf]
      %v589 = vld [vmem:[%s2 + $0xe4] sm:$0xf]
      %v590 = vld [vmem:[%s2 + $0xe8] sm:$0xf]
      %v591 = vld [vmem:[%s2 + $0xec] sm:$0xf]
      %v592 = vld [vmem:[%s2 + $0xf0] sm:$0xf]
      %v593 = vld [vmem:[%s2 + $0xf4] sm:$0xf]
      %v594 = vld [vmem:[%s2 + $0xf8] sm:$0xf]
      %v595 = vld [vmem:[%s2 + $0xfc] sm:$0xf]
      %v596 = vld [vmem:[%s2 + $0x100] sm:$0xf]
      %v597 = vld [vmem:[%s2 + $0x104] sm:$0xf]
      %v598 = vld [vmem:[%s2 + $0x108] sm:$0xf]
      %v599 = vld [vmem:[%s2 + $0x10c] sm:$0xf]
      %v600 = vld [vmem:[%s2 + $0x110] sm:$0xf]
      %v601 = vld [vmem:[%s2 + $0x114] sm:$0xf]
      %v602 = vld [vmem:[%s2 + $0x118] sm:$0xf]
      %v603 = vld [vmem:[%s2 + $0x11c] sm:$0xf]
      %v604 = vld [vmem:[%s2 + $0x120] sm:$0xf]
      %v605 = vld [vmem:[%s2 + $0x124] sm:$0xf]
      %v606 = vld [vmem:[%s2 + $0x128] sm:$0xf]
      %v607 = vld [vmem:[%s2 + $0x12c] sm:$0xf]
      %v608 = vld [vmem:[%s2 + $0x130] sm:$0xf]
      %v609 = vld [vmem:[%s2 + $0x134] sm:$0xf]
      %v610 = vld [vmem:[%s2 + $0x138] sm:$0xf]
      %v611 = vld [vmem:[%s2 + $0x13c] sm:$0xf]
      %v612 = vld [vmem:[%s2 + $0x140] sm:$0xf]
      %v613 = vld [vmem:[%s2 + $0x144] sm:$0xf]
      %v614 = vld [vmem:[%s2 + $0x148] sm:$0xf]
      %v615 = vld [vmem:[%s2 + $0x14c] sm:$0xf]
      %v616 = vld [vmem:[%s2 + $0x150] sm:$0xf]
      %v617 = vld [vmem:[%s2 + $0x154] sm:$0xf]
      %v618 = vld [vmem:[%s2 + $0x158] sm:$0xf]
      %v619 = vld [vmem:[%s2 + $0x15c] sm:$0xf]
      %v620 = vld [vmem:[%s2 + $0x160] sm:$0xf]
      %v621 = vld [vmem:[%s2 + $0x164] sm:$0xf]
      %v622 = vld [vmem:[%s2 + $0x168] sm:$0xf]
      %v623 = vld [vmem:[%s2 + $0x16c] sm:$0xf]
      %v624 = vld [vmem:[%s2 + $0x170] sm:$0xf]
      %v625 = vld [vmem:[%s2 + $0x174] sm:$0xf]
      %v626 = vld [vmem:[%s2 + $0x178] sm:$0xf]
      %v627 = vld [vmem:[%s2 + $0x17c] sm:$0xf]
      %v628 = vld [vmem:[%s2 + $0x180] sm:$0xf]
      %v629 = vld [vmem:[%s2 + $0x184] sm:$0xf]
      %v630 = vld [vmem:[%s2 + $0x188] sm:$0xf]
      %v631 = vld [vmem:[%s2 + $0x18c] sm:$0xf]
      %v632 = vld [vmem:[%s2 + $0x190] sm:$0xf]
      %v633 = vld [vmem:[%s2 + $0x194] sm:$0xf]
      %v634 = vld [vmem:[%s2 + $0x198] sm:$0xf]
      %v635 = vld [vmem:[%s2 + $0x19c] sm:$0xf]
      %v636 = vld [vmem:[%s2 + $0x1a0] sm:$0xf]
      %v637 = vld [vmem:[%s2 + $0x1a4] sm:$0xf]
      %v638 = vld [vmem:[%s2 + $0x1a8] sm:$0xf]
      %v639 = vld [vmem:[%s2 + $0x1ac] sm:$0xf]
      %v640 = vld [vmem:[%s2 + $0x1b0] sm:$0xf]
      %v641 = vld [vmem:[%s2 + $0x1b4] sm:$0xf]
      %v642 = vld [vmem:[%s2 + $0x1b8] sm:$0xf]
      %v643 = vld [vmem:[%s2 + $0x1bc] sm:$0xf]
      %v644 = vld [vmem:[%s2 + $0x1c0] sm:$0xf]
      %v645 = vld [vmem:[%s2 + $0x1c4] sm:$0xf]
      %v646 = vld [vmem:[%s2 + $0x1c8] sm:$0xf]
      %v647 = vld [vmem:[%s2 + $0x1cc] sm:$0xf]
      %v648 = vld [vmem:[%s2 + $0x1d0] sm:$0xf]
      %v649 = vld [vmem:[%s2 + $0x1d4] sm:$0xf]
      %v650 = vld [vmem:[%s2 + $0x1d8] sm:$0xf]
      %v651 = vld [vmem:[%s2 + $0x1dc] sm:$0xf]
      %v652 = vld [vmem:[%s2 + $0x1e0] sm:$0xf]
      %v653 = vld [vmem:[%s2 + $0x1e4] sm:$0xf]
      %v654 = vld [vmem:[%s2 + $0x1e8] sm:$0xf]
      %v655 = vld [vmem:[%s2 + $0x1ec] sm:$0xf]
      %v656 = vld [vmem:[%s2 + $0x1f0] sm:$0xf]
      %v657 = vld [vmem:[%s2 + $0x1f4] sm:$0xf]
      %v658 = vld [vmem:[%s2 + $0x1f8] sm:$0xf]
      %v659 = vld [vmem:[%s2 + $0x1fc] sm:$0xf]
      %v916 = vunpack.c.l.b16 %v276
      %v917 = vunpack.c.h.b16 %v276
      %v918 = vunpack.c.l.b16 %v277
      %v919 = vunpack.c.h.b16 %v277
      %v920 = vunpack.c.l.b16 %v278
      %v921 = vunpack.c.h.b16 %v278
      %v922 = vunpack.c.l.b16 %v279
      %v923 = vunpack.c.h.b16 %v279
      %v924 = vunpack.c.l.b16 %v280
      %v925 = vunpack.c.h.b16 %v280
      %v926 = vunpack.c.l.b16 %v281
      %v927 = vunpack.c.h.b16 %v281
      %v928 = vunpack.c.l.b16 %v282
      %v929 = vunpack.c.h.b16 %v282
      %v930 = vunpack.c.l.b16 %v283
      %v931 = vunpack.c.h.b16 %v283
      %v932 = vunpack.c.l.b16 %v284
      %v933 = vunpack.c.h.b16 %v284
      %v934 = vunpack.c.l.b16 %v285
      %v935 = vunpack.c.h.b16 %v285
      %v936 = vunpack.c.l.b16 %v286
      %v937 = vunpack.c.h.b16 %v286
      %v938 = vunpack.c.l.b16 %v287
      %v939 = vunpack.c.h.b16 %v287
      %v940 = vunpack.c.l.b16 %v288
      %v941 = vunpack.c.h.b16 %v288
      %v942 = vunpack.c.l.b16 %v289
      %v943 = vunpack.c.h.b16 %v289
      %v944 = vunpack.c.l.b16 %v290
      %v945 = vunpack.c.h.b16 %v290
      %v946 = vunpack.c.l.b16 %v291
      %v947 = vunpack.c.h.b16 %v291
      %v948 = vunpack.c.l.b16 %v292
      %v949 = vunpack.c.h.b16 %v292
      %v950 = vunpack.c.l.b16 %v293
      %v951 = vunpack.c.h.b16 %v293
      %v952 = vunpack.c.l.b16 %v294
      %v953 = vunpack.c.h.b16 %v294
      %v954 = vunpack.c.l.b16 %v295
      %v955 = vunpack.c.h.b16 %v295
      %v956 = vunpack.c.l.b16 %v296
      %v957 = vunpack.c.h.b16 %v296
      %v958 = vunpack.c.l.b16 %v297
      %v959 = vunpack.c.h.b16 %v297
      %v960 = vunpack.c.l.b16 %v298
      %v961 = vunpack.c.h.b16 %v298
      %v962 = vunpack.c.l.b16 %v299
      %v963 = vunpack.c.h.b16 %v299
      %v964 = vunpack.c.l.b16 %v300
      %v965 = vunpack.c.h.b16 %v300
      %v966 = vunpack.c.l.b16 %v301
      %v967 = vunpack.c.h.b16 %v301
      %v968 = vunpack.c.l.b16 %v302
      %v969 = vunpack.c.h.b16 %v302
      %v970 = vunpack.c.l.b16 %v303
      %v971 = vunpack.c.h.b16 %v303
      %v972 = vunpack.c.l.b16 %v304
      %v973 = vunpack.c.h.b16 %v304
      %v974 = vunpack.c.l.b16 %v305
      %v975 = vunpack.c.h.b16 %v305
      %v976 = vunpack.c.l.b16 %v306
      %v977 = vunpack.c.h.b16 %v306
      %v978 = vunpack.c.l.b16 %v307
      %v979 = vunpack.c.h.b16 %v307
      %v980 = vunpack.c.l.b16 %v308
      %v981 = vunpack.c.h.b16 %v308
      %v982 = vunpack.c.l.b16 %v309
      %v983 = vunpack.c.h.b16 %v309
      %v984 = vunpack.c.l.b16 %v310
      %v985 = vunpack.c.h.b16 %v310
      %v986 = vunpack.c.l.b16 %v311
      %v987 = vunpack.c.h.b16 %v311
      %v988 = vunpack.c.l.b16 %v312
      %v989 = vunpack.c.h.b16 %v312
      %v990 = vunpack.c.l.b16 %v313
      %v991 = vunpack.c.h.b16 %v313
      %v992 = vunpack.c.l.b16 %v314
      %v993 = vunpack.c.h.b16 %v314
      %v994 = vunpack.c.l.b16 %v315
      %v995 = vunpack.c.h.b16 %v315
      %v996 = vunpack.c.l.b16 %v316
      %v997 = vunpack.c.h.b16 %v316
      %v998 = vunpack.c.l.b16 %v317
      %v999 = vunpack.c.h.b16 %v317
      %v1000 = vunpack.c.l.b16 %v318
      %v1001 = vunpack.c.h.b16 %v318
      %v1002 = vunpack.c.l.b16 %v319
      %v1003 = vunpack.c.h.b16 %v319
      %v1004 = vunpack.c.l.b16 %v320
      %v1005 = vunpack.c.h.b16 %v320
      %v1006 = vunpack.c.l.b16 %v321
      %v1007 = vunpack.c.h.b16 %v321
      %v1008 = vunpack.c.l.b16 %v322
      %v1009 = vunpack.c.h.b16 %v322
      %v1010 = vunpack.c.l.b16 %v323
      %v1011 = vunpack.c.h.b16 %v323
      %v1012 = vunpack.c.l.b16 %v324
      %v1013 = vunpack.c.h.b16 %v324
      %v1014 = vunpack.c.l.b16 %v325
      %v1015 = vunpack.c.h.b16 %v325
      %v1016 = vunpack.c.l.b16 %v326
      %v1017 = vunpack.c.h.b16 %v326
      %v1018 = vunpack.c.l.b16 %v327
      %v1019 = vunpack.c.h.b16 %v327
      %v1020 = vunpack.c.l.b16 %v328
      %v1021 = vunpack.c.h.b16 %v328
      %v1022 = vunpack.c.l.b16 %v329
      %v1023 = vunpack.c.h.b16 %v329
      %v1024 = vunpack.c.l.b16 %v330
      %v1025 = vunpack.c.h.b16 %v330
      %v1026 = vunpack.c.l.b16 %v331
      %v1027 = vunpack.c.h.b16 %v331
      %v1028 = vunpack.c.l.b16 %v332
      %v1029 = vunpack.c.h.b16 %v332
      %v1030 = vunpack.c.l.b16 %v333
      %v1031 = vunpack.c.h.b16 %v333
      %v1032 = vunpack.c.l.b16 %v334
      %v1033 = vunpack.c.h.b16 %v334
      %v1034 = vunpack.c.l.b16 %v335
      %v1035 = vunpack.c.h.b16 %v335
      %v1036 = vunpack.c.l.b16 %v336
      %v1037 = vunpack.c.h.b16 %v336
      %v1038 = vunpack.c.l.b16 %v337
      %v1039 = vunpack.c.h.b16 %v337
      %v1040 = vunpack.c.l.b16 %v338
      %v1041 = vunpack.c.h.b16 %v338
      %v1042 = vunpack.c.l.b16 %v339
      %v1043 = vunpack.c.h.b16 %v339
      %v1044 = vunpack.c.l.b16 %v340
      %v1045 = vunpack.c.h.b16 %v340
      %v1046 = vunpack.c.l.b16 %v341
      %v1047 = vunpack.c.h.b16 %v341
      %v1048 = vunpack.c.l.b16 %v342
      %v1049 = vunpack.c.h.b16 %v342
      %v1050 = vunpack.c.l.b16 %v343
      %v1051 = vunpack.c.h.b16 %v343
      %v1052 = vunpack.c.l.b16 %v344
      %v1053 = vunpack.c.h.b16 %v344
      %v1054 = vunpack.c.l.b16 %v345
      %v1055 = vunpack.c.h.b16 %v345
      %v1056 = vunpack.c.l.b16 %v346
      %v1057 = vunpack.c.h.b16 %v346
      %v1058 = vunpack.c.l.b16 %v347
      %v1059 = vunpack.c.h.b16 %v347
      %v1060 = vunpack.c.l.b16 %v348
      %v1061 = vunpack.c.h.b16 %v348
      %v1062 = vunpack.c.l.b16 %v349
      %v1063 = vunpack.c.h.b16 %v349
      %v1064 = vunpack.c.l.b16 %v350
      %v1065 = vunpack.c.h.b16 %v350
      %v1066 = vunpack.c.l.b16 %v351
      %v1067 = vunpack.c.h.b16 %v351
      %v1068 = vunpack.c.l.b16 %v352
      %v1069 = vunpack.c.h.b16 %v352
      %v1070 = vunpack.c.l.b16 %v353
      %v1071 = vunpack.c.h.b16 %v353
      %v1072 = vunpack.c.l.b16 %v354
      %v1073 = vunpack.c.h.b16 %v354
      %v1074 = vunpack.c.l.b16 %v355
      %v1075 = vunpack.c.h.b16 %v355
      %v1076 = vunpack.c.l.b16 %v356
      %v1077 = vunpack.c.h.b16 %v356
      %v1078 = vunpack.c.l.b16 %v357
      %v1079 = vunpack.c.h.b16 %v357
      %v1080 = vunpack.c.l.b16 %v358
      %v1081 = vunpack.c.h.b16 %v358
      %v1082 = vunpack.c.l.b16 %v359
      %v1083 = vunpack.c.h.b16 %v359
      %v1084 = vunpack.c.l.b16 %v360
      %v1085 = vunpack.c.h.b16 %v360
      %v1086 = vunpack.c.l.b16 %v361
      %v1087 = vunpack.c.h.b16 %v361
      %v1088 = vunpack.c.l.b16 %v362
      %v1089 = vunpack.c.h.b16 %v362
      %v1090 = vunpack.c.l.b16 %v363
      %v1091 = vunpack.c.h.b16 %v363
      %v1092 = vunpack.c.l.b16 %v364
      %v1093 = vunpack.c.h.b16 %v364
      %v1094 = vunpack.c.l.b16 %v365
      %v1095 = vunpack.c.h.b16 %v365
      %v1096 = vunpack.c.l.b16 %v366
      %v1097 = vunpack.c.h.b16 %v366
      %v1098 = vunpack.c.l.b16 %v367
      %v1099 = vunpack.c.h.b16 %v367
      %v1100 = vunpack.c.l.b16 %v368
      %v1101 = vunpack.c.h.b16 %v368
      %v1102 = vunpack.c.l.b16 %v369
      %v1103 = vunpack.c.h.b16 %v369
      %v1104 = vunpack.c.l.b16 %v370
      %v1105 = vunpack.c.h.b16 %v370
      %v1106 = vunpack.c.l.b16 %v371
      %v1107 = vunpack.c.h.b16 %v371
      %v1108 = vunpack.c.l.b16 %v372
      %v1109 = vunpack.c.h.b16 %v372
      %v1110 = vunpack.c.l.b16 %v373
      %v1111 = vunpack.c.h.b16 %v373
      %v1112 = vunpack.c.l.b16 %v374
      %v1113 = vunpack.c.h.b16 %v374
      %v1114 = vunpack.c.l.b16 %v375
      %v1115 = vunpack.c.h.b16 %v375
      %v1116 = vunpack.c.l.b16 %v376
      %v1117 = vunpack.c.h.b16 %v376
      %v1118 = vunpack.c.l.b16 %v377
      %v1119 = vunpack.c.h.b16 %v377
      %v1120 = vunpack.c.l.b16 %v378
      %v1121 = vunpack.c.h.b16 %v378
      %v1122 = vunpack.c.l.b16 %v379
      %v1123 = vunpack.c.h.b16 %v379
      %v1124 = vunpack.c.l.b16 %v380
      %v1125 = vunpack.c.h.b16 %v380
      %v1126 = vunpack.c.l.b16 %v381
      %v1127 = vunpack.c.h.b16 %v381
      %v1128 = vunpack.c.l.b16 %v382
      %v1129 = vunpack.c.h.b16 %v382
      %v1130 = vunpack.c.l.b16 %v383
      %v1131 = vunpack.c.h.b16 %v383
      %v1132 = vunpack.c.l.b16 %v384
      %v1133 = vunpack.c.h.b16 %v384
      %v1134 = vunpack.c.l.b16 %v385
      %v1135 = vunpack.c.h.b16 %v385
      %v1136 = vunpack.c.l.b16 %v386
      %v1137 = vunpack.c.h.b16 %v386
      %v1138 = vunpack.c.l.b16 %v387
      %v1139 = vunpack.c.h.b16 %v387
      %v1140 = vunpack.c.l.b16 %v388
      %v1141 = vunpack.c.h.b16 %v388
      %v1142 = vunpack.c.l.b16 %v389
      %v1143 = vunpack.c.h.b16 %v389
      %v1144 = vunpack.c.l.b16 %v390
      %v1145 = vunpack.c.h.b16 %v390
      %v1146 = vunpack.c.l.b16 %v391
      %v1147 = vunpack.c.h.b16 %v391
      %v1148 = vunpack.c.l.b16 %v392
      %v1149 = vunpack.c.h.b16 %v392
      %v1150 = vunpack.c.l.b16 %v393
      %v1151 = vunpack.c.h.b16 %v393
      %v1152 = vunpack.c.l.b16 %v394
      %v1153 = vunpack.c.h.b16 %v394
      %v1154 = vunpack.c.l.b16 %v395
      %v1155 = vunpack.c.h.b16 %v395
      %v1156 = vunpack.c.l.b16 %v396
      %v1157 = vunpack.c.h.b16 %v396
      %v1158 = vunpack.c.l.b16 %v397
      %v1159 = vunpack.c.h.b16 %v397
      %v1160 = vunpack.c.l.b16 %v398
      %v1161 = vunpack.c.h.b16 %v398
      %v1162 = vunpack.c.l.b16 %v399
      %v1163 = vunpack.c.h.b16 %v399
      %v1164 = vunpack.c.l.b16 %v400
      %v1165 = vunpack.c.h.b16 %v400
      %v1166 = vunpack.c.l.b16 %v401
      %v1167 = vunpack.c.h.b16 %v401
      %v1168 = vunpack.c.l.b16 %v402
      %v1169 = vunpack.c.h.b16 %v402
      %v1170 = vunpack.c.l.b16 %v403
      %v1171 = vunpack.c.h.b16 %v403
      %v1172 = vunpack.c.l.b16 %v404
      %v1173 = vunpack.c.h.b16 %v404
      %v1174 = vunpack.c.l.b16 %v405
      %v1175 = vunpack.c.h.b16 %v405
      %v1176 = vunpack.c.l.b16 %v406
      %v1177 = vunpack.c.h.b16 %v406
      %v1178 = vunpack.c.l.b16 %v407
      %v1179 = vunpack.c.h.b16 %v407
      %v1180 = vunpack.c.l.b16 %v408
      %v1181 = vunpack.c.h.b16 %v408
      %v1182 = vunpack.c.l.b16 %v409
      %v1183 = vunpack.c.h.b16 %v409
      %v1184 = vunpack.c.l.b16 %v410
      %v1185 = vunpack.c.h.b16 %v410
      %v1186 = vunpack.c.l.b16 %v411
      %v1187 = vunpack.c.h.b16 %v411
      %v1188 = vunpack.c.l.b16 %v412
      %v1189 = vunpack.c.h.b16 %v412
      %v1190 = vunpack.c.l.b16 %v413
      %v1191 = vunpack.c.h.b16 %v413
      %v1192 = vunpack.c.l.b16 %v414
      %v1193 = vunpack.c.h.b16 %v414
      %v1194 = vunpack.c.l.b16 %v415
      %v1195 = vunpack.c.h.b16 %v415
      %v1196 = vunpack.c.l.b16 %v416
      %v1197 = vunpack.c.h.b16 %v416
      %v1198 = vunpack.c.l.b16 %v417
      %v1199 = vunpack.c.h.b16 %v417
      %v1200 = vunpack.c.l.b16 %v418
      %v1201 = vunpack.c.h.b16 %v418
      %v1202 = vunpack.c.l.b16 %v419
      %v1203 = vunpack.c.h.b16 %v419
      %v1204 = vunpack.c.l.b16 %v420
      %v1205 = vunpack.c.h.b16 %v420
      %v1206 = vunpack.c.l.b16 %v421
      %v1207 = vunpack.c.h.b16 %v421
      %v1208 = vunpack.c.l.b16 %v422
      %v1209 = vunpack.c.h.b16 %v422
      %v1210 = vunpack.c.l.b16 %v423
      %v1211 = vunpack.c.h.b16 %v423
      %v1212 = vunpack.c.l.b16 %v424
      %v1213 = vunpack.c.h.b16 %v424
      %v1214 = vunpack.c.l.b16 %v425
      %v1215 = vunpack.c.h.b16 %v425
      %v1216 = vunpack.c.l.b16 %v426
      %v1217 = vunpack.c.h.b16 %v426
      %v1218 = vunpack.c.l.b16 %v427
      %v1219 = vunpack.c.h.b16 %v427
      %v1220 = vunpack.c.l.b16 %v428
      %v1221 = vunpack.c.h.b16 %v428
      %v1222 = vunpack.c.l.b16 %v429
      %v1223 = vunpack.c.h.b16 %v429
      %v1224 = vunpack.c.l.b16 %v430
      %v1225 = vunpack.c.h.b16 %v430
      %v1226 = vunpack.c.l.b16 %v431
      %v1227 = vunpack.c.h.b16 %v431
      %v1228 = vunpack.c.l.b16 %v432
      %v1229 = vunpack.c.h.b16 %v432
      %v1230 = vunpack.c.l.b16 %v433
      %v1231 = vunpack.c.h.b16 %v433
      %v1232 = vunpack.c.l.b16 %v434
      %v1233 = vunpack.c.h.b16 %v434
      %v1234 = vunpack.c.l.b16 %v435
      %v1235 = vunpack.c.h.b16 %v435
      %v1236 = vunpack.c.l.b16 %v436
      %v1237 = vunpack.c.h.b16 %v436
      %v1238 = vunpack.c.l.b16 %v437
      %v1239 = vunpack.c.h.b16 %v437
      %v1240 = vunpack.c.l.b16 %v438
      %v1241 = vunpack.c.h.b16 %v438
      %v1242 = vunpack.c.l.b16 %v439
      %v1243 = vunpack.c.h.b16 %v439
      %v1244 = vunpack.c.l.b16 %v440
      %v1245 = vunpack.c.h.b16 %v440
      %v1246 = vunpack.c.l.b16 %v441
      %v1247 = vunpack.c.h.b16 %v441
      %v1248 = vunpack.c.l.b16 %v442
      %v1249 = vunpack.c.h.b16 %v442
      %v1250 = vunpack.c.l.b16 %v443
      %v1251 = vunpack.c.h.b16 %v443
      %v1252 = vunpack.c.l.b16 %v444
      %v1253 = vunpack.c.h.b16 %v444
      %v1254 = vunpack.c.l.b16 %v445
      %v1255 = vunpack.c.h.b16 %v445
      %v1256 = vunpack.c.l.b16 %v446
      %v1257 = vunpack.c.h.b16 %v446
      %v1258 = vunpack.c.l.b16 %v447
      %v1259 = vunpack.c.h.b16 %v447
      %v1260 = vunpack.c.l.b16 %v448
      %v1261 = vunpack.c.h.b16 %v448
      %v1262 = vunpack.c.l.b16 %v449
      %v1263 = vunpack.c.h.b16 %v449
      %v1264 = vunpack.c.l.b16 %v450
      %v1265 = vunpack.c.h.b16 %v450
      %v1266 = vunpack.c.l.b16 %v451
      %v1267 = vunpack.c.h.b16 %v451
      %v1268 = vunpack.c.l.b16 %v452
      %v1269 = vunpack.c.h.b16 %v452
      %v1270 = vunpack.c.l.b16 %v453
      %v1271 = vunpack.c.h.b16 %v453
      %v1272 = vunpack.c.l.b16 %v454
      %v1273 = vunpack.c.h.b16 %v454
      %v1274 = vunpack.c.l.b16 %v455
      %v1275 = vunpack.c.h.b16 %v455
      %v1276 = vunpack.c.l.b16 %v456
      %v1277 = vunpack.c.h.b16 %v456
      %v1278 = vunpack.c.l.b16 %v457
      %v1279 = vunpack.c.h.b16 %v457
      %v1280 = vunpack.c.l.b16 %v458
      %v1281 = vunpack.c.h.b16 %v458
      %v1282 = vunpack.c.l.b16 %v459
      %v1283 = vunpack.c.h.b16 %v459
      %v1284 = vunpack.c.l.b16 %v460
      %v1285 = vunpack.c.h.b16 %v460
      %v1286 = vunpack.c.l.b16 %v461
      %v1287 = vunpack.c.h.b16 %v461
      %v1288 = vunpack.c.l.b16 %v462
      %v1289 = vunpack.c.h.b16 %v462
      %v1290 = vunpack.c.l.b16 %v463
      %v1291 = vunpack.c.h.b16 %v463
      %v1292 = vunpack.c.l.b16 %v464
      %v1293 = vunpack.c.h.b16 %v464
      %v1294 = vunpack.c.l.b16 %v465
      %v1295 = vunpack.c.h.b16 %v465
      %v1296 = vunpack.c.l.b16 %v466
      %v1297 = vunpack.c.h.b16 %v466
      %v1298 = vunpack.c.l.b16 %v467
      %v1299 = vunpack.c.h.b16 %v467
      %v1300 = vunpack.c.l.b16 %v468
      %v1301 = vunpack.c.h.b16 %v468
      %v1302 = vunpack.c.l.b16 %v469
      %v1303 = vunpack.c.h.b16 %v469
      %v1304 = vunpack.c.l.b16 %v470
      %v1305 = vunpack.c.h.b16 %v470
      %v1306 = vunpack.c.l.b16 %v471
      %v1307 = vunpack.c.h.b16 %v471
      %v1308 = vunpack.c.l.b16 %v472
      %v1309 = vunpack.c.h.b16 %v472
      %v1310 = vunpack.c.l.b16 %v473
      %v1311 = vunpack.c.h.b16 %v473
      %v1312 = vunpack.c.l.b16 %v474
      %v1313 = vunpack.c.h.b16 %v474
      %v1314 = vunpack.c.l.b16 %v475
      %v1315 = vunpack.c.h.b16 %v475
      %v1316 = vunpack.c.l.b16 %v476
      %v1317 = vunpack.c.h.b16 %v476
      %v1318 = vunpack.c.l.b16 %v477
      %v1319 = vunpack.c.h.b16 %v477
      %v1320 = vunpack.c.l.b16 %v478
      %v1321 = vunpack.c.h.b16 %v478
      %v1322 = vunpack.c.l.b16 %v479
      %v1323 = vunpack.c.h.b16 %v479
      %v1324 = vunpack.c.l.b16 %v480
      %v1325 = vunpack.c.h.b16 %v480
      %v1326 = vunpack.c.l.b16 %v481
      %v1327 = vunpack.c.h.b16 %v481
      %v1328 = vunpack.c.l.b16 %v482
      %v1329 = vunpack.c.h.b16 %v482
      %v1330 = vunpack.c.l.b16 %v483
      %v1331 = vunpack.c.h.b16 %v483
      %v1332 = vunpack.c.l.b16 %v484
      %v1333 = vunpack.c.h.b16 %v484
      %v1334 = vunpack.c.l.b16 %v485
      %v1335 = vunpack.c.h.b16 %v485
      %v1336 = vunpack.c.l.b16 %v486
      %v1337 = vunpack.c.h.b16 %v486
      %v1338 = vunpack.c.l.b16 %v487
      %v1339 = vunpack.c.h.b16 %v487
      %v1340 = vunpack.c.l.b16 %v488
      %v1341 = vunpack.c.h.b16 %v488
      %v1342 = vunpack.c.l.b16 %v489
      %v1343 = vunpack.c.h.b16 %v489
      %v1344 = vunpack.c.l.b16 %v490
      %v1345 = vunpack.c.h.b16 %v490
      %v1346 = vunpack.c.l.b16 %v491
      %v1347 = vunpack.c.h.b16 %v491
      %v1348 = vunpack.c.l.b16 %v492
      %v1349 = vunpack.c.h.b16 %v492
      %v1350 = vunpack.c.l.b16 %v493
      %v1351 = vunpack.c.h.b16 %v493
      %v1352 = vunpack.c.l.b16 %v494
      %v1353 = vunpack.c.h.b16 %v494
      %v1354 = vunpack.c.l.b16 %v495
      %v1355 = vunpack.c.h.b16 %v495
      %v1356 = vunpack.c.l.b16 %v496
      %v1357 = vunpack.c.h.b16 %v496
      %v1358 = vunpack.c.l.b16 %v497
      %v1359 = vunpack.c.h.b16 %v497
      %v1360 = vunpack.c.l.b16 %v498
      %v1361 = vunpack.c.h.b16 %v498
      %v1362 = vunpack.c.l.b16 %v499
      %v1363 = vunpack.c.h.b16 %v499
      %v1364 = vunpack.c.l.b16 %v500
      %v1365 = vunpack.c.h.b16 %v500
      %v1366 = vunpack.c.l.b16 %v501
      %v1367 = vunpack.c.h.b16 %v501
      %v1368 = vunpack.c.l.b16 %v502
      %v1369 = vunpack.c.h.b16 %v502
      %v1370 = vunpack.c.l.b16 %v503
      %v1371 = vunpack.c.h.b16 %v503
      %v1372 = vunpack.c.l.b16 %v504
      %v1373 = vunpack.c.h.b16 %v504
      %v1374 = vunpack.c.l.b16 %v505
      %v1375 = vunpack.c.h.b16 %v505
      %v1376 = vunpack.c.l.b16 %v506
      %v1377 = vunpack.c.h.b16 %v506
      %v1378 = vunpack.c.l.b16 %v507
      %v1379 = vunpack.c.h.b16 %v507
      %v1380 = vunpack.c.l.b16 %v508
      %v1381 = vunpack.c.h.b16 %v508
      %v1382 = vunpack.c.l.b16 %v509
      %v1383 = vunpack.c.h.b16 %v509
      %v1384 = vunpack.c.l.b16 %v510
      %v1385 = vunpack.c.h.b16 %v510
      %v1386 = vunpack.c.l.b16 %v511
      %v1387 = vunpack.c.h.b16 %v511
      %v1388 = vunpack.c.l.b16 %v512
      %v1389 = vunpack.c.h.b16 %v512
      %v1390 = vunpack.c.l.b16 %v513
      %v1391 = vunpack.c.h.b16 %v513
      %v1392 = vunpack.c.l.b16 %v514
      %v1393 = vunpack.c.h.b16 %v514
      %v1394 = vunpack.c.l.b16 %v515
      %v1395 = vunpack.c.h.b16 %v515
      %v1396 = vunpack.c.l.b16 %v516
      %v1397 = vunpack.c.h.b16 %v516
      %v1398 = vunpack.c.l.b16 %v517
      %v1399 = vunpack.c.h.b16 %v517
      %v1400 = vunpack.c.l.b16 %v518
      %v1401 = vunpack.c.h.b16 %v518
      %v1402 = vunpack.c.l.b16 %v519
      %v1403 = vunpack.c.h.b16 %v519
      %v1404 = vunpack.c.l.b16 %v520
      %v1405 = vunpack.c.h.b16 %v520
      %v1406 = vunpack.c.l.b16 %v521
      %v1407 = vunpack.c.h.b16 %v521
      %v1408 = vunpack.c.l.b16 %v522
      %v1409 = vunpack.c.h.b16 %v522
      %v1410 = vunpack.c.l.b16 %v523
      %v1411 = vunpack.c.h.b16 %v523
      %v1412 = vunpack.c.l.b16 %v524
      %v1413 = vunpack.c.h.b16 %v524
      %v1414 = vunpack.c.l.b16 %v525
      %v1415 = vunpack.c.h.b16 %v525
      %v1416 = vunpack.c.l.b16 %v526
      %v1417 = vunpack.c.h.b16 %v526
      %v1418 = vunpack.c.l.b16 %v527
      %v1419 = vunpack.c.h.b16 %v527
      %v1420 = vunpack.c.l.b16 %v528
      %v1421 = vunpack.c.h.b16 %v528
      %v1422 = vunpack.c.l.b16 %v529
      %v1423 = vunpack.c.h.b16 %v529
      %v1424 = vunpack.c.l.b16 %v530
      %v1425 = vunpack.c.h.b16 %v530
      %v1426 = vunpack.c.l.b16 %v531
      %v1427 = vunpack.c.h.b16 %v531
      %v1428 = vpack.c.b16 %v924, %v916
      %v1429 = vpack.c.b16 %v925, %v917
      %v1430 = vpack.c.b16 %v926, %v918
      %v1431 = vpack.c.b16 %v927, %v919
      %v1432 = vpack.c.b16 %v928, %v920
      %v1433 = vpack.c.b16 %v929, %v921
      %v1434 = vpack.c.b16 %v930, %v922
      %v1435 = vpack.c.b16 %v931, %v923
      %v1436 = vpack.c.b16 %v940, %v932
      %v1437 = vpack.c.b16 %v941, %v933
      %v1438 = vpack.c.b16 %v942, %v934
      %v1439 = vpack.c.b16 %v943, %v935
      %v1440 = vpack.c.b16 %v944, %v936
      %v1441 = vpack.c.b16 %v945, %v937
      %v1442 = vpack.c.b16 %v946, %v938
      %v1443 = vpack.c.b16 %v947, %v939
      %v1444 = vpack.c.b16 %v956, %v948
      %v1445 = vpack.c.b16 %v957, %v949
      %v1446 = vpack.c.b16 %v958, %v950
      %v1447 = vpack.c.b16 %v959, %v951
      %v1448 = vpack.c.b16 %v960, %v952
      %v1449 = vpack.c.b16 %v961, %v953
      %v1450 = vpack.c.b16 %v962, %v954
      %v1451 = vpack.c.b16 %v963, %v955
      %v1452 = vpack.c.b16 %v972, %v964
      %v1453 = vpack.c.b16 %v973, %v965
      %v1454 = vpack.c.b16 %v974, %v966
      %v1455 = vpack.c.b16 %v975, %v967
      %v1456 = vpack.c.b16 %v976, %v968
      %v1457 = vpack.c.b16 %v977, %v969
      %v1458 = vpack.c.b16 %v978, %v970
      %v1459 = vpack.c.b16 %v979, %v971
      %v1460 = vpack.c.b16 %v988, %v980
      %v1461 = vpack.c.b16 %v989, %v981
      %v1462 = vpack.c.b16 %v990, %v982
      %v1463 = vpack.c.b16 %v991, %v983
      %v1464 = vpack.c.b16 %v992, %v984
      %v1465 = vpack.c.b16 %v993, %v985
      %v1466 = vpack.c.b16 %v994, %v986
      %v1467 = vpack.c.b16 %v995, %v987
      %v1468 = vpack.c.b16 %v1004, %v996
      %v1469 = vpack.c.b16 %v1005, %v997
      %v1470 = vpack.c.b16 %v1006, %v998
      %v1471 = vpack.c.b16 %v1007, %v999
      %v1472 = vpack.c.b16 %v1008, %v1000
      %v1473 = vpack.c.b16 %v1009, %v1001
      %v1474 = vpack.c.b16 %v1010, %v1002
      %v1475 = vpack.c.b16 %v1011, %v1003
      %v1476 = vpack.c.b16 %v1020, %v1012
      %v1477 = vpack.c.b16 %v1021, %v1013
      %v1478 = vpack.c.b16 %v1022, %v1014
      %v1479 = vpack.c.b16 %v1023, %v1015
      %v1480 = vpack.c.b16 %v1024, %v1016
      %v1481 = vpack.c.b16 %v1025, %v1017
      %v1482 = vpack.c.b16 %v1026, %v1018
      %v1483 = vpack.c.b16 %v1027, %v1019
      %v1484 = vpack.c.b16 %v1036, %v1028
      %v1485 = vpack.c.b16 %v1037, %v1029
      %v1486 = vpack.c.b16 %v1038, %v1030
      %v1487 = vpack.c.b16 %v1039, %v1031
      %v1488 = vpack.c.b16 %v1040, %v1032
      %v1489 = vpack.c.b16 %v1041, %v1033
      %v1490 = vpack.c.b16 %v1042, %v1034
      %v1491 = vpack.c.b16 %v1043, %v1035
      %v1492 = vpack.c.b16 %v1052, %v1044
      %v1493 = vpack.c.b16 %v1053, %v1045
      %v1494 = vpack.c.b16 %v1054, %v1046
      %v1495 = vpack.c.b16 %v1055, %v1047
      %v1496 = vpack.c.b16 %v1056, %v1048
      %v1497 = vpack.c.b16 %v1057, %v1049
      %v1498 = vpack.c.b16 %v1058, %v1050
      %v1499 = vpack.c.b16 %v1059, %v1051
      %v1500 = vpack.c.b16 %v1068, %v1060
      %v1501 = vpack.c.b16 %v1069, %v1061
      %v1502 = vpack.c.b16 %v1070, %v1062
      %v1503 = vpack.c.b16 %v1071, %v1063
      %v1504 = vpack.c.b16 %v1072, %v1064
      %v1505 = vpack.c.b16 %v1073, %v1065
      %v1506 = vpack.c.b16 %v1074, %v1066
      %v1507 = vpack.c.b16 %v1075, %v1067
      %v1508 = vpack.c.b16 %v1084, %v1076
      %v1509 = vpack.c.b16 %v1085, %v1077
      %v1510 = vpack.c.b16 %v1086, %v1078
      %v1511 = vpack.c.b16 %v1087, %v1079
      %v1512 = vpack.c.b16 %v1088, %v1080
      %v1513 = vpack.c.b16 %v1089, %v1081
      %v1514 = vpack.c.b16 %v1090, %v1082
      %v1515 = vpack.c.b16 %v1091, %v1083
      %v1516 = vpack.c.b16 %v1100, %v1092
      %v1517 = vpack.c.b16 %v1101, %v1093
      %v1518 = vpack.c.b16 %v1102, %v1094
      %v1519 = vpack.c.b16 %v1103, %v1095
      %v1520 = vpack.c.b16 %v1104, %v1096
      %v1521 = vpack.c.b16 %v1105, %v1097
      %v1522 = vpack.c.b16 %v1106, %v1098
      %v1523 = vpack.c.b16 %v1107, %v1099
      %v1524 = vpack.c.b16 %v1116, %v1108
      %v1525 = vpack.c.b16 %v1117, %v1109
      %v1526 = vpack.c.b16 %v1118, %v1110
      %v1527 = vpack.c.b16 %v1119, %v1111
      %v1528 = vpack.c.b16 %v1120, %v1112
      %v1529 = vpack.c.b16 %v1121, %v1113
      %v1530 = vpack.c.b16 %v1122, %v1114
      %v1531 = vpack.c.b16 %v1123, %v1115
      %v1532 = vpack.c.b16 %v1132, %v1124
      %v1533 = vpack.c.b16 %v1133, %v1125
      %v1534 = vpack.c.b16 %v1134, %v1126
      %v1535 = vpack.c.b16 %v1135, %v1127
      %v1536 = vpack.c.b16 %v1136, %v1128
      %v1537 = vpack.c.b16 %v1137, %v1129
      %v1538 = vpack.c.b16 %v1138, %v1130
      %v1539 = vpack.c.b16 %v1139, %v1131
      %v1540 = vpack.c.b16 %v1148, %v1140
      %v1541 = vpack.c.b16 %v1149, %v1141
      %v1542 = vpack.c.b16 %v1150, %v1142
      %v1543 = vpack.c.b16 %v1151, %v1143
      %v1544 = vpack.c.b16 %v1152, %v1144
      %v1545 = vpack.c.b16 %v1153, %v1145
      %v1546 = vpack.c.b16 %v1154, %v1146
      %v1547 = vpack.c.b16 %v1155, %v1147
      %v1548 = vpack.c.b16 %v1164, %v1156
      %v1549 = vpack.c.b16 %v1165, %v1157
      %v1550 = vpack.c.b16 %v1166, %v1158
      %v1551 = vpack.c.b16 %v1167, %v1159
      %v1552 = vpack.c.b16 %v1168, %v1160
      %v1553 = vpack.c.b16 %v1169, %v1161
      %v1554 = vpack.c.b16 %v1170, %v1162
      %v1555 = vpack.c.b16 %v1171, %v1163
      %v1556 = vpack.c.b16 %v1180, %v1172
      %v1557 = vpack.c.b16 %v1181, %v1173
      %v1558 = vpack.c.b16 %v1182, %v1174
      %v1559 = vpack.c.b16 %v1183, %v1175
      %v1560 = vpack.c.b16 %v1184, %v1176
      %v1561 = vpack.c.b16 %v1185, %v1177
      %v1562 = vpack.c.b16 %v1186, %v1178
      %v1563 = vpack.c.b16 %v1187, %v1179
      %v1564 = vpack.c.b16 %v1196, %v1188
      %v1565 = vpack.c.b16 %v1197, %v1189
      %v1566 = vpack.c.b16 %v1198, %v1190
      %v1567 = vpack.c.b16 %v1199, %v1191
      %v1568 = vpack.c.b16 %v1200, %v1192
      %v1569 = vpack.c.b16 %v1201, %v1193
      %v1570 = vpack.c.b16 %v1202, %v1194
      %v1571 = vpack.c.b16 %v1203, %v1195
      %v1572 = vpack.c.b16 %v1212, %v1204
      %v1573 = vpack.c.b16 %v1213, %v1205
      %v1574 = vpack.c.b16 %v1214, %v1206
      %v1575 = vpack.c.b16 %v1215, %v1207
      %v1576 = vpack.c.b16 %v1216, %v1208
      %v1577 = vpack.c.b16 %v1217, %v1209
      %v1578 = vpack.c.b16 %v1218, %v1210
      %v1579 = vpack.c.b16 %v1219, %v1211
      %v1580 = vpack.c.b16 %v1228, %v1220
      %v1581 = vpack.c.b16 %v1229, %v1221
      %v1582 = vpack.c.b16 %v1230, %v1222
      %v1583 = vpack.c.b16 %v1231, %v1223
      %v1584 = vpack.c.b16 %v1232, %v1224
      %v1585 = vpack.c.b16 %v1233, %v1225
      %v1586 = vpack.c.b16 %v1234, %v1226
      %v1587 = vpack.c.b16 %v1235, %v1227
      %v1588 = vpack.c.b16 %v1244, %v1236
      %v1589 = vpack.c.b16 %v1245, %v1237
      %v1590 = vpack.c.b16 %v1246, %v1238
      %v1591 = vpack.c.b16 %v1247, %v1239
      %v1592 = vpack.c.b16 %v1248, %v1240
      %v1593 = vpack.c.b16 %v1249, %v1241
      %v1594 = vpack.c.b16 %v1250, %v1242
      %v1595 = vpack.c.b16 %v1251, %v1243
      %v1596 = vpack.c.b16 %v1260, %v1252
      %v1597 = vpack.c.b16 %v1261, %v1253
      %v1598 = vpack.c.b16 %v1262, %v1254
      %v1599 = vpack.c.b16 %v1263, %v1255
      %v1600 = vpack.c.b16 %v1264, %v1256
      %v1601 = vpack.c.b16 %v1265, %v1257
      %v1602 = vpack.c.b16 %v1266, %v1258
      %v1603 = vpack.c.b16 %v1267, %v1259
      %v1604 = vpack.c.b16 %v1276, %v1268
      %v1605 = vpack.c.b16 %v1277, %v1269
      %v1606 = vpack.c.b16 %v1278, %v1270
      %v1607 = vpack.c.b16 %v1279, %v1271
      %v1608 = vpack.c.b16 %v1280, %v1272
      %v1609 = vpack.c.b16 %v1281, %v1273
      %v1610 = vpack.c.b16 %v1282, %v1274
      %v1611 = vpack.c.b16 %v1283, %v1275
      %v1612 = vpack.c.b16 %v1292, %v1284
      %v1613 = vpack.c.b16 %v1293, %v1285
      %v1614 = vpack.c.b16 %v1294, %v1286
      %v1615 = vpack.c.b16 %v1295, %v1287
      %v1616 = vpack.c.b16 %v1296, %v1288
      %v1617 = vpack.c.b16 %v1297, %v1289
      %v1618 = vpack.c.b16 %v1298, %v1290
      %v1619 = vpack.c.b16 %v1299, %v1291
      %v1620 = vpack.c.b16 %v1308, %v1300
      %v1621 = vpack.c.b16 %v1309, %v1301
      %v1622 = vpack.c.b16 %v1310, %v1302
      %v1623 = vpack.c.b16 %v1311, %v1303
      %v1624 = vpack.c.b16 %v1312, %v1304
      %v1625 = vpack.c.b16 %v1313, %v1305
      %v1626 = vpack.c.b16 %v1314, %v1306
      %v1627 = vpack.c.b16 %v1315, %v1307
      %v1628 = vpack.c.b16 %v1324, %v1316
      %v1629 = vpack.c.b16 %v1325, %v1317
      %v1630 = vpack.c.b16 %v1326, %v1318
      %v1631 = vpack.c.b16 %v1327, %v1319
      %v1632 = vpack.c.b16 %v1328, %v1320
      %v1633 = vpack.c.b16 %v1329, %v1321
      %v1634 = vpack.c.b16 %v1330, %v1322
      %v1635 = vpack.c.b16 %v1331, %v1323
      %v1636 = vpack.c.b16 %v1340, %v1332
      %v1637 = vpack.c.b16 %v1341, %v1333
      %v1638 = vpack.c.b16 %v1342, %v1334
      %v1639 = vpack.c.b16 %v1343, %v1335
      %v1640 = vpack.c.b16 %v1344, %v1336
      %v1641 = vpack.c.b16 %v1345, %v1337
      %v1642 = vpack.c.b16 %v1346, %v1338
      %v1643 = vpack.c.b16 %v1347, %v1339
      %v1644 = vpack.c.b16 %v1356, %v1348
      %v1645 = vpack.c.b16 %v1357, %v1349
      %v1646 = vpack.c.b16 %v1358, %v1350
      %v1647 = vpack.c.b16 %v1359, %v1351
      %v1648 = vpack.c.b16 %v1360, %v1352
      %v1649 = vpack.c.b16 %v1361, %v1353
      %v1650 = vpack.c.b16 %v1362, %v1354
      %v1651 = vpack.c.b16 %v1363, %v1355
      %v1652 = vpack.c.b16 %v1372, %v1364
      %v1653 = vpack.c.b16 %v1373, %v1365
      %v1654 = vpack.c.b16 %v1374, %v1366
      %v1655 = vpack.c.b16 %v1375, %v1367
      %v1656 = vpack.c.b16 %v1376, %v1368
      %v1657 = vpack.c.b16 %v1377, %v1369
      %v1658 = vpack.c.b16 %v1378, %v1370
      %v1659 = vpack.c.b16 %v1379, %v1371
      %v1660 = vpack.c.b16 %v1388, %v1380
      %v1661 = vpack.c.b16 %v1389, %v1381
      %v1662 = vpack.c.b16 %v1390, %v1382
      %v1663 = vpack.c.b16 %v1391, %v1383
      %v1664 = vpack.c.b16 %v1392, %v1384
      %v1665 = vpack.c.b16 %v1393, %v1385
      %v1666 = vpack.c.b16 %v1394, %v1386
      %v1667 = vpack.c.b16 %v1395, %v1387
      %v1668 = vpack.c.b16 %v1404, %v1396
      %v1669 = vpack.c.b16 %v1405, %v1397
      %v1670 = vpack.c.b16 %v1406, %v1398
      %v1671 = vpack.c.b16 %v1407, %v1399
      %v1672 = vpack.c.b16 %v1408, %v1400
      %v1673 = vpack.c.b16 %v1409, %v1401
      %v1674 = vpack.c.b16 %v1410, %v1402
      %v1675 = vpack.c.b16 %v1411, %v1403
      %v1676 = vpack.c.b16 %v1420, %v1412
      %v1677 = vpack.c.b16 %v1421, %v1413
      %v1678 = vpack.c.b16 %v1422, %v1414
      %v1679 = vpack.c.b16 %v1423, %v1415
      %v1680 = vpack.c.b16 %v1424, %v1416
      %v1681 = vpack.c.b16 %v1425, %v1417
      %v1682 = vpack.c.b16 %v1426, %v1418
      %v1683 = vpack.c.b16 %v1427, %v1419
      %v2068 = vunpack.c.l.b16 %v532
      %v2069 = vunpack.c.l.b16 %v533
      %v2070 = vunpack.c.l.b16 %v534
      %v2071 = vunpack.c.l.b16 %v535
      %v2072 = vunpack.c.l.b16 %v536
      %v2073 = vunpack.c.l.b16 %v537
      %v2074 = vunpack.c.l.b16 %v538
      %v2075 = vunpack.c.l.b16 %v539
      %v2076 = vunpack.c.l.b16 %v540
      %v2077 = vunpack.c.l.b16 %v541
      %v2078 = vunpack.c.l.b16 %v542
      %v2079 = vunpack.c.l.b16 %v543
      %v2080 = vunpack.c.l.b16 %v544
      %v2081 = vunpack.c.l.b16 %v545
      %v2082 = vunpack.c.l.b16 %v546
      %v2083 = vunpack.c.l.b16 %v547
      %v2084 = vunpack.c.l.b16 %v548
      %v2085 = vunpack.c.l.b16 %v549
      %v2086 = vunpack.c.l.b16 %v550
      %v2087 = vunpack.c.l.b16 %v551
      %v2088 = vunpack.c.l.b16 %v552
      %v2089 = vunpack.c.l.b16 %v553
      %v2090 = vunpack.c.l.b16 %v554
      %v2091 = vunpack.c.l.b16 %v555
      %v2092 = vunpack.c.l.b16 %v556
      %v2093 = vunpack.c.l.b16 %v557
      %v2094 = vunpack.c.l.b16 %v558
      %v2095 = vunpack.c.l.b16 %v559
      %v2096 = vunpack.c.l.b16 %v560
      %v2097 = vunpack.c.l.b16 %v561
      %v2098 = vunpack.c.l.b16 %v562
      %v2099 = vunpack.c.l.b16 %v563
      %v2100 = vunpack.c.l.b16 %v564
      %v2101 = vunpack.c.l.b16 %v565
      %v2102 = vunpack.c.l.b16 %v566
      %v2103 = vunpack.c.l.b16 %v567
      %v2104 = vunpack.c.l.b16 %v568
      %v2105 = vunpack.c.l.b16 %v569
      %v2106 = vunpack.c.l.b16 %v570
      %v2107 = vunpack.c.l.b16 %v571
      %v2108 = vunpack.c.l.b16 %v572
      %v2109 = vunpack.c.l.b16 %v573
      %v2110 = vunpack.c.l.b16 %v574
      %v2111 = vunpack.c.l.b16 %v575
      %v2112 = vunpack.c.l.b16 %v576
      %v2113 = vunpack.c.l.b16 %v577
      %v2114 = vunpack.c.l.b16 %v578
      %v2115 = vunpack.c.l.b16 %v579
      %v2116 = vunpack.c.l.b16 %v580
      %v2117 = vunpack.c.l.b16 %v581
      %v2118 = vunpack.c.l.b16 %v582
      %v2119 = vunpack.c.l.b16 %v583
      %v2120 = vunpack.c.l.b16 %v584
      %v2121 = vunpack.c.l.b16 %v585
      %v2122 = vunpack.c.l.b16 %v586
      %v2123 = vunpack.c.l.b16 %v587
      %v2124 = vunpack.c.l.b16 %v588
      %v2125 = vunpack.c.l.b16 %v589
      %v2126 = vunpack.c.l.b16 %v590
      %v2127 = vunpack.c.l.b16 %v591
      %v2128 = vunpack.c.l.b16 %v592
      %v2129 = vunpack.c.l.b16 %v593
      %v2130 = vunpack.c.l.b16 %v594
      %v2131 = vunpack.c.l.b16 %v595
      %v2132 = vunpack.c.l.b16 %v596
      %v2133 = vunpack.c.l.b16 %v597
      %v2134 = vunpack.c.l.b16 %v598
      %v2135 = vunpack.c.l.b16 %v599
      %v2136 = vunpack.c.l.b16 %v600
      %v2137 = vunpack.c.l.b16 %v601
      %v2138 = vunpack.c.l.b16 %v602
      %v2139 = vunpack.c.l.b16 %v603
      %v2140 = vunpack.c.l.b16 %v604
      %v2141 = vunpack.c.l.b16 %v605
      %v2142 = vunpack.c.l.b16 %v606
      %v2143 = vunpack.c.l.b16 %v607
      %v2144 = vunpack.c.l.b16 %v608
      %v2145 = vunpack.c.l.b16 %v609
      %v2146 = vunpack.c.l.b16 %v610
      %v2147 = vunpack.c.l.b16 %v611
      %v2148 = vunpack.c.l.b16 %v612
      %v2149 = vunpack.c.l.b16 %v613
      %v2150 = vunpack.c.l.b16 %v614
      %v2151 = vunpack.c.l.b16 %v615
      %v2152 = vunpack.c.l.b16 %v616
      %v2153 = vunpack.c.l.b16 %v617
      %v2154 = vunpack.c.l.b16 %v618
      %v2155 = vunpack.c.l.b16 %v619
      %v2156 = vunpack.c.l.b16 %v620
      %v2157 = vunpack.c.l.b16 %v621
      %v2158 = vunpack.c.l.b16 %v622
      %v2159 = vunpack.c.l.b16 %v623
      %v2160 = vunpack.c.l.b16 %v624
      %v2161 = vunpack.c.l.b16 %v625
      %v2162 = vunpack.c.l.b16 %v626
      %v2163 = vunpack.c.l.b16 %v627
      %v2164 = vunpack.c.l.b16 %v628
      %v2165 = vunpack.c.l.b16 %v629
      %v2166 = vunpack.c.l.b16 %v630
      %v2167 = vunpack.c.l.b16 %v631
      %v2168 = vunpack.c.l.b16 %v632
      %v2169 = vunpack.c.l.b16 %v633
      %v2170 = vunpack.c.l.b16 %v634
      %v2171 = vunpack.c.l.b16 %v635
      %v2172 = vunpack.c.l.b16 %v636
      %v2173 = vunpack.c.l.b16 %v637
      %v2174 = vunpack.c.l.b16 %v638
      %v2175 = vunpack.c.l.b16 %v639
      %v2176 = vunpack.c.l.b16 %v640
      %v2177 = vunpack.c.l.b16 %v641
      %v2178 = vunpack.c.l.b16 %v642
      %v2179 = vunpack.c.l.b16 %v643
      %v2180 = vunpack.c.l.b16 %v644
      %v2181 = vunpack.c.l.b16 %v645
      %v2182 = vunpack.c.l.b16 %v646
      %v2183 = vunpack.c.l.b16 %v647
      %v2184 = vunpack.c.l.b16 %v648
      %v2185 = vunpack.c.l.b16 %v649
      %v2186 = vunpack.c.l.b16 %v650
      %v2187 = vunpack.c.l.b16 %v651
      %v2188 = vunpack.c.l.b16 %v652
      %v2189 = vunpack.c.l.b16 %v653
      %v2190 = vunpack.c.l.b16 %v654
      %v2191 = vunpack.c.l.b16 %v655
      %v2192 = vunpack.c.l.b16 %v656
      %v2193 = vunpack.c.l.b16 %v657
      %v2194 = vunpack.c.l.b16 %v658
      %v2195 = vunpack.c.l.b16 %v659
      %v2196 = vpack.c.b16 %v2069, %v2068
      %v2197 = vpack.c.b16 %v2071, %v2070
      %v2198 = vpack.c.b16 %v2073, %v2072
      %v2199 = vpack.c.b16 %v2075, %v2074
      %v2200 = vpack.c.b16 %v2077, %v2076
      %v2201 = vpack.c.b16 %v2079, %v2078
      %v2202 = vpack.c.b16 %v2081, %v2080
      %v2203 = vpack.c.b16 %v2083, %v2082
      %v2204 = vpack.c.b16 %v2085, %v2084
      %v2205 = vpack.c.b16 %v2087, %v2086
      %v2206 = vpack.c.b16 %v2089, %v2088
      %v2207 = vpack.c.b16 %v2091, %v2090
      %v2208 = vpack.c.b16 %v2093, %v2092
      %v2209 = vpack.c.b16 %v2095, %v2094
      %v2210 = vpack.c.b16 %v2097, %v2096
      %v2211 = vpack.c.b16 %v2099, %v2098
      %v2212 = vpack.c.b16 %v2101, %v2100
      %v2213 = vpack.c.b16 %v2103, %v2102
      %v2214 = vpack.c.b16 %v2105, %v2104
      %v2215 = vpack.c.b16 %v2107, %v2106
      %v2216 = vpack.c.b16 %v2109, %v2108
      %v2217 = vpack.c.b16 %v2111, %v2110
      %v2218 = vpack.c.b16 %v2113, %v2112
      %v2219 = vpack.c.b16 %v2115, %v2114
      %v2220 = vpack.c.b16 %v2117, %v2116
      %v2221 = vpack.c.b16 %v2119, %v2118
      %v2222 = vpack.c.b16 %v2121, %v2120
      %v2223 = vpack.c.b16 %v2123, %v2122
      %v2224 = vpack.c.b16 %v2125, %v2124
      %v2225 = vpack.c.b16 %v2127, %v2126
      %v2226 = vpack.c.b16 %v2129, %v2128
      %v2227 = vpack.c.b16 %v2131, %v2130
      %v2228 = vpack.c.b16 %v2133, %v2132
      %v2229 = vpack.c.b16 %v2135, %v2134
      %v2230 = vpack.c.b16 %v2137, %v2136
      %v2231 = vpack.c.b16 %v2139, %v2138
      %v2232 = vpack.c.b16 %v2141, %v2140
      %v2233 = vpack.c.b16 %v2143, %v2142
      %v2234 = vpack.c.b16 %v2145, %v2144
      %v2235 = vpack.c.b16 %v2147, %v2146
      %v2236 = vpack.c.b16 %v2149, %v2148
      %v2237 = vpack.c.b16 %v2151, %v2150
      %v2238 = vpack.c.b16 %v2153, %v2152
      %v2239 = vpack.c.b16 %v2155, %v2154
      %v2240 = vpack.c.b16 %v2157, %v2156
      %v2241 = vpack.c.b16 %v2159, %v2158
      %v2242 = vpack.c.b16 %v2161, %v2160
      %v2243 = vpack.c.b16 %v2163, %v2162
      %v2244 = vpack.c.b16 %v2165, %v2164
      %v2245 = vpack.c.b16 %v2167, %v2166
      %v2246 = vpack.c.b16 %v2169, %v2168
      %v2247 = vpack.c.b16 %v2171, %v2170
      %v2248 = vpack.c.b16 %v2173, %v2172
      %v2249 = vpack.c.b16 %v2175, %v2174
      %v2250 = vpack.c.b16 %v2177, %v2176
      %v2251 = vpack.c.b16 %v2179, %v2178
      %v2252 = vpack.c.b16 %v2181, %v2180
      %v2253 = vpack.c.b16 %v2183, %v2182
      %v2254 = vpack.c.b16 %v2185, %v2184
      %v2255 = vpack.c.b16 %v2187, %v2186
      %v2256 = vpack.c.b16 %v2189, %v2188
      %v2257 = vpack.c.b16 %v2191, %v2190
      %v2258 = vpack.c.b16 %v2193, %v2192
      %v2259 = vpack.c.b16 %v2195, %v2194
      %2324 = vmatprep.subr.bf16.mxu0 0
      %2325 = vmatpush1.bf16.msra.mxu0 %v2196
      %2326 = vmatprep.subr.bf16.mxu0 0
      %2327 = vmatpush1.bf16.msra.mxu0 %v2197
      %2328 = vmatprep.subr.bf16.mxu0 0
      %2329 = vmatpush1.bf16.msra.mxu0 %v2198
      %2330 = vmatprep.subr.bf16.mxu0 0
      %2331 = vmatpush1.bf16.msra.mxu0 %v2199
      %2332 = vmatprep.subr.bf16.mxu0 0
      %2333 = vmatpush1.bf16.msra.mxu0 %v2200
      %2334 = vmatprep.subr.bf16.mxu0 0
      %2335 = vmatpush1.bf16.msra.mxu0 %v2201
      %2336 = vmatprep.subr.bf16.mxu0 0
      %2337 = vmatpush1.bf16.msra.mxu0 %v2202
      %2338 = vmatprep.subr.bf16.mxu0 0
      %2339 = vmatpush1.bf16.msra.mxu0 %v2203
      %2340 = vmatprep.subr.bf16.mxu0 0
      %2341 = vmatpush1.bf16.msra.mxu0 %v2204
      %2342 = vmatprep.subr.bf16.mxu0 0
      %2343 = vmatpush1.bf16.msra.mxu0 %v2205
      %2344 = vmatprep.subr.bf16.mxu0 0
      %2345 = vmatpush1.bf16.msra.mxu0 %v2206
      %2346 = vmatprep.subr.bf16.mxu0 0
      %2347 = vmatpush1.bf16.msra.mxu0 %v2207
      %2348 = vmatprep.subr.bf16.mxu0 0
      %2349 = vmatpush1.bf16.msra.mxu0 %v2208
      %2350 = vmatprep.subr.bf16.mxu0 0
      %2351 = vmatpush1.bf16.msra.mxu0 %v2209
      %2352 = vmatprep.subr.bf16.mxu0 0
      %2353 = vmatpush1.bf16.msra.mxu0 %v2210
      %2354 = vmatprep.subr.bf16.mxu0 0
      %2355 = vmatpush1.bf16.msra.mxu0 %v2211
      %2356 = vmatprep.mubr.bf16.mxu0 %v1429
      %2357 = vmatmul.mubr.bf16.gmra.mrb[0].mxu0 %v1428
      %v2358 = vpop.f32.mrb[0].mxu0
      %v2359 = vadd.f32 0.0, %v2358
      %v2360 = vpop.f32.mrb[0].mxu0
      %v2361 = vpop.f32.mrb[0].mxu0
      %v2362 = vadd.f32 0.0, %v2361
      %v2363 = vpop.f32.mrb[0].mxu0
      %2364 = vmatprep.mubr.bf16.mxu0 %v1437
      %2365 = vmatmul.mubr.bf16.gmra.mrb[0].mxu0 %v1436
      %v2366 = vpop.f32.mrb[0].mxu0
      %v2367 = vadd.f32 0.0, %v2366
      %v2368 = vpop.f32.mrb[0].mxu0
      %v2369 = vpop.f32.mrb[0].mxu0
      %v2370 = vadd.f32 0.0, %v2369
      %v2371 = vpop.f32.mrb[0].mxu0
      %2372 = vmatprep.mubr.bf16.mxu0 %v1445
      %2373 = vmatmul.mubr.bf16.gmra.mrb[0].mxu0 %v1444
      %v2374 = vpop.f32.mrb[0].mxu0
      %v2375 = vadd.f32 0.0, %v2374
      %v2376 = vpop.f32.mrb[0].mxu0
      %v2377 = vpop.f32.mrb[0].mxu0
      %v2378 = vadd.f32 0.0, %v2377
      %v2379 = vpop.f32.mrb[0].mxu0
      %2380 = vmatprep.mubr.bf16.mxu0 %v1453
      %2381 = vmatmul.mubr.bf16.gmra.mrb[0].mxu0 %v1452
      %v2382 = vpop.f32.mrb[0].mxu0
      %v2383 = vadd.f32 0.0, %v2382
      %v2384 = vpop.f32.mrb[0].mxu0
      %v2385 = vpop.f32.mrb[0].mxu0
      %v2386 = vadd.f32 0.0, %v2385
      %v2387 = vpop.f32.mrb[0].mxu0
      %2388 = vmatprep.mubr.bf16.mxu0 %v1461
      %2389 = vmatmul.mubr.bf16.gmra.mrb[0].mxu0 %v1460
      %v2390 = vpop.f32.mrb[0].mxu0
      %v2391 = vadd.f32 0.0, %v2390
      %v2392 = vpop.f32.mrb[0].mxu0
      %v2393 = vpop.f32.mrb[0].mxu0
      %v2394 = vadd.f32 0.0, %v2393
      %v2395 = vpop.f32.mrb[0].mxu0
      %2396 = vmatprep.mubr.bf16.mxu0 %v1469
      %2397 = vmatmul.mubr.bf16.gmra.mrb[0].mxu0 %v1468
      %v2398 = vpop.f32.mrb[0].mxu0
      %v2399 = vadd.f32 0.0, %v2398
      %v2400 = vpop.f32.mrb[0].mxu0
      %v2401 = vpop.f32.mrb[0].mxu0
      %v2402 = vadd.f32 0.0, %v2401
      %v2403 = vpop.f32.mrb[0].mxu0
      %2404 = vmatprep.mubr.bf16.mxu0 %v1477
      %2405 = vmatmul.mubr.bf16.gmra.mrb[0].mxu0 %v1476
      %v2406 = vpop.f32.mrb[0].mxu0
      %v2407 = vadd.f32 0.0, %v2406
      %v2408 = vpop.f32.mrb[0].mxu0
      %v2409 = vpop.f32.mrb[0].mxu0
      %v2410 = vadd.f32 0.0, %v2409
      %v2411 = vpop.f32.mrb[0].mxu0
      %2412 = vmatprep.mubr.bf16.mxu0 %v1485
      %2413 = vmatmul.mubr.bf16.gmra.mrb[0].mxu0 %v1484
      %v2414 = vpop.f32.mrb[0].mxu0
      %v2415 = vadd.f32 0.0, %v2414
      %v2416 = vpop.f32.mrb[0].mxu0
      %v2417 = vpop.f32.mrb[0].mxu0
      %v2418 = vadd.f32 0.0, %v2417
      %v2419 = vpop.f32.mrb[0].mxu0
      %2420 = vmatprep.mubr.bf16.mxu0 %v1493
      %2421 = vmatmul.mubr.bf16.gmra.mrb[0].mxu0 %v1492
      %v2422 = vpop.f32.mrb[0].mxu0
      %v2423 = vadd.f32 0.0, %v2422
      %v2424 = vpop.f32.mrb[0].mxu0
      %v2425 = vpop.f32.mrb[0].mxu0
      %v2426 = vadd.f32 0.0, %v2425
      %v2427 = vpop.f32.mrb[0].mxu0
      %2428 = vmatprep.mubr.bf16.mxu0 %v1501
      %2429 = vmatmul.mubr.bf16.gmra.mrb[0].mxu0 %v1500
      %v2430 = vpop.f32.mrb[0].mxu0
      %v2431 = vadd.f32 0.0, %v2430
      %v2432 = vpop.f32.mrb[0].mxu0
      %v2433 = vpop.f32.mrb[0].mxu0
      %v2434 = vadd.f32 0.0, %v2433
      %v2435 = vpop.f32.mrb[0].mxu0
      %2436 = vmatprep.mubr.bf16.mxu0 %v1509
      %2437 = vmatmul.mubr.bf16.gmra.mrb[0].mxu0 %v1508
      %v2438 = vpop.f32.mrb[0].mxu0
      %v2439 = vadd.f32 0.0, %v2438
      %v2440 = vpop.f32.mrb[0].mxu0
      %v2441 = vpop.f32.mrb[0].mxu0
      %v2442 = vadd.f32 0.0, %v2441
      %v2443 = vpop.f32.mrb[0].mxu0
      %2444 = vmatprep.mubr.bf16.mxu0 %v1517
      %2445 = vmatmul.mubr.bf16.gmra.mrb[0].mxu0 %v1516
      %v2446 = vpop.f32.mrb[0].mxu0
      %v2447 = vadd.f32 0.0, %v2446
      %v2448 = vpop.f32.mrb[0].mxu0
      %v2449 = vpop.f32.mrb[0].mxu0
      %v2450 = vadd.f32 0.0, %v2449
      %v2451 = vpop.f32.mrb[0].mxu0
      %2452 = vmatprep.mubr.bf16.mxu0 %v1525
      %2453 = vmatmul.mubr.bf16.gmra.mrb[0].mxu0 %v1524
      %v2454 = vpop.f32.mrb[0].mxu0
      %v2455 = vadd.f32 0.0, %v2454
      %v2456 = vpop.f32.mrb[0].mxu0
      %v2457 = vpop.f32.mrb[0].mxu0
      %v2458 = vadd.f32 0.0, %v2457
      %v2459 = vpop.f32.mrb[0].mxu0
      %2460 = vmatprep.mubr.bf16.mxu0 %v1533
      %2461 = vmatmul.mubr.bf16.gmra.mrb[0].mxu0 %v1532
      %v2462 = vpop.f32.mrb[0].mxu0
      %v2463 = vadd.f32 0.0, %v2462
      %v2464 = vpop.f32.mrb[0].mxu0
      %v2465 = vpop.f32.mrb[0].mxu0
      %v2466 = vadd.f32 0.0, %v2465
      %v2467 = vpop.f32.mrb[0].mxu0
      %2468 = vmatprep.mubr.bf16.mxu0 %v1541
      %2469 = vmatmul.mubr.bf16.gmra.mrb[0].mxu0 %v1540
      %v2470 = vpop.f32.mrb[0].mxu0
      %v2471 = vadd.f32 0.0, %v2470
      %v2472 = vpop.f32.mrb[0].mxu0
      %v2473 = vpop.f32.mrb[0].mxu0
      %v2474 = vadd.f32 0.0, %v2473
      %v2475 = vpop.f32.mrb[0].mxu0
      %2476 = vmatprep.mubr.bf16.mxu0 %v1549
      %2477 = vmatmul.mubr.bf16.gmra.mrb[0].mxu0 %v1548
      %v2478 = vpop.f32.mrb[0].mxu0
      %v2479 = vadd.f32 0.0, %v2478
      %v2480 = vpop.f32.mrb[0].mxu0
      %v2481 = vpop.f32.mrb[0].mxu0
      %v2482 = vadd.f32 0.0, %v2481
      %v2483 = vpop.f32.mrb[0].mxu0
      %2484 = vmatprep.mubr.bf16.mxu0 %v1557
      %2485 = vmatmul.mubr.bf16.gmra.mrb[0].mxu0 %v1556
      %v2486 = vpop.f32.mrb[0].mxu0
      %v2487 = vadd.f32 0.0, %v2486
      %v2488 = vpop.f32.mrb[0].mxu0
      %v2489 = vpop.f32.mrb[0].mxu0
      %v2490 = vadd.f32 0.0, %v2489
      %v2491 = vpop.f32.mrb[0].mxu0
      %2492 = vmatprep.mubr.bf16.mxu0 %v1565
      %2493 = vmatmul.mubr.bf16.gmra.mrb[0].mxu0 %v1564
      %v2494 = vpop.f32.mrb[0].mxu0
      %v2495 = vadd.f32 0.0, %v2494
      %v2496 = vpop.f32.mrb[0].mxu0
      %v2497 = vpop.f32.mrb[0].mxu0
      %v2498 = vadd.f32 0.0, %v2497
      %v2499 = vpop.f32.mrb[0].mxu0
      %2500 = vmatprep.mubr.bf16.mxu0 %v1573
      %2501 = vmatmul.mubr.bf16.gmra.mrb[0].mxu0 %v1572
      %v2502 = vpop.f32.mrb[0].mxu0
      %v2503 = vadd.f32 0.0, %v2502
      %v2504 = vpop.f32.mrb[0].mxu0
      %v2505 = vpop.f32.mrb[0].mxu0
      %v2506 = vadd.f32 0.0, %v2505
      %v2507 = vpop.f32.mrb[0].mxu0
      %2508 = vmatprep.mubr.bf16.mxu0 %v1581
      %2509 = vmatmul.mubr.bf16.gmra.mrb[0].mxu0 %v1580
      %v2510 = vpop.f32.mrb[0].mxu0
      %v2511 = vadd.f32 0.0, %v2510
      %v2512 = vpop.f32.mrb[0].mxu0
      %v2513 = vpop.f32.mrb[0].mxu0
      %v2514 = vadd.f32 0.0, %v2513
      %v2515 = vpop.f32.mrb[0].mxu0
      %2516 = vmatprep.mubr.bf16.mxu0 %v1589
      %2517 = vmatmul.mubr.bf16.gmra.mrb[0].mxu0 %v1588
      %v2518 = vpop.f32.mrb[0].mxu0
      %v2519 = vadd.f32 0.0, %v2518
      %v2520 = vpop.f32.mrb[0].mxu0
      %v2521 = vpop.f32.mrb[0].mxu0
      %v2522 = vadd.f32 0.0, %v2521
      %v2523 = vpop.f32.mrb[0].mxu0
      %2524 = vmatprep.mubr.bf16.mxu0 %v1597
      %2525 = vmatmul.mubr.bf16.gmra.mrb[0].mxu0 %v1596
      %v2526 = vpop.f32.mrb[0].mxu0
      %v2527 = vadd.f32 0.0, %v2526
      %v2528 = vpop.f32.mrb[0].mxu0
      %v2529 = vpop.f32.mrb[0].mxu0
      %v2530 = vadd.f32 0.0, %v2529
      %v2531 = vpop.f32.mrb[0].mxu0
      %2532 = vmatprep.mubr.bf16.mxu0 %v1605
      %2533 = vmatmul.mubr.bf16.gmra.mrb[0].mxu0 %v1604
      %v2534 = vpop.f32.mrb[0].mxu0
      %v2535 = vadd.f32 0.0, %v2534
      %v2536 = vpop.f32.mrb[0].mxu0
      %v2537 = vpop.f32.mrb[0].mxu0
      %v2538 = vadd.f32 0.0, %v2537
      %v2539 = vpop.f32.mrb[0].mxu0
      %2540 = vmatprep.mubr.bf16.mxu0 %v1613
      %2541 = vmatmul.mubr.bf16.gmra.mrb[0].mxu0 %v1612
      %v2542 = vpop.f32.mrb[0].mxu0
      %v2543 = vadd.f32 0.0, %v2542
      %v2544 = vpop.f32.mrb[0].mxu0
      %v2545 = vpop.f32.mrb[0].mxu0
      %v2546 = vadd.f32 0.0, %v2545
      %v2547 = vpop.f32.mrb[0].mxu0
      %2548 = vmatprep.mubr.bf16.mxu0 %v1621
      %2549 = vmatmul.mubr.bf16.gmra.mrb[0].mxu0 %v1620
      %v2550 = vpop.f32.mrb[0].mxu0
      %v2551 = vadd.f32 0.0, %v2550
      %v2552 = vpop.f32.mrb[0].mxu0
      %v2553 = vpop.f32.mrb[0].mxu0
      %v2554 = vadd.f32 0.0, %v2553
      %v2555 = vpop.f32.mrb[0].mxu0
      %2556 = vmatprep.mubr.bf16.mxu0 %v1629
      %2557 = vmatmul.mubr.bf16.gmra.mrb[0].mxu0 %v1628
      %v2558 = vpop.f32.mrb[0].mxu0
      %v2559 = vadd.f32 0.0, %v2558
      %v2560 = vpop.f32.mrb[0].mxu0
      %v2561 = vpop.f32.mrb[0].mxu0
      %v2562 = vadd.f32 0.0, %v2561
      %v2563 = vpop.f32.mrb[0].mxu0
      %2564 = vmatprep.mubr.bf16.mxu0 %v1637
      %2565 = vmatmul.mubr.bf16.gmra.mrb[0].mxu0 %v1636
      %v2566 = vpop.f32.mrb[0].mxu0
      %v2567 = vadd.f32 0.0, %v2566
      %v2568 = vpop.f32.mrb[0].mxu0
      %v2569 = vpop.f32.mrb[0].mxu0
      %v2570 = vadd.f32 0.0, %v2569
      %v2571 = vpop.f32.mrb[0].mxu0
      %2572 = vmatprep.mubr.bf16.mxu0 %v1645
      %2573 = vmatmul.mubr.bf16.gmra.mrb[0].mxu0 %v1644
      %v2574 = vpop.f32.mrb[0].mxu0
      %v2575 = vadd.f32 0.0, %v2574
      %v2576 = vpop.f32.mrb[0].mxu0
      %v2577 = vpop.f32.mrb[0].mxu0
      %v2578 = vadd.f32 0.0, %v2577
      %v2579 = vpop.f32.mrb[0].mxu0
      %2580 = vmatprep.mubr.bf16.mxu0 %v1653
      %2581 = vmatmul.mubr.bf16.gmra.mrb[0].mxu0 %v1652
      %v2582 = vpop.f32.mrb[0].mxu0
      %v2583 = vadd.f32 0.0, %v2582
      %v2584 = vpop.f32.mrb[0].mxu0
      %v2585 = vpop.f32.mrb[0].mxu0
      %v2586 = vadd.f32 0.0, %v2585
      %v2587 = vpop.f32.mrb[0].mxu0
      %2588 = vmatprep.mubr.bf16.mxu0 %v1661
      %2589 = vmatmul.mubr.bf16.gmra.mrb[0].mxu0 %v1660
      %v2590 = vpop.f32.mrb[0].mxu0
      %v2591 = vadd.f32 0.0, %v2590
      %v2592 = vpop.f32.mrb[0].mxu0
      %v2593 = vpop.f32.mrb[0].mxu0
      %v2594 = vadd.f32 0.0, %v2593
      %v2595 = vpop.f32.mrb[0].mxu0
      %2596 = vmatprep.mubr.bf16.mxu0 %v1669
      %2597 = vmatmul.mubr.bf16.gmra.mrb[0].mxu0 %v1668
      %v2598 = vpop.f32.mrb[0].mxu0
      %v2599 = vadd.f32 0.0, %v2598
      %v2600 = vpop.f32.mrb[0].mxu0
      %v2601 = vpop.f32.mrb[0].mxu0
      %v2602 = vadd.f32 0.0, %v2601
      %v2603 = vpop.f32.mrb[0].mxu0
      %2604 = vmatprep.mubr.bf16.mxu0 %v1677
      %2605 = vmatmul.mubr.bf16.gmra.mrb[0].mxu0 %v1676
      %v2606 = vpop.f32.mrb[0].mxu0
      %v2607 = vadd.f32 0.0, %v2606
      %v2608 = vpop.f32.mrb[0].mxu0
      %v2609 = vpop.f32.mrb[0].mxu0
      %v2610 = vadd.f32 0.0, %v2609
      %v2611 = vpop.f32.mrb[0].mxu0
      %2612 = vdwg.mxu0
      %2613 = vmatprep.subr.bf16.mxu0 0
      %2614 = vmatpush1.bf16.msra.mxu0 %v2212
      %2615 = vmatprep.subr.bf16.mxu0 0
      %2616 = vmatpush1.bf16.msra.mxu0 %v2213
      %2617 = vmatprep.subr.bf16.mxu0 0
      %2618 = vmatpush1.bf16.msra.mxu0 %v2214
      %2619 = vmatprep.subr.bf16.mxu0 0
      %2620 = vmatpush1.bf16.msra.mxu0 %v2215
      %2621 = vmatprep.subr.bf16.mxu0 0
      %2622 = vmatpush1.bf16.msra.mxu0 %v2216
      %2623 = vmatprep.subr.bf16.mxu0 0
      %2624 = vmatpush1.bf16.msra.mxu0 %v2217
      %2625 = vmatprep.subr.bf16.mxu0 0
      %2626 = vmatpush1.bf16.msra.mxu0 %v2218
      %2627 = vmatprep.subr.bf16.mxu0 0
      %2628 = vmatpush1.bf16.msra.mxu0 %v2219
      %2629 = vmatprep.subr.bf16.mxu0 0
      %2630 = vmatpush1.bf16.msra.mxu0 %v2220
      %2631 = vmatprep.subr.bf16.mxu0 0
      %2632 = vmatpush1.bf16.msra.mxu0 %v2221
      %2633 = vmatprep.subr.bf16.mxu0 0
      %2634 = vmatpush1.bf16.msra.mxu0 %v2222
      %2635 = vmatprep.subr.bf16.mxu0 0
      %2636 = vmatpush1.bf16.msra.mxu0 %v2223
      %2637 = vmatprep.subr.bf16.mxu0 0
      %2638 = vmatpush1.bf16.msra.mxu0 %v2224
      %2639 = vmatprep.subr.bf16.mxu0 0
      %2640 = vmatpush1.bf16.msra.mxu0 %v2225
      %2641 = vmatprep.subr.bf16.mxu0 0
      %2642 = vmatpush1.bf16.msra.mxu0 %v2226
      %2643 = vmatprep.subr.bf16.mxu0 0
      %2644 = vmatpush1.bf16.msra.mxu0 %v2227
      %2645 = vmatprep.mubr.bf16.mxu0 %v1431
      %2646 = vmatmul.mubr.bf16.gmra.mrb[0].mxu0 %v1430
      %v2647 = vpop.f32.mrb[0].mxu0
      %v2648 = vadd.f32 %v2359, %v2647
      %v2649 = vpop.f32.mrb[0].mxu0
      %v2650 = vpop.f32.mrb[0].mxu0
      %v2651 = vadd.f32 %v2362, %v2650
      %v2652 = vpop.f32.mrb[0].mxu0
      %2653 = vmatprep.mubr.bf16.mxu0 %v1439
      %2654 = vmatmul.mubr.bf16.gmra.mrb[0].mxu0 %v1438
      %v2655 = vpop.f32.mrb[0].mxu0
      %v2656 = vadd.f32 %v2367, %v2655
      %v2657 = vpop.f32.mrb[0].mxu0
      %v2658 = vpop.f32.mrb[0].mxu0
      %v2659 = vadd.f32 %v2370, %v2658
      %v2660 = vpop.f32.mrb[0].mxu0
      %2661 = vmatprep.mubr.bf16.mxu0 %v1447
      %2662 = vmatmul.mubr.bf16.gmra.mrb[0].mxu0 %v1446
      %v2663 = vpop.f32.mrb[0].mxu0
      %v2664 = vadd.f32 %v2375, %v2663
      %v2665 = vpop.f32.mrb[0].mxu0
      %v2666 = vpop.f32.mrb[0].mxu0
      %v2667 = vadd.f32 %v2378, %v2666
      %v2668 = vpop.f32.mrb[0].mxu0
      %2669 = vmatprep.mubr.bf16.mxu0 %v1455
      %2670 = vmatmul.mubr.bf16.gmra.mrb[0].mxu0 %v1454
      %v2671 = vpop.f32.mrb[0].mxu0
      %v2672 = vadd.f32 %v2383, %v2671
      %v2673 = vpop.f32.mrb[0].mxu0
      %v2674 = vpop.f32.mrb[0].mxu0
      %v2675 = vadd.f32 %v2386, %v2674
      %v2676 = vpop.f32.mrb[0].mxu0
      %2677 = vmatprep.mubr.bf16.mxu0 %v1463
      %2678 = vmatmul.mubr.bf16.gmra.mrb[0].mxu0 %v1462
      %v2679 = vpop.f32.mrb[0].mxu0
      %v2680 = vadd.f32 %v2391, %v2679
      %v2681 = vpop.f32.mrb[0].mxu0
      %v2682 = vpop.f32.mrb[0].mxu0
      %v2683 = vadd.f32 %v2394, %v2682
      %v2684 = vpop.f32.mrb[0].mxu0
      %2685 = vmatprep.mubr.bf16.mxu0 %v1471
      %2686 = vmatmul.mubr.bf16.gmra.mrb[0].mxu0 %v1470
      %v2687 = vpop.f32.mrb[0].mxu0
      %v2688 = vadd.f32 %v2399, %v2687
      %v2689 = vpop.f32.mrb[0].mxu0
      %v2690 = vpop.f32.mrb[0].mxu0
      %v2691 = vadd.f32 %v2402, %v2690
      %v2692 = vpop.f32.mrb[0].mxu0
      %2693 = vmatprep.mubr.bf16.mxu0 %v1479
      %2694 = vmatmul.mubr.bf16.gmra.mrb[0].mxu0 %v1478
      %v2695 = vpop.f32.mrb[0].mxu0
      %v2696 = vadd.f32 %v2407, %v2695
      %v2697 = vpop.f32.mrb[0].mxu0
      %v2698 = vpop.f32.mrb[0].mxu0
      %v2699 = vadd.f32 %v2410, %v2698
      %v2700 = vpop.f32.mrb[0].mxu0
      %2701 = vmatprep.mubr.bf16.mxu0 %v1487
      %2702 = vmatmul.mubr.bf16.gmra.mrb[0].mxu0 %v1486
      %v2703 = vpop.f32.mrb[0].mxu0
      %v2704 = vadd.f32 %v2415, %v2703
      %v2705 = vpop.f32.mrb[0].mxu0
      %v2706 = vpop.f32.mrb[0].mxu0
      %v2707 = vadd.f32 %v2418, %v2706
      %v2708 = vpop.f32.mrb[0].mxu0
      %2709 = vmatprep.mubr.bf16.mxu0 %v1495
      %2710 = vmatmul.mubr.bf16.gmra.mrb[0].mxu0 %v1494
      %v2711 = vpop.f32.mrb[0].mxu0
      %v2712 = vadd.f32 %v2423, %v2711
      %v2713 = vpop.f32.mrb[0].mxu0
      %v2714 = vpop.f32.mrb[0].mxu0
      %v2715 = vadd.f32 %v2426, %v2714
      %v2716 = vpop.f32.mrb[0].mxu0
      %2717 = vmatprep.mubr.bf16.mxu0 %v1503
      %2718 = vmatmul.mubr.bf16.gmra.mrb[0].mxu0 %v1502
      %v2719 = vpop.f32.mrb[0].mxu0
      %v2720 = vadd.f32 %v2431, %v2719
      %v2721 = vpop.f32.mrb[0].mxu0
      %v2722 = vpop.f32.mrb[0].mxu0
      %v2723 = vadd.f32 %v2434, %v2722
      %v2724 = vpop.f32.mrb[0].mxu0
      %2725 = vmatprep.mubr.bf16.mxu0 %v1511
      %2726 = vmatmul.mubr.bf16.gmra.mrb[0].mxu0 %v1510
      %v2727 = vpop.f32.mrb[0].mxu0
      %v2728 = vadd.f32 %v2439, %v2727
      %v2729 = vpop.f32.mrb[0].mxu0
      %v2730 = vpop.f32.mrb[0].mxu0
      %v2731 = vadd.f32 %v2442, %v2730
      %v2732 = vpop.f32.mrb[0].mxu0
      %2733 = vmatprep.mubr.bf16.mxu0 %v1519
      %2734 = vmatmul.mubr.bf16.gmra.mrb[0].mxu0 %v1518
      %v2735 = vpop.f32.mrb[0].mxu0
      %v2736 = vadd.f32 %v2447, %v2735
      %v2737 = vpop.f32.mrb[0].mxu0
      %v2738 = vpop.f32.mrb[0].mxu0
      %v2739 = vadd.f32 %v2450, %v2738
      %v2740 = vpop.f32.mrb[0].mxu0
      %2741 = vmatprep.mubr.bf16.mxu0 %v1527
      %2742 = vmatmul.mubr.bf16.gmra.mrb[0].mxu0 %v1526
      %v2743 = vpop.f32.mrb[0].mxu0
      %v2744 = vadd.f32 %v2455, %v2743
      %v2745 = vpop.f32.mrb[0].mxu0
      %v2746 = vpop.f32.mrb[0].mxu0
      %v2747 = vadd.f32 %v2458, %v2746
      %v2748 = vpop.f32.mrb[0].mxu0
      %2749 = vmatprep.mubr.bf16.mxu0 %v1535
      %2750 = vmatmul.mubr.bf16.gmra.mrb[0].mxu0 %v1534
      %v2751 = vpop.f32.mrb[0].mxu0
      %v2752 = vadd.f32 %v2463, %v2751
      %v2753 = vpop.f32.mrb[0].mxu0
      %v2754 = vpop.f32.mrb[0].mxu0
      %v2755 = vadd.f32 %v2466, %v2754
      %v2756 = vpop.f32.mrb[0].mxu0
      %2757 = vmatprep.mubr.bf16.mxu0 %v1543
      %2758 = vmatmul.mubr.bf16.gmra.mrb[0].mxu0 %v1542
      %v2759 = vpop.f32.mrb[0].mxu0
      %v2760 = vadd.f32 %v2471, %v2759
      %v2761 = vpop.f32.mrb[0].mxu0
      %v2762 = vpop.f32.mrb[0].mxu0
      %v2763 = vadd.f32 %v2474, %v2762
      %v2764 = vpop.f32.mrb[0].mxu0
      %2765 = vmatprep.mubr.bf16.mxu0 %v1551
      %2766 = vmatmul.mubr.bf16.gmra.mrb[0].mxu0 %v1550
      %v2767 = vpop.f32.mrb[0].mxu0
      %v2768 = vadd.f32 %v2479, %v2767
      %v2769 = vpop.f32.mrb[0].mxu0
      %v2770 = vpop.f32.mrb[0].mxu0
      %v2771 = vadd.f32 %v2482, %v2770
      %v2772 = vpop.f32.mrb[0].mxu0
      %2773 = vmatprep.mubr.bf16.mxu0 %v1559
      %2774 = vmatmul.mubr.bf16.gmra.mrb[0].mxu0 %v1558
      %v2775 = vpop.f32.mrb[0].mxu0
      %v2776 = vadd.f32 %v2487, %v2775
      %v2777 = vpop.f32.mrb[0].mxu0
      %v2778 = vpop.f32.mrb[0].mxu0
      %v2779 = vadd.f32 %v2490, %v2778
      %v2780 = vpop.f32.mrb[0].mxu0
      %2781 = vmatprep.mubr.bf16.mxu0 %v1567
      %2782 = vmatmul.mubr.bf16.gmra.mrb[0].mxu0 %v1566
      %v2783 = vpop.f32.mrb[0].mxu0
      %v2784 = vadd.f32 %v2495, %v2783
      %v2785 = vpop.f32.mrb[0].mxu0
      %v2786 = vpop.f32.mrb[0].mxu0
      %v2787 = vadd.f32 %v2498, %v2786
      %v2788 = vpop.f32.mrb[0].mxu0
      %2789 = vmatprep.mubr.bf16.mxu0 %v1575
      %2790 = vmatmul.mubr.bf16.gmra.mrb[0].mxu0 %v1574
      %v2791 = vpop.f32.mrb[0].mxu0
      %v2792 = vadd.f32 %v2503, %v2791
      %v2793 = vpop.f32.mrb[0].mxu0
      %v2794 = vpop.f32.mrb[0].mxu0
      %v2795 = vadd.f32 %v2506, %v2794
      %v2796 = vpop.f32.mrb[0].mxu0
      %2797 = vmatprep.mubr.bf16.mxu0 %v1583
      %2798 = vmatmul.mubr.bf16.gmra.mrb[0].mxu0 %v1582
      %v2799 = vpop.f32.mrb[0].mxu0
      %v2800 = vadd.f32 %v2511, %v2799
      %v2801 = vpop.f32.mrb[0].mxu0
      %v2802 = vpop.f32.mrb[0].mxu0
      %v2803 = vadd.f32 %v2514, %v2802
      %v2804 = vpop.f32.mrb[0].mxu0
      %2805 = vmatprep.mubr.bf16.mxu0 %v1591
      %2806 = vmatmul.mubr.bf16.gmra.mrb[0].mxu0 %v1590
      %v2807 = vpop.f32.mrb[0].mxu0
      %v2808 = vadd.f32 %v2519, %v2807
      %v2809 = vpop.f32.mrb[0].mxu0
      %v2810 = vpop.f32.mrb[0].mxu0
      %v2811 = vadd.f32 %v2522, %v2810
      %v2812 = vpop.f32.mrb[0].mxu0
      %2813 = vmatprep.mubr.bf16.mxu0 %v1599
      %2814 = vmatmul.mubr.bf16.gmra.mrb[0].mxu0 %v1598
      %v2815 = vpop.f32.mrb[0].mxu0
      %v2816 = vadd.f32 %v2527, %v2815
      %v2817 = vpop.f32.mrb[0].mxu0
      %v2818 = vpop.f32.mrb[0].mxu0
      %v2819 = vadd.f32 %v2530, %v2818
      %v2820 = vpop.f32.mrb[0].mxu0
      %2821 = vmatprep.mubr.bf16.mxu0 %v1607
      %2822 = vmatmul.mubr.bf16.gmra.mrb[0].mxu0 %v1606
      %v2823 = vpop.f32.mrb[0].mxu0
      %v2824 = vadd.f32 %v2535, %v2823
      %v2825 = vpop.f32.mrb[0].mxu0
      %v2826 = vpop.f32.mrb[0].mxu0
      %v2827 = vadd.f32 %v2538, %v2826
      %v2828 = vpop.f32.mrb[0].mxu0
      %2829 = vmatprep.mubr.bf16.mxu0 %v1615
      %2830 = vmatmul.mubr.bf16.gmra.mrb[0].mxu0 %v1614
      %v2831 = vpop.f32.mrb[0].mxu0
      %v2832 = vadd.f32 %v2543, %v2831
      %v2833 = vpop.f32.mrb[0].mxu0
      %v2834 = vpop.f32.mrb[0].mxu0
      %v2835 = vadd.f32 %v2546, %v2834
      %v2836 = vpop.f32.mrb[0].mxu0
      %2837 = vmatprep.mubr.bf16.mxu0 %v1623
      %2838 = vmatmul.mubr.bf16.gmra.mrb[0].mxu0 %v1622
      %v2839 = vpop.f32.mrb[0].mxu0
      %v2840 = vadd.f32 %v2551, %v2839
      %v2841 = vpop.f32.mrb[0].mxu0
      %v2842 = vpop.f32.mrb[0].mxu0
      %v2843 = vadd.f32 %v2554, %v2842
      %v2844 = vpop.f32.mrb[0].mxu0
      %2845 = vmatprep.mubr.bf16.mxu0 %v1631
      %2846 = vmatmul.mubr.bf16.gmra.mrb[0].mxu0 %v1630
      %v2847 = vpop.f32.mrb[0].mxu0
      %v2848 = vadd.f32 %v2559, %v2847
      %v2849 = vpop.f32.mrb[0].mxu0
      %v2850 = vpop.f32.mrb[0].mxu0
      %v2851 = vadd.f32 %v2562, %v2850
      %v2852 = vpop.f32.mrb[0].mxu0
      %2853 = vmatprep.mubr.bf16.mxu0 %v1639
      %2854 = vmatmul.mubr.bf16.gmra.mrb[0].mxu0 %v1638
      %v2855 = vpop.f32.mrb[0].mxu0
      %v2856 = vadd.f32 %v2567, %v2855
      %v2857 = vpop.f32.mrb[0].mxu0
      %v2858 = vpop.f32.mrb[0].mxu0
      %v2859 = vadd.f32 %v2570, %v2858
      %v2860 = vpop.f32.mrb[0].mxu0
      %2861 = vmatprep.mubr.bf16.mxu0 %v1647
      %2862 = vmatmul.mubr.bf16.gmra.mrb[0].mxu0 %v1646
      %v2863 = vpop.f32.mrb[0].mxu0
      %v2864 = vadd.f32 %v2575, %v2863
      %v2865 = vpop.f32.mrb[0].mxu0
      %v2866 = vpop.f32.mrb[0].mxu0
      %v2867 = vadd.f32 %v2578, %v2866
      %v2868 = vpop.f32.mrb[0].mxu0
      %2869 = vmatprep.mubr.bf16.mxu0 %v1655
      %2870 = vmatmul.mubr.bf16.gmra.mrb[0].mxu0 %v1654
      %v2871 = vpop.f32.mrb[0].mxu0
      %v2872 = vadd.f32 %v2583, %v2871
      %v2873 = vpop.f32.mrb[0].mxu0
      %v2874 = vpop.f32.mrb[0].mxu0
      %v2875 = vadd.f32 %v2586, %v2874
      %v2876 = vpop.f32.mrb[0].mxu0
      %2877 = vmatprep.mubr.bf16.mxu0 %v1663
      %2878 = vmatmul.mubr.bf16.gmra.mrb[0].mxu0 %v1662
      %v2879 = vpop.f32.mrb[0].mxu0
      %v2880 = vadd.f32 %v2591, %v2879
      %v2881 = vpop.f32.mrb[0].mxu0
      %v2882 = vpop.f32.mrb[0].mxu0
      %v2883 = vadd.f32 %v2594, %v2882
      %v2884 = vpop.f32.mrb[0].mxu0
      %2885 = vmatprep.mubr.bf16.mxu0 %v1671
      %2886 = vmatmul.mubr.bf16.gmra.mrb[0].mxu0 %v1670
      %v2887 = vpop.f32.mrb[0].mxu0
      %v2888 = vadd.f32 %v2599, %v2887
      %v2889 = vpop.f32.mrb[0].mxu0
      %v2890 = vpop.f32.mrb[0].mxu0
      %v2891 = vadd.f32 %v2602, %v2890
      %v2892 = vpop.f32.mrb[0].mxu0
      %2893 = vmatprep.mubr.bf16.mxu0 %v1679
      %2894 = vmatmul.mubr.bf16.gmra.mrb[0].mxu0 %v1678
      %v2895 = vpop.f32.mrb[0].mxu0
      %v2896 = vadd.f32 %v2607, %v2895
      %v2897 = vpop.f32.mrb[0].mxu0
      %v2898 = vpop.f32.mrb[0].mxu0
      %v2899 = vadd.f32 %v2610, %v2898
      %v2900 = vpop.f32.mrb[0].mxu0
      %2901 = vdwg.mxu0
      %2902 = vmatprep.subr.bf16.mxu0 0
      %2903 = vmatpush1.bf16.msra.mxu0 %v2228
      %2904 = vmatprep.subr.bf16.mxu0 0
      %2905 = vmatpush1.bf16.msra.mxu0 %v2229
      %2906 = vmatprep.subr.bf16.mxu0 0
      %2907 = vmatpush1.bf16.msra.mxu0 %v2230
      %2908 = vmatprep.subr.bf16.mxu0 0
      %2909 = vmatpush1.bf16.msra.mxu0 %v2231
      %2910 = vmatprep.subr.bf16.mxu0 0
      %2911 = vmatpush1.bf16.msra.mxu0 %v2232
      %2912 = vmatprep.subr.bf16.mxu0 0
      %2913 = vmatpush1.bf16.msra.mxu0 %v2233
      %2914 = vmatprep.subr.bf16.mxu0 0
      %2915 = vmatpush1.bf16.msra.mxu0 %v2234
      %2916 = vmatprep.subr.bf16.mxu0 0
      %2917 = vmatpush1.bf16.msra.mxu0 %v2235
      %2918 = vmatprep.subr.bf16.mxu0 0
      %2919 = vmatpush1.bf16.msra.mxu0 %v2236
      %2920 = vmatprep.subr.bf16.mxu0 0
      %2921 = vmatpush1.bf16.msra.mxu0 %v2237
      %2922 = vmatprep.subr.bf16.mxu0 0
      %2923 = vmatpush1.bf16.msra.mxu0 %v2238
      %2924 = vmatprep.subr.bf16.mxu0 0
      %2925 = vmatpush1.bf16.msra.mxu0 %v2239
      %2926 = vmatprep.subr.bf16.mxu0 0
      %2927 = vmatpush1.bf16.msra.mxu0 %v2240
      %2928 = vmatprep.subr.bf16.mxu0 0
      %2929 = vmatpush1.bf16.msra.mxu0 %v2241
      %2930 = vmatprep.subr.bf16.mxu0 0
      %2931 = vmatpush1.bf16.msra.mxu0 %v2242
      %2932 = vmatprep.subr.bf16.mxu0 0
      %2933 = vmatpush1.bf16.msra.mxu0 %v2243
      %2934 = vmatprep.mubr.bf16.mxu0 %v1433
      %2935 = vmatmul.mubr.bf16.gmra.mrb[0].mxu0 %v1432
      %v2936 = vpop.f32.mrb[0].mxu0
      %v2937 = vadd.f32 %v2648, %v2936
      %v2938 = vpop.f32.mrb[0].mxu0
      %v2939 = vpop.f32.mrb[0].mxu0
      %v2940 = vadd.f32 %v2651, %v2939
      %v2941 = vpop.f32.mrb[0].mxu0
      %2942 = vmatprep.mubr.bf16.mxu0 %v1441
      %2943 = vmatmul.mubr.bf16.gmra.mrb[0].mxu0 %v1440
      %v2944 = vpop.f32.mrb[0].mxu0
      %v2945 = vadd.f32 %v2656, %v2944
      %v2946 = vpop.f32.mrb[0].mxu0
      %v2947 = vpop.f32.mrb[0].mxu0
      %v2948 = vadd.f32 %v2659, %v2947
      %v2949 = vpop.f32.mrb[0].mxu0
      %2950 = vmatprep.mubr.bf16.mxu0 %v1449
      %2951 = vmatmul.mubr.bf16.gmra.mrb[0].mxu0 %v1448
      %v2952 = vpop.f32.mrb[0].mxu0
      %v2953 = vadd.f32 %v2664, %v2952
      %v2954 = vpop.f32.mrb[0].mxu0
      %v2955 = vpop.f32.mrb[0].mxu0
      %v2956 = vadd.f32 %v2667, %v2955
      %v2957 = vpop.f32.mrb[0].mxu0
      %2958 = vmatprep.mubr.bf16.mxu0 %v1457
      %2959 = vmatmul.mubr.bf16.gmra.mrb[0].mxu0 %v1456
      %v2960 = vpop.f32.mrb[0].mxu0
      %v2961 = vadd.f32 %v2672, %v2960
      %v2962 = vpop.f32.mrb[0].mxu0
      %v2963 = vpop.f32.mrb[0].mxu0
      %v2964 = vadd.f32 %v2675, %v2963
      %v2965 = vpop.f32.mrb[0].mxu0
      %2966 = vmatprep.mubr.bf16.mxu0 %v1465
      %2967 = vmatmul.mubr.bf16.gmra.mrb[0].mxu0 %v1464
      %v2968 = vpop.f32.mrb[0].mxu0
      %v2969 = vadd.f32 %v2680, %v2968
      %v2970 = vpop.f32.mrb[0].mxu0
      %v2971 = vpop.f32.mrb[0].mxu0
      %v2972 = vadd.f32 %v2683, %v2971
      %v2973 = vpop.f32.mrb[0].mxu0
      %2974 = vmatprep.mubr.bf16.mxu0 %v1473
      %2975 = vmatmul.mubr.bf16.gmra.mrb[0].mxu0 %v1472
      %v2976 = vpop.f32.mrb[0].mxu0
      %v2977 = vadd.f32 %v2688, %v2976
      %v2978 = vpop.f32.mrb[0].mxu0
      %v2979 = vpop.f32.mrb[0].mxu0
      %v2980 = vadd.f32 %v2691, %v2979
      %v2981 = vpop.f32.mrb[0].mxu0
      %2982 = vmatprep.mubr.bf16.mxu0 %v1481
      %2983 = vmatmul.mubr.bf16.gmra.mrb[0].mxu0 %v1480
      %v2984 = vpop.f32.mrb[0].mxu0
      %v2985 = vadd.f32 %v2696, %v2984
      %v2986 = vpop.f32.mrb[0].mxu0
      %v2987 = vpop.f32.mrb[0].mxu0
      %v2988 = vadd.f32 %v2699, %v2987
      %v2989 = vpop.f32.mrb[0].mxu0
      %2990 = vmatprep.mubr.bf16.mxu0 %v1489
      %2991 = vmatmul.mubr.bf16.gmra.mrb[0].mxu0 %v1488
      %v2992 = vpop.f32.mrb[0].mxu0
      %v2993 = vadd.f32 %v2704, %v2992
      %v2994 = vpop.f32.mrb[0].mxu0
      %v2995 = vpop.f32.mrb[0].mxu0
      %v2996 = vadd.f32 %v2707, %v2995
      %v2997 = vpop.f32.mrb[0].mxu0
      %2998 = vmatprep.mubr.bf16.mxu0 %v1497
      %2999 = vmatmul.mubr.bf16.gmra.mrb[0].mxu0 %v1496
      %v3000 = vpop.f32.mrb[0].mxu0
      %v3001 = vadd.f32 %v2712, %v3000
      %v3002 = vpop.f32.mrb[0].mxu0
      %v3003 = vpop.f32.mrb[0].mxu0
      %v3004 = vadd.f32 %v2715, %v3003
      %v3005 = vpop.f32.mrb[0].mxu0
      %3006 = vmatprep.mubr.bf16.mxu0 %v1505
      %3007 = vmatmul.mubr.bf16.gmra.mrb[0].mxu0 %v1504
      %v3008 = vpop.f32.mrb[0].mxu0
      %v3009 = vadd.f32 %v2720, %v3008
      %v3010 = vpop.f32.mrb[0].mxu0
      %v3011 = vpop.f32.mrb[0].mxu0
      %v3012 = vadd.f32 %v2723, %v3011
      %v3013 = vpop.f32.mrb[0].mxu0
      %3014 = vmatprep.mubr.bf16.mxu0 %v1513
      %3015 = vmatmul.mubr.bf16.gmra.mrb[0].mxu0 %v1512
      %v3016 = vpop.f32.mrb[0].mxu0
      %v3017 = vadd.f32 %v2728, %v3016
      %v3018 = vpop.f32.mrb[0].mxu0
      %v3019 = vpop.f32.mrb[0].mxu0
      %v3020 = vadd.f32 %v2731, %v3019
      %v3021 = vpop.f32.mrb[0].mxu0
      %3022 = vmatprep.mubr.bf16.mxu0 %v1521
      %3023 = vmatmul.mubr.bf16.gmra.mrb[0].mxu0 %v1520
      %v3024 = vpop.f32.mrb[0].mxu0
      %v3025 = vadd.f32 %v2736, %v3024
      %v3026 = vpop.f32.mrb[0].mxu0
      %v3027 = vpop.f32.mrb[0].mxu0
      %v3028 = vadd.f32 %v2739, %v3027
      %v3029 = vpop.f32.mrb[0].mxu0
      %3030 = vmatprep.mubr.bf16.mxu0 %v1529
      %3031 = vmatmul.mubr.bf16.gmra.mrb[0].mxu0 %v1528
      %v3032 = vpop.f32.mrb[0].mxu0
      %v3033 = vadd.f32 %v2744, %v3032
      %v3034 = vpop.f32.mrb[0].mxu0
      %v3035 = vpop.f32.mrb[0].mxu0
      %v3036 = vadd.f32 %v2747, %v3035
      %v3037 = vpop.f32.mrb[0].mxu0
      %3038 = vmatprep.mubr.bf16.mxu0 %v1537
      %3039 = vmatmul.mubr.bf16.gmra.mrb[0].mxu0 %v1536
      %v3040 = vpop.f32.mrb[0].mxu0
      %v3041 = vadd.f32 %v2752, %v3040
      %v3042 = vpop.f32.mrb[0].mxu0
      %v3043 = vpop.f32.mrb[0].mxu0
      %v3044 = vadd.f32 %v2755, %v3043
      %v3045 = vpop.f32.mrb[0].mxu0
      %3046 = vmatprep.mubr.bf16.mxu0 %v1545
      %3047 = vmatmul.mubr.bf16.gmra.mrb[0].mxu0 %v1544
      %v3048 = vpop.f32.mrb[0].mxu0
      %v3049 = vadd.f32 %v2760, %v3048
      %v3050 = vpop.f32.mrb[0].mxu0
      %v3051 = vpop.f32.mrb[0].mxu0
      %v3052 = vadd.f32 %v2763, %v3051
      %v3053 = vpop.f32.mrb[0].mxu0
      %3054 = vmatprep.mubr.bf16.mxu0 %v1553
      %3055 = vmatmul.mubr.bf16.gmra.mrb[0].mxu0 %v1552
      %v3056 = vpop.f32.mrb[0].mxu0
      %v3057 = vadd.f32 %v2768, %v3056
      %v3058 = vpop.f32.mrb[0].mxu0
      %v3059 = vpop.f32.mrb[0].mxu0
      %v3060 = vadd.f32 %v2771, %v3059
      %v3061 = vpop.f32.mrb[0].mxu0
      %3062 = vmatprep.mubr.bf16.mxu0 %v1561
      %3063 = vmatmul.mubr.bf16.gmra.mrb[0].mxu0 %v1560
      %v3064 = vpop.f32.mrb[0].mxu0
      %v3065 = vadd.f32 %v2776, %v3064
      %v3066 = vpop.f32.mrb[0].mxu0
      %v3067 = vpop.f32.mrb[0].mxu0
      %v3068 = vadd.f32 %v2779, %v3067
      %v3069 = vpop.f32.mrb[0].mxu0
      %3070 = vmatprep.mubr.bf16.mxu0 %v1569
      %3071 = vmatmul.mubr.bf16.gmra.mrb[0].mxu0 %v1568
      %v3072 = vpop.f32.mrb[0].mxu0
      %v3073 = vadd.f32 %v2784, %v3072
      %v3074 = vpop.f32.mrb[0].mxu0
      %v3075 = vpop.f32.mrb[0].mxu0
      %v3076 = vadd.f32 %v2787, %v3075
      %v3077 = vpop.f32.mrb[0].mxu0
      %3078 = vmatprep.mubr.bf16.mxu0 %v1577
      %3079 = vmatmul.mubr.bf16.gmra.mrb[0].mxu0 %v1576
      %v3080 = vpop.f32.mrb[0].mxu0
      %v3081 = vadd.f32 %v2792, %v3080
      %v3082 = vpop.f32.mrb[0].mxu0
      %v3083 = vpop.f32.mrb[0].mxu0
      %v3084 = vadd.f32 %v2795, %v3083
      %v3085 = vpop.f32.mrb[0].mxu0
      %3086 = vmatprep.mubr.bf16.mxu0 %v1585
      %3087 = vmatmul.mubr.bf16.gmra.mrb[0].mxu0 %v1584
      %v3088 = vpop.f32.mrb[0].mxu0
      %v3089 = vadd.f32 %v2800, %v3088
      %v3090 = vpop.f32.mrb[0].mxu0
      %v3091 = vpop.f32.mrb[0].mxu0
      %v3092 = vadd.f32 %v2803, %v3091
      %v3093 = vpop.f32.mrb[0].mxu0
      %3094 = vmatprep.mubr.bf16.mxu0 %v1593
      %3095 = vmatmul.mubr.bf16.gmra.mrb[0].mxu0 %v1592
      %v3096 = vpop.f32.mrb[0].mxu0
      %v3097 = vadd.f32 %v2808, %v3096
      %v3098 = vpop.f32.mrb[0].mxu0
      %v3099 = vpop.f32.mrb[0].mxu0
      %v3100 = vadd.f32 %v2811, %v3099
      %v3101 = vpop.f32.mrb[0].mxu0
      %3102 = vmatprep.mubr.bf16.mxu0 %v1601
      %3103 = vmatmul.mubr.bf16.gmra.mrb[0].mxu0 %v1600
      %v3104 = vpop.f32.mrb[0].mxu0
      %v3105 = vadd.f32 %v2816, %v3104
      %v3106 = vpop.f32.mrb[0].mxu0
      %v3107 = vpop.f32.mrb[0].mxu0
      %v3108 = vadd.f32 %v2819, %v3107
      %v3109 = vpop.f32.mrb[0].mxu0
      %3110 = vmatprep.mubr.bf16.mxu0 %v1609
      %3111 = vmatmul.mubr.bf16.gmra.mrb[0].mxu0 %v1608
      %v3112 = vpop.f32.mrb[0].mxu0
      %v3113 = vadd.f32 %v2824, %v3112
      %v3114 = vpop.f32.mrb[0].mxu0
      %v3115 = vpop.f32.mrb[0].mxu0
      %v3116 = vadd.f32 %v2827, %v3115
      %v3117 = vpop.f32.mrb[0].mxu0
      %3118 = vmatprep.mubr.bf16.mxu0 %v1617
      %3119 = vmatmul.mubr.bf16.gmra.mrb[0].mxu0 %v1616
      %v3120 = vpop.f32.mrb[0].mxu0
      %v3121 = vadd.f32 %v2832, %v3120
      %v3122 = vpop.f32.mrb[0].mxu0
      %v3123 = vpop.f32.mrb[0].mxu0
      %v3124 = vadd.f32 %v2835, %v3123
      %v3125 = vpop.f32.mrb[0].mxu0
      %3126 = vmatprep.mubr.bf16.mxu0 %v1625
      %3127 = vmatmul.mubr.bf16.gmra.mrb[0].mxu0 %v1624
      %v3128 = vpop.f32.mrb[0].mxu0
      %v3129 = vadd.f32 %v2840, %v3128
      %v3130 = vpop.f32.mrb[0].mxu0
      %v3131 = vpop.f32.mrb[0].mxu0
      %v3132 = vadd.f32 %v2843, %v3131
      %v3133 = vpop.f32.mrb[0].mxu0
      %3134 = vmatprep.mubr.bf16.mxu0 %v1633
      %3135 = vmatmul.mubr.bf16.gmra.mrb[0].mxu0 %v1632
      %v3136 = vpop.f32.mrb[0].mxu0
      %v3137 = vadd.f32 %v2848, %v3136
      %v3138 = vpop.f32.mrb[0].mxu0
      %v3139 = vpop.f32.mrb[0].mxu0
      %v3140 = vadd.f32 %v2851, %v3139
      %v3141 = vpop.f32.mrb[0].mxu0
      %3142 = vmatprep.mubr.bf16.mxu0 %v1641
      %3143 = vmatmul.mubr.bf16.gmra.mrb[0].mxu0 %v1640
      %v3144 = vpop.f32.mrb[0].mxu0
      %v3145 = vadd.f32 %v2856, %v3144
      %v3146 = vpop.f32.mrb[0].mxu0
      %v3147 = vpop.f32.mrb[0].mxu0
      %v3148 = vadd.f32 %v2859, %v3147
      %v3149 = vpop.f32.mrb[0].mxu0
      %3150 = vmatprep.mubr.bf16.mxu0 %v1649
      %3151 = vmatmul.mubr.bf16.gmra.mrb[0].mxu0 %v1648
      %v3152 = vpop.f32.mrb[0].mxu0
      %v3153 = vadd.f32 %v2864, %v3152
      %v3154 = vpop.f32.mrb[0].mxu0
      %v3155 = vpop.f32.mrb[0].mxu0
      %v3156 = vadd.f32 %v2867, %v3155
      %v3157 = vpop.f32.mrb[0].mxu0
      %3158 = vmatprep.mubr.bf16.mxu0 %v1657
      %3159 = vmatmul.mubr.bf16.gmra.mrb[0].mxu0 %v1656
      %v3160 = vpop.f32.mrb[0].mxu0
      %v3161 = vadd.f32 %v2872, %v3160
      %v3162 = vpop.f32.mrb[0].mxu0
      %v3163 = vpop.f32.mrb[0].mxu0
      %v3164 = vadd.f32 %v2875, %v3163
      %v3165 = vpop.f32.mrb[0].mxu0
      %3166 = vmatprep.mubr.bf16.mxu0 %v1665
      %3167 = vmatmul.mubr.bf16.gmra.mrb[0].mxu0 %v1664
      %v3168 = vpop.f32.mrb[0].mxu0
      %v3169 = vadd.f32 %v2880, %v3168
      %v3170 = vpop.f32.mrb[0].mxu0
      %v3171 = vpop.f32.mrb[0].mxu0
      %v3172 = vadd.f32 %v2883, %v3171
      %v3173 = vpop.f32.mrb[0].mxu0
      %3174 = vmatprep.mubr.bf16.mxu0 %v1673
      %3175 = vmatmul.mubr.bf16.gmra.mrb[0].mxu0 %v1672
      %v3176 = vpop.f32.mrb[0].mxu0
      %v3177 = vadd.f32 %v2888, %v3176
      %v3178 = vpop.f32.mrb[0].mxu0
      %v3179 = vpop.f32.mrb[0].mxu0
      %v3180 = vadd.f32 %v2891, %v3179
      %v3181 = vpop.f32.mrb[0].mxu0
      %3182 = vmatprep.mubr.bf16.mxu0 %v1681
      %3183 = vmatmul.mubr.bf16.gmra.mrb[0].mxu0 %v1680
      %v3184 = vpop.f32.mrb[0].mxu0
      %v3185 = vadd.f32 %v2896, %v3184
      %v3186 = vpop.f32.mrb[0].mxu0
      %v3187 = vpop.f32.mrb[0].mxu0
      %v3188 = vadd.f32 %v2899, %v3187
      %v3189 = vpop.f32.mrb[0].mxu0
      %3190 = vdwg.mxu0
      %3191 = vmatprep.subr.bf16.mxu0 0
      %3192 = vmatpush1.bf16.msra.mxu0 %v2244
      %3193 = vmatprep.subr.bf16.mxu0 0
      %3194 = vmatpush1.bf16.msra.mxu0 %v2245
      %3195 = vmatprep.subr.bf16.mxu0 0
      %3196 = vmatpush1.bf16.msra.mxu0 %v2246
      %3197 = vmatprep.subr.bf16.mxu0 0
      %3198 = vmatpush1.bf16.msra.mxu0 %v2247
      %3199 = vmatprep.subr.bf16.mxu0 0
      %3200 = vmatpush1.bf16.msra.mxu0 %v2248
      %3201 = vmatprep.subr.bf16.mxu0 0
      %3202 = vmatpush1.bf16.msra.mxu0 %v2249
      %3203 = vmatprep.subr.bf16.mxu0 0
      %3204 = vmatpush1.bf16.msra.mxu0 %v2250
      %3205 = vmatprep.subr.bf16.mxu0 0
      %3206 = vmatpush1.bf16.msra.mxu0 %v2251
      %3207 = vmatprep.subr.bf16.mxu0 0
      %3208 = vmatpush1.bf16.msra.mxu0 %v2252
      %3209 = vmatprep.subr.bf16.mxu0 0
      %3210 = vmatpush1.bf16.msra.mxu0 %v2253
      %3211 = vmatprep.subr.bf16.mxu0 0
      %3212 = vmatpush1.bf16.msra.mxu0 %v2254
      %3213 = vmatprep.subr.bf16.mxu0 0
      %3214 = vmatpush1.bf16.msra.mxu0 %v2255
      %3215 = vmatprep.subr.bf16.mxu0 0
      %3216 = vmatpush1.bf16.msra.mxu0 %v2256
      %3217 = vmatprep.subr.bf16.mxu0 0
      %3218 = vmatpush1.bf16.msra.mxu0 %v2257
      %3219 = vmatprep.subr.bf16.mxu0 0
      %3220 = vmatpush1.bf16.msra.mxu0 %v2258
      %3221 = vmatprep.subr.bf16.mxu0 0
      %3222 = vmatpush1.bf16.msra.mxu0 %v2259
      %3223 = vmatprep.mubr.bf16.mxu0 %v1435
      %3224 = vmatmul.mubr.bf16.gmra.mrb[0].mxu0 %v1434
      %v3225 = vpop.f32.mrb[0].mxu0
      %v3226 = vadd.f32 %v2937, %v3225
      %v3227 = vpop.f32.mrb[0].mxu0
      %v3228 = vpop.f32.mrb[0].mxu0
      %v3229 = vadd.f32 %v2940, %v3228
      %v3230 = vpop.f32.mrb[0].mxu0
      %3231 = vmatprep.mubr.bf16.mxu0 %v1443
      %3232 = vmatmul.mubr.bf16.gmra.mrb[0].mxu0 %v1442
      %v3233 = vpop.f32.mrb[0].mxu0
      %v3234 = vadd.f32 %v2945, %v3233
      %v3235 = vpop.f32.mrb[0].mxu0
      %v3236 = vpop.f32.mrb[0].mxu0
      %v3237 = vadd.f32 %v2948, %v3236
      %v3238 = vpop.f32.mrb[0].mxu0
      %3239 = vmatprep.mubr.bf16.mxu0 %v1451
      %3240 = vmatmul.mubr.bf16.gmra.mrb[0].mxu0 %v1450
      %v3241 = vpop.f32.mrb[0].mxu0
      %v3242 = vadd.f32 %v2953, %v3241
      %v3243 = vpop.f32.mrb[0].mxu0
      %v3244 = vpop.f32.mrb[0].mxu0
      %v3245 = vadd.f32 %v2956, %v3244
      %v3246 = vpop.f32.mrb[0].mxu0
      %3247 = vmatprep.mubr.bf16.mxu0 %v1459
      %3248 = vmatmul.mubr.bf16.gmra.mrb[0].mxu0 %v1458
      %v3249 = vpop.f32.mrb[0].mxu0
      %v3250 = vadd.f32 %v2961, %v3249
      %v3251 = vpop.f32.mrb[0].mxu0
      %v3252 = vpop.f32.mrb[0].mxu0
      %v3253 = vadd.f32 %v2964, %v3252
      %v3254 = vpop.f32.mrb[0].mxu0
      %3255 = vmatprep.mubr.bf16.mxu0 %v1467
      %3256 = vmatmul.mubr.bf16.gmra.mrb[0].mxu0 %v1466
      %v3257 = vpop.f32.mrb[0].mxu0
      %v3258 = vadd.f32 %v2969, %v3257
      %v3259 = vpop.f32.mrb[0].mxu0
      %v3260 = vpop.f32.mrb[0].mxu0
      %v3261 = vadd.f32 %v2972, %v3260
      %v3262 = vpop.f32.mrb[0].mxu0
      %3263 = vmatprep.mubr.bf16.mxu0 %v1475
      %3264 = vmatmul.mubr.bf16.gmra.mrb[0].mxu0 %v1474
      %v3265 = vpop.f32.mrb[0].mxu0
      %v3266 = vadd.f32 %v2977, %v3265
      %v3267 = vpop.f32.mrb[0].mxu0
      %v3268 = vpop.f32.mrb[0].mxu0
      %v3269 = vadd.f32 %v2980, %v3268
      %v3270 = vpop.f32.mrb[0].mxu0
      %3271 = vmatprep.mubr.bf16.mxu0 %v1483
      %3272 = vmatmul.mubr.bf16.gmra.mrb[0].mxu0 %v1482
      %v3273 = vpop.f32.mrb[0].mxu0
      %v3274 = vadd.f32 %v2985, %v3273
      %v3275 = vpop.f32.mrb[0].mxu0
      %v3276 = vpop.f32.mrb[0].mxu0
      %v3277 = vadd.f32 %v2988, %v3276
      %v3278 = vpop.f32.mrb[0].mxu0
      %3279 = vmatprep.mubr.bf16.mxu0 %v1491
      %3280 = vmatmul.mubr.bf16.gmra.mrb[0].mxu0 %v1490
      %v3281 = vpop.f32.mrb[0].mxu0
      %v3282 = vadd.f32 %v2993, %v3281
      %v3283 = vpop.f32.mrb[0].mxu0
      %v3284 = vpop.f32.mrb[0].mxu0
      %v3285 = vadd.f32 %v2996, %v3284
      %v3286 = vpop.f32.mrb[0].mxu0
      %3287 = vmatprep.mubr.bf16.mxu0 %v1499
      %3288 = vmatmul.mubr.bf16.gmra.mrb[0].mxu0 %v1498
      %v3289 = vpop.f32.mrb[0].mxu0
      %v3290 = vadd.f32 %v3001, %v3289
      %v3291 = vpop.f32.mrb[0].mxu0
      %v3292 = vpop.f32.mrb[0].mxu0
      %v3293 = vadd.f32 %v3004, %v3292
      %v3294 = vpop.f32.mrb[0].mxu0
      %3295 = vmatprep.mubr.bf16.mxu0 %v1507
      %3296 = vmatmul.mubr.bf16.gmra.mrb[0].mxu0 %v1506
      %v3297 = vpop.f32.mrb[0].mxu0
      %v3298 = vadd.f32 %v3009, %v3297
      %v3299 = vpop.f32.mrb[0].mxu0
      %v3300 = vpop.f32.mrb[0].mxu0
      %v3301 = vadd.f32 %v3012, %v3300
      %v3302 = vpop.f32.mrb[0].mxu0
      %3303 = vmatprep.mubr.bf16.mxu0 %v1515
      %3304 = vmatmul.mubr.bf16.gmra.mrb[0].mxu0 %v1514
      %v3305 = vpop.f32.mrb[0].mxu0
      %v3306 = vadd.f32 %v3017, %v3305
      %v3307 = vpop.f32.mrb[0].mxu0
      %v3308 = vpop.f32.mrb[0].mxu0
      %v3309 = vadd.f32 %v3020, %v3308
      %v3310 = vpop.f32.mrb[0].mxu0
      %3311 = vmatprep.mubr.bf16.mxu0 %v1523
      %3312 = vmatmul.mubr.bf16.gmra.mrb[0].mxu0 %v1522
      %v3313 = vpop.f32.mrb[0].mxu0
      %v3314 = vadd.f32 %v3025, %v3313
      %v3315 = vpop.f32.mrb[0].mxu0
      %v3316 = vpop.f32.mrb[0].mxu0
      %v3317 = vadd.f32 %v3028, %v3316
      %v3318 = vpop.f32.mrb[0].mxu0
      %3319 = vmatprep.mubr.bf16.mxu0 %v1531
      %3320 = vmatmul.mubr.bf16.gmra.mrb[0].mxu0 %v1530
      %v3321 = vpop.f32.mrb[0].mxu0
      %v3322 = vadd.f32 %v3033, %v3321
      %v3323 = vpop.f32.mrb[0].mxu0
      %v3324 = vpop.f32.mrb[0].mxu0
      %v3325 = vadd.f32 %v3036, %v3324
      %v3326 = vpop.f32.mrb[0].mxu0
      %3327 = vmatprep.mubr.bf16.mxu0 %v1539
      %3328 = vmatmul.mubr.bf16.gmra.mrb[0].mxu0 %v1538
      %v3329 = vpop.f32.mrb[0].mxu0
      %v3330 = vadd.f32 %v3041, %v3329
      %v3331 = vpop.f32.mrb[0].mxu0
      %v3332 = vpop.f32.mrb[0].mxu0
      %v3333 = vadd.f32 %v3044, %v3332
      %v3334 = vpop.f32.mrb[0].mxu0
      %3335 = vmatprep.mubr.bf16.mxu0 %v1547
      %3336 = vmatmul.mubr.bf16.gmra.mrb[0].mxu0 %v1546
      %v3337 = vpop.f32.mrb[0].mxu0
      %v3338 = vadd.f32 %v3049, %v3337
      %v3339 = vpop.f32.mrb[0].mxu0
      %v3340 = vpop.f32.mrb[0].mxu0
      %v3341 = vadd.f32 %v3052, %v3340
      %v3342 = vpop.f32.mrb[0].mxu0
      %3343 = vmatprep.mubr.bf16.mxu0 %v1555
      %3344 = vmatmul.mubr.bf16.gmra.mrb[0].mxu0 %v1554
      %v3345 = vpop.f32.mrb[0].mxu0
      %v3346 = vadd.f32 %v3057, %v3345
      %v3347 = vpop.f32.mrb[0].mxu0
      %v3348 = vpop.f32.mrb[0].mxu0
      %v3349 = vadd.f32 %v3060, %v3348
      %v3350 = vpop.f32.mrb[0].mxu0
      %3351 = vmatprep.mubr.bf16.mxu0 %v1563
      %3352 = vmatmul.mubr.bf16.gmra.mrb[0].mxu0 %v1562
      %v3353 = vpop.f32.mrb[0].mxu0
      %v3354 = vadd.f32 %v3065, %v3353
      %v3355 = vpop.f32.mrb[0].mxu0
      %v3356 = vpop.f32.mrb[0].mxu0
      %v3357 = vadd.f32 %v3068, %v3356
      %v3358 = vpop.f32.mrb[0].mxu0
      %3359 = vmatprep.mubr.bf16.mxu0 %v1571
      %3360 = vmatmul.mubr.bf16.gmra.mrb[0].mxu0 %v1570
      %v3361 = vpop.f32.mrb[0].mxu0
      %v3362 = vadd.f32 %v3073, %v3361
      %v3363 = vpop.f32.mrb[0].mxu0
      %v3364 = vpop.f32.mrb[0].mxu0
      %v3365 = vadd.f32 %v3076, %v3364
      %v3366 = vpop.f32.mrb[0].mxu0
      %3367 = vmatprep.mubr.bf16.mxu0 %v1579
      %3368 = vmatmul.mubr.bf16.gmra.mrb[0].mxu0 %v1578
      %v3369 = vpop.f32.mrb[0].mxu0
      %v3370 = vadd.f32 %v3081, %v3369
      %v3371 = vpop.f32.mrb[0].mxu0
      %v3372 = vpop.f32.mrb[0].mxu0
      %v3373 = vadd.f32 %v3084, %v3372
      %v3374 = vpop.f32.mrb[0].mxu0
      %3375 = vmatprep.mubr.bf16.mxu0 %v1587
      %3376 = vmatmul.mubr.bf16.gmra.mrb[0].mxu0 %v1586
      %v3377 = vpop.f32.mrb[0].mxu0
      %v3378 = vadd.f32 %v3089, %v3377
      %v3379 = vpop.f32.mrb[0].mxu0
      %v3380 = vpop.f32.mrb[0].mxu0
      %v3381 = vadd.f32 %v3092, %v3380
      %v3382 = vpop.f32.mrb[0].mxu0
      %3383 = vmatprep.mubr.bf16.mxu0 %v1595
      %3384 = vmatmul.mubr.bf16.gmra.mrb[0].mxu0 %v1594
      %v3385 = vpop.f32.mrb[0].mxu0
      %v3386 = vadd.f32 %v3097, %v3385
      %v3387 = vpop.f32.mrb[0].mxu0
      %v3388 = vpop.f32.mrb[0].mxu0
      %v3389 = vadd.f32 %v3100, %v3388
      %v3390 = vpop.f32.mrb[0].mxu0
      %3391 = vmatprep.mubr.bf16.mxu0 %v1603
      %3392 = vmatmul.mubr.bf16.gmra.mrb[0].mxu0 %v1602
      %v3393 = vpop.f32.mrb[0].mxu0
      %v3394 = vadd.f32 %v3105, %v3393
      %v3395 = vpop.f32.mrb[0].mxu0
      %v3396 = vpop.f32.mrb[0].mxu0
      %v3397 = vadd.f32 %v3108, %v3396
      %v3398 = vpop.f32.mrb[0].mxu0
      %3399 = vmatprep.mubr.bf16.mxu0 %v1611
      %3400 = vmatmul.mubr.bf16.gmra.mrb[0].mxu0 %v1610
      %v3401 = vpop.f32.mrb[0].mxu0
      %v3402 = vadd.f32 %v3113, %v3401
      %v3403 = vpop.f32.mrb[0].mxu0
      %v3404 = vpop.f32.mrb[0].mxu0
      %v3405 = vadd.f32 %v3116, %v3404
      %v3406 = vpop.f32.mrb[0].mxu0
      %3407 = vmatprep.mubr.bf16.mxu0 %v1619
      %3408 = vmatmul.mubr.bf16.gmra.mrb[0].mxu0 %v1618
      %v3409 = vpop.f32.mrb[0].mxu0
      %v3410 = vadd.f32 %v3121, %v3409
      %v3411 = vpop.f32.mrb[0].mxu0
      %v3412 = vpop.f32.mrb[0].mxu0
      %v3413 = vadd.f32 %v3124, %v3412
      %v3414 = vpop.f32.mrb[0].mxu0
      %3415 = vmatprep.mubr.bf16.mxu0 %v1627
      %3416 = vmatmul.mubr.bf16.gmra.mrb[0].mxu0 %v1626
      %v3417 = vpop.f32.mrb[0].mxu0
      %v3418 = vadd.f32 %v3129, %v3417
      %v3419 = vpop.f32.mrb[0].mxu0
      %v3420 = vpop.f32.mrb[0].mxu0
      %v3421 = vadd.f32 %v3132, %v3420
      %v3422 = vpop.f32.mrb[0].mxu0
      %3423 = vmatprep.mubr.bf16.mxu0 %v1635
      %3424 = vmatmul.mubr.bf16.gmra.mrb[0].mxu0 %v1634
      %v3425 = vpop.f32.mrb[0].mxu0
      %v3426 = vadd.f32 %v3137, %v3425
      %v3427 = vpop.f32.mrb[0].mxu0
      %v3428 = vpop.f32.mrb[0].mxu0
      %v3429 = vadd.f32 %v3140, %v3428
      %v3430 = vpop.f32.mrb[0].mxu0
      %3431 = vmatprep.mubr.bf16.mxu0 %v1643
      %3432 = vmatmul.mubr.bf16.gmra.mrb[0].mxu0 %v1642
      %v3433 = vpop.f32.mrb[0].mxu0
      %v3434 = vadd.f32 %v3145, %v3433
      %v3435 = vpop.f32.mrb[0].mxu0
      %v3436 = vpop.f32.mrb[0].mxu0
      %v3437 = vadd.f32 %v3148, %v3436
      %v3438 = vpop.f32.mrb[0].mxu0
      %3439 = vmatprep.mubr.bf16.mxu0 %v1651
      %3440 = vmatmul.mubr.bf16.gmra.mrb[0].mxu0 %v1650
      %v3441 = vpop.f32.mrb[0].mxu0
      %v3442 = vadd.f32 %v3153, %v3441
      %v3443 = vpop.f32.mrb[0].mxu0
      %v3444 = vpop.f32.mrb[0].mxu0
      %v3445 = vadd.f32 %v3156, %v3444
      %v3446 = vpop.f32.mrb[0].mxu0
      %3447 = vmatprep.mubr.bf16.mxu0 %v1659
      %3448 = vmatmul.mubr.bf16.gmra.mrb[0].mxu0 %v1658
      %v3449 = vpop.f32.mrb[0].mxu0
      %v3450 = vadd.f32 %v3161, %v3449
      %v3451 = vpop.f32.mrb[0].mxu0
      %v3452 = vpop.f32.mrb[0].mxu0
      %v3453 = vadd.f32 %v3164, %v3452
      %v3454 = vpop.f32.mrb[0].mxu0
      %3455 = vmatprep.mubr.bf16.mxu0 %v1667
      %3456 = vmatmul.mubr.bf16.gmra.mrb[0].mxu0 %v1666
      %v3457 = vpop.f32.mrb[0].mxu0
      %v3458 = vadd.f32 %v3169, %v3457
      %v3459 = vpop.f32.mrb[0].mxu0
      %v3460 = vpop.f32.mrb[0].mxu0
      %v3461 = vadd.f32 %v3172, %v3460
      %v3462 = vpop.f32.mrb[0].mxu0
      %3463 = vmatprep.mubr.bf16.mxu0 %v1675
      %3464 = vmatmul.mubr.bf16.gmra.mrb[0].mxu0 %v1674
      %v3465 = vpop.f32.mrb[0].mxu0
      %v3466 = vadd.f32 %v3177, %v3465
      %v3467 = vpop.f32.mrb[0].mxu0
      %v3468 = vpop.f32.mrb[0].mxu0
      %v3469 = vadd.f32 %v3180, %v3468
      %v3470 = vpop.f32.mrb[0].mxu0
      %3471 = vmatprep.mubr.bf16.mxu0 %v1683
      %3472 = vmatmul.mubr.bf16.gmra.mrb[0].mxu0 %v1682
      %v3473 = vpop.f32.mrb[0].mxu0
      %v3474 = vadd.f32 %v3185, %v3473
      %v3475 = vpop.f32.mrb[0].mxu0
      %v3476 = vpop.f32.mrb[0].mxu0
      %v3477 = vadd.f32 %v3188, %v3476
      %v3478 = vpop.f32.mrb[0].mxu0
      %3479 = vdwg.mxu0
      %v3480 = vld [vmem:[%s261] sm:$0xff]
      %v3481 = vld [vmem:[%s261 + $0x8] sm:$0xff]
      %v3482 = vld [vmem:[%s261 + $0x10] sm:$0xff]
      %v3483 = vld [vmem:[%s261 + $0x18] sm:$0xff]
      %v3484 = vld [vmem:[%s261 + $0x20] sm:$0xff]
      %v3485 = vld [vmem:[%s261 + $0x28] sm:$0xff]
      %v3486 = vld [vmem:[%s261 + $0x30] sm:$0xff]
      %v3487 = vld [vmem:[%s261 + $0x38] sm:$0xff]
      %v3488 = vld [vmem:[%s261 + $0x40] sm:$0xff]
      %v3489 = vld [vmem:[%s261 + $0x48] sm:$0xff]
      %v3490 = vld [vmem:[%s261 + $0x50] sm:$0xff]
      %v3491 = vld [vmem:[%s261 + $0x58] sm:$0xff]
      %v3492 = vld [vmem:[%s261 + $0x60] sm:$0xff]
      %v3493 = vld [vmem:[%s261 + $0x68] sm:$0xff]
      %v3494 = vld [vmem:[%s261 + $0x70] sm:$0xff]
      %v3495 = vld [vmem:[%s261 + $0x78] sm:$0xff]
      %v3496 = vld [vmem:[%s261 + $0x80] sm:$0xff]
      %v3497 = vld [vmem:[%s261 + $0x88] sm:$0xff]
      %v3498 = vld [vmem:[%s261 + $0x90] sm:$0xff]
      %v3499 = vld [vmem:[%s261 + $0x98] sm:$0xff]
      %v3500 = vld [vmem:[%s261 + $0xa0] sm:$0xff]
      %v3501 = vld [vmem:[%s261 + $0xa8] sm:$0xff]
      %v3502 = vld [vmem:[%s261 + $0xb0] sm:$0xff]
      %v3503 = vld [vmem:[%s261 + $0xb8] sm:$0xff]
      %v3504 = vld [vmem:[%s261 + $0xc0] sm:$0xff]
      %v3505 = vld [vmem:[%s261 + $0xc8] sm:$0xff]
      %v3506 = vld [vmem:[%s261 + $0xd0] sm:$0xff]
      %v3507 = vld [vmem:[%s261 + $0xd8] sm:$0xff]
      %v3508 = vld [vmem:[%s261 + $0xe0] sm:$0xff]
      %v3509 = vld [vmem:[%s261 + $0xe8] sm:$0xff]
      %v3510 = vld [vmem:[%s261 + $0xf0] sm:$0xff]
      %v3511 = vld [vmem:[%s261 + $0xf8] sm:$0xff]
      %v3512 = vld [vmem:[%s261 + $0x100] sm:$0xff]
      %v3513 = vld [vmem:[%s261 + $0x108] sm:$0xff]
      %v3514 = vld [vmem:[%s261 + $0x110] sm:$0xff]
      %v3515 = vld [vmem:[%s261 + $0x118] sm:$0xff]
      %v3516 = vld [vmem:[%s261 + $0x120] sm:$0xff]
      %v3517 = vld [vmem:[%s261 + $0x128] sm:$0xff]
      %v3518 = vld [vmem:[%s261 + $0x130] sm:$0xff]
      %v3519 = vld [vmem:[%s261 + $0x138] sm:$0xff]
      %v3520 = vld [vmem:[%s261 + $0x140] sm:$0xff]
      %v3521 = vld [vmem:[%s261 + $0x148] sm:$0xff]
      %v3522 = vld [vmem:[%s261 + $0x150] sm:$0xff]
      %v3523 = vld [vmem:[%s261 + $0x158] sm:$0xff]
      %v3524 = vld [vmem:[%s261 + $0x160] sm:$0xff]
      %v3525 = vld [vmem:[%s261 + $0x168] sm:$0xff]
      %v3526 = vld [vmem:[%s261 + $0x170] sm:$0xff]
      %v3527 = vld [vmem:[%s261 + $0x178] sm:$0xff]
      %v3528 = vld [vmem:[%s261 + $0x180] sm:$0xff]
      %v3529 = vld [vmem:[%s261 + $0x188] sm:$0xff]
      %v3530 = vld [vmem:[%s261 + $0x190] sm:$0xff]
      %v3531 = vld [vmem:[%s261 + $0x198] sm:$0xff]
      %v3532 = vld [vmem:[%s261 + $0x1a0] sm:$0xff]
      %v3533 = vld [vmem:[%s261 + $0x1a8] sm:$0xff]
      %v3534 = vld [vmem:[%s261 + $0x1b0] sm:$0xff]
      %v3535 = vld [vmem:[%s261 + $0x1b8] sm:$0xff]
      %v3536 = vld [vmem:[%s261 + $0x1c0] sm:$0xff]
      %v3537 = vld [vmem:[%s261 + $0x1c8] sm:$0xff]
      %v3538 = vld [vmem:[%s261 + $0x1d0] sm:$0xff]
      %v3539 = vld [vmem:[%s261 + $0x1d8] sm:$0xff]
      %v3540 = vld [vmem:[%s261 + $0x1e0] sm:$0xff]
      %v3541 = vld [vmem:[%s261 + $0x1e8] sm:$0xff]
      %v3542 = vld [vmem:[%s261 + $0x1f0] sm:$0xff]
      %v3543 = vld [vmem:[%s261 + $0x1f8] sm:$0xff]
      %3545 = vset.pattern.permute.xlu0 0
      %3546 = vperm.xlu0 %3545, %v3480
      %v3547 = vpop.permute.xlu0 %3546
      %3550 = vset.pattern.permute.xlu0 0
      %3551 = vperm.xlu0 %3550, %v3481
      %v3552 = vpop.permute.xlu0 %3551
      %3555 = vset.pattern.permute.xlu0 0
      %3556 = vperm.xlu0 %3555, %v3482
      %v3557 = vpop.permute.xlu0 %3556
      %3560 = vset.pattern.permute.xlu0 0
      %3561 = vperm.xlu0 %3560, %v3483
      %v3562 = vpop.permute.xlu0 %3561
      %3565 = vset.pattern.permute.xlu0 0
      %3566 = vperm.xlu0 %3565, %v3484
      %v3567 = vpop.permute.xlu0 %3566
      %3570 = vset.pattern.permute.xlu0 0
      %3571 = vperm.xlu0 %3570, %v3485
      %v3572 = vpop.permute.xlu0 %3571
      %3575 = vset.pattern.permute.xlu0 0
      %3576 = vperm.xlu0 %3575, %v3486
      %v3577 = vpop.permute.xlu0 %3576
      %3580 = vset.pattern.permute.xlu0 0
      %3581 = vperm.xlu0 %3580, %v3487
      %v3582 = vpop.permute.xlu0 %3581
      %3585 = vset.pattern.permute.xlu0 0
      %3586 = vperm.xlu0 %3585, %v3488
      %v3587 = vpop.permute.xlu0 %3586
      %3590 = vset.pattern.permute.xlu0 0
      %3591 = vperm.xlu0 %3590, %v3489
      %v3592 = vpop.permute.xlu0 %3591
      %3595 = vset.pattern.permute.xlu0 0
      %3596 = vperm.xlu0 %3595, %v3490
      %v3597 = vpop.permute.xlu0 %3596
      %3600 = vset.pattern.permute.xlu0 0
      %3601 = vperm.xlu0 %3600, %v3491
      %v3602 = vpop.permute.xlu0 %3601
      %3605 = vset.pattern.permute.xlu0 0
      %3606 = vperm.xlu0 %3605, %v3492
      %v3607 = vpop.permute.xlu0 %3606
      %3610 = vset.pattern.permute.xlu0 0
      %3611 = vperm.xlu0 %3610, %v3493
      %v3612 = vpop.permute.xlu0 %3611
      %3615 = vset.pattern.permute.xlu0 0
      %3616 = vperm.xlu0 %3615, %v3494
      %v3617 = vpop.permute.xlu0 %3616
      %3620 = vset.pattern.permute.xlu0 0
      %3621 = vperm.xlu0 %3620, %v3495
      %v3622 = vpop.permute.xlu0 %3621
      %3625 = vset.pattern.permute.xlu0 0
      %3626 = vperm.xlu0 %3625, %v3496
      %v3627 = vpop.permute.xlu0 %3626
      %3630 = vset.pattern.permute.xlu0 0
      %3631 = vperm.xlu0 %3630, %v3497
      %v3632 = vpop.permute.xlu0 %3631
      %3635 = vset.pattern.permute.xlu0 0
      %3636 = vperm.xlu0 %3635, %v3498
      %v3637 = vpop.permute.xlu0 %3636
      %3640 = vset.pattern.permute.xlu0 0
      %3641 = vperm.xlu0 %3640, %v3499
      %v3642 = vpop.permute.xlu0 %3641
      %3645 = vset.pattern.permute.xlu0 0
      %3646 = vperm.xlu0 %3645, %v3500
      %v3647 = vpop.permute.xlu0 %3646
      %3650 = vset.pattern.permute.xlu0 0
      %3651 = vperm.xlu0 %3650, %v3501
      %v3652 = vpop.permute.xlu0 %3651
      %3655 = vset.pattern.permute.xlu0 0
      %3656 = vperm.xlu0 %3655, %v3502
      %v3657 = vpop.permute.xlu0 %3656
      %3660 = vset.pattern.permute.xlu0 0
      %3661 = vperm.xlu0 %3660, %v3503
      %v3662 = vpop.permute.xlu0 %3661
      %3665 = vset.pattern.permute.xlu0 0
      %3666 = vperm.xlu0 %3665, %v3504
      %v3667 = vpop.permute.xlu0 %3666
      %3670 = vset.pattern.permute.xlu0 0
      %3671 = vperm.xlu0 %3670, %v3505
      %v3672 = vpop.permute.xlu0 %3671
      %3675 = vset.pattern.permute.xlu0 0
      %3676 = vperm.xlu0 %3675, %v3506
      %v3677 = vpop.permute.xlu0 %3676
      %3680 = vset.pattern.permute.xlu0 0
      %3681 = vperm.xlu0 %3680, %v3507
      %v3682 = vpop.permute.xlu0 %3681
      %3685 = vset.pattern.permute.xlu0 0
      %3686 = vperm.xlu0 %3685, %v3508
      %v3687 = vpop.permute.xlu0 %3686
      %3690 = vset.pattern.permute.xlu0 0
      %3691 = vperm.xlu0 %3690, %v3509
      %v3692 = vpop.permute.xlu0 %3691
      %3695 = vset.pattern.permute.xlu0 0
      %3696 = vperm.xlu0 %3695, %v3510
      %v3697 = vpop.permute.xlu0 %3696
      %3700 = vset.pattern.permute.xlu0 0
      %3701 = vperm.xlu0 %3700, %v3511
      %v3702 = vpop.permute.xlu0 %3701
      %3705 = vset.pattern.permute.xlu0 0
      %3706 = vperm.xlu0 %3705, %v3512
      %v3707 = vpop.permute.xlu0 %3706
      %3710 = vset.pattern.permute.xlu0 0
      %3711 = vperm.xlu0 %3710, %v3513
      %v3712 = vpop.permute.xlu0 %3711
      %3715 = vset.pattern.permute.xlu0 0
      %3716 = vperm.xlu0 %3715, %v3514
      %v3717 = vpop.permute.xlu0 %3716
      %3720 = vset.pattern.permute.xlu0 0
      %3721 = vperm.xlu0 %3720, %v3515
      %v3722 = vpop.permute.xlu0 %3721
      %3725 = vset.pattern.permute.xlu0 0
      %3726 = vperm.xlu0 %3725, %v3516
      %v3727 = vpop.permute.xlu0 %3726
      %3730 = vset.pattern.permute.xlu0 0
      %3731 = vperm.xlu0 %3730, %v3517
      %v3732 = vpop.permute.xlu0 %3731
      %3735 = vset.pattern.permute.xlu0 0
      %3736 = vperm.xlu0 %3735, %v3518
      %v3737 = vpop.permute.xlu0 %3736
      %3740 = vset.pattern.permute.xlu0 0
      %3741 = vperm.xlu0 %3740, %v3519
      %v3742 = vpop.permute.xlu0 %3741
      %3745 = vset.pattern.permute.xlu0 0
      %3746 = vperm.xlu0 %3745, %v3520
      %v3747 = vpop.permute.xlu0 %3746
      %3750 = vset.pattern.permute.xlu0 0
      %3751 = vperm.xlu0 %3750, %v3521
      %v3752 = vpop.permute.xlu0 %3751
      %3755 = vset.pattern.permute.xlu0 0
      %3756 = vperm.xlu0 %3755, %v3522
      %v3757 = vpop.permute.xlu0 %3756
      %3760 = vset.pattern.permute.xlu0 0
      %3761 = vperm.xlu0 %3760, %v3523
      %v3762 = vpop.permute.xlu0 %3761
      %3765 = vset.pattern.permute.xlu0 0
      %3766 = vperm.xlu0 %3765, %v3524
      %v3767 = vpop.permute.xlu0 %3766
      %3770 = vset.pattern.permute.xlu0 0
      %3771 = vperm.xlu0 %3770, %v3525
      %v3772 = vpop.permute.xlu0 %3771
      %3775 = vset.pattern.permute.xlu0 0
      %3776 = vperm.xlu0 %3775, %v3526
      %v3777 = vpop.permute.xlu0 %3776
      %3780 = vset.pattern.permute.xlu0 0
      %3781 = vperm.xlu0 %3780, %v3527
      %v3782 = vpop.permute.xlu0 %3781
      %3785 = vset.pattern.permute.xlu0 0
      %3786 = vperm.xlu0 %3785, %v3528
      %v3787 = vpop.permute.xlu0 %3786
      %3790 = vset.pattern.permute.xlu0 0
      %3791 = vperm.xlu0 %3790, %v3529
      %v3792 = vpop.permute.xlu0 %3791
      %3795 = vset.pattern.permute.xlu0 0
      %3796 = vperm.xlu0 %3795, %v3530
      %v3797 = vpop.permute.xlu0 %3796
      %3800 = vset.pattern.permute.xlu0 0
      %3801 = vperm.xlu0 %3800, %v3531
      %v3802 = vpop.permute.xlu0 %3801
      %3805 = vset.pattern.permute.xlu0 0
      %3806 = vperm.xlu0 %3805, %v3532
      %v3807 = vpop.permute.xlu0 %3806
      %3810 = vset.pattern.permute.xlu0 0
      %3811 = vperm.xlu0 %3810, %v3533
      %v3812 = vpop.permute.xlu0 %3811
      %3815 = vset.pattern.permute.xlu0 0
      %3816 = vperm.xlu0 %3815, %v3534
      %v3817 = vpop.permute.xlu0 %3816
      %3820 = vset.pattern.permute.xlu0 0
      %3821 = vperm.xlu0 %3820, %v3535
      %v3822 = vpop.permute.xlu0 %3821
      %3825 = vset.pattern.permute.xlu0 0
      %3826 = vperm.xlu0 %3825, %v3536
      %v3827 = vpop.permute.xlu0 %3826
      %3830 = vset.pattern.permute.xlu0 0
      %3831 = vperm.xlu0 %3830, %v3537
      %v3832 = vpop.permute.xlu0 %3831
      %3835 = vset.pattern.permute.xlu0 0
      %3836 = vperm.xlu0 %3835, %v3538
      %v3837 = vpop.permute.xlu0 %3836
      %3840 = vset.pattern.permute.xlu0 0
      %3841 = vperm.xlu0 %3840, %v3539
      %v3842 = vpop.permute.xlu0 %3841
      %3845 = vset.pattern.permute.xlu0 0
      %3846 = vperm.xlu0 %3845, %v3540
      %v3847 = vpop.permute.xlu0 %3846
      %3850 = vset.pattern.permute.xlu0 0
      %3851 = vperm.xlu0 %3850, %v3541
      %v3852 = vpop.permute.xlu0 %3851
      %3855 = vset.pattern.permute.xlu0 0
      %3856 = vperm.xlu0 %3855, %v3542
      %v3857 = vpop.permute.xlu0 %3856
      %3860 = vset.pattern.permute.xlu0 0
      %3861 = vperm.xlu0 %3860, %v3543
      %v3862 = vpop.permute.xlu0 %3861
      %v3864 = vmul.f32 %v3226, %v3547
      %v3865 = vmul.f32 %v3229, %v3552
      %v3866 = vmul.f32 %v3234, %v3557
      %v3867 = vmul.f32 %v3237, %v3562
      %v3868 = vmul.f32 %v3242, %v3567
      %v3869 = vmul.f32 %v3245, %v3572
      %v3870 = vmul.f32 %v3250, %v3577
      %v3871 = vmul.f32 %v3253, %v3582
      %v3872 = vmul.f32 %v3258, %v3587
      %v3873 = vmul.f32 %v3261, %v3592
      %v3874 = vmul.f32 %v3266, %v3597
      %v3875 = vmul.f32 %v3269, %v3602
      %v3876 = vmul.f32 %v3274, %v3607
      %v3877 = vmul.f32 %v3277, %v3612
      %v3878 = vmul.f32 %v3282, %v3617
      %v3879 = vmul.f32 %v3285, %v3622
      %v3880 = vmul.f32 %v3290, %v3627
      %v3881 = vmul.f32 %v3293, %v3632
      %v3882 = vmul.f32 %v3298, %v3637
      %v3883 = vmul.f32 %v3301, %v3642
      %v3884 = vmul.f32 %v3306, %v3647
      %v3885 = vmul.f32 %v3309, %v3652
      %v3886 = vmul.f32 %v3314, %v3657
      %v3887 = vmul.f32 %v3317, %v3662
      %v3888 = vmul.f32 %v3322, %v3667
      %v3889 = vmul.f32 %v3325, %v3672
      %v3890 = vmul.f32 %v3330, %v3677
      %v3891 = vmul.f32 %v3333, %v3682
      %v3892 = vmul.f32 %v3338, %v3687
      %v3893 = vmul.f32 %v3341, %v3692
      %v3894 = vmul.f32 %v3346, %v3697
      %v3895 = vmul.f32 %v3349, %v3702
      %v3896 = vmul.f32 %v3354, %v3707
      %v3897 = vmul.f32 %v3357, %v3712
      %v3898 = vmul.f32 %v3362, %v3717
      %v3899 = vmul.f32 %v3365, %v3722
      %v3900 = vmul.f32 %v3370, %v3727
      %v3901 = vmul.f32 %v3373, %v3732
      %v3902 = vmul.f32 %v3378, %v3737
      %v3903 = vmul.f32 %v3381, %v3742
      %v3904 = vmul.f32 %v3386, %v3747
      %v3905 = vmul.f32 %v3389, %v3752
      %v3906 = vmul.f32 %v3394, %v3757
      %v3907 = vmul.f32 %v3397, %v3762
      %v3908 = vmul.f32 %v3402, %v3767
      %v3909 = vmul.f32 %v3405, %v3772
      %v3910 = vmul.f32 %v3410, %v3777
      %v3911 = vmul.f32 %v3413, %v3782
      %v3912 = vmul.f32 %v3418, %v3787
      %v3913 = vmul.f32 %v3421, %v3792
      %v3914 = vmul.f32 %v3426, %v3797
      %v3915 = vmul.f32 %v3429, %v3802
      %v3916 = vmul.f32 %v3434, %v3807
      %v3917 = vmul.f32 %v3437, %v3812
      %v3918 = vmul.f32 %v3442, %v3817
      %v3919 = vmul.f32 %v3445, %v3822
      %v3920 = vmul.f32 %v3450, %v3827
      %v3921 = vmul.f32 %v3453, %v3832
      %v3922 = vmul.f32 %v3458, %v3837
      %v3923 = vmul.f32 %v3461, %v3842
      %v3924 = vmul.f32 %v3466, %v3847
      %v3925 = vmul.f32 %v3469, %v3852
      %v3926 = vmul.f32 %v3474, %v3857
      %v3927 = vmul.f32 %v3477, %v3862
      %v3928 = vld [vmem:[%s267] sm:$0xff]
      %v3929 = vld [vmem:[%s267 + $0x8] sm:$0xff]
      %v3930 = vld [vmem:[%s267 + $0x10] sm:$0xff]
      %v3931 = vld [vmem:[%s267 + $0x18] sm:$0xff]
      %v3932 = vld [vmem:[%s267 + $0x20] sm:$0xff]
      %v3933 = vld [vmem:[%s267 + $0x28] sm:$0xff]
      %v3934 = vld [vmem:[%s267 + $0x30] sm:$0xff]
      %v3935 = vld [vmem:[%s267 + $0x38] sm:$0xff]
      %v3936 = vld [vmem:[%s267 + $0x40] sm:$0xff]
      %v3937 = vld [vmem:[%s267 + $0x48] sm:$0xff]
      %v3938 = vld [vmem:[%s267 + $0x50] sm:$0xff]
      %v3939 = vld [vmem:[%s267 + $0x58] sm:$0xff]
      %v3940 = vld [vmem:[%s267 + $0x60] sm:$0xff]
      %v3941 = vld [vmem:[%s267 + $0x68] sm:$0xff]
      %v3942 = vld [vmem:[%s267 + $0x70] sm:$0xff]
      %v3943 = vld [vmem:[%s267 + $0x78] sm:$0xff]
      %v3944 = vld [vmem:[%s267 + $0x80] sm:$0xff]
      %v3945 = vld [vmem:[%s267 + $0x88] sm:$0xff]
      %v3946 = vld [vmem:[%s267 + $0x90] sm:$0xff]
      %v3947 = vld [vmem:[%s267 + $0x98] sm:$0xff]
      %v3948 = vld [vmem:[%s267 + $0xa0] sm:$0xff]
      %v3949 = vld [vmem:[%s267 + $0xa8] sm:$0xff]
      %v3950 = vld [vmem:[%s267 + $0xb0] sm:$0xff]
      %v3951 = vld [vmem:[%s267 + $0xb8] sm:$0xff]
      %v3952 = vld [vmem:[%s267 + $0xc0] sm:$0xff]
      %v3953 = vld [vmem:[%s267 + $0xc8] sm:$0xff]
      %v3954 = vld [vmem:[%s267 + $0xd0] sm:$0xff]
      %v3955 = vld [vmem:[%s267 + $0xd8] sm:$0xff]
      %v3956 = vld [vmem:[%s267 + $0xe0] sm:$0xff]
      %v3957 = vld [vmem:[%s267 + $0xe8] sm:$0xff]
      %v3958 = vld [vmem:[%s267 + $0xf0] sm:$0xff]
      %v3959 = vld [vmem:[%s267 + $0xf8] sm:$0xff]
      %v3960 = vld [vmem:[%s267 + $0x100] sm:$0xff]
      %v3961 = vld [vmem:[%s267 + $0x108] sm:$0xff]
      %v3962 = vld [vmem:[%s267 + $0x110] sm:$0xff]
      %v3963 = vld [vmem:[%s267 + $0x118] sm:$0xff]
      %v3964 = vld [vmem:[%s267 + $0x120] sm:$0xff]
      %v3965 = vld [vmem:[%s267 + $0x128] sm:$0xff]
      %v3966 = vld [vmem:[%s267 + $0x130] sm:$0xff]
      %v3967 = vld [vmem:[%s267 + $0x138] sm:$0xff]
      %v3968 = vld [vmem:[%s267 + $0x140] sm:$0xff]
      %v3969 = vld [vmem:[%s267 + $0x148] sm:$0xff]
      %v3970 = vld [vmem:[%s267 + $0x150] sm:$0xff]
      %v3971 = vld [vmem:[%s267 + $0x158] sm:$0xff]
      %v3972 = vld [vmem:[%s267 + $0x160] sm:$0xff]
      %v3973 = vld [vmem:[%s267 + $0x168] sm:$0xff]
      %v3974 = vld [vmem:[%s267 + $0x170] sm:$0xff]
      %v3975 = vld [vmem:[%s267 + $0x178] sm:$0xff]
      %v3976 = vld [vmem:[%s267 + $0x180] sm:$0xff]
      %v3977 = vld [vmem:[%s267 + $0x188] sm:$0xff]
      %v3978 = vld [vmem:[%s267 + $0x190] sm:$0xff]
      %v3979 = vld [vmem:[%s267 + $0x198] sm:$0xff]
      %v3980 = vld [vmem:[%s267 + $0x1a0] sm:$0xff]
      %v3981 = vld [vmem:[%s267 + $0x1a8] sm:$0xff]
      %v3982 = vld [vmem:[%s267 + $0x1b0] sm:$0xff]
      %v3983 = vld [vmem:[%s267 + $0x1b8] sm:$0xff]
      %v3984 = vld [vmem:[%s267 + $0x1c0] sm:$0xff]
      %v3985 = vld [vmem:[%s267 + $0x1c8] sm:$0xff]
      %v3986 = vld [vmem:[%s267 + $0x1d0] sm:$0xff]
      %v3987 = vld [vmem:[%s267 + $0x1d8] sm:$0xff]
      %v3988 = vld [vmem:[%s267 + $0x1e0] sm:$0xff]
      %v3989 = vld [vmem:[%s267 + $0x1e8] sm:$0xff]
      %v3990 = vld [vmem:[%s267 + $0x1f0] sm:$0xff]
      %v3991 = vld [vmem:[%s267 + $0x1f8] sm:$0xff]
      %v3992 = vadd.f32 %v3864, %v3928
      %v3993 = vadd.f32 %v3865, %v3929
      %v3994 = vadd.f32 %v3866, %v3930
      %v3995 = vadd.f32 %v3867, %v3931
      %v3996 = vadd.f32 %v3868, %v3932
      %v3997 = vadd.f32 %v3869, %v3933
      %v3998 = vadd.f32 %v3870, %v3934
      %v3999 = vadd.f32 %v3871, %v3935
      %v4000 = vadd.f32 %v3872, %v3936
      %v4001 = vadd.f32 %v3873, %v3937
      %v4002 = vadd.f32 %v3874, %v3938
      %v4003 = vadd.f32 %v3875, %v3939
      %v4004 = vadd.f32 %v3876, %v3940
      %v4005 = vadd.f32 %v3877, %v3941
      %v4006 = vadd.f32 %v3878, %v3942
      %v4007 = vadd.f32 %v3879, %v3943
      %v4008 = vadd.f32 %v3880, %v3944
      %v4009 = vadd.f32 %v3881, %v3945
      %v4010 = vadd.f32 %v3882, %v3946
      %v4011 = vadd.f32 %v3883, %v3947
      %v4012 = vadd.f32 %v3884, %v3948
      %v4013 = vadd.f32 %v3885, %v3949
      %v4014 = vadd.f32 %v3886, %v3950
      %v4015 = vadd.f32 %v3887, %v3951
      %v4016 = vadd.f32 %v3888, %v3952
      %v4017 = vadd.f32 %v3889, %v3953
      %v4018 = vadd.f32 %v3890, %v3954
      %v4019 = vadd.f32 %v3891, %v3955
      %v4020 = vadd.f32 %v3892, %v3956
      %v4021 = vadd.f32 %v3893, %v3957
      %v4022 = vadd.f32 %v3894, %v3958
      %v4023 = vadd.f32 %v3895, %v3959
      %v4024 = vadd.f32 %v3896, %v3960
      %v4025 = vadd.f32 %v3897, %v3961
      %v4026 = vadd.f32 %v3898, %v3962
      %v4027 = vadd.f32 %v3899, %v3963
      %v4028 = vadd.f32 %v3900, %v3964
      %v4029 = vadd.f32 %v3901, %v3965
      %v4030 = vadd.f32 %v3902, %v3966
      %v4031 = vadd.f32 %v3903, %v3967
      %v4032 = vadd.f32 %v3904, %v3968
      %v4033 = vadd.f32 %v3905, %v3969
      %v4034 = vadd.f32 %v3906, %v3970
      %v4035 = vadd.f32 %v3907, %v3971
      %v4036 = vadd.f32 %v3908, %v3972
      %v4037 = vadd.f32 %v3909, %v3973
      %v4038 = vadd.f32 %v3910, %v3974
      %v4039 = vadd.f32 %v3911, %v3975
      %v4040 = vadd.f32 %v3912, %v3976
      %v4041 = vadd.f32 %v3913, %v3977
      %v4042 = vadd.f32 %v3914, %v3978
      %v4043 = vadd.f32 %v3915, %v3979
      %v4044 = vadd.f32 %v3916, %v3980
      %v4045 = vadd.f32 %v3917, %v3981
      %v4046 = vadd.f32 %v3918, %v3982
      %v4047 = vadd.f32 %v3919, %v3983
      %v4048 = vadd.f32 %v3920, %v3984
      %v4049 = vadd.f32 %v3921, %v3985
      %v4050 = vadd.f32 %v3922, %v3986
      %v4051 = vadd.f32 %v3923, %v3987
      %v4052 = vadd.f32 %v3924, %v3988
      %v4053 = vadd.f32 %v3925, %v3989
      %v4054 = vadd.f32 %v3926, %v3990
      %v4055 = vadd.f32 %v3927, %v3991
      %v4056 = vld [vmem:[%s4] sm:$0x1]
      %v4058 = vlaneseq
      %v4059 = vshrl.u32 %v4058, 7
      %v4060 = vsub.s32 0, %v4059
      %v4061 = vrot.slane %v4056, %v4060
      %v4063 = vadd.f32 %v3992, %v4061
      %v4064 = vadd.f32 %v3993, %v4061
      %v4065 = vadd.f32 %v3994, %v4061
      %v4066 = vadd.f32 %v3995, %v4061
      %v4067 = vadd.f32 %v3996, %v4061
      %v4068 = vadd.f32 %v3997, %v4061
      %v4069 = vadd.f32 %v3998, %v4061
      %v4070 = vadd.f32 %v3999, %v4061
      %v4071 = vadd.f32 %v4000, %v4061
      %v4072 = vadd.f32 %v4001, %v4061
      %v4073 = vadd.f32 %v4002, %v4061
      %v4074 = vadd.f32 %v4003, %v4061
      %v4075 = vadd.f32 %v4004, %v4061
      %v4076 = vadd.f32 %v4005, %v4061
      %v4077 = vadd.f32 %v4006, %v4061
      %v4078 = vadd.f32 %v4007, %v4061
      %v4079 = vadd.f32 %v4008, %v4061
      %v4080 = vadd.f32 %v4009, %v4061
      %v4081 = vadd.f32 %v4010, %v4061
      %v4082 = vadd.f32 %v4011, %v4061
      %v4083 = vadd.f32 %v4012, %v4061
      %v4084 = vadd.f32 %v4013, %v4061
      %v4085 = vadd.f32 %v4014, %v4061
      %v4086 = vadd.f32 %v4015, %v4061
      %v4087 = vadd.f32 %v4016, %v4061
      %v4088 = vadd.f32 %v4017, %v4061
      %v4089 = vadd.f32 %v4018, %v4061
      %v4090 = vadd.f32 %v4019, %v4061
      %v4091 = vadd.f32 %v4020, %v4061
      %v4092 = vadd.f32 %v4021, %v4061
      %v4093 = vadd.f32 %v4022, %v4061
      %v4094 = vadd.f32 %v4023, %v4061
      %v4095 = vadd.f32 %v4024, %v4061
      %v4096 = vadd.f32 %v4025, %v4061
      %v4097 = vadd.f32 %v4026, %v4061
      %v4098 = vadd.f32 %v4027, %v4061
      %v4099 = vadd.f32 %v4028, %v4061
      %v4100 = vadd.f32 %v4029, %v4061
      %v4101 = vadd.f32 %v4030, %v4061
      %v4102 = vadd.f32 %v4031, %v4061
      %v4103 = vadd.f32 %v4032, %v4061
      %v4104 = vadd.f32 %v4033, %v4061
      %v4105 = vadd.f32 %v4034, %v4061
      %v4106 = vadd.f32 %v4035, %v4061
      %v4107 = vadd.f32 %v4036, %v4061
      %v4108 = vadd.f32 %v4037, %v4061
      %v4109 = vadd.f32 %v4038, %v4061
      %v4110 = vadd.f32 %v4039, %v4061
      %v4111 = vadd.f32 %v4040, %v4061
      %v4112 = vadd.f32 %v4041, %v4061
      %v4113 = vadd.f32 %v4042, %v4061
      %v4114 = vadd.f32 %v4043, %v4061
      %v4115 = vadd.f32 %v4044, %v4061
      %v4116 = vadd.f32 %v4045, %v4061
      %v4117 = vadd.f32 %v4046, %v4061
      %v4118 = vadd.f32 %v4047, %v4061
      %v4119 = vadd.f32 %v4048, %v4061
      %v4120 = vadd.f32 %v4049, %v4061
      %v4121 = vadd.f32 %v4050, %v4061
      %v4122 = vadd.f32 %v4051, %v4061
      %v4123 = vadd.f32 %v4052, %v4061
      %v4124 = vadd.f32 %v4053, %v4061
      %v4125 = vadd.f32 %v4054, %v4061
      %v4126 = vadd.f32 %v4055, %v4061
      %vm4127 = vcmask 64512
      %v4128 = vsel %vm4127, %v4063, -inf
      %4129 = vmax.xlane.f32.xlu0 %v4128
      %v4130 = vpop.xlane.xlu0 %4129
      %v4131 = vsel %vm4127, %v4064, -inf
      %4132 = vmax.xlane.f32.xlu0 %v4131
      %v4133 = vpop.xlane.xlu0 %4132
      %v4134 = vsel %vm4127, %v4065, -inf
      %4135 = vmax.xlane.f32.xlu0 %v4134
      %v4136 = vpop.xlane.xlu0 %4135
      %v4137 = vsel %vm4127, %v4066, -inf
      %4138 = vmax.xlane.f32.xlu0 %v4137
      %v4139 = vpop.xlane.xlu0 %4138
      %v4140 = vsel %vm4127, %v4067, -inf
      %4141 = vmax.xlane.f32.xlu0 %v4140
      %v4142 = vpop.xlane.xlu0 %4141
      %v4143 = vsel %vm4127, %v4068, -inf
      %4144 = vmax.xlane.f32.xlu0 %v4143
      %v4145 = vpop.xlane.xlu0 %4144
      %v4146 = vsel %vm4127, %v4069, -inf
      %4147 = vmax.xlane.f32.xlu0 %v4146
      %v4148 = vpop.xlane.xlu0 %4147
      %v4149 = vsel %vm4127, %v4070, -inf
      %4150 = vmax.xlane.f32.xlu0 %v4149
      %v4151 = vpop.xlane.xlu0 %4150
      %v4152 = vsel %vm4127, %v4071, -inf
      %4153 = vmax.xlane.f32.xlu0 %v4152
      %v4154 = vpop.xlane.xlu0 %4153
      %v4155 = vsel %vm4127, %v4072, -inf
      %4156 = vmax.xlane.f32.xlu0 %v4155
      %v4157 = vpop.xlane.xlu0 %4156
      %v4158 = vsel %vm4127, %v4073, -inf
      %4159 = vmax.xlane.f32.xlu0 %v4158
      %v4160 = vpop.xlane.xlu0 %4159
      %v4161 = vsel %vm4127, %v4074, -inf
      %4162 = vmax.xlane.f32.xlu0 %v4161
      %v4163 = vpop.xlane.xlu0 %4162
      %v4164 = vsel %vm4127, %v4075, -inf
      %4165 = vmax.xlane.f32.xlu0 %v4164
      %v4166 = vpop.xlane.xlu0 %4165
      %v4167 = vsel %vm4127, %v4076, -inf
      %4168 = vmax.xlane.f32.xlu0 %v4167
      %v4169 = vpop.xlane.xlu0 %4168
      %v4170 = vsel %vm4127, %v4077, -inf
      %4171 = vmax.xlane.f32.xlu0 %v4170
      %v4172 = vpop.xlane.xlu0 %4171
      %v4173 = vsel %vm4127, %v4078, -inf
      %4174 = vmax.xlane.f32.xlu0 %v4173
      %v4175 = vpop.xlane.xlu0 %4174
      %v4176 = vsel %vm4127, %v4079, -inf
      %4177 = vmax.xlane.f32.xlu0 %v4176
      %v4178 = vpop.xlane.xlu0 %4177
      %v4179 = vsel %vm4127, %v4080, -inf
      %4180 = vmax.xlane.f32.xlu0 %v4179
      %v4181 = vpop.xlane.xlu0 %4180
      %v4182 = vsel %vm4127, %v4081, -inf
      %4183 = vmax.xlane.f32.xlu0 %v4182
      %v4184 = vpop.xlane.xlu0 %4183
      %v4185 = vsel %vm4127, %v4082, -inf
      %4186 = vmax.xlane.f32.xlu0 %v4185
      %v4187 = vpop.xlane.xlu0 %4186
      %v4188 = vsel %vm4127, %v4083, -inf
      %4189 = vmax.xlane.f32.xlu0 %v4188
      %v4190 = vpop.xlane.xlu0 %4189
      %v4191 = vsel %vm4127, %v4084, -inf
      %4192 = vmax.xlane.f32.xlu0 %v4191
      %v4193 = vpop.xlane.xlu0 %4192
      %v4194 = vsel %vm4127, %v4085, -inf
      %4195 = vmax.xlane.f32.xlu0 %v4194
      %v4196 = vpop.xlane.xlu0 %4195
      %v4197 = vsel %vm4127, %v4086, -inf
      %4198 = vmax.xlane.f32.xlu0 %v4197
      %v4199 = vpop.xlane.xlu0 %4198
      %v4200 = vsel %vm4127, %v4087, -inf
      %4201 = vmax.xlane.f32.xlu0 %v4200
      %v4202 = vpop.xlane.xlu0 %4201
      %v4203 = vsel %vm4127, %v4088, -inf
      %4204 = vmax.xlane.f32.xlu0 %v4203
      %v4205 = vpop.xlane.xlu0 %4204
      %v4206 = vsel %vm4127, %v4089, -inf
      %4207 = vmax.xlane.f32.xlu0 %v4206
      %v4208 = vpop.xlane.xlu0 %4207
      %v4209 = vsel %vm4127, %v4090, -inf
      %4210 = vmax.xlane.f32.xlu0 %v4209
      %v4211 = vpop.xlane.xlu0 %4210
      %v4212 = vsel %vm4127, %v4091, -inf
      %4213 = vmax.xlane.f32.xlu0 %v4212
      %v4214 = vpop.xlane.xlu0 %4213
      %v4215 = vsel %vm4127, %v4092, -inf
      %4216 = vmax.xlane.f32.xlu0 %v4215
      %v4217 = vpop.xlane.xlu0 %4216
      %v4218 = vsel %vm4127, %v4093, -inf
      %4219 = vmax.xlane.f32.xlu0 %v4218
      %v4220 = vpop.xlane.xlu0 %4219
      %v4221 = vsel %vm4127, %v4094, -inf
      %4222 = vmax.xlane.f32.xlu0 %v4221
      %v4223 = vpop.xlane.xlu0 %4222
      %v4224 = vsel %vm4127, %v4095, -inf
      %4225 = vmax.xlane.f32.xlu0 %v4224
      %v4226 = vpop.xlane.xlu0 %4225
      %v4227 = vsel %vm4127, %v4096, -inf
      %4228 = vmax.xlane.f32.xlu0 %v4227
      %v4229 = vpop.xlane.xlu0 %4228
      %v4230 = vsel %vm4127, %v4097, -inf
      %4231 = vmax.xlane.f32.xlu0 %v4230
      %v4232 = vpop.xlane.xlu0 %4231
      %v4233 = vsel %vm4127, %v4098, -inf
      %4234 = vmax.xlane.f32.xlu0 %v4233
      %v4235 = vpop.xlane.xlu0 %4234
      %v4236 = vsel %vm4127, %v4099, -inf
      %4237 = vmax.xlane.f32.xlu0 %v4236
      %v4238 = vpop.xlane.xlu0 %4237
      %v4239 = vsel %vm4127, %v4100, -inf
      %4240 = vmax.xlane.f32.xlu0 %v4239
      %v4241 = vpop.xlane.xlu0 %4240
      %v4242 = vsel %vm4127, %v4101, -inf
      %4243 = vmax.xlane.f32.xlu0 %v4242
      %v4244 = vpop.xlane.xlu0 %4243
      %v4245 = vsel %vm4127, %v4102, -inf
      %4246 = vmax.xlane.f32.xlu0 %v4245
      %v4247 = vpop.xlane.xlu0 %4246
      %v4248 = vsel %vm4127, %v4103, -inf
      %4249 = vmax.xlane.f32.xlu0 %v4248
      %v4250 = vpop.xlane.xlu0 %4249
      %v4251 = vsel %vm4127, %v4104, -inf
      %4252 = vmax.xlane.f32.xlu0 %v4251
      %v4253 = vpop.xlane.xlu0 %4252
      %v4254 = vsel %vm4127, %v4105, -inf
      %4255 = vmax.xlane.f32.xlu0 %v4254
      %v4256 = vpop.xlane.xlu0 %4255
      %v4257 = vsel %vm4127, %v4106, -inf
      %4258 = vmax.xlane.f32.xlu0 %v4257
      %v4259 = vpop.xlane.xlu0 %4258
      %v4260 = vsel %vm4127, %v4107, -inf
      %4261 = vmax.xlane.f32.xlu0 %v4260
      %v4262 = vpop.xlane.xlu0 %4261
      %v4263 = vsel %vm4127, %v4108, -inf
      %4264 = vmax.xlane.f32.xlu0 %v4263
      %v4265 = vpop.xlane.xlu0 %4264
      %v4266 = vsel %vm4127, %v4109, -inf
      %4267 = vmax.xlane.f32.xlu0 %v4266
      %v4268 = vpop.xlane.xlu0 %4267
      %v4269 = vsel %vm4127, %v4110, -inf
      %4270 = vmax.xlane.f32.xlu0 %v4269
      %v4271 = vpop.xlane.xlu0 %4270
      %v4272 = vsel %vm4127, %v4111, -inf
      %4273 = vmax.xlane.f32.xlu0 %v4272
      %v4274 = vpop.xlane.xlu0 %4273
      %v4275 = vsel %vm4127, %v4112, -inf
      %4276 = vmax.xlane.f32.xlu0 %v4275
      %v4277 = vpop.xlane.xlu0 %4276
      %v4278 = vsel %vm4127, %v4113, -inf
      %4279 = vmax.xlane.f32.xlu0 %v4278
      %v4280 = vpop.xlane.xlu0 %4279
      %v4281 = vsel %vm4127, %v4114, -inf
      %4282 = vmax.xlane.f32.xlu0 %v4281
      %v4283 = vpop.xlane.xlu0 %4282
      %v4284 = vsel %vm4127, %v4115, -inf
      %4285 = vmax.xlane.f32.xlu0 %v4284
      %v4286 = vpop.xlane.xlu0 %4285
      %v4287 = vsel %vm4127, %v4116, -inf
      %4288 = vmax.xlane.f32.xlu0 %v4287
      %v4289 = vpop.xlane.xlu0 %4288
      %v4290 = vsel %vm4127, %v4117, -inf
      %4291 = vmax.xlane.f32.xlu0 %v4290
      %v4292 = vpop.xlane.xlu0 %4291
      %v4293 = vsel %vm4127, %v4118, -inf
      %4294 = vmax.xlane.f32.xlu0 %v4293
      %v4295 = vpop.xlane.xlu0 %4294
      %v4296 = vsel %vm4127, %v4119, -inf
      %4297 = vmax.xlane.f32.xlu0 %v4296
      %v4298 = vpop.xlane.xlu0 %4297
      %v4299 = vsel %vm4127, %v4120, -inf
      %4300 = vmax.xlane.f32.xlu0 %v4299
      %v4301 = vpop.xlane.xlu0 %4300
      %v4302 = vsel %vm4127, %v4121, -inf
      %4303 = vmax.xlane.f32.xlu0 %v4302
      %v4304 = vpop.xlane.xlu0 %4303
      %v4305 = vsel %vm4127, %v4122, -inf
      %4306 = vmax.xlane.f32.xlu0 %v4305
      %v4307 = vpop.xlane.xlu0 %4306
      %v4308 = vsel %vm4127, %v4123, -inf
      %4309 = vmax.xlane.f32.xlu0 %v4308
      %v4310 = vpop.xlane.xlu0 %4309
      %v4311 = vsel %vm4127, %v4124, -inf
      %4312 = vmax.xlane.f32.xlu0 %v4311
      %v4313 = vpop.xlane.xlu0 %4312
      %v4314 = vsel %vm4127, %v4125, -inf
      %4315 = vmax.xlane.f32.xlu0 %v4314
      %v4316 = vpop.xlane.xlu0 %4315
      %v4317 = vsel %vm4127, %v4126, -inf
      %4318 = vmax.xlane.f32.xlu0 %v4317
      %v4319 = vpop.xlane.xlu0 %4318
      %v4320 = vsub.f32 %v4063, %v4130
      %v4321 = vsub.f32 %v4064, %v4133
      %v4322 = vsub.f32 %v4065, %v4136
      %v4323 = vsub.f32 %v4066, %v4139
      %v4324 = vsub.f32 %v4067, %v4142
      %v4325 = vsub.f32 %v4068, %v4145
      %v4326 = vsub.f32 %v4069, %v4148
      %v4327 = vsub.f32 %v4070, %v4151
      %v4328 = vsub.f32 %v4071, %v4154
      %v4329 = vsub.f32 %v4072, %v4157
      %v4330 = vsub.f32 %v4073, %v4160
      %v4331 = vsub.f32 %v4074, %v4163
      %v4332 = vsub.f32 %v4075, %v4166
      %v4333 = vsub.f32 %v4076, %v4169
      %v4334 = vsub.f32 %v4077, %v4172
      %v4335 = vsub.f32 %v4078, %v4175
      %v4336 = vsub.f32 %v4079, %v4178
      %v4337 = vsub.f32 %v4080, %v4181
      %v4338 = vsub.f32 %v4081, %v4184
      %v4339 = vsub.f32 %v4082, %v4187
      %v4340 = vsub.f32 %v4083, %v4190
      %v4341 = vsub.f32 %v4084, %v4193
      %v4342 = vsub.f32 %v4085, %v4196
      %v4343 = vsub.f32 %v4086, %v4199
      %v4344 = vsub.f32 %v4087, %v4202
      %v4345 = vsub.f32 %v4088, %v4205
      %v4346 = vsub.f32 %v4089, %v4208
      %v4347 = vsub.f32 %v4090, %v4211
      %v4348 = vsub.f32 %v4091, %v4214
      %v4349 = vsub.f32 %v4092, %v4217
      %v4350 = vsub.f32 %v4093, %v4220
      %v4351 = vsub.f32 %v4094, %v4223
      %v4352 = vsub.f32 %v4095, %v4226
      %v4353 = vsub.f32 %v4096, %v4229
      %v4354 = vsub.f32 %v4097, %v4232
      %v4355 = vsub.f32 %v4098, %v4235
      %v4356 = vsub.f32 %v4099, %v4238
      %v4357 = vsub.f32 %v4100, %v4241
      %v4358 = vsub.f32 %v4101, %v4244
      %v4359 = vsub.f32 %v4102, %v4247
      %v4360 = vsub.f32 %v4103, %v4250
      %v4361 = vsub.f32 %v4104, %v4253
      %v4362 = vsub.f32 %v4105, %v4256
      %v4363 = vsub.f32 %v4106, %v4259
      %v4364 = vsub.f32 %v4107, %v4262
      %v4365 = vsub.f32 %v4108, %v4265
      %v4366 = vsub.f32 %v4109, %v4268
      %v4367 = vsub.f32 %v4110, %v4271
      %v4368 = vsub.f32 %v4111, %v4274
      %v4369 = vsub.f32 %v4112, %v4277
      %v4370 = vsub.f32 %v4113, %v4280
      %v4371 = vsub.f32 %v4114, %v4283
      %v4372 = vsub.f32 %v4115, %v4286
      %v4373 = vsub.f32 %v4116, %v4289
      %v4374 = vsub.f32 %v4117, %v4292
      %v4375 = vsub.f32 %v4118, %v4295
      %v4376 = vsub.f32 %v4119, %v4298
      %v4377 = vsub.f32 %v4120, %v4301
      %v4378 = vsub.f32 %v4121, %v4304
      %v4379 = vsub.f32 %v4122, %v4307
      %v4380 = vsub.f32 %v4123, %v4310
      %v4381 = vsub.f32 %v4124, %v4313
      %v4382 = vsub.f32 %v4125, %v4316
      %v4383 = vsub.f32 %v4126, %v4319
      %v4384 = vmul.f32 %v4320, 1.442695
      %v4385 = vpow.pop %v4384
      %v4386 = vmul.f32 %v4321, 1.442695
      %v4387 = vpow.pop %v4386
      %v4388 = vmul.f32 %v4322, 1.442695
      %v4389 = vpow.pop %v4388
      %v4390 = vmul.f32 %v4323, 1.442695
      %v4391 = vpow.pop %v4390
      %v4392 = vmul.f32 %v4324, 1.442695
      %v4393 = vpow.pop %v4392
      %v4394 = vmul.f32 %v4325, 1.442695
      %v4395 = vpow.pop %v4394
      %v4396 = vmul.f32 %v4326, 1.442695
      %v4397 = vpow.pop %v4396
      %v4398 = vmul.f32 %v4327, 1.442695
      %v4399 = vpow.pop %v4398
      %v4400 = vmul.f32 %v4328, 1.442695
      %v4401 = vpow.pop %v4400
      %v4402 = vmul.f32 %v4329, 1.442695
      %v4403 = vpow.pop %v4402
      %v4404 = vmul.f32 %v4330, 1.442695
      %v4405 = vpow.pop %v4404
      %v4406 = vmul.f32 %v4331, 1.442695
      %v4407 = vpow.pop %v4406
      %v4408 = vmul.f32 %v4332, 1.442695
      %v4409 = vpow.pop %v4408
      %v4410 = vmul.f32 %v4333, 1.442695
      %v4411 = vpow.pop %v4410
      %v4412 = vmul.f32 %v4334, 1.442695
      %v4413 = vpow.pop %v4412
      %v4414 = vmul.f32 %v4335, 1.442695
      %v4415 = vpow.pop %v4414
      %v4416 = vmul.f32 %v4336, 1.442695
      %v4417 = vpow.pop %v4416
      %v4418 = vmul.f32 %v4337, 1.442695
      %v4419 = vpow.pop %v4418
      %v4420 = vmul.f32 %v4338, 1.442695
      %v4421 = vpow.pop %v4420
      %v4422 = vmul.f32 %v4339, 1.442695
      %v4423 = vpow.pop %v4422
      %v4424 = vmul.f32 %v4340, 1.442695
      %v4425 = vpow.pop %v4424
      %v4426 = vmul.f32 %v4341, 1.442695
      %v4427 = vpow.pop %v4426
      %v4428 = vmul.f32 %v4342, 1.442695
      %v4429 = vpow.pop %v4428
      %v4430 = vmul.f32 %v4343, 1.442695
      %v4431 = vpow.pop %v4430
      %v4432 = vmul.f32 %v4344, 1.442695
      %v4433 = vpow.pop %v4432
      %v4434 = vmul.f32 %v4345, 1.442695
      %v4435 = vpow.pop %v4434
      %v4436 = vmul.f32 %v4346, 1.442695
      %v4437 = vpow.pop %v4436
      %v4438 = vmul.f32 %v4347, 1.442695
      %v4439 = vpow.pop %v4438
      %v4440 = vmul.f32 %v4348, 1.442695
      %v4441 = vpow.pop %v4440
      %v4442 = vmul.f32 %v4349, 1.442695
      %v4443 = vpow.pop %v4442
      %v4444 = vmul.f32 %v4350, 1.442695
      %v4445 = vpow.pop %v4444
      %v4446 = vmul.f32 %v4351, 1.442695
      %v4447 = vpow.pop %v4446
      %v4448 = vmul.f32 %v4352, 1.442695
      %v4449 = vpow.pop %v4448
      %v4450 = vmul.f32 %v4353, 1.442695
      %v4451 = vpow.pop %v4450
      %v4452 = vmul.f32 %v4354, 1.442695
      %v4453 = vpow.pop %v4452
      %v4454 = vmul.f32 %v4355, 1.442695
      %v4455 = vpow.pop %v4454
      %v4456 = vmul.f32 %v4356, 1.442695
      %v4457 = vpow.pop %v4456
      %v4458 = vmul.f32 %v4357, 1.442695
      %v4459 = vpow.pop %v4458
      %v4460 = vmul.f32 %v4358, 1.442695
      %v4461 = vpow.pop %v4460
      %v4462 = vmul.f32 %v4359, 1.442695
      %v4463 = vpow.pop %v4462
      %v4464 = vmul.f32 %v4360, 1.442695
      %v4465 = vpow.pop %v4464
      %v4466 = vmul.f32 %v4361, 1.442695
      %v4467 = vpow.pop %v4466
      %v4468 = vmul.f32 %v4362, 1.442695
      %v4469 = vpow.pop %v4468
      %v4470 = vmul.f32 %v4363, 1.442695
      %v4471 = vpow.pop %v4470
      %v4472 = vmul.f32 %v4364, 1.442695
      %v4473 = vpow.pop %v4472
      %v4474 = vmul.f32 %v4365, 1.442695
      %v4475 = vpow.pop %v4474
      %v4476 = vmul.f32 %v4366, 1.442695
      %v4477 = vpow.pop %v4476
      %v4478 = vmul.f32 %v4367, 1.442695
      %v4479 = vpow.pop %v4478
      %v4480 = vmul.f32 %v4368, 1.442695
      %v4481 = vpow.pop %v4480
      %v4482 = vmul.f32 %v4369, 1.442695
      %v4483 = vpow.pop %v4482
      %v4484 = vmul.f32 %v4370, 1.442695
      %v4485 = vpow.pop %v4484
      %v4486 = vmul.f32 %v4371, 1.442695
      %v4487 = vpow.pop %v4486
      %v4488 = vmul.f32 %v4372, 1.442695
      %v4489 = vpow.pop %v4488
      %v4490 = vmul.f32 %v4373, 1.442695
      %v4491 = vpow.pop %v4490
      %v4492 = vmul.f32 %v4374, 1.442695
      %v4493 = vpow.pop %v4492
      %v4494 = vmul.f32 %v4375, 1.442695
      %v4495 = vpow.pop %v4494
      %v4496 = vmul.f32 %v4376, 1.442695
      %v4497 = vpow.pop %v4496
      %v4498 = vmul.f32 %v4377, 1.442695
      %v4499 = vpow.pop %v4498
      %v4500 = vmul.f32 %v4378, 1.442695
      %v4501 = vpow.pop %v4500
      %v4502 = vmul.f32 %v4379, 1.442695
      %v4503 = vpow.pop %v4502
      %v4504 = vmul.f32 %v4380, 1.442695
      %v4505 = vpow.pop %v4504
      %v4506 = vmul.f32 %v4381, 1.442695
      %v4507 = vpow.pop %v4506
      %v4508 = vmul.f32 %v4382, 1.442695
      %v4509 = vpow.pop %v4508
      %v4510 = vmul.f32 %v4383, 1.442695
      %v4511 = vpow.pop %v4510
      %v4512 = vsel %vm4127, %v4385, 0.0
      %4513 = vadd.xlane.f32.xlu0 %v4512
      %v4514 = vpop.xlane.xlu0 %4513
      %v4515 = vsel %vm4127, %v4387, 0.0
      %4516 = vadd.xlane.f32.xlu0 %v4515
      %v4517 = vpop.xlane.xlu0 %4516
      %v4518 = vsel %vm4127, %v4389, 0.0
      %4519 = vadd.xlane.f32.xlu0 %v4518
      %v4520 = vpop.xlane.xlu0 %4519
      %v4521 = vsel %vm4127, %v4391, 0.0
      %4522 = vadd.xlane.f32.xlu0 %v4521
      %v4523 = vpop.xlane.xlu0 %4522
      %v4524 = vsel %vm4127, %v4393, 0.0
      %4525 = vadd.xlane.f32.xlu0 %v4524
      %v4526 = vpop.xlane.xlu0 %4525
      %v4527 = vsel %vm4127, %v4395, 0.0
      %4528 = vadd.xlane.f32.xlu0 %v4527
      %v4529 = vpop.xlane.xlu0 %4528
      %v4530 = vsel %vm4127, %v4397, 0.0
      %4531 = vadd.xlane.f32.xlu0 %v4530
      %v4532 = vpop.xlane.xlu0 %4531
      %v4533 = vsel %vm4127, %v4399, 0.0
      %4534 = vadd.xlane.f32.xlu0 %v4533
      %v4535 = vpop.xlane.xlu0 %4534
      %v4536 = vsel %vm4127, %v4401, 0.0
      %4537 = vadd.xlane.f32.xlu0 %v4536
      %v4538 = vpop.xlane.xlu0 %4537
      %v4539 = vsel %vm4127, %v4403, 0.0
      %4540 = vadd.xlane.f32.xlu0 %v4539
      %v4541 = vpop.xlane.xlu0 %4540
      %v4542 = vsel %vm4127, %v4405, 0.0
      %4543 = vadd.xlane.f32.xlu0 %v4542
      %v4544 = vpop.xlane.xlu0 %4543
      %v4545 = vsel %vm4127, %v4407, 0.0
      %4546 = vadd.xlane.f32.xlu0 %v4545
      %v4547 = vpop.xlane.xlu0 %4546
      %v4548 = vsel %vm4127, %v4409, 0.0
      %4549 = vadd.xlane.f32.xlu0 %v4548
      %v4550 = vpop.xlane.xlu0 %4549
      %v4551 = vsel %vm4127, %v4411, 0.0
      %4552 = vadd.xlane.f32.xlu0 %v4551
      %v4553 = vpop.xlane.xlu0 %4552
      %v4554 = vsel %vm4127, %v4413, 0.0
      %4555 = vadd.xlane.f32.xlu0 %v4554
      %v4556 = vpop.xlane.xlu0 %4555
      %v4557 = vsel %vm4127, %v4415, 0.0
      %4558 = vadd.xlane.f32.xlu0 %v4557
      %v4559 = vpop.xlane.xlu0 %4558
      %v4560 = vsel %vm4127, %v4417, 0.0
      %4561 = vadd.xlane.f32.xlu0 %v4560
      %v4562 = vpop.xlane.xlu0 %4561
      %v4563 = vsel %vm4127, %v4419, 0.0
      %4564 = vadd.xlane.f32.xlu0 %v4563
      %v4565 = vpop.xlane.xlu0 %4564
      %v4566 = vsel %vm4127, %v4421, 0.0
      %4567 = vadd.xlane.f32.xlu0 %v4566
      %v4568 = vpop.xlane.xlu0 %4567
      %v4569 = vsel %vm4127, %v4423, 0.0
      %4570 = vadd.xlane.f32.xlu0 %v4569
      %v4571 = vpop.xlane.xlu0 %4570
      %v4572 = vsel %vm4127, %v4425, 0.0
      %4573 = vadd.xlane.f32.xlu0 %v4572
      %v4574 = vpop.xlane.xlu0 %4573
      %v4575 = vsel %vm4127, %v4427, 0.0
      %4576 = vadd.xlane.f32.xlu0 %v4575
      %v4577 = vpop.xlane.xlu0 %4576
      %v4578 = vsel %vm4127, %v4429, 0.0
      %4579 = vadd.xlane.f32.xlu0 %v4578
      %v4580 = vpop.xlane.xlu0 %4579
      %v4581 = vsel %vm4127, %v4431, 0.0
      %4582 = vadd.xlane.f32.xlu0 %v4581
      %v4583 = vpop.xlane.xlu0 %4582
      %v4584 = vsel %vm4127, %v4433, 0.0
      %4585 = vadd.xlane.f32.xlu0 %v4584
      %v4586 = vpop.xlane.xlu0 %4585
      %v4587 = vsel %vm4127, %v4435, 0.0
      %4588 = vadd.xlane.f32.xlu0 %v4587
      %v4589 = vpop.xlane.xlu0 %4588
      %v4590 = vsel %vm4127, %v4437, 0.0
      %4591 = vadd.xlane.f32.xlu0 %v4590
      %v4592 = vpop.xlane.xlu0 %4591
      %v4593 = vsel %vm4127, %v4439, 0.0
      %4594 = vadd.xlane.f32.xlu0 %v4593
      %v4595 = vpop.xlane.xlu0 %4594
      %v4596 = vsel %vm4127, %v4441, 0.0
      %4597 = vadd.xlane.f32.xlu0 %v4596
      %v4598 = vpop.xlane.xlu0 %4597
      %v4599 = vsel %vm4127, %v4443, 0.0
      %4600 = vadd.xlane.f32.xlu0 %v4599
      %v4601 = vpop.xlane.xlu0 %4600
      %v4602 = vsel %vm4127, %v4445, 0.0
      %4603 = vadd.xlane.f32.xlu0 %v4602
      %v4604 = vpop.xlane.xlu0 %4603
      %v4605 = vsel %vm4127, %v4447, 0.0
      %4606 = vadd.xlane.f32.xlu0 %v4605
      %v4607 = vpop.xlane.xlu0 %4606
      %v4608 = vsel %vm4127, %v4449, 0.0
      %4609 = vadd.xlane.f32.xlu0 %v4608
      %v4610 = vpop.xlane.xlu0 %4609
      %v4611 = vsel %vm4127, %v4451, 0.0
      %4612 = vadd.xlane.f32.xlu0 %v4611
      %v4613 = vpop.xlane.xlu0 %4612
      %v4614 = vsel %vm4127, %v4453, 0.0
      %4615 = vadd.xlane.f32.xlu0 %v4614
      %v4616 = vpop.xlane.xlu0 %4615
      %v4617 = vsel %vm4127, %v4455, 0.0
      %4618 = vadd.xlane.f32.xlu0 %v4617
      %v4619 = vpop.xlane.xlu0 %4618
      %v4620 = vsel %vm4127, %v4457, 0.0
      %4621 = vadd.xlane.f32.xlu0 %v4620
      %v4622 = vpop.xlane.xlu0 %4621
      %v4623 = vsel %vm4127, %v4459, 0.0
      %4624 = vadd.xlane.f32.xlu0 %v4623
      %v4625 = vpop.xlane.xlu0 %4624
      %v4626 = vsel %vm4127, %v4461, 0.0
      %4627 = vadd.xlane.f32.xlu0 %v4626
      %v4628 = vpop.xlane.xlu0 %4627
      %v4629 = vsel %vm4127, %v4463, 0.0
      %4630 = vadd.xlane.f32.xlu0 %v4629
      %v4631 = vpop.xlane.xlu0 %4630
      %v4632 = vsel %vm4127, %v4465, 0.0
      %4633 = vadd.xlane.f32.xlu0 %v4632
      %v4634 = vpop.xlane.xlu0 %4633
      %v4635 = vsel %vm4127, %v4467, 0.0
      %4636 = vadd.xlane.f32.xlu0 %v4635
      %v4637 = vpop.xlane.xlu0 %4636
      %v4638 = vsel %vm4127, %v4469, 0.0
      %4639 = vadd.xlane.f32.xlu0 %v4638
      %v4640 = vpop.xlane.xlu0 %4639
      %v4641 = vsel %vm4127, %v4471, 0.0
      %4642 = vadd.xlane.f32.xlu0 %v4641
      %v4643 = vpop.xlane.xlu0 %4642
      %v4644 = vsel %vm4127, %v4473, 0.0
      %4645 = vadd.xlane.f32.xlu0 %v4644
      %v4646 = vpop.xlane.xlu0 %4645
      %v4647 = vsel %vm4127, %v4475, 0.0
      %4648 = vadd.xlane.f32.xlu0 %v4647
      %v4649 = vpop.xlane.xlu0 %4648
      %v4650 = vsel %vm4127, %v4477, 0.0
      %4651 = vadd.xlane.f32.xlu0 %v4650
      %v4652 = vpop.xlane.xlu0 %4651
      %v4653 = vsel %vm4127, %v4479, 0.0
      %4654 = vadd.xlane.f32.xlu0 %v4653
      %v4655 = vpop.xlane.xlu0 %4654
      %v4656 = vsel %vm4127, %v4481, 0.0
      %4657 = vadd.xlane.f32.xlu0 %v4656
      %v4658 = vpop.xlane.xlu0 %4657
      %v4659 = vsel %vm4127, %v4483, 0.0
      %4660 = vadd.xlane.f32.xlu0 %v4659
      %v4661 = vpop.xlane.xlu0 %4660
      %v4662 = vsel %vm4127, %v4485, 0.0
      %4663 = vadd.xlane.f32.xlu0 %v4662
      %v4664 = vpop.xlane.xlu0 %4663
      %v4665 = vsel %vm4127, %v4487, 0.0
      %4666 = vadd.xlane.f32.xlu0 %v4665
      %v4667 = vpop.xlane.xlu0 %4666
      %v4668 = vsel %vm4127, %v4489, 0.0
      %4669 = vadd.xlane.f32.xlu0 %v4668
      %v4670 = vpop.xlane.xlu0 %4669
      %v4671 = vsel %vm4127, %v4491, 0.0
      %4672 = vadd.xlane.f32.xlu0 %v4671
      %v4673 = vpop.xlane.xlu0 %4672
      %v4674 = vsel %vm4127, %v4493, 0.0
      %4675 = vadd.xlane.f32.xlu0 %v4674
      %v4676 = vpop.xlane.xlu0 %4675
      %v4677 = vsel %vm4127, %v4495, 0.0
      %4678 = vadd.xlane.f32.xlu0 %v4677
      %v4679 = vpop.xlane.xlu0 %4678
      %v4680 = vsel %vm4127, %v4497, 0.0
      %4681 = vadd.xlane.f32.xlu0 %v4680
      %v4682 = vpop.xlane.xlu0 %4681
      %v4683 = vsel %vm4127, %v4499, 0.0
      %4684 = vadd.xlane.f32.xlu0 %v4683
      %v4685 = vpop.xlane.xlu0 %4684
      %v4686 = vsel %vm4127, %v4501, 0.0
      %4687 = vadd.xlane.f32.xlu0 %v4686
      %v4688 = vpop.xlane.xlu0 %4687
      %v4689 = vsel %vm4127, %v4503, 0.0
      %4690 = vadd.xlane.f32.xlu0 %v4689
      %v4691 = vpop.xlane.xlu0 %4690
      %v4692 = vsel %vm4127, %v4505, 0.0
      %4693 = vadd.xlane.f32.xlu0 %v4692
      %v4694 = vpop.xlane.xlu0 %4693
      %v4695 = vsel %vm4127, %v4507, 0.0
      %4696 = vadd.xlane.f32.xlu0 %v4695
      %v4697 = vpop.xlane.xlu0 %4696
      %v4698 = vsel %vm4127, %v4509, 0.0
      %4699 = vadd.xlane.f32.xlu0 %v4698
      %v4700 = vpop.xlane.xlu0 %4699
      %v4701 = vsel %vm4127, %v4511, 0.0
      %4702 = vadd.xlane.f32.xlu0 %v4701
      %v4703 = vpop.xlane.xlu0 %4702
      %v4704 = vlog2.pop %v4514
      %v4705 = vmul.f32 %v4704, 0.6931472
      %v4706 = vlog2.pop %v4517
      %v4707 = vmul.f32 %v4706, 0.6931472
      %v4708 = vlog2.pop %v4520
      %v4709 = vmul.f32 %v4708, 0.6931472
      %v4710 = vlog2.pop %v4523
      %v4711 = vmul.f32 %v4710, 0.6931472
      %v4712 = vlog2.pop %v4526
      %v4713 = vmul.f32 %v4712, 0.6931472
      %v4714 = vlog2.pop %v4529
      %v4715 = vmul.f32 %v4714, 0.6931472
      %v4716 = vlog2.pop %v4532
      %v4717 = vmul.f32 %v4716, 0.6931472
      %v4718 = vlog2.pop %v4535
      %v4719 = vmul.f32 %v4718, 0.6931472
      %v4720 = vlog2.pop %v4538
      %v4721 = vmul.f32 %v4720, 0.6931472
      %v4722 = vlog2.pop %v4541
      %v4723 = vmul.f32 %v4722, 0.6931472
      %v4724 = vlog2.pop %v4544
      %v4725 = vmul.f32 %v4724, 0.6931472
      %v4726 = vlog2.pop %v4547
      %v4727 = vmul.f32 %v4726, 0.6931472
      %v4728 = vlog2.pop %v4550
      %v4729 = vmul.f32 %v4728, 0.6931472
      %v4730 = vlog2.pop %v4553
      %v4731 = vmul.f32 %v4730, 0.6931472
      %v4732 = vlog2.pop %v4556
      %v4733 = vmul.f32 %v4732, 0.6931472
      %v4734 = vlog2.pop %v4559
      %v4735 = vmul.f32 %v4734, 0.6931472
      %v4736 = vlog2.pop %v4562
      %v4737 = vmul.f32 %v4736, 0.6931472
      %v4738 = vlog2.pop %v4565
      %v4739 = vmul.f32 %v4738, 0.6931472
      %v4740 = vlog2.pop %v4568
      %v4741 = vmul.f32 %v4740, 0.6931472
      %v4742 = vlog2.pop %v4571
      %v4743 = vmul.f32 %v4742, 0.6931472
      %v4744 = vlog2.pop %v4574
      %v4745 = vmul.f32 %v4744, 0.6931472
      %v4746 = vlog2.pop %v4577
      %v4747 = vmul.f32 %v4746, 0.6931472
      %v4748 = vlog2.pop %v4580
      %v4749 = vmul.f32 %v4748, 0.6931472
      %v4750 = vlog2.pop %v4583
      %v4751 = vmul.f32 %v4750, 0.6931472
      %v4752 = vlog2.pop %v4586
      %v4753 = vmul.f32 %v4752, 0.6931472
      %v4754 = vlog2.pop %v4589
      %v4755 = vmul.f32 %v4754, 0.6931472
      %v4756 = vlog2.pop %v4592
      %v4757 = vmul.f32 %v4756, 0.6931472
      %v4758 = vlog2.pop %v4595
      %v4759 = vmul.f32 %v4758, 0.6931472
      %v4760 = vlog2.pop %v4598
      %v4761 = vmul.f32 %v4760, 0.6931472
      %v4762 = vlog2.pop %v4601
      %v4763 = vmul.f32 %v4762, 0.6931472
      %v4764 = vlog2.pop %v4604
      %v4765 = vmul.f32 %v4764, 0.6931472
      %v4766 = vlog2.pop %v4607
      %v4767 = vmul.f32 %v4766, 0.6931472
      %v4768 = vlog2.pop %v4610
      %v4769 = vmul.f32 %v4768, 0.6931472
      %v4770 = vlog2.pop %v4613
      %v4771 = vmul.f32 %v4770, 0.6931472
      %v4772 = vlog2.pop %v4616
      %v4773 = vmul.f32 %v4772, 0.6931472
      %v4774 = vlog2.pop %v4619
      %v4775 = vmul.f32 %v4774, 0.6931472
      %v4776 = vlog2.pop %v4622
      %v4777 = vmul.f32 %v4776, 0.6931472
      %v4778 = vlog2.pop %v4625
      %v4779 = vmul.f32 %v4778, 0.6931472
      %v4780 = vlog2.pop %v4628
      %v4781 = vmul.f32 %v4780, 0.6931472
      %v4782 = vlog2.pop %v4631
      %v4783 = vmul.f32 %v4782, 0.6931472
      %v4784 = vlog2.pop %v4634
      %v4785 = vmul.f32 %v4784, 0.6931472
      %v4786 = vlog2.pop %v4637
      %v4787 = vmul.f32 %v4786, 0.6931472
      %v4788 = vlog2.pop %v4640
      %v4789 = vmul.f32 %v4788, 0.6931472
      %v4790 = vlog2.pop %v4643
      %v4791 = vmul.f32 %v4790, 0.6931472
      %v4792 = vlog2.pop %v4646
      %v4793 = vmul.f32 %v4792, 0.6931472
      %v4794 = vlog2.pop %v4649
      %v4795 = vmul.f32 %v4794, 0.6931472
      %v4796 = vlog2.pop %v4652
      %v4797 = vmul.f32 %v4796, 0.6931472
      %v4798 = vlog2.pop %v4655
      %v4799 = vmul.f32 %v4798, 0.6931472
      %v4800 = vlog2.pop %v4658
      %v4801 = vmul.f32 %v4800, 0.6931472
      %v4802 = vlog2.pop %v4661
      %v4803 = vmul.f32 %v4802, 0.6931472
      %v4804 = vlog2.pop %v4664
      %v4805 = vmul.f32 %v4804, 0.6931472
      %v4806 = vlog2.pop %v4667
      %v4807 = vmul.f32 %v4806, 0.6931472
      %v4808 = vlog2.pop %v4670
      %v4809 = vmul.f32 %v4808, 0.6931472
      %v4810 = vlog2.pop %v4673
      %v4811 = vmul.f32 %v4810, 0.6931472
      %v4812 = vlog2.pop %v4676
      %v4813 = vmul.f32 %v4812, 0.6931472
      %v4814 = vlog2.pop %v4679
      %v4815 = vmul.f32 %v4814, 0.6931472
      %v4816 = vlog2.pop %v4682
      %v4817 = vmul.f32 %v4816, 0.6931472
      %v4818 = vlog2.pop %v4685
      %v4819 = vmul.f32 %v4818, 0.6931472
      %v4820 = vlog2.pop %v4688
      %v4821 = vmul.f32 %v4820, 0.6931472
      %v4822 = vlog2.pop %v4691
      %v4823 = vmul.f32 %v4822, 0.6931472
      %v4824 = vlog2.pop %v4694
      %v4825 = vmul.f32 %v4824, 0.6931472
      %v4826 = vlog2.pop %v4697
      %v4827 = vmul.f32 %v4826, 0.6931472
      %v4828 = vlog2.pop %v4700
      %v4829 = vmul.f32 %v4828, 0.6931472
      %v4830 = vlog2.pop %v4703
      %v4831 = vmul.f32 %v4830, 0.6931472
      %v4832 = vsub.f32 %v4320, %v4705
      %v4833 = vsub.f32 %v4321, %v4707
      %v4834 = vsub.f32 %v4322, %v4709
      %v4835 = vsub.f32 %v4323, %v4711
      %v4836 = vsub.f32 %v4324, %v4713
      %v4837 = vsub.f32 %v4325, %v4715
      %v4838 = vsub.f32 %v4326, %v4717
      %v4839 = vsub.f32 %v4327, %v4719
      %v4840 = vsub.f32 %v4328, %v4721
      %v4841 = vsub.f32 %v4329, %v4723
      %v4842 = vsub.f32 %v4330, %v4725
      %v4843 = vsub.f32 %v4331, %v4727
      %v4844 = vsub.f32 %v4332, %v4729
      %v4845 = vsub.f32 %v4333, %v4731
      %v4846 = vsub.f32 %v4334, %v4733
      %v4847 = vsub.f32 %v4335, %v4735
      %v4848 = vsub.f32 %v4336, %v4737
      %v4849 = vsub.f32 %v4337, %v4739
      %v4850 = vsub.f32 %v4338, %v4741
      %v4851 = vsub.f32 %v4339, %v4743
      %v4852 = vsub.f32 %v4340, %v4745
      %v4853 = vsub.f32 %v4341, %v4747
      %v4854 = vsub.f32 %v4342, %v4749
      %v4855 = vsub.f32 %v4343, %v4751
      %v4856 = vsub.f32 %v4344, %v4753
      %v4857 = vsub.f32 %v4345, %v4755
      %v4858 = vsub.f32 %v4346, %v4757
      %v4859 = vsub.f32 %v4347, %v4759
      %v4860 = vsub.f32 %v4348, %v4761
      %v4861 = vsub.f32 %v4349, %v4763
      %v4862 = vsub.f32 %v4350, %v4765
      %v4863 = vsub.f32 %v4351, %v4767
      %v4864 = vsub.f32 %v4352, %v4769
      %v4865 = vsub.f32 %v4353, %v4771
      %v4866 = vsub.f32 %v4354, %v4773
      %v4867 = vsub.f32 %v4355, %v4775
      %v4868 = vsub.f32 %v4356, %v4777
      %v4869 = vsub.f32 %v4357, %v4779
      %v4870 = vsub.f32 %v4358, %v4781
      %v4871 = vsub.f32 %v4359, %v4783
      %v4872 = vsub.f32 %v4360, %v4785
      %v4873 = vsub.f32 %v4361, %v4787
      %v4874 = vsub.f32 %v4362, %v4789
      %v4875 = vsub.f32 %v4363, %v4791
      %v4876 = vsub.f32 %v4364, %v4793
      %v4877 = vsub.f32 %v4365, %v4795
      %v4878 = vsub.f32 %v4366, %v4797
      %v4879 = vsub.f32 %v4367, %v4799
      %v4880 = vsub.f32 %v4368, %v4801
      %v4881 = vsub.f32 %v4369, %v4803
      %v4882 = vsub.f32 %v4370, %v4805
      %v4883 = vsub.f32 %v4371, %v4807
      %v4884 = vsub.f32 %v4372, %v4809
      %v4885 = vsub.f32 %v4373, %v4811
      %v4886 = vsub.f32 %v4374, %v4813
      %v4887 = vsub.f32 %v4375, %v4815
      %v4888 = vsub.f32 %v4376, %v4817
      %v4889 = vsub.f32 %v4377, %v4819
      %v4890 = vsub.f32 %v4378, %v4821
      %v4891 = vsub.f32 %v4379, %v4823
      %v4892 = vsub.f32 %v4380, %v4825
      %v4893 = vsub.f32 %v4381, %v4827
      %v4894 = vsub.f32 %v4382, %v4829
      %v4895 = vsub.f32 %v4383, %v4831
      %4896 = vst.msk [vmem:[%s273] sm:$0xff] %vm4127, %v4832
      %4897 = vst.msk [vmem:[%s273 + $0x8] sm:$0xff] %vm4127, %v4833
      %4898 = vst.msk [vmem:[%s273 + $0x10] sm:$0xff] %vm4127, %v4834
      %4899 = vst.msk [vmem:[%s273 + $0x18] sm:$0xff] %vm4127, %v4835
      %4900 = vst.msk [vmem:[%s273 + $0x20] sm:$0xff] %vm4127, %v4836
      %4901 = vst.msk [vmem:[%s273 + $0x28] sm:$0xff] %vm4127, %v4837
      %4902 = vst.msk [vmem:[%s273 + $0x30] sm:$0xff] %vm4127, %v4838
      %4903 = vst.msk [vmem:[%s273 + $0x38] sm:$0xff] %vm4127, %v4839
      %4904 = vst.msk [vmem:[%s273 + $0x40] sm:$0xff] %vm4127, %v4840
      %4905 = vst.msk [vmem:[%s273 + $0x48] sm:$0xff] %vm4127, %v4841
      %4906 = vst.msk [vmem:[%s273 + $0x50] sm:$0xff] %vm4127, %v4842
      %4907 = vst.msk [vmem:[%s273 + $0x58] sm:$0xff] %vm4127, %v4843
      %4908 = vst.msk [vmem:[%s273 + $0x60] sm:$0xff] %vm4127, %v4844
      %4909 = vst.msk [vmem:[%s273 + $0x68] sm:$0xff] %vm4127, %v4845
      %4910 = vst.msk [vmem:[%s273 + $0x70] sm:$0xff] %vm4127, %v4846
      %4911 = vst.msk [vmem:[%s273 + $0x78] sm:$0xff] %vm4127, %v4847
      %4912 = vst.msk [vmem:[%s273 + $0x80] sm:$0xff] %vm4127, %v4848
      %4913 = vst.msk [vmem:[%s273 + $0x88] sm:$0xff] %vm4127, %v4849
      %4914 = vst.msk [vmem:[%s273 + $0x90] sm:$0xff] %vm4127, %v4850
      %4915 = vst.msk [vmem:[%s273 + $0x98] sm:$0xff] %vm4127, %v4851
      %4916 = vst.msk [vmem:[%s273 + $0xa0] sm:$0xff] %vm4127, %v4852
      %4917 = vst.msk [vmem:[%s273 + $0xa8] sm:$0xff] %vm4127, %v4853
      %4918 = vst.msk [vmem:[%s273 + $0xb0] sm:$0xff] %vm4127, %v4854
      %4919 = vst.msk [vmem:[%s273 + $0xb8] sm:$0xff] %vm4127, %v4855
      %4920 = vst.msk [vmem:[%s273 + $0xc0] sm:$0xff] %vm4127, %v4856
      %4921 = vst.msk [vmem:[%s273 + $0xc8] sm:$0xff] %vm4127, %v4857
      %4922 = vst.msk [vmem:[%s273 + $0xd0] sm:$0xff] %vm4127, %v4858
      %4923 = vst.msk [vmem:[%s273 + $0xd8] sm:$0xff] %vm4127, %v4859
      %4924 = vst.msk [vmem:[%s273 + $0xe0] sm:$0xff] %vm4127, %v4860
      %4925 = vst.msk [vmem:[%s273 + $0xe8] sm:$0xff] %vm4127, %v4861
      %4926 = vst.msk [vmem:[%s273 + $0xf0] sm:$0xff] %vm4127, %v4862
      %4927 = vst.msk [vmem:[%s273 + $0xf8] sm:$0xff] %vm4127, %v4863
      %4928 = vst.msk [vmem:[%s273 + $0x100] sm:$0xff] %vm4127, %v4864
      %4929 = vst.msk [vmem:[%s273 + $0x108] sm:$0xff] %vm4127, %v4865
      %4930 = vst.msk [vmem:[%s273 + $0x110] sm:$0xff] %vm4127, %v4866
      %4931 = vst.msk [vmem:[%s273 + $0x118] sm:$0xff] %vm4127, %v4867
      %4932 = vst.msk [vmem:[%s273 + $0x120] sm:$0xff] %vm4127, %v4868
      %4933 = vst.msk [vmem:[%s273 + $0x128] sm:$0xff] %vm4127, %v4869
      %4934 = vst.msk [vmem:[%s273 + $0x130] sm:$0xff] %vm4127, %v4870
      %4935 = vst.msk [vmem:[%s273 + $0x138] sm:$0xff] %vm4127, %v4871
      %4936 = vst.msk [vmem:[%s273 + $0x140] sm:$0xff] %vm4127, %v4872
      %4937 = vst.msk [vmem:[%s273 + $0x148] sm:$0xff] %vm4127, %v4873
      %4938 = vst.msk [vmem:[%s273 + $0x150] sm:$0xff] %vm4127, %v4874
      %4939 = vst.msk [vmem:[%s273 + $0x158] sm:$0xff] %vm4127, %v4875
      %4940 = vst.msk [vmem:[%s273 + $0x160] sm:$0xff] %vm4127, %v4876
      %4941 = vst.msk [vmem:[%s273 + $0x168] sm:$0xff] %vm4127, %v4877
      %4942 = vst.msk [vmem:[%s273 + $0x170] sm:$0xff] %vm4127, %v4878
      %4943 = vst.msk [vmem:[%s273 + $0x178] sm:$0xff] %vm4127, %v4879
      %4944 = vst.msk [vmem:[%s273 + $0x180] sm:$0xff] %vm4127, %v4880
      %4945 = vst.msk [vmem:[%s273 + $0x188] sm:$0xff] %vm4127, %v4881
      %4946 = vst.msk [vmem:[%s273 + $0x190] sm:$0xff] %vm4127, %v4882
      %4947 = vst.msk [vmem:[%s273 + $0x198] sm:$0xff] %vm4127, %v4883
      %4948 = vst.msk [vmem:[%s273 + $0x1a0] sm:$0xff] %vm4127, %v4884
      %4949 = vst.msk [vmem:[%s273 + $0x1a8] sm:$0xff] %vm4127, %v4885
      %4950 = vst.msk [vmem:[%s273 + $0x1b0] sm:$0xff] %vm4127, %v4886
      %4951 = vst.msk [vmem:[%s273 + $0x1b8] sm:$0xff] %vm4127, %v4887
      %4952 = vst.msk [vmem:[%s273 + $0x1c0] sm:$0xff] %vm4127, %v4888
      %4953 = vst.msk [vmem:[%s273 + $0x1c8] sm:$0xff] %vm4127, %v4889
      %4954 = vst.msk [vmem:[%s273 + $0x1d0] sm:$0xff] %vm4127, %v4890
      %4955 = vst.msk [vmem:[%s273 + $0x1d8] sm:$0xff] %vm4127, %v4891
      %4956 = vst.msk [vmem:[%s273 + $0x1e0] sm:$0xff] %vm4127, %v4892
      %4957 = vst.msk [vmem:[%s273 + $0x1e8] sm:$0xff] %vm4127, %v4893
      %4958 = vst.msk [vmem:[%s273 + $0x1f0] sm:$0xff] %vm4127, %v4894
      %4959 = vst.msk [vmem:[%s273 + $0x1f8] sm:$0xff] %vm4127, %v4895
      %s4960 = smul.u32 64, %s16
      %p4961 = scmp.lt.s32.totalorder %s4960, 127
      %s4962 = scalar_select %p4961, %s4960, 127
      %s4963 = smul.addr %s4962, 8
      %s4964 = scalar_lea.vmem %s5, %s4963
      // Predicated region
      $region41: #{graphsage_forward.5} parent=39 // pred_check
        %p4965 = pneg %p154
      $region42: #{graphsage_forward.5} parent=39 // pred_check_branch
        %4967 = sbr.rel (%p4965) target = $region44
      $region43: #{graphsage_forward.5} parent=39 // pred_region
        %s4968 = smul.u32 64, %s16
      $region44: #{graphsage_forward.5} parent=39 // pred_fallthru
        _
    $region40: #{graphsage_forward.5} parent=5 // pred_fallthru
      _
    %p4969 = scmp.le.s32.totalorder 2, %s11
    // Predicated region
    $region45: #{graphsage_forward.5} parent=5 // pred_check
      %p4970 = pneg %p4969
    $region46: #{graphsage_forward.5} parent=5 // pred_check_branch
      %4972 = sbr.rel (%p4970) target = $region48
    $region47: #{graphsage_forward.5} parent=5 // pred_region
      %s4973 = ssub.s32 %s11, 2
      // Predicated region
      $region49: #{graphsage_forward.5} parent=47 // pred_check
        %p4974 = pneg %p160
      $region50: #{graphsage_forward.5} parent=47 // pred_check_branch
        %4976 = sbr.rel (%p4974) target = $region52
      $region51: #{graphsage_forward.5} parent=47 // pred_region
        %s4977 = smul.u32 64, %s17
        %p4978 = scmp.lt.s32.totalorder %s4977, 127
        %s4979 = scalar_select %p4978, %s4977, 127
        %s4980 = smul.addr %s4979, 8
        %s4981 = scalar_lea.vmem %s5, %s4980
      $region52: #{graphsage_forward.5} parent=47 // pred_fallthru
        _
    $region48: #{graphsage_forward.5} parent=5 // pred_fallthru
      _
  $region6: #{graphsage_forward.5} parent=0 // loop_footer
    %s15 = sadd.s32 1, %s11
  $region7: #{graphsage_forward.5} parent=0 // loop_footer_branch
    %10 = sbr.rel target = $region3
  $region8: #{graphsage_forward.5} parent=0 // loop_exit
    _

// kernel: graphsage_forward.4
$region0: #{graphsage_forward.4}
  #allocation0 [shape = 'u32[]', space=smem, size = 0x4, offset = 0x4, fixed_abs, tag = 'smem constant byte address 0x4 - core index']
  #allocation1 [shape = 'u32[144,128]{1,0:T(1,128)}', space=vmem, size = 0x12000, scoped, tag = 'internal scratch']
  %s0 = inlined_call_operand.vmem [shape: bf16[1024,1024], index: 0, kind: input, shape index: {}]
  %s1 = inlined_call_operand.vmem [shape: f32[1024,1], index: 1, kind: input, shape index: {}]
  %s2 = inlined_call_operand.vmem [shape: bf16[1024,16], index: 2, kind: input, shape index: {}]
  %s3 = inlined_call_operand.vmem [shape: f32[1024,16], index: 3, kind: input, shape index: {}]
  %s4 = inlined_call_operand.vmem [shape: f32[1,16], index: 4, kind: input, shape index: {}]
  %s5 = inlined_call_operand.vmem [shape: f32[16,16], index: 5, kind: input, shape index: {}]
  %s6 = inlined_call_operand.vmem [shape: bf16[1024,8], index: 6, kind: output, shape index: {0}]
  %s7 = inlined_call_operand.vmem [shape: f32[1024,8], index: 7, kind: output, shape index: {1}]
  %8 = xla_tuple %s6, %s7
  %s9 = sld [smem:[#allocation0]]
  $region65: #{graphsage_forward.4} parent=0
    _
  %s11 = ssub.s32 1, %s9
  %s12 = scalar_select 0, %s11, %s9
  loop: start=0, step=1, limit=4
  $region2: #{graphsage_forward.4} parent=0 // loop_pre_header
    _
  $region3: #{graphsage_forward.4} parent=0 // loop_header
    %s14 = sphi 0, %s18
    %p15 = scmp.ge.s32.totalorder %s14, 4
    %s24 = sphi 0, %s26
    %s27 = sphi 0, %s24
    %s28 = sphi 0, %s27
    %s44 = sphi 0, %s28
    %s50 = sphi 0, %s52
    %s53 = sphi 0, %s50
    %s54 = sphi 0, %s53
    %s70 = sphi 0, %s54
    %s74 = sphi 0, %s74
    %s76 = sphi 0, %s74
    %s77 = sphi 0, %s76
    %s91 = sphi 0, %s77
    %s97 = sphi 0, %s99
    %s100 = sphi 0, %s97
    %s101 = sphi 0, %s100
    %s117 = sphi 0, %s101
    %s121 = sphi 0, %s121
    %s123 = sphi 0, %s121
    %s124 = sphi 0, %s123
    %s138 = sphi 0, %s124
    %s142 = sphi 0, %s142
    %s144 = sphi 0, %s142
    %s145 = sphi 0, %s144
    %s159 = sphi 0, %s145
    %s165 = sphi 0, %s167
    %s168 = sphi 0, %s165
    %s169 = sphi 0, %s168
    %s185 = sphi 0, %s169
    %s191 = sphi 0, %s193
    %s194 = sphi 0, %s191
    %s195 = sphi 0, %s194
    %s211 = sphi 0, %s195
  $region4: #{graphsage_forward.4} parent=0 // loop_header_branch
    %17 = sbr.rel (%p15) target = $region8
  $region5: #{graphsage_forward.4} parent=0 // loop_body
    %s19 = ssub.s32 %s14, 1
    %s20 = ssub.s32 %s14, 2
    %s21 = sadd.s32 %s14, 1
    %s22 = ssub.s32 %s14, %s21
    %p23 = scmp.eq.s32.totalorder %s22, 0
    %s25 = sadd.s32 %s24, 1
    %s26 = scalar_select %p23, %s24, %s25
    %p29 = pneg %p23
    %p30 = scmp.eq.s32.totalorder %s14, 1
    %p31 = por %p29, %p30
    %p32 = scmp.ne.s32.totalorder %s24, %s27
    %p33 = scmp.eq.s32.totalorder %s14, 0
    %p34 = por %p32, %p33
    %p35 = scmp.ne.s32.totalorder %s24, %s27
    %p36 = scmp.eq.s32.totalorder %s19, 1
    %p37 = por %p35, %p36
    %p38 = scmp.ne.s32.totalorder %s27, %s28
    %p39 = scmp.eq.s32.totalorder %s19, 0
    %p40 = por %p38, %p39
    %p41 = scmp.ne.s32.totalorder %s27, %s28
    %p42 = scmp.eq.s32.totalorder %s20, 1
    %p43 = por %p41, %p42
    %p45 = scmp.ne.s32.totalorder %s28, %s44
    %p46 = scmp.eq.s32.totalorder %s20, 0
    %p47 = por %p45, %p46
    %s48 = ssub.s32 %s14, %s21
    %p49 = scmp.eq.s32.totalorder %s48, 0
    %s51 = sadd.s32 %s50, 1
    %s52 = scalar_select %p49, %s50, %s51
    %p55 = pneg %p49
    %p56 = scmp.eq.s32.totalorder %s14, 1
    %p57 = por %p55, %p56
    %p58 = scmp.ne.s32.totalorder %s50, %s53
    %p59 = scmp.eq.s32.totalorder %s14, 0
    %p60 = por %p58, %p59
    %p61 = scmp.ne.s32.totalorder %s50, %s53
    %p62 = scmp.eq.s32.totalorder %s19, 1
    %p63 = por %p61, %p62
    %p64 = scmp.ne.s32.totalorder %s53, %s54
    %p65 = scmp.eq.s32.totalorder %s19, 0
    %p66 = por %p64, %p65
    %p67 = scmp.ne.s32.totalorder %s53, %s54
    %p68 = scmp.eq.s32.totalorder %s20, 1
    %p69 = por %p67, %p68
    %p71 = scmp.ne.s32.totalorder %s54, %s70
    %p72 = scmp.eq.s32.totalorder %s20, 0
    %p73 = por %p71, %p72
    %s75 = sadd.s32 %s74, 1
    %p78 = scmp.eq.s32.totalorder %s14, 1
    %p79 = scmp.ne.s32.totalorder %s74, %s76
    %p80 = scmp.eq.s32.totalorder %s14, 0
    %p81 = por %p79, %p80
    %p82 = scmp.ne.s32.totalorder %s74, %s76
    %p83 = scmp.eq.s32.totalorder %s19, 1
    %p84 = por %p82, %p83
    %p85 = scmp.ne.s32.totalorder %s76, %s77
    %p86 = scmp.eq.s32.totalorder %s19, 0
    %p87 = por %p85, %p86
    %p88 = scmp.ne.s32.totalorder %s76, %s77
    %p89 = scmp.eq.s32.totalorder %s20, 1
    %p90 = por %p88, %p89
    %p92 = scmp.ne.s32.totalorder %s77, %s91
    %p93 = scmp.eq.s32.totalorder %s20, 0
    %p94 = por %p92, %p93
    %s95 = ssub.s32 %s14, %s21
    %p96 = scmp.eq.s32.totalorder %s95, 0
    %s98 = sadd.s32 %s97, 1
    %s99 = scalar_select %p96, %s97, %s98
    %p102 = pneg %p96
    %p103 = scmp.eq.s32.totalorder %s14, 1
    %p104 = por %p102, %p103
    %p105 = scmp.ne.s32.totalorder %s97, %s100
    %p106 = scmp.eq.s32.totalorder %s14, 0
    %p107 = por %p105, %p106
    %p108 = scmp.ne.s32.totalorder %s97, %s100
    %p109 = scmp.eq.s32.totalorder %s19, 1
    %p110 = por %p108, %p109
    %p111 = scmp.ne.s32.totalorder %s100, %s101
    %p112 = scmp.eq.s32.totalorder %s19, 0
    %p113 = por %p111, %p112
    %p114 = scmp.ne.s32.totalorder %s100, %s101
    %p115 = scmp.eq.s32.totalorder %s20, 1
    %p116 = por %p114, %p115
    %p118 = scmp.ne.s32.totalorder %s101, %s117
    %p119 = scmp.eq.s32.totalorder %s20, 0
    %p120 = por %p118, %p119
    %s122 = sadd.s32 %s121, 1
    %p125 = scmp.eq.s32.totalorder %s14, 1
    %p126 = scmp.ne.s32.totalorder %s121, %s123
    %p127 = scmp.eq.s32.totalorder %s14, 0
    %p128 = por %p126, %p127
    %p129 = scmp.ne.s32.totalorder %s121, %s123
    %p130 = scmp.eq.s32.totalorder %s19, 1
    %p131 = por %p129, %p130
    %p132 = scmp.ne.s32.totalorder %s123, %s124
    %p133 = scmp.eq.s32.totalorder %s19, 0
    %p134 = por %p132, %p133
    %p135 = scmp.ne.s32.totalorder %s123, %s124
    %p136 = scmp.eq.s32.totalorder %s20, 1
    %p137 = por %p135, %p136
    %p139 = scmp.ne.s32.totalorder %s124, %s138
    %p140 = scmp.eq.s32.totalorder %s20, 0
    %p141 = por %p139, %p140
    %s143 = sadd.s32 %s142, 1
    %p146 = scmp.eq.s32.totalorder %s14, 1
    %p147 = scmp.ne.s32.totalorder %s142, %s144
    %p148 = scmp.eq.s32.totalorder %s14, 0
    %p149 = por %p147, %p148
    %p150 = scmp.ne.s32.totalorder %s142, %s144
    %p151 = scmp.eq.s32.totalorder %s19, 1
    %p152 = por %p150, %p151
    %p153 = scmp.ne.s32.totalorder %s144, %s145
    %p154 = scmp.eq.s32.totalorder %s19, 0
    %p155 = por %p153, %p154
    %p156 = scmp.ne.s32.totalorder %s144, %s145
    %p157 = scmp.eq.s32.totalorder %s20, 1
    %p158 = por %p156, %p157
    %p160 = scmp.ne.s32.totalorder %s145, %s159
    %p161 = scmp.eq.s32.totalorder %s20, 0
    %p162 = por %p160, %p161
    %s163 = ssub.s32 %s14, %s21
    %p164 = scmp.eq.s32.totalorder %s163, 0
    %s166 = sadd.s32 %s165, 1
    %s167 = scalar_select %p164, %s165, %s166
    %p170 = pneg %p164
    %p171 = scmp.eq.s32.totalorder %s14, 1
    %p172 = por %p170, %p171
    %p173 = scmp.ne.s32.totalorder %s165, %s168
    %p174 = scmp.eq.s32.totalorder %s14, 0
    %p175 = por %p173, %p174
    %p176 = scmp.ne.s32.totalorder %s165, %s168
    %p177 = scmp.eq.s32.totalorder %s19, 1
    %p178 = por %p176, %p177
    %p179 = scmp.ne.s32.totalorder %s168, %s169
    %p180 = scmp.eq.s32.totalorder %s19, 0
    %p181 = por %p179, %p180
    %p182 = scmp.ne.s32.totalorder %s168, %s169
    %p183 = scmp.eq.s32.totalorder %s20, 1
    %p184 = por %p182, %p183
    %p186 = scmp.ne.s32.totalorder %s169, %s185
    %p187 = scmp.eq.s32.totalorder %s20, 0
    %p188 = por %p186, %p187
    %s189 = ssub.s32 %s14, %s21
    %p190 = scmp.eq.s32.totalorder %s189, 0
    %s192 = sadd.s32 %s191, 1
    %s193 = scalar_select %p190, %s191, %s192
    %p196 = pneg %p190
    %p197 = scmp.eq.s32.totalorder %s14, 1
    %p198 = por %p196, %p197
    %p199 = scmp.ne.s32.totalorder %s191, %s194
    %p200 = scmp.eq.s32.totalorder %s14, 0
    %p201 = por %p199, %p200
    %p202 = scmp.ne.s32.totalorder %s191, %s194
    %p203 = scmp.eq.s32.totalorder %s19, 1
    %p204 = por %p202, %p203
    %p205 = scmp.ne.s32.totalorder %s194, %s195
    %p206 = scmp.eq.s32.totalorder %s19, 0
    %p207 = por %p205, %p206
    %p208 = scmp.ne.s32.totalorder %s194, %s195
    %p209 = scmp.eq.s32.totalorder %s20, 1
    %p210 = por %p208, %p209
    %p212 = scmp.ne.s32.totalorder %s195, %s211
    %p213 = scmp.eq.s32.totalorder %s20, 0
    %p214 = por %p212, %p213
    %p215 = scmp.le.s32.totalorder 1, %s14
    %p216 = scmp.lt.s32.totalorder %s14, 3
    %p217 = pnand %p215, %p216
    %p218 = pneg %p217
    // Predicated region
    $region9: #{graphsage_forward.4} parent=5 // pred_check
      _
    $region10: #{graphsage_forward.4} parent=5 // pred_check_branch
      %220 = sbr.rel (%p217) target = $region12
    $region11: #{graphsage_forward.4} parent=5 // pred_region
      %s221 = ssub.s32 %s14, 1
      // Predicated region
      $region13: #{graphsage_forward.4} parent=11 // pred_check
        %p222 = pneg %p87
      $region14: #{graphsage_forward.4} parent=11 // pred_check_branch
        %224 = sbr.rel (%p222) target = $region16
      $region15: #{graphsage_forward.4} parent=11 // pred_region
        _
      $region16: #{graphsage_forward.4} parent=11 // pred_fallthru
        _
      // Predicated region
      $region17: #{graphsage_forward.4} parent=11 // pred_check
        %p225 = pneg %p134
      $region18: #{graphsage_forward.4} parent=11 // pred_check_branch
        %227 = sbr.rel (%p225) target = $region20
      $region19: #{graphsage_forward.4} parent=11 // pred_region
        _
      $region20: #{graphsage_forward.4} parent=11 // pred_fallthru
        _
      // Predicated region
      $region21: #{graphsage_forward.4} parent=11 // pred_check
        %p228 = pneg %p155
      $region22: #{graphsage_forward.4} parent=11 // pred_check_branch
        %230 = sbr.rel (%p228) target = $region24
      $region23: #{graphsage_forward.4} parent=11 // pred_region
        _
      $region24: #{graphsage_forward.4} parent=11 // pred_fallthru
        _
    $region12: #{graphsage_forward.4} parent=5 // pred_fallthru
      _
    %p231 = scmp.lt.s32.totalorder %s14, 2
    // Predicated region
    $region25: #{graphsage_forward.4} parent=5 // pred_check
      %p232 = pneg %p231
    $region26: #{graphsage_forward.4} parent=5 // pred_check_branch
      %234 = sbr.rel (%p232) target = $region28
    $region27: #{graphsage_forward.4} parent=5 // pred_region
      // Predicated region
      $region29: #{graphsage_forward.4} parent=27 // pred_check
        %p235 = pneg %p34
      $region30: #{graphsage_forward.4} parent=27 // pred_check_branch
        %237 = sbr.rel (%p235) target = $region32
      $region31: #{graphsage_forward.4} parent=27 // pred_region
        %s238 = smul.u32 64, %s14
        %p239 = scmp.lt.s32.totalorder %s238, 127
        %s240 = scalar_select %p239, %s238, 127
        %s241 = smul.addr %s240, 8
        %s242 = smul.addr %s241, 4
        %s243 = scalar_lea.vmem %s0, %s242
        %s244 = smul.u32 64, %s14
      $region32: #{graphsage_forward.4} parent=27 // pred_fallthru
        _
      // Predicated region
      $region33: #{graphsage_forward.4} parent=27 // pred_check
        %p245 = pneg %p60
      $region34: #{graphsage_forward.4} parent=27 // pred_check_branch
        %247 = sbr.rel (%p245) target = $region36
      $region35: #{graphsage_forward.4} parent=27 // pred_region
        %s248 = smul.u32 64, %s14
        %p249 = scmp.lt.s32.totalorder %s248, 127
        %s250 = scalar_select %p249, %s248, 127
        %s251 = smul.addr %s250, 8
        %s252 = scalar_lea.vmem %s1, %s251
        %s253 = smul.u32 64, %s14
      $region36: #{graphsage_forward.4} parent=27 // pred_fallthru
        _
      // Predicated region
      $region37: #{graphsage_forward.4} parent=27 // pred_check
        %p254 = pneg %p107
      $region38: #{graphsage_forward.4} parent=27 // pred_check_branch
        %256 = sbr.rel (%p254) target = $region40
      $region39: #{graphsage_forward.4} parent=27 // pred_region
        %s257 = smul.u32 64, %s14
        %p258 = scmp.lt.s32.totalorder %s257, 127
        %s259 = scalar_select %p258, %s257, 127
        %s260 = smul.addr %s259, 8
        %s261 = scalar_lea.vmem %s3, %s260
        %s262 = smul.u32 64, %s14
      $region40: #{graphsage_forward.4} parent=27 // pred_fallthru
        _
    $region28: #{graphsage_forward.4} parent=5 // pred_fallthru
      _
    %p263 = scmp.le.s32.totalorder 1, %s14
    %p264 = scmp.lt.s32.totalorder %s14, 3
    %p265 = pnand %p263, %p264
    %p266 = pneg %p265
    // Predicated region
    $region41: #{graphsage_forward.4} parent=5 // pred_check
      _
    $region42: #{graphsage_forward.4} parent=5 // pred_check_branch
      %268 = sbr.rel (%p265) target = $region44
    $region43: #{graphsage_forward.4} parent=5 // pred_region
      %s269 = ssub.s32 %s14, 1
      %s270 = smul.u32 64, %s19
      %p271 = scmp.lt.s32.totalorder %s270, 127
      %s272 = scalar_select %p271, %s270, 127
      %s273 = smul.addr %s272, 8
      %s274 = smul.addr %s273, 4
      %s275 = scalar_lea.vmem %s0, %s274
      %p276 = pneg %p40
      %p277 = pneg %p37
      %s278 = smul.u32 64, %s19
      %p279 = scmp.lt.s32.totalorder %s278, 127
      %s280 = scalar_select %p279, %s278, 127
      %s281 = smul.addr %s280, 8
      %s282 = scalar_lea.vmem %s1, %s281
      %p283 = pneg %p66
      %p284 = pneg %p63
      %p285 = pneg %p87
      %p286 = pneg %p84
      %s287 = smul.u32 64, %s19
      %p288 = scmp.lt.s32.totalorder %s287, 127
      %s289 = scalar_select %p288, %s287, 127
      %s290 = smul.addr %s289, 8
      %s291 = scalar_lea.vmem %s3, %s290
      %p292 = pneg %p113
      %p293 = pneg %p110
      %p294 = pneg %p134
      %p295 = pneg %p131
      %p296 = pneg %p155
      %p297 = pneg %p152
      %p298 = pneg %p181
      %p299 = pneg %p178
      %s300 = smul.u32 64, %s19
      %p301 = scmp.lt.s32.totalorder %s300, 127
      %s302 = scalar_select %p301, %s300, 127
      %s303 = smul.addr %s302, 4
      %s304 = scalar_lea.vmem %s6, %s303
      %p305 = pneg %p207
      %p306 = pneg %p204
      %s307 = smul.u32 64, %s19
      %p308 = scmp.lt.s32.totalorder %s307, 127
      %s309 = scalar_select %p308, %s307, 127
      %s310 = smul.addr %s309, 8
      %s311 = scalar_lea.vmem %s7, %s310
      %s312 = smul.u32 64, %s19
      %p313 = scmp.lt.s32.totalorder %s312, 127
      %s314 = scalar_select %p313, %s312, 127
      %s315 = smul.addr %s314, 8
      %s316 = smul.addr %s315, 4
      %s317 = scalar_lea.vmem %s0, %s316
      %s318 = smul.u32 64, %s19
      %s319 = smul.u32 64, %s19
      %p320 = scmp.lt.s32.totalorder %s319, 127
      %s321 = scalar_select %p320, %s319, 127
      %s322 = smul.addr %s321, 8
      %s323 = scalar_lea.vmem %s1, %s322
      %s324 = smul.u32 64, %s19
      %s325 = smul.u32 64, %s19
      %p326 = scmp.lt.s32.totalorder %s325, 127
      %s327 = scalar_select %p326, %s325, 127
      %s328 = smul.addr %s327, 8
      %s329 = scalar_lea.vmem %s3, %s328
      %s330 = smul.u32 64, %s19
      %s331 = smul.u32 64, %s19
      %p332 = scmp.lt.s32.totalorder %s331, 127
      %s333 = scalar_select %p332, %s331, 127
      %s334 = smul.addr %s333, 4
      %s335 = scalar_lea.vmem %s6, %s334
      %s336 = smul.u32 64, %s19
      %s337 = smul.u32 64, %s19
      %p338 = scmp.lt.s32.totalorder %s337, 127
      %s339 = scalar_select %p338, %s337, 127
      %s340 = smul.addr %s339, 8
      %s341 = scalar_lea.vmem %s7, %s340
      %s342 = smul.u32 64, %s19
      %v344 = vld [vmem:[%s317] sm:$0xff]
      %v345 = vld [vmem:[%s317 + $0x8] sm:$0xff]
      %v346 = vld [vmem:[%s317 + $0x10] sm:$0xff]
      %v347 = vld [vmem:[%s317 + $0x18] sm:$0xff]
      %v348 = vld [vmem:[%s317 + $0x20] sm:$0xff]
      %v349 = vld [vmem:[%s317 + $0x28] sm:$0xff]
      %v350 = vld [vmem:[%s317 + $0x30] sm:$0xff]
      %v351 = vld [vmem:[%s317 + $0x38] sm:$0xff]
      %v352 = vld [vmem:[%s317 + $0x40] sm:$0xff]
      %v353 = vld [vmem:[%s317 + $0x48] sm:$0xff]
      %v354 = vld [vmem:[%s317 + $0x50] sm:$0xff]
      %v355 = vld [vmem:[%s317 + $0x58] sm:$0xff]
      %v356 = vld [vmem:[%s317 + $0x60] sm:$0xff]
      %v357 = vld [vmem:[%s317 + $0x68] sm:$0xff]
      %v358 = vld [vmem:[%s317 + $0x70] sm:$0xff]
      %v359 = vld [vmem:[%s317 + $0x78] sm:$0xff]
      %v360 = vld [vmem:[%s317 + $0x80] sm:$0xff]
      %v361 = vld [vmem:[%s317 + $0x88] sm:$0xff]
      %v362 = vld [vmem:[%s317 + $0x90] sm:$0xff]
      %v363 = vld [vmem:[%s317 + $0x98] sm:$0xff]
      %v364 = vld [vmem:[%s317 + $0xa0] sm:$0xff]
      %v365 = vld [vmem:[%s317 + $0xa8] sm:$0xff]
      %v366 = vld [vmem:[%s317 + $0xb0] sm:$0xff]
      %v367 = vld [vmem:[%s317 + $0xb8] sm:$0xff]
      %v368 = vld [vmem:[%s317 + $0xc0] sm:$0xff]
      %v369 = vld [vmem:[%s317 + $0xc8] sm:$0xff]
      %v370 = vld [vmem:[%s317 + $0xd0] sm:$0xff]
      %v371 = vld [vmem:[%s317 + $0xd8] sm:$0xff]
      %v372 = vld [vmem:[%s317 + $0xe0] sm:$0xff]
      %v373 = vld [vmem:[%s317 + $0xe8] sm:$0xff]
      %v374 = vld [vmem:[%s317 + $0xf0] sm:$0xff]
      %v375 = vld [vmem:[%s317 + $0xf8] sm:$0xff]
      %v376 = vld [vmem:[%s317 + $0x100] sm:$0xff]
      %v377 = vld [vmem:[%s317 + $0x108] sm:$0xff]
      %v378 = vld [vmem:[%s317 + $0x110] sm:$0xff]
      %v379 = vld [vmem:[%s317 + $0x118] sm:$0xff]
      %v380 = vld [vmem:[%s317 + $0x120] sm:$0xff]
      %v381 = vld [vmem:[%s317 + $0x128] sm:$0xff]
      %v382 = vld [vmem:[%s317 + $0x130] sm:$0xff]
      %v383 = vld [vmem:[%s317 + $0x138] sm:$0xff]
      %v384 = vld [vmem:[%s317 + $0x140] sm:$0xff]
      %v385 = vld [vmem:[%s317 + $0x148] sm:$0xff]
      %v386 = vld [vmem:[%s317 + $0x150] sm:$0xff]
      %v387 = vld [vmem:[%s317 + $0x158] sm:$0xff]
      %v388 = vld [vmem:[%s317 + $0x160] sm:$0xff]
      %v389 = vld [vmem:[%s317 + $0x168] sm:$0xff]
      %v390 = vld [vmem:[%s317 + $0x170] sm:$0xff]
      %v391 = vld [vmem:[%s317 + $0x178] sm:$0xff]
      %v392 = vld [vmem:[%s317 + $0x180] sm:$0xff]
      %v393 = vld [vmem:[%s317 + $0x188] sm:$0xff]
      %v394 = vld [vmem:[%s317 + $0x190] sm:$0xff]
      %v395 = vld [vmem:[%s317 + $0x198] sm:$0xff]
      %v396 = vld [vmem:[%s317 + $0x1a0] sm:$0xff]
      %v397 = vld [vmem:[%s317 + $0x1a8] sm:$0xff]
      %v398 = vld [vmem:[%s317 + $0x1b0] sm:$0xff]
      %v399 = vld [vmem:[%s317 + $0x1b8] sm:$0xff]
      %v400 = vld [vmem:[%s317 + $0x1c0] sm:$0xff]
      %v401 = vld [vmem:[%s317 + $0x1c8] sm:$0xff]
      %v402 = vld [vmem:[%s317 + $0x1d0] sm:$0xff]
      %v403 = vld [vmem:[%s317 + $0x1d8] sm:$0xff]
      %v404 = vld [vmem:[%s317 + $0x1e0] sm:$0xff]
      %v405 = vld [vmem:[%s317 + $0x1e8] sm:$0xff]
      %v406 = vld [vmem:[%s317 + $0x1f0] sm:$0xff]
      %v407 = vld [vmem:[%s317 + $0x1f8] sm:$0xff]
      %v408 = vld [vmem:[%s317 + $0x200] sm:$0xff]
      %v409 = vld [vmem:[%s317 + $0x208] sm:$0xff]
      %v410 = vld [vmem:[%s317 + $0x210] sm:$0xff]
      %v411 = vld [vmem:[%s317 + $0x218] sm:$0xff]
      %v412 = vld [vmem:[%s317 + $0x220] sm:$0xff]
      %v413 = vld [vmem:[%s317 + $0x228] sm:$0xff]
      %v414 = vld [vmem:[%s317 + $0x230] sm:$0xff]
      %v415 = vld [vmem:[%s317 + $0x238] sm:$0xff]
      %v416 = vld [vmem:[%s317 + $0x240] sm:$0xff]
      %v417 = vld [vmem:[%s317 + $0x248] sm:$0xff]
      %v418 = vld [vmem:[%s317 + $0x250] sm:$0xff]
      %v419 = vld [vmem:[%s317 + $0x258] sm:$0xff]
      %v420 = vld [vmem:[%s317 + $0x260] sm:$0xff]
      %v421 = vld [vmem:[%s317 + $0x268] sm:$0xff]
      %v422 = vld [vmem:[%s317 + $0x270] sm:$0xff]
      %v423 = vld [vmem:[%s317 + $0x278] sm:$0xff]
      %v424 = vld [vmem:[%s317 + $0x280] sm:$0xff]
      %v425 = vld [vmem:[%s317 + $0x288] sm:$0xff]
      %v426 = vld [vmem:[%s317 + $0x290] sm:$0xff]
      %v427 = vld [vmem:[%s317 + $0x298] sm:$0xff]
      %v428 = vld [vmem:[%s317 + $0x2a0] sm:$0xff]
      %v429 = vld [vmem:[%s317 + $0x2a8] sm:$0xff]
      %v430 = vld [vmem:[%s317 + $0x2b0] sm:$0xff]
      %v431 = vld [vmem:[%s317 + $0x2b8] sm:$0xff]
      %v432 = vld [vmem:[%s317 + $0x2c0] sm:$0xff]
      %v433 = vld [vmem:[%s317 + $0x2c8] sm:$0xff]
      %v434 = vld [vmem:[%s317 + $0x2d0] sm:$0xff]
      %v435 = vld [vmem:[%s317 + $0x2d8] sm:$0xff]
      %v436 = vld [vmem:[%s317 + $0x2e0] sm:$0xff]
      %v437 = vld [vmem:[%s317 + $0x2e8] sm:$0xff]
      %v438 = vld [vmem:[%s317 + $0x2f0] sm:$0xff]
      %v439 = vld [vmem:[%s317 + $0x2f8] sm:$0xff]
      %v440 = vld [vmem:[%s317 + $0x300] sm:$0xff]
      %v441 = vld [vmem:[%s317 + $0x308] sm:$0xff]
      %v442 = vld [vmem:[%s317 + $0x310] sm:$0xff]
      %v443 = vld [vmem:[%s317 + $0x318] sm:$0xff]
      %v444 = vld [vmem:[%s317 + $0x320] sm:$0xff]
      %v445 = vld [vmem:[%s317 + $0x328] sm:$0xff]
      %v446 = vld [vmem:[%s317 + $0x330] sm:$0xff]
      %v447 = vld [vmem:[%s317 + $0x338] sm:$0xff]
      %v448 = vld [vmem:[%s317 + $0x340] sm:$0xff]
      %v449 = vld [vmem:[%s317 + $0x348] sm:$0xff]
      %v450 = vld [vmem:[%s317 + $0x350] sm:$0xff]
      %v451 = vld [vmem:[%s317 + $0x358] sm:$0xff]
      %v452 = vld [vmem:[%s317 + $0x360] sm:$0xff]
      %v453 = vld [vmem:[%s317 + $0x368] sm:$0xff]
      %v454 = vld [vmem:[%s317 + $0x370] sm:$0xff]
      %v455 = vld [vmem:[%s317 + $0x378] sm:$0xff]
      %v456 = vld [vmem:[%s317 + $0x380] sm:$0xff]
      %v457 = vld [vmem:[%s317 + $0x388] sm:$0xff]
      %v458 = vld [vmem:[%s317 + $0x390] sm:$0xff]
      %v459 = vld [vmem:[%s317 + $0x398] sm:$0xff]
      %v460 = vld [vmem:[%s317 + $0x3a0] sm:$0xff]
      %v461 = vld [vmem:[%s317 + $0x3a8] sm:$0xff]
      %v462 = vld [vmem:[%s317 + $0x3b0] sm:$0xff]
      %v463 = vld [vmem:[%s317 + $0x3b8] sm:$0xff]
      %v464 = vld [vmem:[%s317 + $0x3c0] sm:$0xff]
      %v465 = vld [vmem:[%s317 + $0x3c8] sm:$0xff]
      %v466 = vld [vmem:[%s317 + $0x3d0] sm:$0xff]
      %v467 = vld [vmem:[%s317 + $0x3d8] sm:$0xff]
      %v468 = vld [vmem:[%s317 + $0x3e0] sm:$0xff]
      %v469 = vld [vmem:[%s317 + $0x3e8] sm:$0xff]
      %v470 = vld [vmem:[%s317 + $0x3f0] sm:$0xff]
      %v471 = vld [vmem:[%s317 + $0x3f8] sm:$0xff]
      %v472 = vld [vmem:[%s317 + $0x400] sm:$0xff]
      %v473 = vld [vmem:[%s317 + $0x408] sm:$0xff]
      %v474 = vld [vmem:[%s317 + $0x410] sm:$0xff]
      %v475 = vld [vmem:[%s317 + $0x418] sm:$0xff]
      %v476 = vld [vmem:[%s317 + $0x420] sm:$0xff]
      %v477 = vld [vmem:[%s317 + $0x428] sm:$0xff]
      %v478 = vld [vmem:[%s317 + $0x430] sm:$0xff]
      %v479 = vld [vmem:[%s317 + $0x438] sm:$0xff]
      %v480 = vld [vmem:[%s317 + $0x440] sm:$0xff]
      %v481 = vld [vmem:[%s317 + $0x448] sm:$0xff]
      %v482 = vld [vmem:[%s317 + $0x450] sm:$0xff]
      %v483 = vld [vmem:[%s317 + $0x458] sm:$0xff]
      %v484 = vld [vmem:[%s317 + $0x460] sm:$0xff]
      %v485 = vld [vmem:[%s317 + $0x468] sm:$0xff]
      %v486 = vld [vmem:[%s317 + $0x470] sm:$0xff]
      %v487 = vld [vmem:[%s317 + $0x478] sm:$0xff]
      %v488 = vld [vmem:[%s317 + $0x480] sm:$0xff]
      %v489 = vld [vmem:[%s317 + $0x488] sm:$0xff]
      %v490 = vld [vmem:[%s317 + $0x490] sm:$0xff]
      %v491 = vld [vmem:[%s317 + $0x498] sm:$0xff]
      %v492 = vld [vmem:[%s317 + $0x4a0] sm:$0xff]
      %v493 = vld [vmem:[%s317 + $0x4a8] sm:$0xff]
      %v494 = vld [vmem:[%s317 + $0x4b0] sm:$0xff]
      %v495 = vld [vmem:[%s317 + $0x4b8] sm:$0xff]
      %v496 = vld [vmem:[%s317 + $0x4c0] sm:$0xff]
      %v497 = vld [vmem:[%s317 + $0x4c8] sm:$0xff]
      %v498 = vld [vmem:[%s317 + $0x4d0] sm:$0xff]
      %v499 = vld [vmem:[%s317 + $0x4d8] sm:$0xff]
      %v500 = vld [vmem:[%s317 + $0x4e0] sm:$0xff]
      %v501 = vld [vmem:[%s317 + $0x4e8] sm:$0xff]
      %v502 = vld [vmem:[%s317 + $0x4f0] sm:$0xff]
      %v503 = vld [vmem:[%s317 + $0x4f8] sm:$0xff]
      %v504 = vld [vmem:[%s317 + $0x500] sm:$0xff]
      %v505 = vld [vmem:[%s317 + $0x508] sm:$0xff]
      %v506 = vld [vmem:[%s317 + $0x510] sm:$0xff]
      %v507 = vld [vmem:[%s317 + $0x518] sm:$0xff]
      %v508 = vld [vmem:[%s317 + $0x520] sm:$0xff]
      %v509 = vld [vmem:[%s317 + $0x528] sm:$0xff]
      %v510 = vld [vmem:[%s317 + $0x530] sm:$0xff]
      %v511 = vld [vmem:[%s317 + $0x538] sm:$0xff]
      %v512 = vld [vmem:[%s317 + $0x540] sm:$0xff]
      %v513 = vld [vmem:[%s317 + $0x548] sm:$0xff]
      %v514 = vld [vmem:[%s317 + $0x550] sm:$0xff]
      %v515 = vld [vmem:[%s317 + $0x558] sm:$0xff]
      %v516 = vld [vmem:[%s317 + $0x560] sm:$0xff]
      %v517 = vld [vmem:[%s317 + $0x568] sm:$0xff]
      %v518 = vld [vmem:[%s317 + $0x570] sm:$0xff]
      %v519 = vld [vmem:[%s317 + $0x578] sm:$0xff]
      %v520 = vld [vmem:[%s317 + $0x580] sm:$0xff]
      %v521 = vld [vmem:[%s317 + $0x588] sm:$0xff]
      %v522 = vld [vmem:[%s317 + $0x590] sm:$0xff]
      %v523 = vld [vmem:[%s317 + $0x598] sm:$0xff]
      %v524 = vld [vmem:[%s317 + $0x5a0] sm:$0xff]
      %v525 = vld [vmem:[%s317 + $0x5a8] sm:$0xff]
      %v526 = vld [vmem:[%s317 + $0x5b0] sm:$0xff]
      %v527 = vld [vmem:[%s317 + $0x5b8] sm:$0xff]
      %v528 = vld [vmem:[%s317 + $0x5c0] sm:$0xff]
      %v529 = vld [vmem:[%s317 + $0x5c8] sm:$0xff]
      %v530 = vld [vmem:[%s317 + $0x5d0] sm:$0xff]
      %v531 = vld [vmem:[%s317 + $0x5d8] sm:$0xff]
      %v532 = vld [vmem:[%s317 + $0x5e0] sm:$0xff]
      %v533 = vld [vmem:[%s317 + $0x5e8] sm:$0xff]
      %v534 = vld [vmem:[%s317 + $0x5f0] sm:$0xff]
      %v535 = vld [vmem:[%s317 + $0x5f8] sm:$0xff]
      %v536 = vld [vmem:[%s317 + $0x600] sm:$0xff]
      %v537 = vld [vmem:[%s317 + $0x608] sm:$0xff]
      %v538 = vld [vmem:[%s317 + $0x610] sm:$0xff]
      %v539 = vld [vmem:[%s317 + $0x618] sm:$0xff]
      %v540 = vld [vmem:[%s317 + $0x620] sm:$0xff]
      %v541 = vld [vmem:[%s317 + $0x628] sm:$0xff]
      %v542 = vld [vmem:[%s317 + $0x630] sm:$0xff]
      %v543 = vld [vmem:[%s317 + $0x638] sm:$0xff]
      %v544 = vld [vmem:[%s317 + $0x640] sm:$0xff]
      %v545 = vld [vmem:[%s317 + $0x648] sm:$0xff]
      %v546 = vld [vmem:[%s317 + $0x650] sm:$0xff]
      %v547 = vld [vmem:[%s317 + $0x658] sm:$0xff]
      %v548 = vld [vmem:[%s317 + $0x660] sm:$0xff]
      %v549 = vld [vmem:[%s317 + $0x668] sm:$0xff]
      %v550 = vld [vmem:[%s317 + $0x670] sm:$0xff]
      %v551 = vld [vmem:[%s317 + $0x678] sm:$0xff]
      %v552 = vld [vmem:[%s317 + $0x680] sm:$0xff]
      %v553 = vld [vmem:[%s317 + $0x688] sm:$0xff]
      %v554 = vld [vmem:[%s317 + $0x690] sm:$0xff]
      %v555 = vld [vmem:[%s317 + $0x698] sm:$0xff]
      %v556 = vld [vmem:[%s317 + $0x6a0] sm:$0xff]
      %v557 = vld [vmem:[%s317 + $0x6a8] sm:$0xff]
      %v558 = vld [vmem:[%s317 + $0x6b0] sm:$0xff]
      %v559 = vld [vmem:[%s317 + $0x6b8] sm:$0xff]
      %v560 = vld [vmem:[%s317 + $0x6c0] sm:$0xff]
      %v561 = vld [vmem:[%s317 + $0x6c8] sm:$0xff]
      %v562 = vld [vmem:[%s317 + $0x6d0] sm:$0xff]
      %v563 = vld [vmem:[%s317 + $0x6d8] sm:$0xff]
      %v564 = vld [vmem:[%s317 + $0x6e0] sm:$0xff]
      %v565 = vld [vmem:[%s317 + $0x6e8] sm:$0xff]
      %v566 = vld [vmem:[%s317 + $0x6f0] sm:$0xff]
      %v567 = vld [vmem:[%s317 + $0x6f8] sm:$0xff]
      %v568 = vld [vmem:[%s317 + $0x700] sm:$0xff]
      %v569 = vld [vmem:[%s317 + $0x708] sm:$0xff]
      %v570 = vld [vmem:[%s317 + $0x710] sm:$0xff]
      %v571 = vld [vmem:[%s317 + $0x718] sm:$0xff]
      %v572 = vld [vmem:[%s317 + $0x720] sm:$0xff]
      %v573 = vld [vmem:[%s317 + $0x728] sm:$0xff]
      %v574 = vld [vmem:[%s317 + $0x730] sm:$0xff]
      %v575 = vld [vmem:[%s317 + $0x738] sm:$0xff]
      %v576 = vld [vmem:[%s317 + $0x740] sm:$0xff]
      %v577 = vld [vmem:[%s317 + $0x748] sm:$0xff]
      %v578 = vld [vmem:[%s317 + $0x750] sm:$0xff]
      %v579 = vld [vmem:[%s317 + $0x758] sm:$0xff]
      %v580 = vld [vmem:[%s317 + $0x760] sm:$0xff]
      %v581 = vld [vmem:[%s317 + $0x768] sm:$0xff]
      %v582 = vld [vmem:[%s317 + $0x770] sm:$0xff]
      %v583 = vld [vmem:[%s317 + $0x778] sm:$0xff]
      %v584 = vld [vmem:[%s317 + $0x780] sm:$0xff]
      %v585 = vld [vmem:[%s317 + $0x788] sm:$0xff]
      %v586 = vld [vmem:[%s317 + $0x790] sm:$0xff]
      %v587 = vld [vmem:[%s317 + $0x798] sm:$0xff]
      %v588 = vld [vmem:[%s317 + $0x7a0] sm:$0xff]
      %v589 = vld [vmem:[%s317 + $0x7a8] sm:$0xff]
      %v590 = vld [vmem:[%s317 + $0x7b0] sm:$0xff]
      %v591 = vld [vmem:[%s317 + $0x7b8] sm:$0xff]
      %v592 = vld [vmem:[%s317 + $0x7c0] sm:$0xff]
      %v593 = vld [vmem:[%s317 + $0x7c8] sm:$0xff]
      %v594 = vld [vmem:[%s317 + $0x7d0] sm:$0xff]
      %v595 = vld [vmem:[%s317 + $0x7d8] sm:$0xff]
      %v596 = vld [vmem:[%s317 + $0x7e0] sm:$0xff]
      %v597 = vld [vmem:[%s317 + $0x7e8] sm:$0xff]
      %v598 = vld [vmem:[%s317 + $0x7f0] sm:$0xff]
      %v599 = vld [vmem:[%s317 + $0x7f8] sm:$0xff]
      %v600 = vld [vmem:[%s2] sm:$0xf]
      %v601 = vld [vmem:[%s2 + $0x4] sm:$0xf]
      %v602 = vld [vmem:[%s2 + $0x8] sm:$0xf]
      %v603 = vld [vmem:[%s2 + $0xc] sm:$0xf]
      %v604 = vld [vmem:[%s2 + $0x10] sm:$0xf]
      %v605 = vld [vmem:[%s2 + $0x14] sm:$0xf]
      %v606 = vld [vmem:[%s2 + $0x18] sm:$0xf]
      %v607 = vld [vmem:[%s2 + $0x1c] sm:$0xf]
      %v608 = vld [vmem:[%s2 + $0x20] sm:$0xf]
      %v609 = vld [vmem:[%s2 + $0x24] sm:$0xf]
      %v610 = vld [vmem:[%s2 + $0x28] sm:$0xf]
      %v611 = vld [vmem:[%s2 + $0x2c] sm:$0xf]
      %v612 = vld [vmem:[%s2 + $0x30] sm:$0xf]
      %v613 = vld [vmem:[%s2 + $0x34] sm:$0xf]
      %v614 = vld [vmem:[%s2 + $0x38] sm:$0xf]
      %v615 = vld [vmem:[%s2 + $0x3c] sm:$0xf]
      %v616 = vld [vmem:[%s2 + $0x40] sm:$0xf]
      %v617 = vld [vmem:[%s2 + $0x44] sm:$0xf]
      %v618 = vld [vmem:[%s2 + $0x48] sm:$0xf]
      %v619 = vld [vmem:[%s2 + $0x4c] sm:$0xf]
      %v620 = vld [vmem:[%s2 + $0x50] sm:$0xf]
      %v621 = vld [vmem:[%s2 + $0x54] sm:$0xf]
      %v622 = vld [vmem:[%s2 + $0x58] sm:$0xf]
      %v623 = vld [vmem:[%s2 + $0x5c] sm:$0xf]
      %v624 = vld [vmem:[%s2 + $0x60] sm:$0xf]
      %v625 = vld [vmem:[%s2 + $0x64] sm:$0xf]
      %v626 = vld [vmem:[%s2 + $0x68] sm:$0xf]
      %v627 = vld [vmem:[%s2 + $0x6c] sm:$0xf]
      %v628 = vld [vmem:[%s2 + $0x70] sm:$0xf]
      %v629 = vld [vmem:[%s2 + $0x74] sm:$0xf]
      %v630 = vld [vmem:[%s2 + $0x78] sm:$0xf]
      %v631 = vld [vmem:[%s2 + $0x7c] sm:$0xf]
      %v632 = vld [vmem:[%s2 + $0x80] sm:$0xf]
      %v633 = vld [vmem:[%s2 + $0x84] sm:$0xf]
      %v634 = vld [vmem:[%s2 + $0x88] sm:$0xf]
      %v635 = vld [vmem:[%s2 + $0x8c] sm:$0xf]
      %v636 = vld [vmem:[%s2 + $0x90] sm:$0xf]
      %v637 = vld [vmem:[%s2 + $0x94] sm:$0xf]
      %v638 = vld [vmem:[%s2 + $0x98] sm:$0xf]
      %v639 = vld [vmem:[%s2 + $0x9c] sm:$0xf]
      %v640 = vld [vmem:[%s2 + $0xa0] sm:$0xf]
      %v641 = vld [vmem:[%s2 + $0xa4] sm:$0xf]
      %v642 = vld [vmem:[%s2 + $0xa8] sm:$0xf]
      %v643 = vld [vmem:[%s2 + $0xac] sm:$0xf]
      %v644 = vld [vmem:[%s2 + $0xb0] sm:$0xf]
      %v645 = vld [vmem:[%s2 + $0xb4] sm:$0xf]
      %v646 = vld [vmem:[%s2 + $0xb8] sm:$0xf]
      %v647 = vld [vmem:[%s2 + $0xbc] sm:$0xf]
      %v648 = vld [vmem:[%s2 + $0xc0] sm:$0xf]
      %v649 = vld [vmem:[%s2 + $0xc4] sm:$0xf]
      %v650 = vld [vmem:[%s2 + $0xc8] sm:$0xf]
      %v651 = vld [vmem:[%s2 + $0xcc] sm:$0xf]
      %v652 = vld [vmem:[%s2 + $0xd0] sm:$0xf]
      %v653 = vld [vmem:[%s2 + $0xd4] sm:$0xf]
      %v654 = vld [vmem:[%s2 + $0xd8] sm:$0xf]
      %v655 = vld [vmem:[%s2 + $0xdc] sm:$0xf]
      %v656 = vld [vmem:[%s2 + $0xe0] sm:$0xf]
      %v657 = vld [vmem:[%s2 + $0xe4] sm:$0xf]
      %v658 = vld [vmem:[%s2 + $0xe8] sm:$0xf]
      %v659 = vld [vmem:[%s2 + $0xec] sm:$0xf]
      %v660 = vld [vmem:[%s2 + $0xf0] sm:$0xf]
      %v661 = vld [vmem:[%s2 + $0xf4] sm:$0xf]
      %v662 = vld [vmem:[%s2 + $0xf8] sm:$0xf]
      %v663 = vld [vmem:[%s2 + $0xfc] sm:$0xf]
      %v664 = vld [vmem:[%s2 + $0x100] sm:$0xf]
      %v665 = vld [vmem:[%s2 + $0x104] sm:$0xf]
      %v666 = vld [vmem:[%s2 + $0x108] sm:$0xf]
      %v667 = vld [vmem:[%s2 + $0x10c] sm:$0xf]
      %v668 = vld [vmem:[%s2 + $0x110] sm:$0xf]
      %v669 = vld [vmem:[%s2 + $0x114] sm:$0xf]
      %v670 = vld [vmem:[%s2 + $0x118] sm:$0xf]
      %v671 = vld [vmem:[%s2 + $0x11c] sm:$0xf]
      %v672 = vld [vmem:[%s2 + $0x120] sm:$0xf]
      %v673 = vld [vmem:[%s2 + $0x124] sm:$0xf]
      %v674 = vld [vmem:[%s2 + $0x128] sm:$0xf]
      %v675 = vld [vmem:[%s2 + $0x12c] sm:$0xf]
      %v676 = vld [vmem:[%s2 + $0x130] sm:$0xf]
      %v677 = vld [vmem:[%s2 + $0x134] sm:$0xf]
      %v678 = vld [vmem:[%s2 + $0x138] sm:$0xf]
      %v679 = vld [vmem:[%s2 + $0x13c] sm:$0xf]
      %v680 = vld [vmem:[%s2 + $0x140] sm:$0xf]
      %v681 = vld [vmem:[%s2 + $0x144] sm:$0xf]
      %v682 = vld [vmem:[%s2 + $0x148] sm:$0xf]
      %v683 = vld [vmem:[%s2 + $0x14c] sm:$0xf]
      %v684 = vld [vmem:[%s2 + $0x150] sm:$0xf]
      %v685 = vld [vmem:[%s2 + $0x154] sm:$0xf]
      %v686 = vld [vmem:[%s2 + $0x158] sm:$0xf]
      %v687 = vld [vmem:[%s2 + $0x15c] sm:$0xf]
      %v688 = vld [vmem:[%s2 + $0x160] sm:$0xf]
      %v689 = vld [vmem:[%s2 + $0x164] sm:$0xf]
      %v690 = vld [vmem:[%s2 + $0x168] sm:$0xf]
      %v691 = vld [vmem:[%s2 + $0x16c] sm:$0xf]
      %v692 = vld [vmem:[%s2 + $0x170] sm:$0xf]
      %v693 = vld [vmem:[%s2 + $0x174] sm:$0xf]
      %v694 = vld [vmem:[%s2 + $0x178] sm:$0xf]
      %v695 = vld [vmem:[%s2 + $0x17c] sm:$0xf]
      %v696 = vld [vmem:[%s2 + $0x180] sm:$0xf]
      %v697 = vld [vmem:[%s2 + $0x184] sm:$0xf]
      %v698 = vld [vmem:[%s2 + $0x188] sm:$0xf]
      %v699 = vld [vmem:[%s2 + $0x18c] sm:$0xf]
      %v700 = vld [vmem:[%s2 + $0x190] sm:$0xf]
      %v701 = vld [vmem:[%s2 + $0x194] sm:$0xf]
      %v702 = vld [vmem:[%s2 + $0x198] sm:$0xf]
      %v703 = vld [vmem:[%s2 + $0x19c] sm:$0xf]
      %v704 = vld [vmem:[%s2 + $0x1a0] sm:$0xf]
      %v705 = vld [vmem:[%s2 + $0x1a4] sm:$0xf]
      %v706 = vld [vmem:[%s2 + $0x1a8] sm:$0xf]
      %v707 = vld [vmem:[%s2 + $0x1ac] sm:$0xf]
      %v708 = vld [vmem:[%s2 + $0x1b0] sm:$0xf]
      %v709 = vld [vmem:[%s2 + $0x1b4] sm:$0xf]
      %v710 = vld [vmem:[%s2 + $0x1b8] sm:$0xf]
      %v711 = vld [vmem:[%s2 + $0x1bc] sm:$0xf]
      %v712 = vld [vmem:[%s2 + $0x1c0] sm:$0xf]
      %v713 = vld [vmem:[%s2 + $0x1c4] sm:$0xf]
      %v714 = vld [vmem:[%s2 + $0x1c8] sm:$0xf]
      %v715 = vld [vmem:[%s2 + $0x1cc] sm:$0xf]
      %v716 = vld [vmem:[%s2 + $0x1d0] sm:$0xf]
      %v717 = vld [vmem:[%s2 + $0x1d4] sm:$0xf]
      %v718 = vld [vmem:[%s2 + $0x1d8] sm:$0xf]
      %v719 = vld [vmem:[%s2 + $0x1dc] sm:$0xf]
      %v720 = vld [vmem:[%s2 + $0x1e0] sm:$0xf]
      %v721 = vld [vmem:[%s2 + $0x1e4] sm:$0xf]
      %v722 = vld [vmem:[%s2 + $0x1e8] sm:$0xf]
      %v723 = vld [vmem:[%s2 + $0x1ec] sm:$0xf]
      %v724 = vld [vmem:[%s2 + $0x1f0] sm:$0xf]
      %v725 = vld [vmem:[%s2 + $0x1f4] sm:$0xf]
      %v726 = vld [vmem:[%s2 + $0x1f8] sm:$0xf]
      %v727 = vld [vmem:[%s2 + $0x1fc] sm:$0xf]
      %v984 = vunpack.c.l.b16 %v344
      %v985 = vunpack.c.h.b16 %v344
      %v986 = vunpack.c.l.b16 %v345
      %v987 = vunpack.c.h.b16 %v345
      %v988 = vunpack.c.l.b16 %v346
      %v989 = vunpack.c.h.b16 %v346
      %v990 = vunpack.c.l.b16 %v347
      %v991 = vunpack.c.h.b16 %v347
      %v992 = vunpack.c.l.b16 %v348
      %v993 = vunpack.c.h.b16 %v348
      %v994 = vunpack.c.l.b16 %v349
      %v995 = vunpack.c.h.b16 %v349
      %v996 = vunpack.c.l.b16 %v350
      %v997 = vunpack.c.h.b16 %v350
      %v998 = vunpack.c.l.b16 %v351
      %v999 = vunpack.c.h.b16 %v351
      %v1000 = vunpack.c.l.b16 %v352
      %v1001 = vunpack.c.h.b16 %v352
      %v1002 = vunpack.c.l.b16 %v353
      %v1003 = vunpack.c.h.b16 %v353
      %v1004 = vunpack.c.l.b16 %v354
      %v1005 = vunpack.c.h.b16 %v354
      %v1006 = vunpack.c.l.b16 %v355
      %v1007 = vunpack.c.h.b16 %v355
      %v1008 = vunpack.c.l.b16 %v356
      %v1009 = vunpack.c.h.b16 %v356
      %v1010 = vunpack.c.l.b16 %v357
      %v1011 = vunpack.c.h.b16 %v357
      %v1012 = vunpack.c.l.b16 %v358
      %v1013 = vunpack.c.h.b16 %v358
      %v1014 = vunpack.c.l.b16 %v359
      %v1015 = vunpack.c.h.b16 %v359
      %v1016 = vunpack.c.l.b16 %v360
      %v1017 = vunpack.c.h.b16 %v360
      %v1018 = vunpack.c.l.b16 %v361
      %v1019 = vunpack.c.h.b16 %v361
      %v1020 = vunpack.c.l.b16 %v362
      %v1021 = vunpack.c.h.b16 %v362
      %v1022 = vunpack.c.l.b16 %v363
      %v1023 = vunpack.c.h.b16 %v363
      %v1024 = vunpack.c.l.b16 %v364
      %v1025 = vunpack.c.h.b16 %v364
      %v1026 = vunpack.c.l.b16 %v365
      %v1027 = vunpack.c.h.b16 %v365
      %v1028 = vunpack.c.l.b16 %v366
      %v1029 = vunpack.c.h.b16 %v366
      %v1030 = vunpack.c.l.b16 %v367
      %v1031 = vunpack.c.h.b16 %v367
      %v1032 = vunpack.c.l.b16 %v368
      %v1033 = vunpack.c.h.b16 %v368
      %v1034 = vunpack.c.l.b16 %v369
      %v1035 = vunpack.c.h.b16 %v369
      %v1036 = vunpack.c.l.b16 %v370
      %v1037 = vunpack.c.h.b16 %v370
      %v1038 = vunpack.c.l.b16 %v371
      %v1039 = vunpack.c.h.b16 %v371
      %v1040 = vunpack.c.l.b16 %v372
      %v1041 = vunpack.c.h.b16 %v372
      %v1042 = vunpack.c.l.b16 %v373
      %v1043 = vunpack.c.h.b16 %v373
      %v1044 = vunpack.c.l.b16 %v374
      %v1045 = vunpack.c.h.b16 %v374
      %v1046 = vunpack.c.l.b16 %v375
      %v1047 = vunpack.c.h.b16 %v375
      %v1048 = vunpack.c.l.b16 %v376
      %v1049 = vunpack.c.h.b16 %v376
      %v1050 = vunpack.c.l.b16 %v377
      %v1051 = vunpack.c.h.b16 %v377
      %v1052 = vunpack.c.l.b16 %v378
      %v1053 = vunpack.c.h.b16 %v378
      %v1054 = vunpack.c.l.b16 %v379
      %v1055 = vunpack.c.h.b16 %v379
      %v1056 = vunpack.c.l.b16 %v380
      %v1057 = vunpack.c.h.b16 %v380
      %v1058 = vunpack.c.l.b16 %v381
      %v1059 = vunpack.c.h.b16 %v381
      %v1060 = vunpack.c.l.b16 %v382
      %v1061 = vunpack.c.h.b16 %v382
      %v1062 = vunpack.c.l.b16 %v383
      %v1063 = vunpack.c.h.b16 %v383
      %v1064 = vunpack.c.l.b16 %v384
      %v1065 = vunpack.c.h.b16 %v384
      %v1066 = vunpack.c.l.b16 %v385
      %v1067 = vunpack.c.h.b16 %v385
      %v1068 = vunpack.c.l.b16 %v386
      %v1069 = vunpack.c.h.b16 %v386
      %v1070 = vunpack.c.l.b16 %v387
      %v1071 = vunpack.c.h.b16 %v387
      %v1072 = vunpack.c.l.b16 %v388
      %v1073 = vunpack.c.h.b16 %v388
      %v1074 = vunpack.c.l.b16 %v389
      %v1075 = vunpack.c.h.b16 %v389
      %v1076 = vunpack.c.l.b16 %v390
      %v1077 = vunpack.c.h.b16 %v390
      %v1078 = vunpack.c.l.b16 %v391
      %v1079 = vunpack.c.h.b16 %v391
      %v1080 = vunpack.c.l.b16 %v392
      %v1081 = vunpack.c.h.b16 %v392
      %v1082 = vunpack.c.l.b16 %v393
      %v1083 = vunpack.c.h.b16 %v393
      %v1084 = vunpack.c.l.b16 %v394
      %v1085 = vunpack.c.h.b16 %v394
      %v1086 = vunpack.c.l.b16 %v395
      %v1087 = vunpack.c.h.b16 %v395
      %v1088 = vunpack.c.l.b16 %v396
      %v1089 = vunpack.c.h.b16 %v396
      %v1090 = vunpack.c.l.b16 %v397
      %v1091 = vunpack.c.h.b16 %v397
      %v1092 = vunpack.c.l.b16 %v398
      %v1093 = vunpack.c.h.b16 %v398
      %v1094 = vunpack.c.l.b16 %v399
      %v1095 = vunpack.c.h.b16 %v399
      %v1096 = vunpack.c.l.b16 %v400
      %v1097 = vunpack.c.h.b16 %v400
      %v1098 = vunpack.c.l.b16 %v401
      %v1099 = vunpack.c.h.b16 %v401
      %v1100 = vunpack.c.l.b16 %v402
      %v1101 = vunpack.c.h.b16 %v402
      %v1102 = vunpack.c.l.b16 %v403
      %v1103 = vunpack.c.h.b16 %v403
      %v1104 = vunpack.c.l.b16 %v404
      %v1105 = vunpack.c.h.b16 %v404
      %v1106 = vunpack.c.l.b16 %v405
      %v1107 = vunpack.c.h.b16 %v405
      %v1108 = vunpack.c.l.b16 %v406
      %v1109 = vunpack.c.h.b16 %v406
      %v1110 = vunpack.c.l.b16 %v407
      %v1111 = vunpack.c.h.b16 %v407
      %v1112 = vunpack.c.l.b16 %v408
      %v1113 = vunpack.c.h.b16 %v408
      %v1114 = vunpack.c.l.b16 %v409
      %v1115 = vunpack.c.h.b16 %v409
      %v1116 = vunpack.c.l.b16 %v410
      %v1117 = vunpack.c.h.b16 %v410
      %v1118 = vunpack.c.l.b16 %v411
      %v1119 = vunpack.c.h.b16 %v411
      %v1120 = vunpack.c.l.b16 %v412
      %v1121 = vunpack.c.h.b16 %v412
      %v1122 = vunpack.c.l.b16 %v413
      %v1123 = vunpack.c.h.b16 %v413
      %v1124 = vunpack.c.l.b16 %v414
      %v1125 = vunpack.c.h.b16 %v414
      %v1126 = vunpack.c.l.b16 %v415
      %v1127 = vunpack.c.h.b16 %v415
      %v1128 = vunpack.c.l.b16 %v416
      %v1129 = vunpack.c.h.b16 %v416
      %v1130 = vunpack.c.l.b16 %v417
      %v1131 = vunpack.c.h.b16 %v417
      %v1132 = vunpack.c.l.b16 %v418
      %v1133 = vunpack.c.h.b16 %v418
      %v1134 = vunpack.c.l.b16 %v419
      %v1135 = vunpack.c.h.b16 %v419
      %v1136 = vunpack.c.l.b16 %v420
      %v1137 = vunpack.c.h.b16 %v420
      %v1138 = vunpack.c.l.b16 %v421
      %v1139 = vunpack.c.h.b16 %v421
      %v1140 = vunpack.c.l.b16 %v422
      %v1141 = vunpack.c.h.b16 %v422
      %v1142 = vunpack.c.l.b16 %v423
      %v1143 = vunpack.c.h.b16 %v423
      %v1144 = vunpack.c.l.b16 %v424
      %v1145 = vunpack.c.h.b16 %v424
      %v1146 = vunpack.c.l.b16 %v425
      %v1147 = vunpack.c.h.b16 %v425
      %v1148 = vunpack.c.l.b16 %v426
      %v1149 = vunpack.c.h.b16 %v426
      %v1150 = vunpack.c.l.b16 %v427
      %v1151 = vunpack.c.h.b16 %v427
      %v1152 = vunpack.c.l.b16 %v428
      %v1153 = vunpack.c.h.b16 %v428
      %v1154 = vunpack.c.l.b16 %v429
      %v1155 = vunpack.c.h.b16 %v429
      %v1156 = vunpack.c.l.b16 %v430
      %v1157 = vunpack.c.h.b16 %v430
      %v1158 = vunpack.c.l.b16 %v431
      %v1159 = vunpack.c.h.b16 %v431
      %v1160 = vunpack.c.l.b16 %v432
      %v1161 = vunpack.c.h.b16 %v432
      %v1162 = vunpack.c.l.b16 %v433
      %v1163 = vunpack.c.h.b16 %v433
      %v1164 = vunpack.c.l.b16 %v434
      %v1165 = vunpack.c.h.b16 %v434
      %v1166 = vunpack.c.l.b16 %v435
      %v1167 = vunpack.c.h.b16 %v435
      %v1168 = vunpack.c.l.b16 %v436
      %v1169 = vunpack.c.h.b16 %v436
      %v1170 = vunpack.c.l.b16 %v437
      %v1171 = vunpack.c.h.b16 %v437
      %v1172 = vunpack.c.l.b16 %v438
      %v1173 = vunpack.c.h.b16 %v438
      %v1174 = vunpack.c.l.b16 %v439
      %v1175 = vunpack.c.h.b16 %v439
      %v1176 = vunpack.c.l.b16 %v440
      %v1177 = vunpack.c.h.b16 %v440
      %v1178 = vunpack.c.l.b16 %v441
      %v1179 = vunpack.c.h.b16 %v441
      %v1180 = vunpack.c.l.b16 %v442
      %v1181 = vunpack.c.h.b16 %v442
      %v1182 = vunpack.c.l.b16 %v443
      %v1183 = vunpack.c.h.b16 %v443
      %v1184 = vunpack.c.l.b16 %v444
      %v1185 = vunpack.c.h.b16 %v444
      %v1186 = vunpack.c.l.b16 %v445
      %v1187 = vunpack.c.h.b16 %v445
      %v1188 = vunpack.c.l.b16 %v446
      %v1189 = vunpack.c.h.b16 %v446
      %v1190 = vunpack.c.l.b16 %v447
      %v1191 = vunpack.c.h.b16 %v447
      %v1192 = vunpack.c.l.b16 %v448
      %v1193 = vunpack.c.h.b16 %v448
      %v1194 = vunpack.c.l.b16 %v449
      %v1195 = vunpack.c.h.b16 %v449
      %v1196 = vunpack.c.l.b16 %v450
      %v1197 = vunpack.c.h.b16 %v450
      %v1198 = vunpack.c.l.b16 %v451
      %v1199 = vunpack.c.h.b16 %v451
      %v1200 = vunpack.c.l.b16 %v452
      %v1201 = vunpack.c.h.b16 %v452
      %v1202 = vunpack.c.l.b16 %v453
      %v1203 = vunpack.c.h.b16 %v453
      %v1204 = vunpack.c.l.b16 %v454
      %v1205 = vunpack.c.h.b16 %v454
      %v1206 = vunpack.c.l.b16 %v455
      %v1207 = vunpack.c.h.b16 %v455
      %v1208 = vunpack.c.l.b16 %v456
      %v1209 = vunpack.c.h.b16 %v456
      %v1210 = vunpack.c.l.b16 %v457
      %v1211 = vunpack.c.h.b16 %v457
      %v1212 = vunpack.c.l.b16 %v458
      %v1213 = vunpack.c.h.b16 %v458
      %v1214 = vunpack.c.l.b16 %v459
      %v1215 = vunpack.c.h.b16 %v459
      %v1216 = vunpack.c.l.b16 %v460
      %v1217 = vunpack.c.h.b16 %v460
      %v1218 = vunpack.c.l.b16 %v461
      %v1219 = vunpack.c.h.b16 %v461
      %v1220 = vunpack.c.l.b16 %v462
      %v1221 = vunpack.c.h.b16 %v462
      %v1222 = vunpack.c.l.b16 %v463
      %v1223 = vunpack.c.h.b16 %v463
      %v1224 = vunpack.c.l.b16 %v464
      %v1225 = vunpack.c.h.b16 %v464
      %v1226 = vunpack.c.l.b16 %v465
      %v1227 = vunpack.c.h.b16 %v465
      %v1228 = vunpack.c.l.b16 %v466
      %v1229 = vunpack.c.h.b16 %v466
      %v1230 = vunpack.c.l.b16 %v467
      %v1231 = vunpack.c.h.b16 %v467
      %v1232 = vunpack.c.l.b16 %v468
      %v1233 = vunpack.c.h.b16 %v468
      %v1234 = vunpack.c.l.b16 %v469
      %v1235 = vunpack.c.h.b16 %v469
      %v1236 = vunpack.c.l.b16 %v470
      %v1237 = vunpack.c.h.b16 %v470
      %v1238 = vunpack.c.l.b16 %v471
      %v1239 = vunpack.c.h.b16 %v471
      %v1240 = vunpack.c.l.b16 %v472
      %v1241 = vunpack.c.h.b16 %v472
      %v1242 = vunpack.c.l.b16 %v473
      %v1243 = vunpack.c.h.b16 %v473
      %v1244 = vunpack.c.l.b16 %v474
      %v1245 = vunpack.c.h.b16 %v474
      %v1246 = vunpack.c.l.b16 %v475
      %v1247 = vunpack.c.h.b16 %v475
      %v1248 = vunpack.c.l.b16 %v476
      %v1249 = vunpack.c.h.b16 %v476
      %v1250 = vunpack.c.l.b16 %v477
      %v1251 = vunpack.c.h.b16 %v477
      %v1252 = vunpack.c.l.b16 %v478
      %v1253 = vunpack.c.h.b16 %v478
      %v1254 = vunpack.c.l.b16 %v479
      %v1255 = vunpack.c.h.b16 %v479
      %v1256 = vunpack.c.l.b16 %v480
      %v1257 = vunpack.c.h.b16 %v480
      %v1258 = vunpack.c.l.b16 %v481
      %v1259 = vunpack.c.h.b16 %v481
      %v1260 = vunpack.c.l.b16 %v482
      %v1261 = vunpack.c.h.b16 %v482
      %v1262 = vunpack.c.l.b16 %v483
      %v1263 = vunpack.c.h.b16 %v483
      %v1264 = vunpack.c.l.b16 %v484
      %v1265 = vunpack.c.h.b16 %v484
      %v1266 = vunpack.c.l.b16 %v485
      %v1267 = vunpack.c.h.b16 %v485
      %v1268 = vunpack.c.l.b16 %v486
      %v1269 = vunpack.c.h.b16 %v486
      %v1270 = vunpack.c.l.b16 %v487
      %v1271 = vunpack.c.h.b16 %v487
      %v1272 = vunpack.c.l.b16 %v488
      %v1273 = vunpack.c.h.b16 %v488
      %v1274 = vunpack.c.l.b16 %v489
      %v1275 = vunpack.c.h.b16 %v489
      %v1276 = vunpack.c.l.b16 %v490
      %v1277 = vunpack.c.h.b16 %v490
      %v1278 = vunpack.c.l.b16 %v491
      %v1279 = vunpack.c.h.b16 %v491
      %v1280 = vunpack.c.l.b16 %v492
      %v1281 = vunpack.c.h.b16 %v492
      %v1282 = vunpack.c.l.b16 %v493
      %v1283 = vunpack.c.h.b16 %v493
      %v1284 = vunpack.c.l.b16 %v494
      %v1285 = vunpack.c.h.b16 %v494
      %v1286 = vunpack.c.l.b16 %v495
      %v1287 = vunpack.c.h.b16 %v495
      %v1288 = vunpack.c.l.b16 %v496
      %v1289 = vunpack.c.h.b16 %v496
      %v1290 = vunpack.c.l.b16 %v497
      %v1291 = vunpack.c.h.b16 %v497
      %v1292 = vunpack.c.l.b16 %v498
      %v1293 = vunpack.c.h.b16 %v498
      %v1294 = vunpack.c.l.b16 %v499
      %v1295 = vunpack.c.h.b16 %v499
      %v1296 = vunpack.c.l.b16 %v500
      %v1297 = vunpack.c.h.b16 %v500
      %v1298 = vunpack.c.l.b16 %v501
      %v1299 = vunpack.c.h.b16 %v501
      %v1300 = vunpack.c.l.b16 %v502
      %v1301 = vunpack.c.h.b16 %v502
      %v1302 = vunpack.c.l.b16 %v503
      %v1303 = vunpack.c.h.b16 %v503
      %v1304 = vunpack.c.l.b16 %v504
      %v1305 = vunpack.c.h.b16 %v504
      %v1306 = vunpack.c.l.b16 %v505
      %v1307 = vunpack.c.h.b16 %v505
      %v1308 = vunpack.c.l.b16 %v506
      %v1309 = vunpack.c.h.b16 %v506
      %v1310 = vunpack.c.l.b16 %v507
      %v1311 = vunpack.c.h.b16 %v507
      %v1312 = vunpack.c.l.b16 %v508
      %v1313 = vunpack.c.h.b16 %v508
      %v1314 = vunpack.c.l.b16 %v509
      %v1315 = vunpack.c.h.b16 %v509
      %v1316 = vunpack.c.l.b16 %v510
      %v1317 = vunpack.c.h.b16 %v510
      %v1318 = vunpack.c.l.b16 %v511
      %v1319 = vunpack.c.h.b16 %v511
      %v1320 = vunpack.c.l.b16 %v512
      %v1321 = vunpack.c.h.b16 %v512
      %v1322 = vunpack.c.l.b16 %v513
      %v1323 = vunpack.c.h.b16 %v513
      %v1324 = vunpack.c.l.b16 %v514
      %v1325 = vunpack.c.h.b16 %v514
      %v1326 = vunpack.c.l.b16 %v515
      %v1327 = vunpack.c.h.b16 %v515
      %v1328 = vunpack.c.l.b16 %v516
      %v1329 = vunpack.c.h.b16 %v516
      %v1330 = vunpack.c.l.b16 %v517
      %v1331 = vunpack.c.h.b16 %v517
      %v1332 = vunpack.c.l.b16 %v518
      %v1333 = vunpack.c.h.b16 %v518
      %v1334 = vunpack.c.l.b16 %v519
      %v1335 = vunpack.c.h.b16 %v519
      %v1336 = vunpack.c.l.b16 %v520
      %v1337 = vunpack.c.h.b16 %v520
      %v1338 = vunpack.c.l.b16 %v521
      %v1339 = vunpack.c.h.b16 %v521
      %v1340 = vunpack.c.l.b16 %v522
      %v1341 = vunpack.c.h.b16 %v522
      %v1342 = vunpack.c.l.b16 %v523
      %v1343 = vunpack.c.h.b16 %v523
      %v1344 = vunpack.c.l.b16 %v524
      %v1345 = vunpack.c.h.b16 %v524
      %v1346 = vunpack.c.l.b16 %v525
      %v1347 = vunpack.c.h.b16 %v525
      %v1348 = vunpack.c.l.b16 %v526
      %v1349 = vunpack.c.h.b16 %v526
      %v1350 = vunpack.c.l.b16 %v527
      %v1351 = vunpack.c.h.b16 %v527
      %v1352 = vunpack.c.l.b16 %v528
      %v1353 = vunpack.c.h.b16 %v528
      %v1354 = vunpack.c.l.b16 %v529
      %v1355 = vunpack.c.h.b16 %v529
      %v1356 = vunpack.c.l.b16 %v530
      %v1357 = vunpack.c.h.b16 %v530
      %v1358 = vunpack.c.l.b16 %v531
      %v1359 = vunpack.c.h.b16 %v531
      %v1360 = vunpack.c.l.b16 %v532
      %v1361 = vunpack.c.h.b16 %v532
      %v1362 = vunpack.c.l.b16 %v533
      %v1363 = vunpack.c.h.b16 %v533
      %v1364 = vunpack.c.l.b16 %v534
      %v1365 = vunpack.c.h.b16 %v534
      %v1366 = vunpack.c.l.b16 %v535
      %v1367 = vunpack.c.h.b16 %v535
      %v1368 = vunpack.c.l.b16 %v536
      %v1369 = vunpack.c.h.b16 %v536
      %v1370 = vunpack.c.l.b16 %v537
      %v1371 = vunpack.c.h.b16 %v537
      %v1372 = vunpack.c.l.b16 %v538
      %v1373 = vunpack.c.h.b16 %v538
      %v1374 = vunpack.c.l.b16 %v539
      %v1375 = vunpack.c.h.b16 %v539
      %v1376 = vunpack.c.l.b16 %v540
      %v1377 = vunpack.c.h.b16 %v540
      %v1378 = vunpack.c.l.b16 %v541
      %v1379 = vunpack.c.h.b16 %v541
      %v1380 = vunpack.c.l.b16 %v542
      %v1381 = vunpack.c.h.b16 %v542
      %v1382 = vunpack.c.l.b16 %v543
      %v1383 = vunpack.c.h.b16 %v543
      %v1384 = vunpack.c.l.b16 %v544
      %v1385 = vunpack.c.h.b16 %v544
      %v1386 = vunpack.c.l.b16 %v545
      %v1387 = vunpack.c.h.b16 %v545
      %v1388 = vunpack.c.l.b16 %v546
      %v1389 = vunpack.c.h.b16 %v546
      %v1390 = vunpack.c.l.b16 %v547
      %v1391 = vunpack.c.h.b16 %v547
      %v1392 = vunpack.c.l.b16 %v548
      %v1393 = vunpack.c.h.b16 %v548
      %v1394 = vunpack.c.l.b16 %v549
      %v1395 = vunpack.c.h.b16 %v549
      %v1396 = vunpack.c.l.b16 %v550
      %v1397 = vunpack.c.h.b16 %v550
      %v1398 = vunpack.c.l.b16 %v551
      %v1399 = vunpack.c.h.b16 %v551
      %v1400 = vunpack.c.l.b16 %v552
      %v1401 = vunpack.c.h.b16 %v552
      %v1402 = vunpack.c.l.b16 %v553
      %v1403 = vunpack.c.h.b16 %v553
      %v1404 = vunpack.c.l.b16 %v554
      %v1405 = vunpack.c.h.b16 %v554
      %v1406 = vunpack.c.l.b16 %v555
      %v1407 = vunpack.c.h.b16 %v555
      %v1408 = vunpack.c.l.b16 %v556
      %v1409 = vunpack.c.h.b16 %v556
      %v1410 = vunpack.c.l.b16 %v557
      %v1411 = vunpack.c.h.b16 %v557
      %v1412 = vunpack.c.l.b16 %v558
      %v1413 = vunpack.c.h.b16 %v558
      %v1414 = vunpack.c.l.b16 %v559
      %v1415 = vunpack.c.h.b16 %v559
      %v1416 = vunpack.c.l.b16 %v560
      %v1417 = vunpack.c.h.b16 %v560
      %v1418 = vunpack.c.l.b16 %v561
      %v1419 = vunpack.c.h.b16 %v561
      %v1420 = vunpack.c.l.b16 %v562
      %v1421 = vunpack.c.h.b16 %v562
      %v1422 = vunpack.c.l.b16 %v563
      %v1423 = vunpack.c.h.b16 %v563
      %v1424 = vunpack.c.l.b16 %v564
      %v1425 = vunpack.c.h.b16 %v564
      %v1426 = vunpack.c.l.b16 %v565
      %v1427 = vunpack.c.h.b16 %v565
      %v1428 = vunpack.c.l.b16 %v566
      %v1429 = vunpack.c.h.b16 %v566
      %v1430 = vunpack.c.l.b16 %v567
      %v1431 = vunpack.c.h.b16 %v567
      %v1432 = vunpack.c.l.b16 %v568
      %v1433 = vunpack.c.h.b16 %v568
      %v1434 = vunpack.c.l.b16 %v569
      %v1435 = vunpack.c.h.b16 %v569
      %v1436 = vunpack.c.l.b16 %v570
      %v1437 = vunpack.c.h.b16 %v570
      %v1438 = vunpack.c.l.b16 %v571
      %v1439 = vunpack.c.h.b16 %v571
      %v1440 = vunpack.c.l.b16 %v572
      %v1441 = vunpack.c.h.b16 %v572
      %v1442 = vunpack.c.l.b16 %v573
      %v1443 = vunpack.c.h.b16 %v573
      %v1444 = vunpack.c.l.b16 %v574
      %v1445 = vunpack.c.h.b16 %v574
      %v1446 = vunpack.c.l.b16 %v575
      %v1447 = vunpack.c.h.b16 %v575
      %v1448 = vunpack.c.l.b16 %v576
      %v1449 = vunpack.c.h.b16 %v576
      %v1450 = vunpack.c.l.b16 %v577
      %v1451 = vunpack.c.h.b16 %v577
      %v1452 = vunpack.c.l.b16 %v578
      %v1453 = vunpack.c.h.b16 %v578
      %v1454 = vunpack.c.l.b16 %v579
      %v1455 = vunpack.c.h.b16 %v579
      %v1456 = vunpack.c.l.b16 %v580
      %v1457 = vunpack.c.h.b16 %v580
      %v1458 = vunpack.c.l.b16 %v581
      %v1459 = vunpack.c.h.b16 %v581
      %v1460 = vunpack.c.l.b16 %v582
      %v1461 = vunpack.c.h.b16 %v582
      %v1462 = vunpack.c.l.b16 %v583
      %v1463 = vunpack.c.h.b16 %v583
      %v1464 = vunpack.c.l.b16 %v584
      %v1465 = vunpack.c.h.b16 %v584
      %v1466 = vunpack.c.l.b16 %v585
      %v1467 = vunpack.c.h.b16 %v585
      %v1468 = vunpack.c.l.b16 %v586
      %v1469 = vunpack.c.h.b16 %v586
      %v1470 = vunpack.c.l.b16 %v587
      %v1471 = vunpack.c.h.b16 %v587
      %v1472 = vunpack.c.l.b16 %v588
      %v1473 = vunpack.c.h.b16 %v588
      %v1474 = vunpack.c.l.b16 %v589
      %v1475 = vunpack.c.h.b16 %v589
      %v1476 = vunpack.c.l.b16 %v590
      %v1477 = vunpack.c.h.b16 %v590
      %v1478 = vunpack.c.l.b16 %v591
      %v1479 = vunpack.c.h.b16 %v591
      %v1480 = vunpack.c.l.b16 %v592
      %v1481 = vunpack.c.h.b16 %v592
      %v1482 = vunpack.c.l.b16 %v593
      %v1483 = vunpack.c.h.b16 %v593
      %v1484 = vunpack.c.l.b16 %v594
      %v1485 = vunpack.c.h.b16 %v594
      %v1486 = vunpack.c.l.b16 %v595
      %v1487 = vunpack.c.h.b16 %v595
      %v1488 = vunpack.c.l.b16 %v596
      %v1489 = vunpack.c.h.b16 %v596
      %v1490 = vunpack.c.l.b16 %v597
      %v1491 = vunpack.c.h.b16 %v597
      %v1492 = vunpack.c.l.b16 %v598
      %v1493 = vunpack.c.h.b16 %v598
      %v1494 = vunpack.c.l.b16 %v599
      %v1495 = vunpack.c.h.b16 %v599
      %v1496 = vpack.c.b16 %v992, %v984
      %v1497 = vpack.c.b16 %v993, %v985
      %v1498 = vpack.c.b16 %v994, %v986
      %v1499 = vpack.c.b16 %v995, %v987
      %v1500 = vpack.c.b16 %v996, %v988
      %v1501 = vpack.c.b16 %v997, %v989
      %v1502 = vpack.c.b16 %v998, %v990
      %v1503 = vpack.c.b16 %v999, %v991
      %v1504 = vpack.c.b16 %v1008, %v1000
      %v1505 = vpack.c.b16 %v1009, %v1001
      %v1506 = vpack.c.b16 %v1010, %v1002
      %v1507 = vpack.c.b16 %v1011, %v1003
      %v1508 = vpack.c.b16 %v1012, %v1004
      %v1509 = vpack.c.b16 %v1013, %v1005
      %v1510 = vpack.c.b16 %v1014, %v1006
      %v1511 = vpack.c.b16 %v1015, %v1007
      %v1512 = vpack.c.b16 %v1024, %v1016
      %v1513 = vpack.c.b16 %v1025, %v1017
      %v1514 = vpack.c.b16 %v1026, %v1018
      %v1515 = vpack.c.b16 %v1027, %v1019
      %v1516 = vpack.c.b16 %v1028, %v1020
      %v1517 = vpack.c.b16 %v1029, %v1021
      %v1518 = vpack.c.b16 %v1030, %v1022
      %v1519 = vpack.c.b16 %v1031, %v1023
      %v1520 = vpack.c.b16 %v1040, %v1032
      %v1521 = vpack.c.b16 %v1041, %v1033
      %v1522 = vpack.c.b16 %v1042, %v1034
      %v1523 = vpack.c.b16 %v1043, %v1035
      %v1524 = vpack.c.b16 %v1044, %v1036
      %v1525 = vpack.c.b16 %v1045, %v1037
      %v1526 = vpack.c.b16 %v1046, %v1038
      %v1527 = vpack.c.b16 %v1047, %v1039
      %v1528 = vpack.c.b16 %v1056, %v1048
      %v1529 = vpack.c.b16 %v1057, %v1049
      %v1530 = vpack.c.b16 %v1058, %v1050
      %v1531 = vpack.c.b16 %v1059, %v1051
      %v1532 = vpack.c.b16 %v1060, %v1052
      %v1533 = vpack.c.b16 %v1061, %v1053
      %v1534 = vpack.c.b16 %v1062, %v1054
      %v1535 = vpack.c.b16 %v1063, %v1055
      %v1536 = vpack.c.b16 %v1072, %v1064
      %v1537 = vpack.c.b16 %v1073, %v1065
      %v1538 = vpack.c.b16 %v1074, %v1066
      %v1539 = vpack.c.b16 %v1075, %v1067
      %v1540 = vpack.c.b16 %v1076, %v1068
      %v1541 = vpack.c.b16 %v1077, %v1069
      %v1542 = vpack.c.b16 %v1078, %v1070
      %v1543 = vpack.c.b16 %v1079, %v1071
      %v1544 = vpack.c.b16 %v1088, %v1080
      %v1545 = vpack.c.b16 %v1089, %v1081
      %v1546 = vpack.c.b16 %v1090, %v1082
      %v1547 = vpack.c.b16 %v1091, %v1083
      %v1548 = vpack.c.b16 %v1092, %v1084
      %v1549 = vpack.c.b16 %v1093, %v1085
      %v1550 = vpack.c.b16 %v1094, %v1086
      %v1551 = vpack.c.b16 %v1095, %v1087
      %v1552 = vpack.c.b16 %v1104, %v1096
      %v1553 = vpack.c.b16 %v1105, %v1097
      %v1554 = vpack.c.b16 %v1106, %v1098
      %v1555 = vpack.c.b16 %v1107, %v1099
      %v1556 = vpack.c.b16 %v1108, %v1100
      %v1557 = vpack.c.b16 %v1109, %v1101
      %v1558 = vpack.c.b16 %v1110, %v1102
      %v1559 = vpack.c.b16 %v1111, %v1103
      %v1560 = vpack.c.b16 %v1120, %v1112
      %v1561 = vpack.c.b16 %v1121, %v1113
      %v1562 = vpack.c.b16 %v1122, %v1114
      %v1563 = vpack.c.b16 %v1123, %v1115
      %v1564 = vpack.c.b16 %v1124, %v1116
      %v1565 = vpack.c.b16 %v1125, %v1117
      %v1566 = vpack.c.b16 %v1126, %v1118
      %v1567 = vpack.c.b16 %v1127, %v1119
      %v1568 = vpack.c.b16 %v1136, %v1128
      %v1569 = vpack.c.b16 %v1137, %v1129
      %v1570 = vpack.c.b16 %v1138, %v1130
      %v1571 = vpack.c.b16 %v1139, %v1131
      %v1572 = vpack.c.b16 %v1140, %v1132
      %v1573 = vpack.c.b16 %v1141, %v1133
      %v1574 = vpack.c.b16 %v1142, %v1134
      %v1575 = vpack.c.b16 %v1143, %v1135
      %v1576 = vpack.c.b16 %v1152, %v1144
      %v1577 = vpack.c.b16 %v1153, %v1145
      %v1578 = vpack.c.b16 %v1154, %v1146
      %v1579 = vpack.c.b16 %v1155, %v1147
      %v1580 = vpack.c.b16 %v1156, %v1148
      %v1581 = vpack.c.b16 %v1157, %v1149
      %v1582 = vpack.c.b16 %v1158, %v1150
      %v1583 = vpack.c.b16 %v1159, %v1151
      %v1584 = vpack.c.b16 %v1168, %v1160
      %v1585 = vpack.c.b16 %v1169, %v1161
      %v1586 = vpack.c.b16 %v1170, %v1162
      %v1587 = vpack.c.b16 %v1171, %v1163
      %v1588 = vpack.c.b16 %v1172, %v1164
      %v1589 = vpack.c.b16 %v1173, %v1165
      %v1590 = vpack.c.b16 %v1174, %v1166
      %v1591 = vpack.c.b16 %v1175, %v1167
      %v1592 = vpack.c.b16 %v1184, %v1176
      %v1593 = vpack.c.b16 %v1185, %v1177
      %v1594 = vpack.c.b16 %v1186, %v1178
      %v1595 = vpack.c.b16 %v1187, %v1179
      %v1596 = vpack.c.b16 %v1188, %v1180
      %v1597 = vpack.c.b16 %v1189, %v1181
      %v1598 = vpack.c.b16 %v1190, %v1182
      %v1599 = vpack.c.b16 %v1191, %v1183
      %v1600 = vpack.c.b16 %v1200, %v1192
      %v1601 = vpack.c.b16 %v1201, %v1193
      %v1602 = vpack.c.b16 %v1202, %v1194
      %v1603 = vpack.c.b16 %v1203, %v1195
      %v1604 = vpack.c.b16 %v1204, %v1196
      %v1605 = vpack.c.b16 %v1205, %v1197
      %v1606 = vpack.c.b16 %v1206, %v1198
      %v1607 = vpack.c.b16 %v1207, %v1199
      %v1608 = vpack.c.b16 %v1216, %v1208
      %v1609 = vpack.c.b16 %v1217, %v1209
      %v1610 = vpack.c.b16 %v1218, %v1210
      %v1611 = vpack.c.b16 %v1219, %v1211
      %v1612 = vpack.c.b16 %v1220, %v1212
      %v1613 = vpack.c.b16 %v1221, %v1213
      %v1614 = vpack.c.b16 %v1222, %v1214
      %v1615 = vpack.c.b16 %v1223, %v1215
      %v1616 = vpack.c.b16 %v1232, %v1224
      %v1617 = vpack.c.b16 %v1233, %v1225
      %v1618 = vpack.c.b16 %v1234, %v1226
      %v1619 = vpack.c.b16 %v1235, %v1227
      %v1620 = vpack.c.b16 %v1236, %v1228
      %v1621 = vpack.c.b16 %v1237, %v1229
      %v1622 = vpack.c.b16 %v1238, %v1230
      %v1623 = vpack.c.b16 %v1239, %v1231
      %v1624 = vpack.c.b16 %v1248, %v1240
      %v1625 = vpack.c.b16 %v1249, %v1241
      %v1626 = vpack.c.b16 %v1250, %v1242
      %v1627 = vpack.c.b16 %v1251, %v1243
      %v1628 = vpack.c.b16 %v1252, %v1244
      %v1629 = vpack.c.b16 %v1253, %v1245
      %v1630 = vpack.c.b16 %v1254, %v1246
      %v1631 = vpack.c.b16 %v1255, %v1247
      %v1632 = vpack.c.b16 %v1264, %v1256
      %v1633 = vpack.c.b16 %v1265, %v1257
      %v1634 = vpack.c.b16 %v1266, %v1258
      %v1635 = vpack.c.b16 %v1267, %v1259
      %v1636 = vpack.c.b16 %v1268, %v1260
      %v1637 = vpack.c.b16 %v1269, %v1261
      %v1638 = vpack.c.b16 %v1270, %v1262
      %v1639 = vpack.c.b16 %v1271, %v1263
      %v1640 = vpack.c.b16 %v1280, %v1272
      %v1641 = vpack.c.b16 %v1281, %v1273
      %v1642 = vpack.c.b16 %v1282, %v1274
      %v1643 = vpack.c.b16 %v1283, %v1275
      %v1644 = vpack.c.b16 %v1284, %v1276
      %v1645 = vpack.c.b16 %v1285, %v1277
      %v1646 = vpack.c.b16 %v1286, %v1278
      %v1647 = vpack.c.b16 %v1287, %v1279
      %v1648 = vpack.c.b16 %v1296, %v1288
      %v1649 = vpack.c.b16 %v1297, %v1289
      %v1650 = vpack.c.b16 %v1298, %v1290
      %v1651 = vpack.c.b16 %v1299, %v1291
      %v1652 = vpack.c.b16 %v1300, %v1292
      %v1653 = vpack.c.b16 %v1301, %v1293
      %v1654 = vpack.c.b16 %v1302, %v1294
      %v1655 = vpack.c.b16 %v1303, %v1295
      %v1656 = vpack.c.b16 %v1312, %v1304
      %v1657 = vpack.c.b16 %v1313, %v1305
      %v1658 = vpack.c.b16 %v1314, %v1306
      %v1659 = vpack.c.b16 %v1315, %v1307
      %v1660 = vpack.c.b16 %v1316, %v1308
      %v1661 = vpack.c.b16 %v1317, %v1309
      %v1662 = vpack.c.b16 %v1318, %v1310
      %v1663 = vpack.c.b16 %v1319, %v1311
      %v1664 = vpack.c.b16 %v1328, %v1320
      %v1665 = vpack.c.b16 %v1329, %v1321
      %v1666 = vpack.c.b16 %v1330, %v1322
      %v1667 = vpack.c.b16 %v1331, %v1323
      %v1668 = vpack.c.b16 %v1332, %v1324
      %v1669 = vpack.c.b16 %v1333, %v1325
      %v1670 = vpack.c.b16 %v1334, %v1326
      %v1671 = vpack.c.b16 %v1335, %v1327
      %v1672 = vpack.c.b16 %v1344, %v1336
      %v1673 = vpack.c.b16 %v1345, %v1337
      %v1674 = vpack.c.b16 %v1346, %v1338
      %v1675 = vpack.c.b16 %v1347, %v1339
      %v1676 = vpack.c.b16 %v1348, %v1340
      %v1677 = vpack.c.b16 %v1349, %v1341
      %v1678 = vpack.c.b16 %v1350, %v1342
      %v1679 = vpack.c.b16 %v1351, %v1343
      %v1680 = vpack.c.b16 %v1360, %v1352
      %v1681 = vpack.c.b16 %v1361, %v1353
      %v1682 = vpack.c.b16 %v1362, %v1354
      %v1683 = vpack.c.b16 %v1363, %v1355
      %v1684 = vpack.c.b16 %v1364, %v1356
      %v1685 = vpack.c.b16 %v1365, %v1357
      %v1686 = vpack.c.b16 %v1366, %v1358
      %v1687 = vpack.c.b16 %v1367, %v1359
      %v1688 = vpack.c.b16 %v1376, %v1368
      %v1689 = vpack.c.b16 %v1377, %v1369
      %v1690 = vpack.c.b16 %v1378, %v1370
      %v1691 = vpack.c.b16 %v1379, %v1371
      %v1692 = vpack.c.b16 %v1380, %v1372
      %v1693 = vpack.c.b16 %v1381, %v1373
      %v1694 = vpack.c.b16 %v1382, %v1374
      %v1695 = vpack.c.b16 %v1383, %v1375
      %v1696 = vpack.c.b16 %v1392, %v1384
      %v1697 = vpack.c.b16 %v1393, %v1385
      %v1698 = vpack.c.b16 %v1394, %v1386
      %v1699 = vpack.c.b16 %v1395, %v1387
      %v1700 = vpack.c.b16 %v1396, %v1388
      %v1701 = vpack.c.b16 %v1397, %v1389
      %v1702 = vpack.c.b16 %v1398, %v1390
      %v1703 = vpack.c.b16 %v1399, %v1391
      %v1704 = vpack.c.b16 %v1408, %v1400
      %v1705 = vpack.c.b16 %v1409, %v1401
      %v1706 = vpack.c.b16 %v1410, %v1402
      %v1707 = vpack.c.b16 %v1411, %v1403
      %v1708 = vpack.c.b16 %v1412, %v1404
      %v1709 = vpack.c.b16 %v1413, %v1405
      %v1710 = vpack.c.b16 %v1414, %v1406
      %v1711 = vpack.c.b16 %v1415, %v1407
      %v1712 = vpack.c.b16 %v1424, %v1416
      %v1713 = vpack.c.b16 %v1425, %v1417
      %v1714 = vpack.c.b16 %v1426, %v1418
      %v1715 = vpack.c.b16 %v1427, %v1419
      %v1716 = vpack.c.b16 %v1428, %v1420
      %v1717 = vpack.c.b16 %v1429, %v1421
      %v1718 = vpack.c.b16 %v1430, %v1422
      %v1719 = vpack.c.b16 %v1431, %v1423
      %v1720 = vpack.c.b16 %v1440, %v1432
      %v1721 = vpack.c.b16 %v1441, %v1433
      %v1722 = vpack.c.b16 %v1442, %v1434
      %v1723 = vpack.c.b16 %v1443, %v1435
      %v1724 = vpack.c.b16 %v1444, %v1436
      %v1725 = vpack.c.b16 %v1445, %v1437
      %v1726 = vpack.c.b16 %v1446, %v1438
      %v1727 = vpack.c.b16 %v1447, %v1439
      %v1728 = vpack.c.b16 %v1456, %v1448
      %v1729 = vpack.c.b16 %v1457, %v1449
      %v1730 = vpack.c.b16 %v1458, %v1450
      %v1731 = vpack.c.b16 %v1459, %v1451
      %v1732 = vpack.c.b16 %v1460, %v1452
      %v1733 = vpack.c.b16 %v1461, %v1453
      %v1734 = vpack.c.b16 %v1462, %v1454
      %v1735 = vpack.c.b16 %v1463, %v1455
      %v1736 = vpack.c.b16 %v1472, %v1464
      %v1737 = vpack.c.b16 %v1473, %v1465
      %v1738 = vpack.c.b16 %v1474, %v1466
      %v1739 = vpack.c.b16 %v1475, %v1467
      %v1740 = vpack.c.b16 %v1476, %v1468
      %v1741 = vpack.c.b16 %v1477, %v1469
      %v1742 = vpack.c.b16 %v1478, %v1470
      %v1743 = vpack.c.b16 %v1479, %v1471
      %v1744 = vpack.c.b16 %v1488, %v1480
      %v1745 = vpack.c.b16 %v1489, %v1481
      %v1746 = vpack.c.b16 %v1490, %v1482
      %v1747 = vpack.c.b16 %v1491, %v1483
      %v1748 = vpack.c.b16 %v1492, %v1484
      %v1749 = vpack.c.b16 %v1493, %v1485
      %v1750 = vpack.c.b16 %v1494, %v1486
      %v1751 = vpack.c.b16 %v1495, %v1487
      %v2136 = vunpack.c.l.b16 %v600
      %v2137 = vunpack.c.l.b16 %v601
      %v2138 = vunpack.c.l.b16 %v602
      %v2139 = vunpack.c.l.b16 %v603
      %v2140 = vunpack.c.l.b16 %v604
      %v2141 = vunpack.c.l.b16 %v605
      %v2142 = vunpack.c.l.b16 %v606
      %v2143 = vunpack.c.l.b16 %v607
      %v2144 = vunpack.c.l.b16 %v608
      %v2145 = vunpack.c.l.b16 %v609
      %v2146 = vunpack.c.l.b16 %v610
      %v2147 = vunpack.c.l.b16 %v611
      %v2148 = vunpack.c.l.b16 %v612
      %v2149 = vunpack.c.l.b16 %v613
      %v2150 = vunpack.c.l.b16 %v614
      %v2151 = vunpack.c.l.b16 %v615
      %v2152 = vunpack.c.l.b16 %v616
      %v2153 = vunpack.c.l.b16 %v617
      %v2154 = vunpack.c.l.b16 %v618
      %v2155 = vunpack.c.l.b16 %v619
      %v2156 = vunpack.c.l.b16 %v620
      %v2157 = vunpack.c.l.b16 %v621
      %v2158 = vunpack.c.l.b16 %v622
      %v2159 = vunpack.c.l.b16 %v623
      %v2160 = vunpack.c.l.b16 %v624
      %v2161 = vunpack.c.l.b16 %v625
      %v2162 = vunpack.c.l.b16 %v626
      %v2163 = vunpack.c.l.b16 %v627
      %v2164 = vunpack.c.l.b16 %v628
      %v2165 = vunpack.c.l.b16 %v629
      %v2166 = vunpack.c.l.b16 %v630
      %v2167 = vunpack.c.l.b16 %v631
      %v2168 = vunpack.c.l.b16 %v632
      %v2169 = vunpack.c.l.b16 %v633
      %v2170 = vunpack.c.l.b16 %v634
      %v2171 = vunpack.c.l.b16 %v635
      %v2172 = vunpack.c.l.b16 %v636
      %v2173 = vunpack.c.l.b16 %v637
      %v2174 = vunpack.c.l.b16 %v638
      %v2175 = vunpack.c.l.b16 %v639
      %v2176 = vunpack.c.l.b16 %v640
      %v2177 = vunpack.c.l.b16 %v641
      %v2178 = vunpack.c.l.b16 %v642
      %v2179 = vunpack.c.l.b16 %v643
      %v2180 = vunpack.c.l.b16 %v644
      %v2181 = vunpack.c.l.b16 %v645
      %v2182 = vunpack.c.l.b16 %v646
      %v2183 = vunpack.c.l.b16 %v647
      %v2184 = vunpack.c.l.b16 %v648
      %v2185 = vunpack.c.l.b16 %v649
      %v2186 = vunpack.c.l.b16 %v650
      %v2187 = vunpack.c.l.b16 %v651
      %v2188 = vunpack.c.l.b16 %v652
      %v2189 = vunpack.c.l.b16 %v653
      %v2190 = vunpack.c.l.b16 %v654
      %v2191 = vunpack.c.l.b16 %v655
      %v2192 = vunpack.c.l.b16 %v656
      %v2193 = vunpack.c.l.b16 %v657
      %v2194 = vunpack.c.l.b16 %v658
      %v2195 = vunpack.c.l.b16 %v659
      %v2196 = vunpack.c.l.b16 %v660
      %v2197 = vunpack.c.l.b16 %v661
      %v2198 = vunpack.c.l.b16 %v662
      %v2199 = vunpack.c.l.b16 %v663
      %v2200 = vunpack.c.l.b16 %v664
      %v2201 = vunpack.c.l.b16 %v665
      %v2202 = vunpack.c.l.b16 %v666
      %v2203 = vunpack.c.l.b16 %v667
      %v2204 = vunpack.c.l.b16 %v668
      %v2205 = vunpack.c.l.b16 %v669
      %v2206 = vunpack.c.l.b16 %v670
      %v2207 = vunpack.c.l.b16 %v671
      %v2208 = vunpack.c.l.b16 %v672
      %v2209 = vunpack.c.l.b16 %v673
      %v2210 = vunpack.c.l.b16 %v674
      %v2211 = vunpack.c.l.b16 %v675
      %v2212 = vunpack.c.l.b16 %v676
      %v2213 = vunpack.c.l.b16 %v677
      %v2214 = vunpack.c.l.b16 %v678
      %v2215 = vunpack.c.l.b16 %v679
      %v2216 = vunpack.c.l.b16 %v680
      %v2217 = vunpack.c.l.b16 %v681
      %v2218 = vunpack.c.l.b16 %v682
      %v2219 = vunpack.c.l.b16 %v683
      %v2220 = vunpack.c.l.b16 %v684
      %v2221 = vunpack.c.l.b16 %v685
      %v2222 = vunpack.c.l.b16 %v686
      %v2223 = vunpack.c.l.b16 %v687
      %v2224 = vunpack.c.l.b16 %v688
      %v2225 = vunpack.c.l.b16 %v689
      %v2226 = vunpack.c.l.b16 %v690
      %v2227 = vunpack.c.l.b16 %v691
      %v2228 = vunpack.c.l.b16 %v692
      %v2229 = vunpack.c.l.b16 %v693
      %v2230 = vunpack.c.l.b16 %v694
      %v2231 = vunpack.c.l.b16 %v695
      %v2232 = vunpack.c.l.b16 %v696
      %v2233 = vunpack.c.l.b16 %v697
      %v2234 = vunpack.c.l.b16 %v698
      %v2235 = vunpack.c.l.b16 %v699
      %v2236 = vunpack.c.l.b16 %v700
      %v2237 = vunpack.c.l.b16 %v701
      %v2238 = vunpack.c.l.b16 %v702
      %v2239 = vunpack.c.l.b16 %v703
      %v2240 = vunpack.c.l.b16 %v704
      %v2241 = vunpack.c.l.b16 %v705
      %v2242 = vunpack.c.l.b16 %v706
      %v2243 = vunpack.c.l.b16 %v707
      %v2244 = vunpack.c.l.b16 %v708
      %v2245 = vunpack.c.l.b16 %v709
      %v2246 = vunpack.c.l.b16 %v710
      %v2247 = vunpack.c.l.b16 %v711
      %v2248 = vunpack.c.l.b16 %v712
      %v2249 = vunpack.c.l.b16 %v713
      %v2250 = vunpack.c.l.b16 %v714
      %v2251 = vunpack.c.l.b16 %v715
      %v2252 = vunpack.c.l.b16 %v716
      %v2253 = vunpack.c.l.b16 %v717
      %v2254 = vunpack.c.l.b16 %v718
      %v2255 = vunpack.c.l.b16 %v719
      %v2256 = vunpack.c.l.b16 %v720
      %v2257 = vunpack.c.l.b16 %v721
      %v2258 = vunpack.c.l.b16 %v722
      %v2259 = vunpack.c.l.b16 %v723
      %v2260 = vunpack.c.l.b16 %v724
      %v2261 = vunpack.c.l.b16 %v725
      %v2262 = vunpack.c.l.b16 %v726
      %v2263 = vunpack.c.l.b16 %v727
      %v2264 = vpack.c.b16 %v2137, %v2136
      %v2265 = vpack.c.b16 %v2139, %v2138
      %v2266 = vpack.c.b16 %v2141, %v2140
      %v2267 = vpack.c.b16 %v2143, %v2142
      %v2268 = vpack.c.b16 %v2145, %v2144
      %v2269 = vpack.c.b16 %v2147, %v2146
      %v2270 = vpack.c.b16 %v2149, %v2148
      %v2271 = vpack.c.b16 %v2151, %v2150
      %v2272 = vpack.c.b16 %v2153, %v2152
      %v2273 = vpack.c.b16 %v2155, %v2154
      %v2274 = vpack.c.b16 %v2157, %v2156
      %v2275 = vpack.c.b16 %v2159, %v2158
      %v2276 = vpack.c.b16 %v2161, %v2160
      %v2277 = vpack.c.b16 %v2163, %v2162
      %v2278 = vpack.c.b16 %v2165, %v2164
      %v2279 = vpack.c.b16 %v2167, %v2166
      %v2280 = vpack.c.b16 %v2169, %v2168
      %v2281 = vpack.c.b16 %v2171, %v2170
      %v2282 = vpack.c.b16 %v2173, %v2172
      %v2283 = vpack.c.b16 %v2175, %v2174
      %v2284 = vpack.c.b16 %v2177, %v2176
      %v2285 = vpack.c.b16 %v2179, %v2178
      %v2286 = vpack.c.b16 %v2181, %v2180
      %v2287 = vpack.c.b16 %v2183, %v2182
      %v2288 = vpack.c.b16 %v2185, %v2184
      %v2289 = vpack.c.b16 %v2187, %v2186
      %v2290 = vpack.c.b16 %v2189, %v2188
      %v2291 = vpack.c.b16 %v2191, %v2190
      %v2292 = vpack.c.b16 %v2193, %v2192
      %v2293 = vpack.c.b16 %v2195, %v2194
      %v2294 = vpack.c.b16 %v2197, %v2196
      %v2295 = vpack.c.b16 %v2199, %v2198
      %v2296 = vpack.c.b16 %v2201, %v2200
      %v2297 = vpack.c.b16 %v2203, %v2202
      %v2298 = vpack.c.b16 %v2205, %v2204
      %v2299 = vpack.c.b16 %v2207, %v2206
      %v2300 = vpack.c.b16 %v2209, %v2208
      %v2301 = vpack.c.b16 %v2211, %v2210
      %v2302 = vpack.c.b16 %v2213, %v2212
      %v2303 = vpack.c.b16 %v2215, %v2214
      %v2304 = vpack.c.b16 %v2217, %v2216
      %v2305 = vpack.c.b16 %v2219, %v2218
      %v2306 = vpack.c.b16 %v2221, %v2220
      %v2307 = vpack.c.b16 %v2223, %v2222
      %v2308 = vpack.c.b16 %v2225, %v2224
      %v2309 = vpack.c.b16 %v2227, %v2226
      %v2310 = vpack.c.b16 %v2229, %v2228
      %v2311 = vpack.c.b16 %v2231, %v2230
      %v2312 = vpack.c.b16 %v2233, %v2232
      %v2313 = vpack.c.b16 %v2235, %v2234
      %v2314 = vpack.c.b16 %v2237, %v2236
      %v2315 = vpack.c.b16 %v2239, %v2238
      %v2316 = vpack.c.b16 %v2241, %v2240
      %v2317 = vpack.c.b16 %v2243, %v2242
      %v2318 = vpack.c.b16 %v2245, %v2244
      %v2319 = vpack.c.b16 %v2247, %v2246
      %v2320 = vpack.c.b16 %v2249, %v2248
      %v2321 = vpack.c.b16 %v2251, %v2250
      %v2322 = vpack.c.b16 %v2253, %v2252
      %v2323 = vpack.c.b16 %v2255, %v2254
      %v2324 = vpack.c.b16 %v2257, %v2256
      %v2325 = vpack.c.b16 %v2259, %v2258
      %v2326 = vpack.c.b16 %v2261, %v2260
      %v2327 = vpack.c.b16 %v2263, %v2262
      %2392 = vmatprep.subr.bf16.mxu0 0
      %2393 = vmatpush1.bf16.msra.mxu0 %v2264
      %2394 = vmatprep.subr.bf16.mxu0 0
      %2395 = vmatpush1.bf16.msra.mxu0 %v2265
      %2396 = vmatprep.subr.bf16.mxu0 0
      %2397 = vmatpush1.bf16.msra.mxu0 %v2266
      %2398 = vmatprep.subr.bf16.mxu0 0
      %2399 = vmatpush1.bf16.msra.mxu0 %v2267
      %2400 = vmatprep.subr.bf16.mxu0 0
      %2401 = vmatpush1.bf16.msra.mxu0 %v2268
      %2402 = vmatprep.subr.bf16.mxu0 0
      %2403 = vmatpush1.bf16.msra.mxu0 %v2269
      %2404 = vmatprep.subr.bf16.mxu0 0
      %2405 = vmatpush1.bf16.msra.mxu0 %v2270
      %2406 = vmatprep.subr.bf16.mxu0 0
      %2407 = vmatpush1.bf16.msra.mxu0 %v2271
      %2408 = vmatprep.subr.bf16.mxu0 0
      %2409 = vmatpush1.bf16.msra.mxu0 %v2272
      %2410 = vmatprep.subr.bf16.mxu0 0
      %2411 = vmatpush1.bf16.msra.mxu0 %v2273
      %2412 = vmatprep.subr.bf16.mxu0 0
      %2413 = vmatpush1.bf16.msra.mxu0 %v2274
      %2414 = vmatprep.subr.bf16.mxu0 0
      %2415 = vmatpush1.bf16.msra.mxu0 %v2275
      %2416 = vmatprep.subr.bf16.mxu0 0
      %2417 = vmatpush1.bf16.msra.mxu0 %v2276
      %2418 = vmatprep.subr.bf16.mxu0 0
      %2419 = vmatpush1.bf16.msra.mxu0 %v2277
      %2420 = vmatprep.subr.bf16.mxu0 0
      %2421 = vmatpush1.bf16.msra.mxu0 %v2278
      %2422 = vmatprep.subr.bf16.mxu0 0
      %2423 = vmatpush1.bf16.msra.mxu0 %v2279
      %2424 = vmatprep.mubr.bf16.mxu0 %v1497
      %2425 = vmatmul.mubr.bf16.gmra.mrb[0].mxu0 %v1496
      %v2426 = vpop.f32.mrb[0].mxu0
      %v2427 = vadd.f32 0.0, %v2426
      %v2428 = vpop.f32.mrb[0].mxu0
      %v2429 = vpop.f32.mrb[0].mxu0
      %v2430 = vadd.f32 0.0, %v2429
      %v2431 = vpop.f32.mrb[0].mxu0
      %2432 = vmatprep.mubr.bf16.mxu0 %v1505
      %2433 = vmatmul.mubr.bf16.gmra.mrb[0].mxu0 %v1504
      %v2434 = vpop.f32.mrb[0].mxu0
      %v2435 = vadd.f32 0.0, %v2434
      %v2436 = vpop.f32.mrb[0].mxu0
      %v2437 = vpop.f32.mrb[0].mxu0
      %v2438 = vadd.f32 0.0, %v2437
      %v2439 = vpop.f32.mrb[0].mxu0
      %2440 = vmatprep.mubr.bf16.mxu0 %v1513
      %2441 = vmatmul.mubr.bf16.gmra.mrb[0].mxu0 %v1512
      %v2442 = vpop.f32.mrb[0].mxu0
      %v2443 = vadd.f32 0.0, %v2442
      %v2444 = vpop.f32.mrb[0].mxu0
      %v2445 = vpop.f32.mrb[0].mxu0
      %v2446 = vadd.f32 0.0, %v2445
      %v2447 = vpop.f32.mrb[0].mxu0
      %2448 = vmatprep.mubr.bf16.mxu0 %v1521
      %2449 = vmatmul.mubr.bf16.gmra.mrb[0].mxu0 %v1520
      %v2450 = vpop.f32.mrb[0].mxu0
      %v2451 = vadd.f32 0.0, %v2450
      %v2452 = vpop.f32.mrb[0].mxu0
      %v2453 = vpop.f32.mrb[0].mxu0
      %v2454 = vadd.f32 0.0, %v2453
      %v2455 = vpop.f32.mrb[0].mxu0
      %2456 = vmatprep.mubr.bf16.mxu0 %v1529
      %2457 = vmatmul.mubr.bf16.gmra.mrb[0].mxu0 %v1528
      %v2458 = vpop.f32.mrb[0].mxu0
      %v2459 = vadd.f32 0.0, %v2458
      %v2460 = vpop.f32.mrb[0].mxu0
      %v2461 = vpop.f32.mrb[0].mxu0
      %v2462 = vadd.f32 0.0, %v2461
      %v2463 = vpop.f32.mrb[0].mxu0
      %2464 = vmatprep.mubr.bf16.mxu0 %v1537
      %2465 = vmatmul.mubr.bf16.gmra.mrb[0].mxu0 %v1536
      %v2466 = vpop.f32.mrb[0].mxu0
      %v2467 = vadd.f32 0.0, %v2466
      %v2468 = vpop.f32.mrb[0].mxu0
      %v2469 = vpop.f32.mrb[0].mxu0
      %v2470 = vadd.f32 0.0, %v2469
      %v2471 = vpop.f32.mrb[0].mxu0
      %2472 = vmatprep.mubr.bf16.mxu0 %v1545
      %2473 = vmatmul.mubr.bf16.gmra.mrb[0].mxu0 %v1544
      %v2474 = vpop.f32.mrb[0].mxu0
      %v2475 = vadd.f32 0.0, %v2474
      %v2476 = vpop.f32.mrb[0].mxu0
      %v2477 = vpop.f32.mrb[0].mxu0
      %v2478 = vadd.f32 0.0, %v2477
      %v2479 = vpop.f32.mrb[0].mxu0
      %2480 = vmatprep.mubr.bf16.mxu0 %v1553
      %2481 = vmatmul.mubr.bf16.gmra.mrb[0].mxu0 %v1552
      %v2482 = vpop.f32.mrb[0].mxu0
      %v2483 = vadd.f32 0.0, %v2482
      %v2484 = vpop.f32.mrb[0].mxu0
      %v2485 = vpop.f32.mrb[0].mxu0
      %v2486 = vadd.f32 0.0, %v2485
      %v2487 = vpop.f32.mrb[0].mxu0
      %2488 = vmatprep.mubr.bf16.mxu0 %v1561
      %2489 = vmatmul.mubr.bf16.gmra.mrb[0].mxu0 %v1560
      %v2490 = vpop.f32.mrb[0].mxu0
      %v2491 = vadd.f32 0.0, %v2490
      %v2492 = vpop.f32.mrb[0].mxu0
      %v2493 = vpop.f32.mrb[0].mxu0
      %v2494 = vadd.f32 0.0, %v2493
      %v2495 = vpop.f32.mrb[0].mxu0
      %2496 = vmatprep.mubr.bf16.mxu0 %v1569
      %2497 = vmatmul.mubr.bf16.gmra.mrb[0].mxu0 %v1568
      %v2498 = vpop.f32.mrb[0].mxu0
      %v2499 = vadd.f32 0.0, %v2498
      %v2500 = vpop.f32.mrb[0].mxu0
      %v2501 = vpop.f32.mrb[0].mxu0
      %v2502 = vadd.f32 0.0, %v2501
      %v2503 = vpop.f32.mrb[0].mxu0
      %2504 = vmatprep.mubr.bf16.mxu0 %v1577
      %2505 = vmatmul.mubr.bf16.gmra.mrb[0].mxu0 %v1576
      %v2506 = vpop.f32.mrb[0].mxu0
      %v2507 = vadd.f32 0.0, %v2506
      %v2508 = vpop.f32.mrb[0].mxu0
      %v2509 = vpop.f32.mrb[0].mxu0
      %v2510 = vadd.f32 0.0, %v2509
      %v2511 = vpop.f32.mrb[0].mxu0
      %2512 = vmatprep.mubr.bf16.mxu0 %v1585
      %2513 = vmatmul.mubr.bf16.gmra.mrb[0].mxu0 %v1584
      %v2514 = vpop.f32.mrb[0].mxu0
      %v2515 = vadd.f32 0.0, %v2514
      %v2516 = vpop.f32.mrb[0].mxu0
      %v2517 = vpop.f32.mrb[0].mxu0
      %v2518 = vadd.f32 0.0, %v2517
      %v2519 = vpop.f32.mrb[0].mxu0
      %2520 = vmatprep.mubr.bf16.mxu0 %v1593
      %2521 = vmatmul.mubr.bf16.gmra.mrb[0].mxu0 %v1592
      %v2522 = vpop.f32.mrb[0].mxu0
      %v2523 = vadd.f32 0.0, %v2522
      %v2524 = vpop.f32.mrb[0].mxu0
      %v2525 = vpop.f32.mrb[0].mxu0
      %v2526 = vadd.f32 0.0, %v2525
      %v2527 = vpop.f32.mrb[0].mxu0
      %2528 = vmatprep.mubr.bf16.mxu0 %v1601
      %2529 = vmatmul.mubr.bf16.gmra.mrb[0].mxu0 %v1600
      %v2530 = vpop.f32.mrb[0].mxu0
      %v2531 = vadd.f32 0.0, %v2530
      %v2532 = vpop.f32.mrb[0].mxu0
      %v2533 = vpop.f32.mrb[0].mxu0
      %v2534 = vadd.f32 0.0, %v2533
      %v2535 = vpop.f32.mrb[0].mxu0
      %2536 = vmatprep.mubr.bf16.mxu0 %v1609
      %2537 = vmatmul.mubr.bf16.gmra.mrb[0].mxu0 %v1608
      %v2538 = vpop.f32.mrb[0].mxu0
      %v2539 = vadd.f32 0.0, %v2538
      %v2540 = vpop.f32.mrb[0].mxu0
      %v2541 = vpop.f32.mrb[0].mxu0
      %v2542 = vadd.f32 0.0, %v2541
      %v2543 = vpop.f32.mrb[0].mxu0
      %2544 = vmatprep.mubr.bf16.mxu0 %v1617
      %2545 = vmatmul.mubr.bf16.gmra.mrb[0].mxu0 %v1616
      %v2546 = vpop.f32.mrb[0].mxu0
      %v2547 = vadd.f32 0.0, %v2546
      %v2548 = vpop.f32.mrb[0].mxu0
      %v2549 = vpop.f32.mrb[0].mxu0
      %v2550 = vadd.f32 0.0, %v2549
      %v2551 = vpop.f32.mrb[0].mxu0
      %2552 = vmatprep.mubr.bf16.mxu0 %v1625
      %2553 = vmatmul.mubr.bf16.gmra.mrb[0].mxu0 %v1624
      %v2554 = vpop.f32.mrb[0].mxu0
      %v2555 = vadd.f32 0.0, %v2554
      %v2556 = vpop.f32.mrb[0].mxu0
      %v2557 = vpop.f32.mrb[0].mxu0
      %v2558 = vadd.f32 0.0, %v2557
      %v2559 = vpop.f32.mrb[0].mxu0
      %2560 = vmatprep.mubr.bf16.mxu0 %v1633
      %2561 = vmatmul.mubr.bf16.gmra.mrb[0].mxu0 %v1632
      %v2562 = vpop.f32.mrb[0].mxu0
      %v2563 = vadd.f32 0.0, %v2562
      %v2564 = vpop.f32.mrb[0].mxu0
      %v2565 = vpop.f32.mrb[0].mxu0
      %v2566 = vadd.f32 0.0, %v2565
      %v2567 = vpop.f32.mrb[0].mxu0
      %2568 = vmatprep.mubr.bf16.mxu0 %v1641
      %2569 = vmatmul.mubr.bf16.gmra.mrb[0].mxu0 %v1640
      %v2570 = vpop.f32.mrb[0].mxu0
      %v2571 = vadd.f32 0.0, %v2570
      %v2572 = vpop.f32.mrb[0].mxu0
      %v2573 = vpop.f32.mrb[0].mxu0
      %v2574 = vadd.f32 0.0, %v2573
      %v2575 = vpop.f32.mrb[0].mxu0
      %2576 = vmatprep.mubr.bf16.mxu0 %v1649
      %2577 = vmatmul.mubr.bf16.gmra.mrb[0].mxu0 %v1648
      %v2578 = vpop.f32.mrb[0].mxu0
      %v2579 = vadd.f32 0.0, %v2578
      %v2580 = vpop.f32.mrb[0].mxu0
      %v2581 = vpop.f32.mrb[0].mxu0
      %v2582 = vadd.f32 0.0, %v2581
      %v2583 = vpop.f32.mrb[0].mxu0
      %2584 = vmatprep.mubr.bf16.mxu0 %v1657
      %2585 = vmatmul.mubr.bf16.gmra.mrb[0].mxu0 %v1656
      %v2586 = vpop.f32.mrb[0].mxu0
      %v2587 = vadd.f32 0.0, %v2586
      %v2588 = vpop.f32.mrb[0].mxu0
      %v2589 = vpop.f32.mrb[0].mxu0
      %v2590 = vadd.f32 0.0, %v2589
      %v2591 = vpop.f32.mrb[0].mxu0
      %2592 = vmatprep.mubr.bf16.mxu0 %v1665
      %2593 = vmatmul.mubr.bf16.gmra.mrb[0].mxu0 %v1664
      %v2594 = vpop.f32.mrb[0].mxu0
      %v2595 = vadd.f32 0.0, %v2594
      %v2596 = vpop.f32.mrb[0].mxu0
      %v2597 = vpop.f32.mrb[0].mxu0
      %v2598 = vadd.f32 0.0, %v2597
      %v2599 = vpop.f32.mrb[0].mxu0
      %2600 = vmatprep.mubr.bf16.mxu0 %v1673
      %2601 = vmatmul.mubr.bf16.gmra.mrb[0].mxu0 %v1672
      %v2602 = vpop.f32.mrb[0].mxu0
      %v2603 = vadd.f32 0.0, %v2602
      %v2604 = vpop.f32.mrb[0].mxu0
      %v2605 = vpop.f32.mrb[0].mxu0
      %v2606 = vadd.f32 0.0, %v2605
      %v2607 = vpop.f32.mrb[0].mxu0
      %2608 = vmatprep.mubr.bf16.mxu0 %v1681
      %2609 = vmatmul.mubr.bf16.gmra.mrb[0].mxu0 %v1680
      %v2610 = vpop.f32.mrb[0].mxu0
      %v2611 = vadd.f32 0.0, %v2610
      %v2612 = vpop.f32.mrb[0].mxu0
      %v2613 = vpop.f32.mrb[0].mxu0
      %v2614 = vadd.f32 0.0, %v2613
      %v2615 = vpop.f32.mrb[0].mxu0
      %2616 = vmatprep.mubr.bf16.mxu0 %v1689
      %2617 = vmatmul.mubr.bf16.gmra.mrb[0].mxu0 %v1688
      %v2618 = vpop.f32.mrb[0].mxu0
      %v2619 = vadd.f32 0.0, %v2618
      %v2620 = vpop.f32.mrb[0].mxu0
      %v2621 = vpop.f32.mrb[0].mxu0
      %v2622 = vadd.f32 0.0, %v2621
      %v2623 = vpop.f32.mrb[0].mxu0
      %2624 = vmatprep.mubr.bf16.mxu0 %v1697
      %2625 = vmatmul.mubr.bf16.gmra.mrb[0].mxu0 %v1696
      %v2626 = vpop.f32.mrb[0].mxu0
      %v2627 = vadd.f32 0.0, %v2626
      %v2628 = vpop.f32.mrb[0].mxu0
      %v2629 = vpop.f32.mrb[0].mxu0
      %v2630 = vadd.f32 0.0, %v2629
      %v2631 = vpop.f32.mrb[0].mxu0
      %2632 = vmatprep.mubr.bf16.mxu0 %v1705
      %2633 = vmatmul.mubr.bf16.gmra.mrb[0].mxu0 %v1704
      %v2634 = vpop.f32.mrb[0].mxu0
      %v2635 = vadd.f32 0.0, %v2634
      %v2636 = vpop.f32.mrb[0].mxu0
      %v2637 = vpop.f32.mrb[0].mxu0
      %v2638 = vadd.f32 0.0, %v2637
      %v2639 = vpop.f32.mrb[0].mxu0
      %2640 = vmatprep.mubr.bf16.mxu0 %v1713
      %2641 = vmatmul.mubr.bf16.gmra.mrb[0].mxu0 %v1712
      %v2642 = vpop.f32.mrb[0].mxu0
      %v2643 = vadd.f32 0.0, %v2642
      %v2644 = vpop.f32.mrb[0].mxu0
      %v2645 = vpop.f32.mrb[0].mxu0
      %v2646 = vadd.f32 0.0, %v2645
      %v2647 = vpop.f32.mrb[0].mxu0
      %2648 = vmatprep.mubr.bf16.mxu0 %v1721
      %2649 = vmatmul.mubr.bf16.gmra.mrb[0].mxu0 %v1720
      %v2650 = vpop.f32.mrb[0].mxu0
      %v2651 = vadd.f32 0.0, %v2650
      %v2652 = vpop.f32.mrb[0].mxu0
      %v2653 = vpop.f32.mrb[0].mxu0
      %v2654 = vadd.f32 0.0, %v2653
      %v2655 = vpop.f32.mrb[0].mxu0
      %2656 = vmatprep.mubr.bf16.mxu0 %v1729
      %2657 = vmatmul.mubr.bf16.gmra.mrb[0].mxu0 %v1728
      %v2658 = vpop.f32.mrb[0].mxu0
      %v2659 = vadd.f32 0.0, %v2658
      %v2660 = vpop.f32.mrb[0].mxu0
      %v2661 = vpop.f32.mrb[0].mxu0
      %v2662 = vadd.f32 0.0, %v2661
      %v2663 = vpop.f32.mrb[0].mxu0
      %2664 = vmatprep.mubr.bf16.mxu0 %v1737
      %2665 = vmatmul.mubr.bf16.gmra.mrb[0].mxu0 %v1736
      %v2666 = vpop.f32.mrb[0].mxu0
      %v2667 = vadd.f32 0.0, %v2666
      %v2668 = vpop.f32.mrb[0].mxu0
      %v2669 = vpop.f32.mrb[0].mxu0
      %v2670 = vadd.f32 0.0, %v2669
      %v2671 = vpop.f32.mrb[0].mxu0
      %2672 = vmatprep.mubr.bf16.mxu0 %v1745
      %2673 = vmatmul.mubr.bf16.gmra.mrb[0].mxu0 %v1744
      %v2674 = vpop.f32.mrb[0].mxu0
      %v2675 = vadd.f32 0.0, %v2674
      %v2676 = vpop.f32.mrb[0].mxu0
      %v2677 = vpop.f32.mrb[0].mxu0
      %v2678 = vadd.f32 0.0, %v2677
      %v2679 = vpop.f32.mrb[0].mxu0
      %2680 = vdwg.mxu0
      %2681 = vmatprep.subr.bf16.mxu0 0
      %2682 = vmatpush1.bf16.msra.mxu0 %v2280
      %2683 = vmatprep.subr.bf16.mxu0 0
      %2684 = vmatpush1.bf16.msra.mxu0 %v2281
      %2685 = vmatprep.subr.bf16.mxu0 0
      %2686 = vmatpush1.bf16.msra.mxu0 %v2282
      %2687 = vmatprep.subr.bf16.mxu0 0
      %2688 = vmatpush1.bf16.msra.mxu0 %v2283
      %2689 = vmatprep.subr.bf16.mxu0 0
      %2690 = vmatpush1.bf16.msra.mxu0 %v2284
      %2691 = vmatprep.subr.bf16.mxu0 0
      %2692 = vmatpush1.bf16.msra.mxu0 %v2285
      %2693 = vmatprep.subr.bf16.mxu0 0
      %2694 = vmatpush1.bf16.msra.mxu0 %v2286
      %2695 = vmatprep.subr.bf16.mxu0 0
      %2696 = vmatpush1.bf16.msra.mxu0 %v2287
      %2697 = vmatprep.subr.bf16.mxu0 0
      %2698 = vmatpush1.bf16.msra.mxu0 %v2288
      %2699 = vmatprep.subr.bf16.mxu0 0
      %2700 = vmatpush1.bf16.msra.mxu0 %v2289
      %2701 = vmatprep.subr.bf16.mxu0 0
      %2702 = vmatpush1.bf16.msra.mxu0 %v2290
      %2703 = vmatprep.subr.bf16.mxu0 0
      %2704 = vmatpush1.bf16.msra.mxu0 %v2291
      %2705 = vmatprep.subr.bf16.mxu0 0
      %2706 = vmatpush1.bf16.msra.mxu0 %v2292
      %2707 = vmatprep.subr.bf16.mxu0 0
      %2708 = vmatpush1.bf16.msra.mxu0 %v2293
      %2709 = vmatprep.subr.bf16.mxu0 0
      %2710 = vmatpush1.bf16.msra.mxu0 %v2294
      %2711 = vmatprep.subr.bf16.mxu0 0
      %2712 = vmatpush1.bf16.msra.mxu0 %v2295
      %2713 = vmatprep.mubr.bf16.mxu0 %v1499
      %2714 = vmatmul.mubr.bf16.gmra.mrb[0].mxu0 %v1498
      %v2715 = vpop.f32.mrb[0].mxu0
      %v2716 = vadd.f32 %v2427, %v2715
      %v2717 = vpop.f32.mrb[0].mxu0
      %v2718 = vpop.f32.mrb[0].mxu0
      %v2719 = vadd.f32 %v2430, %v2718
      %v2720 = vpop.f32.mrb[0].mxu0
      %2721 = vmatprep.mubr.bf16.mxu0 %v1507
      %2722 = vmatmul.mubr.bf16.gmra.mrb[0].mxu0 %v1506
      %v2723 = vpop.f32.mrb[0].mxu0
      %v2724 = vadd.f32 %v2435, %v2723
      %v2725 = vpop.f32.mrb[0].mxu0
      %v2726 = vpop.f32.mrb[0].mxu0
      %v2727 = vadd.f32 %v2438, %v2726
      %v2728 = vpop.f32.mrb[0].mxu0
      %2729 = vmatprep.mubr.bf16.mxu0 %v1515
      %2730 = vmatmul.mubr.bf16.gmra.mrb[0].mxu0 %v1514
      %v2731 = vpop.f32.mrb[0].mxu0
      %v2732 = vadd.f32 %v2443, %v2731
      %v2733 = vpop.f32.mrb[0].mxu0
      %v2734 = vpop.f32.mrb[0].mxu0
      %v2735 = vadd.f32 %v2446, %v2734
      %v2736 = vpop.f32.mrb[0].mxu0
      %2737 = vmatprep.mubr.bf16.mxu0 %v1523
      %2738 = vmatmul.mubr.bf16.gmra.mrb[0].mxu0 %v1522
      %v2739 = vpop.f32.mrb[0].mxu0
      %v2740 = vadd.f32 %v2451, %v2739
      %v2741 = vpop.f32.mrb[0].mxu0
      %v2742 = vpop.f32.mrb[0].mxu0
      %v2743 = vadd.f32 %v2454, %v2742
      %v2744 = vpop.f32.mrb[0].mxu0
      %2745 = vmatprep.mubr.bf16.mxu0 %v1531
      %2746 = vmatmul.mubr.bf16.gmra.mrb[0].mxu0 %v1530
      %v2747 = vpop.f32.mrb[0].mxu0
      %v2748 = vadd.f32 %v2459, %v2747
      %v2749 = vpop.f32.mrb[0].mxu0
      %v2750 = vpop.f32.mrb[0].mxu0
      %v2751 = vadd.f32 %v2462, %v2750
      %v2752 = vpop.f32.mrb[0].mxu0
      %2753 = vmatprep.mubr.bf16.mxu0 %v1539
      %2754 = vmatmul.mubr.bf16.gmra.mrb[0].mxu0 %v1538
      %v2755 = vpop.f32.mrb[0].mxu0
      %v2756 = vadd.f32 %v2467, %v2755
      %v2757 = vpop.f32.mrb[0].mxu0
      %v2758 = vpop.f32.mrb[0].mxu0
      %v2759 = vadd.f32 %v2470, %v2758
      %v2760 = vpop.f32.mrb[0].mxu0
      %2761 = vmatprep.mubr.bf16.mxu0 %v1547
      %2762 = vmatmul.mubr.bf16.gmra.mrb[0].mxu0 %v1546
      %v2763 = vpop.f32.mrb[0].mxu0
      %v2764 = vadd.f32 %v2475, %v2763
      %v2765 = vpop.f32.mrb[0].mxu0
      %v2766 = vpop.f32.mrb[0].mxu0
      %v2767 = vadd.f32 %v2478, %v2766
      %v2768 = vpop.f32.mrb[0].mxu0
      %2769 = vmatprep.mubr.bf16.mxu0 %v1555
      %2770 = vmatmul.mubr.bf16.gmra.mrb[0].mxu0 %v1554
      %v2771 = vpop.f32.mrb[0].mxu0
      %v2772 = vadd.f32 %v2483, %v2771
      %v2773 = vpop.f32.mrb[0].mxu0
      %v2774 = vpop.f32.mrb[0].mxu0
      %v2775 = vadd.f32 %v2486, %v2774
      %v2776 = vpop.f32.mrb[0].mxu0
      %2777 = vmatprep.mubr.bf16.mxu0 %v1563
      %2778 = vmatmul.mubr.bf16.gmra.mrb[0].mxu0 %v1562
      %v2779 = vpop.f32.mrb[0].mxu0
      %v2780 = vadd.f32 %v2491, %v2779
      %v2781 = vpop.f32.mrb[0].mxu0
      %v2782 = vpop.f32.mrb[0].mxu0
      %v2783 = vadd.f32 %v2494, %v2782
      %v2784 = vpop.f32.mrb[0].mxu0
      %2785 = vmatprep.mubr.bf16.mxu0 %v1571
      %2786 = vmatmul.mubr.bf16.gmra.mrb[0].mxu0 %v1570
      %v2787 = vpop.f32.mrb[0].mxu0
      %v2788 = vadd.f32 %v2499, %v2787
      %v2789 = vpop.f32.mrb[0].mxu0
      %v2790 = vpop.f32.mrb[0].mxu0
      %v2791 = vadd.f32 %v2502, %v2790
      %v2792 = vpop.f32.mrb[0].mxu0
      %2793 = vmatprep.mubr.bf16.mxu0 %v1579
      %2794 = vmatmul.mubr.bf16.gmra.mrb[0].mxu0 %v1578
      %v2795 = vpop.f32.mrb[0].mxu0
      %v2796 = vadd.f32 %v2507, %v2795
      %v2797 = vpop.f32.mrb[0].mxu0
      %v2798 = vpop.f32.mrb[0].mxu0
      %v2799 = vadd.f32 %v2510, %v2798
      %v2800 = vpop.f32.mrb[0].mxu0
      %2801 = vmatprep.mubr.bf16.mxu0 %v1587
      %2802 = vmatmul.mubr.bf16.gmra.mrb[0].mxu0 %v1586
      %v2803 = vpop.f32.mrb[0].mxu0
      %v2804 = vadd.f32 %v2515, %v2803
      %v2805 = vpop.f32.mrb[0].mxu0
      %v2806 = vpop.f32.mrb[0].mxu0
      %v2807 = vadd.f32 %v2518, %v2806
      %v2808 = vpop.f32.mrb[0].mxu0
      %2809 = vmatprep.mubr.bf16.mxu0 %v1595
      %2810 = vmatmul.mubr.bf16.gmra.mrb[0].mxu0 %v1594
      %v2811 = vpop.f32.mrb[0].mxu0
      %v2812 = vadd.f32 %v2523, %v2811
      %v2813 = vpop.f32.mrb[0].mxu0
      %v2814 = vpop.f32.mrb[0].mxu0
      %v2815 = vadd.f32 %v2526, %v2814
      %v2816 = vpop.f32.mrb[0].mxu0
      %2817 = vmatprep.mubr.bf16.mxu0 %v1603
      %2818 = vmatmul.mubr.bf16.gmra.mrb[0].mxu0 %v1602
      %v2819 = vpop.f32.mrb[0].mxu0
      %v2820 = vadd.f32 %v2531, %v2819
      %v2821 = vpop.f32.mrb[0].mxu0
      %v2822 = vpop.f32.mrb[0].mxu0
      %v2823 = vadd.f32 %v2534, %v2822
      %v2824 = vpop.f32.mrb[0].mxu0
      %2825 = vmatprep.mubr.bf16.mxu0 %v1611
      %2826 = vmatmul.mubr.bf16.gmra.mrb[0].mxu0 %v1610
      %v2827 = vpop.f32.mrb[0].mxu0
      %v2828 = vadd.f32 %v2539, %v2827
      %v2829 = vpop.f32.mrb[0].mxu0
      %v2830 = vpop.f32.mrb[0].mxu0
      %v2831 = vadd.f32 %v2542, %v2830
      %v2832 = vpop.f32.mrb[0].mxu0
      %2833 = vmatprep.mubr.bf16.mxu0 %v1619
      %2834 = vmatmul.mubr.bf16.gmra.mrb[0].mxu0 %v1618
      %v2835 = vpop.f32.mrb[0].mxu0
      %v2836 = vadd.f32 %v2547, %v2835
      %v2837 = vpop.f32.mrb[0].mxu0
      %v2838 = vpop.f32.mrb[0].mxu0
      %v2839 = vadd.f32 %v2550, %v2838
      %v2840 = vpop.f32.mrb[0].mxu0
      %2841 = vmatprep.mubr.bf16.mxu0 %v1627
      %2842 = vmatmul.mubr.bf16.gmra.mrb[0].mxu0 %v1626
      %v2843 = vpop.f32.mrb[0].mxu0
      %v2844 = vadd.f32 %v2555, %v2843
      %v2845 = vpop.f32.mrb[0].mxu0
      %v2846 = vpop.f32.mrb[0].mxu0
      %v2847 = vadd.f32 %v2558, %v2846
      %v2848 = vpop.f32.mrb[0].mxu0
      %2849 = vmatprep.mubr.bf16.mxu0 %v1635
      %2850 = vmatmul.mubr.bf16.gmra.mrb[0].mxu0 %v1634
      %v2851 = vpop.f32.mrb[0].mxu0
      %v2852 = vadd.f32 %v2563, %v2851
      %v2853 = vpop.f32.mrb[0].mxu0
      %v2854 = vpop.f32.mrb[0].mxu0
      %v2855 = vadd.f32 %v2566, %v2854
      %v2856 = vpop.f32.mrb[0].mxu0
      %2857 = vmatprep.mubr.bf16.mxu0 %v1643
      %2858 = vmatmul.mubr.bf16.gmra.mrb[0].mxu0 %v1642
      %v2859 = vpop.f32.mrb[0].mxu0
      %v2860 = vadd.f32 %v2571, %v2859
      %v2861 = vpop.f32.mrb[0].mxu0
      %v2862 = vpop.f32.mrb[0].mxu0
      %v2863 = vadd.f32 %v2574, %v2862
      %v2864 = vpop.f32.mrb[0].mxu0
      %2865 = vmatprep.mubr.bf16.mxu0 %v1651
      %2866 = vmatmul.mubr.bf16.gmra.mrb[0].mxu0 %v1650
      %v2867 = vpop.f32.mrb[0].mxu0
      %v2868 = vadd.f32 %v2579, %v2867
      %v2869 = vpop.f32.mrb[0].mxu0
      %v2870 = vpop.f32.mrb[0].mxu0
      %v2871 = vadd.f32 %v2582, %v2870
      %v2872 = vpop.f32.mrb[0].mxu0
      %2873 = vmatprep.mubr.bf16.mxu0 %v1659
      %2874 = vmatmul.mubr.bf16.gmra.mrb[0].mxu0 %v1658
      %v2875 = vpop.f32.mrb[0].mxu0
      %v2876 = vadd.f32 %v2587, %v2875
      %v2877 = vpop.f32.mrb[0].mxu0
      %v2878 = vpop.f32.mrb[0].mxu0
      %v2879 = vadd.f32 %v2590, %v2878
      %v2880 = vpop.f32.mrb[0].mxu0
      %2881 = vmatprep.mubr.bf16.mxu0 %v1667
      %2882 = vmatmul.mubr.bf16.gmra.mrb[0].mxu0 %v1666
      %v2883 = vpop.f32.mrb[0].mxu0
      %v2884 = vadd.f32 %v2595, %v2883
      %v2885 = vpop.f32.mrb[0].mxu0
      %v2886 = vpop.f32.mrb[0].mxu0
      %v2887 = vadd.f32 %v2598, %v2886
      %v2888 = vpop.f32.mrb[0].mxu0
      %2889 = vmatprep.mubr.bf16.mxu0 %v1675
      %2890 = vmatmul.mubr.bf16.gmra.mrb[0].mxu0 %v1674
      %v2891 = vpop.f32.mrb[0].mxu0
      %v2892 = vadd.f32 %v2603, %v2891
      %v2893 = vpop.f32.mrb[0].mxu0
      %v2894 = vpop.f32.mrb[0].mxu0
      %v2895 = vadd.f32 %v2606, %v2894
      %v2896 = vpop.f32.mrb[0].mxu0
      %2897 = vmatprep.mubr.bf16.mxu0 %v1683
      %2898 = vmatmul.mubr.bf16.gmra.mrb[0].mxu0 %v1682
      %v2899 = vpop.f32.mrb[0].mxu0
      %v2900 = vadd.f32 %v2611, %v2899
      %v2901 = vpop.f32.mrb[0].mxu0
      %v2902 = vpop.f32.mrb[0].mxu0
      %v2903 = vadd.f32 %v2614, %v2902
      %v2904 = vpop.f32.mrb[0].mxu0
      %2905 = vmatprep.mubr.bf16.mxu0 %v1691
      %2906 = vmatmul.mubr.bf16.gmra.mrb[0].mxu0 %v1690
      %v2907 = vpop.f32.mrb[0].mxu0
      %v2908 = vadd.f32 %v2619, %v2907
      %v2909 = vpop.f32.mrb[0].mxu0
      %v2910 = vpop.f32.mrb[0].mxu0
      %v2911 = vadd.f32 %v2622, %v2910
      %v2912 = vpop.f32.mrb[0].mxu0
      %2913 = vmatprep.mubr.bf16.mxu0 %v1699
      %2914 = vmatmul.mubr.bf16.gmra.mrb[0].mxu0 %v1698
      %v2915 = vpop.f32.mrb[0].mxu0
      %v2916 = vadd.f32 %v2627, %v2915
      %v2917 = vpop.f32.mrb[0].mxu0
      %v2918 = vpop.f32.mrb[0].mxu0
      %v2919 = vadd.f32 %v2630, %v2918
      %v2920 = vpop.f32.mrb[0].mxu0
      %2921 = vmatprep.mubr.bf16.mxu0 %v1707
      %2922 = vmatmul.mubr.bf16.gmra.mrb[0].mxu0 %v1706
      %v2923 = vpop.f32.mrb[0].mxu0
      %v2924 = vadd.f32 %v2635, %v2923
      %v2925 = vpop.f32.mrb[0].mxu0
      %v2926 = vpop.f32.mrb[0].mxu0
      %v2927 = vadd.f32 %v2638, %v2926
      %v2928 = vpop.f32.mrb[0].mxu0
      %2929 = vmatprep.mubr.bf16.mxu0 %v1715
      %2930 = vmatmul.mubr.bf16.gmra.mrb[0].mxu0 %v1714
      %v2931 = vpop.f32.mrb[0].mxu0
      %v2932 = vadd.f32 %v2643, %v2931
      %v2933 = vpop.f32.mrb[0].mxu0
      %v2934 = vpop.f32.mrb[0].mxu0
      %v2935 = vadd.f32 %v2646, %v2934
      %v2936 = vpop.f32.mrb[0].mxu0
      %2937 = vmatprep.mubr.bf16.mxu0 %v1723
      %2938 = vmatmul.mubr.bf16.gmra.mrb[0].mxu0 %v1722
      %v2939 = vpop.f32.mrb[0].mxu0
      %v2940 = vadd.f32 %v2651, %v2939
      %v2941 = vpop.f32.mrb[0].mxu0
      %v2942 = vpop.f32.mrb[0].mxu0
      %v2943 = vadd.f32 %v2654, %v2942
      %v2944 = vpop.f32.mrb[0].mxu0
      %2945 = vmatprep.mubr.bf16.mxu0 %v1731
      %2946 = vmatmul.mubr.bf16.gmra.mrb[0].mxu0 %v1730
      %v2947 = vpop.f32.mrb[0].mxu0
      %v2948 = vadd.f32 %v2659, %v2947
      %v2949 = vpop.f32.mrb[0].mxu0
      %v2950 = vpop.f32.mrb[0].mxu0
      %v2951 = vadd.f32 %v2662, %v2950
      %v2952 = vpop.f32.mrb[0].mxu0
      %2953 = vmatprep.mubr.bf16.mxu0 %v1739
      %2954 = vmatmul.mubr.bf16.gmra.mrb[0].mxu0 %v1738
      %v2955 = vpop.f32.mrb[0].mxu0
      %v2956 = vadd.f32 %v2667, %v2955
      %v2957 = vpop.f32.mrb[0].mxu0
      %v2958 = vpop.f32.mrb[0].mxu0
      %v2959 = vadd.f32 %v2670, %v2958
      %v2960 = vpop.f32.mrb[0].mxu0
      %2961 = vmatprep.mubr.bf16.mxu0 %v1747
      %2962 = vmatmul.mubr.bf16.gmra.mrb[0].mxu0 %v1746
      %v2963 = vpop.f32.mrb[0].mxu0
      %v2964 = vadd.f32 %v2675, %v2963
      %v2965 = vpop.f32.mrb[0].mxu0
      %v2966 = vpop.f32.mrb[0].mxu0
      %v2967 = vadd.f32 %v2678, %v2966
      %v2968 = vpop.f32.mrb[0].mxu0
      %2969 = vdwg.mxu0
      %2970 = vmatprep.subr.bf16.mxu0 0
      %2971 = vmatpush1.bf16.msra.mxu0 %v2296
      %2972 = vmatprep.subr.bf16.mxu0 0
      %2973 = vmatpush1.bf16.msra.mxu0 %v2297
      %2974 = vmatprep.subr.bf16.mxu0 0
      %2975 = vmatpush1.bf16.msra.mxu0 %v2298
      %2976 = vmatprep.subr.bf16.mxu0 0
      %2977 = vmatpush1.bf16.msra.mxu0 %v2299
      %2978 = vmatprep.subr.bf16.mxu0 0
      %2979 = vmatpush1.bf16.msra.mxu0 %v2300
      %2980 = vmatprep.subr.bf16.mxu0 0
      %2981 = vmatpush1.bf16.msra.mxu0 %v2301
      %2982 = vmatprep.subr.bf16.mxu0 0
      %2983 = vmatpush1.bf16.msra.mxu0 %v2302
      %2984 = vmatprep.subr.bf16.mxu0 0
      %2985 = vmatpush1.bf16.msra.mxu0 %v2303
      %2986 = vmatprep.subr.bf16.mxu0 0
      %2987 = vmatpush1.bf16.msra.mxu0 %v2304
      %2988 = vmatprep.subr.bf16.mxu0 0
      %2989 = vmatpush1.bf16.msra.mxu0 %v2305
      %2990 = vmatprep.subr.bf16.mxu0 0
      %2991 = vmatpush1.bf16.msra.mxu0 %v2306
      %2992 = vmatprep.subr.bf16.mxu0 0
      %2993 = vmatpush1.bf16.msra.mxu0 %v2307
      %2994 = vmatprep.subr.bf16.mxu0 0
      %2995 = vmatpush1.bf16.msra.mxu0 %v2308
      %2996 = vmatprep.subr.bf16.mxu0 0
      %2997 = vmatpush1.bf16.msra.mxu0 %v2309
      %2998 = vmatprep.subr.bf16.mxu0 0
      %2999 = vmatpush1.bf16.msra.mxu0 %v2310
      %3000 = vmatprep.subr.bf16.mxu0 0
      %3001 = vmatpush1.bf16.msra.mxu0 %v2311
      %3002 = vmatprep.mubr.bf16.mxu0 %v1501
      %3003 = vmatmul.mubr.bf16.gmra.mrb[0].mxu0 %v1500
      %v3004 = vpop.f32.mrb[0].mxu0
      %v3005 = vadd.f32 %v2716, %v3004
      %v3006 = vpop.f32.mrb[0].mxu0
      %v3007 = vpop.f32.mrb[0].mxu0
      %v3008 = vadd.f32 %v2719, %v3007
      %v3009 = vpop.f32.mrb[0].mxu0
      %3010 = vmatprep.mubr.bf16.mxu0 %v1509
      %3011 = vmatmul.mubr.bf16.gmra.mrb[0].mxu0 %v1508
      %v3012 = vpop.f32.mrb[0].mxu0
      %v3013 = vadd.f32 %v2724, %v3012
      %v3014 = vpop.f32.mrb[0].mxu0
      %v3015 = vpop.f32.mrb[0].mxu0
      %v3016 = vadd.f32 %v2727, %v3015
      %v3017 = vpop.f32.mrb[0].mxu0
      %3018 = vmatprep.mubr.bf16.mxu0 %v1517
      %3019 = vmatmul.mubr.bf16.gmra.mrb[0].mxu0 %v1516
      %v3020 = vpop.f32.mrb[0].mxu0
      %v3021 = vadd.f32 %v2732, %v3020
      %v3022 = vpop.f32.mrb[0].mxu0
      %v3023 = vpop.f32.mrb[0].mxu0
      %v3024 = vadd.f32 %v2735, %v3023
      %v3025 = vpop.f32.mrb[0].mxu0
      %3026 = vmatprep.mubr.bf16.mxu0 %v1525
      %3027 = vmatmul.mubr.bf16.gmra.mrb[0].mxu0 %v1524
      %v3028 = vpop.f32.mrb[0].mxu0
      %v3029 = vadd.f32 %v2740, %v3028
      %v3030 = vpop.f32.mrb[0].mxu0
      %v3031 = vpop.f32.mrb[0].mxu0
      %v3032 = vadd.f32 %v2743, %v3031
      %v3033 = vpop.f32.mrb[0].mxu0
      %3034 = vmatprep.mubr.bf16.mxu0 %v1533
      %3035 = vmatmul.mubr.bf16.gmra.mrb[0].mxu0 %v1532
      %v3036 = vpop.f32.mrb[0].mxu0
      %v3037 = vadd.f32 %v2748, %v3036
      %v3038 = vpop.f32.mrb[0].mxu0
      %v3039 = vpop.f32.mrb[0].mxu0
      %v3040 = vadd.f32 %v2751, %v3039
      %v3041 = vpop.f32.mrb[0].mxu0
      %3042 = vmatprep.mubr.bf16.mxu0 %v1541
      %3043 = vmatmul.mubr.bf16.gmra.mrb[0].mxu0 %v1540
      %v3044 = vpop.f32.mrb[0].mxu0
      %v3045 = vadd.f32 %v2756, %v3044
      %v3046 = vpop.f32.mrb[0].mxu0
      %v3047 = vpop.f32.mrb[0].mxu0
      %v3048 = vadd.f32 %v2759, %v3047
      %v3049 = vpop.f32.mrb[0].mxu0
      %3050 = vmatprep.mubr.bf16.mxu0 %v1549
      %3051 = vmatmul.mubr.bf16.gmra.mrb[0].mxu0 %v1548
      %v3052 = vpop.f32.mrb[0].mxu0
      %v3053 = vadd.f32 %v2764, %v3052
      %v3054 = vpop.f32.mrb[0].mxu0
      %v3055 = vpop.f32.mrb[0].mxu0
      %v3056 = vadd.f32 %v2767, %v3055
      %v3057 = vpop.f32.mrb[0].mxu0
      %3058 = vmatprep.mubr.bf16.mxu0 %v1557
      %3059 = vmatmul.mubr.bf16.gmra.mrb[0].mxu0 %v1556
      %v3060 = vpop.f32.mrb[0].mxu0
      %v3061 = vadd.f32 %v2772, %v3060
      %v3062 = vpop.f32.mrb[0].mxu0
      %v3063 = vpop.f32.mrb[0].mxu0
      %v3064 = vadd.f32 %v2775, %v3063
      %v3065 = vpop.f32.mrb[0].mxu0
      %3066 = vmatprep.mubr.bf16.mxu0 %v1565
      %3067 = vmatmul.mubr.bf16.gmra.mrb[0].mxu0 %v1564
      %v3068 = vpop.f32.mrb[0].mxu0
      %v3069 = vadd.f32 %v2780, %v3068
      %v3070 = vpop.f32.mrb[0].mxu0
      %v3071 = vpop.f32.mrb[0].mxu0
      %v3072 = vadd.f32 %v2783, %v3071
      %v3073 = vpop.f32.mrb[0].mxu0
      %3074 = vmatprep.mubr.bf16.mxu0 %v1573
      %3075 = vmatmul.mubr.bf16.gmra.mrb[0].mxu0 %v1572
      %v3076 = vpop.f32.mrb[0].mxu0
      %v3077 = vadd.f32 %v2788, %v3076
      %v3078 = vpop.f32.mrb[0].mxu0
      %v3079 = vpop.f32.mrb[0].mxu0
      %v3080 = vadd.f32 %v2791, %v3079
      %v3081 = vpop.f32.mrb[0].mxu0
      %3082 = vmatprep.mubr.bf16.mxu0 %v1581
      %3083 = vmatmul.mubr.bf16.gmra.mrb[0].mxu0 %v1580
      %v3084 = vpop.f32.mrb[0].mxu0
      %v3085 = vadd.f32 %v2796, %v3084
      %v3086 = vpop.f32.mrb[0].mxu0
      %v3087 = vpop.f32.mrb[0].mxu0
      %v3088 = vadd.f32 %v2799, %v3087
      %v3089 = vpop.f32.mrb[0].mxu0
      %3090 = vmatprep.mubr.bf16.mxu0 %v1589
      %3091 = vmatmul.mubr.bf16.gmra.mrb[0].mxu0 %v1588
      %v3092 = vpop.f32.mrb[0].mxu0
      %v3093 = vadd.f32 %v2804, %v3092
      %v3094 = vpop.f32.mrb[0].mxu0
      %v3095 = vpop.f32.mrb[0].mxu0
      %v3096 = vadd.f32 %v2807, %v3095
      %v3097 = vpop.f32.mrb[0].mxu0
      %3098 = vmatprep.mubr.bf16.mxu0 %v1597
      %3099 = vmatmul.mubr.bf16.gmra.mrb[0].mxu0 %v1596
      %v3100 = vpop.f32.mrb[0].mxu0
      %v3101 = vadd.f32 %v2812, %v3100
      %v3102 = vpop.f32.mrb[0].mxu0
      %v3103 = vpop.f32.mrb[0].mxu0
      %v3104 = vadd.f32 %v2815, %v3103
      %v3105 = vpop.f32.mrb[0].mxu0
      %3106 = vmatprep.mubr.bf16.mxu0 %v1605
      %3107 = vmatmul.mubr.bf16.gmra.mrb[0].mxu0 %v1604
      %v3108 = vpop.f32.mrb[0].mxu0
      %v3109 = vadd.f32 %v2820, %v3108
      %v3110 = vpop.f32.mrb[0].mxu0
      %v3111 = vpop.f32.mrb[0].mxu0
      %v3112 = vadd.f32 %v2823, %v3111
      %v3113 = vpop.f32.mrb[0].mxu0
      %3114 = vmatprep.mubr.bf16.mxu0 %v1613
      %3115 = vmatmul.mubr.bf16.gmra.mrb[0].mxu0 %v1612
      %v3116 = vpop.f32.mrb[0].mxu0
      %v3117 = vadd.f32 %v2828, %v3116
      %v3118 = vpop.f32.mrb[0].mxu0
      %v3119 = vpop.f32.mrb[0].mxu0
      %v3120 = vadd.f32 %v2831, %v3119
      %v3121 = vpop.f32.mrb[0].mxu0
      %3122 = vmatprep.mubr.bf16.mxu0 %v1621
      %3123 = vmatmul.mubr.bf16.gmra.mrb[0].mxu0 %v1620
      %v3124 = vpop.f32.mrb[0].mxu0
      %v3125 = vadd.f32 %v2836, %v3124
      %v3126 = vpop.f32.mrb[0].mxu0
      %v3127 = vpop.f32.mrb[0].mxu0
      %v3128 = vadd.f32 %v2839, %v3127
      %v3129 = vpop.f32.mrb[0].mxu0
      %3130 = vmatprep.mubr.bf16.mxu0 %v1629
      %3131 = vmatmul.mubr.bf16.gmra.mrb[0].mxu0 %v1628
      %v3132 = vpop.f32.mrb[0].mxu0
      %v3133 = vadd.f32 %v2844, %v3132
      %v3134 = vpop.f32.mrb[0].mxu0
      %v3135 = vpop.f32.mrb[0].mxu0
      %v3136 = vadd.f32 %v2847, %v3135
      %v3137 = vpop.f32.mrb[0].mxu0
      %3138 = vmatprep.mubr.bf16.mxu0 %v1637
      %3139 = vmatmul.mubr.bf16.gmra.mrb[0].mxu0 %v1636
      %v3140 = vpop.f32.mrb[0].mxu0
      %v3141 = vadd.f32 %v2852, %v3140
      %v3142 = vpop.f32.mrb[0].mxu0
      %v3143 = vpop.f32.mrb[0].mxu0
      %v3144 = vadd.f32 %v2855, %v3143
      %v3145 = vpop.f32.mrb[0].mxu0
      %3146 = vmatprep.mubr.bf16.mxu0 %v1645
      %3147 = vmatmul.mubr.bf16.gmra.mrb[0].mxu0 %v1644
      %v3148 = vpop.f32.mrb[0].mxu0
      %v3149 = vadd.f32 %v2860, %v3148
      %v3150 = vpop.f32.mrb[0].mxu0
      %v3151 = vpop.f32.mrb[0].mxu0
      %v3152 = vadd.f32 %v2863, %v3151
      %v3153 = vpop.f32.mrb[0].mxu0
      %3154 = vmatprep.mubr.bf16.mxu0 %v1653
      %3155 = vmatmul.mubr.bf16.gmra.mrb[0].mxu0 %v1652
      %v3156 = vpop.f32.mrb[0].mxu0
      %v3157 = vadd.f32 %v2868, %v3156
      %v3158 = vpop.f32.mrb[0].mxu0
      %v3159 = vpop.f32.mrb[0].mxu0
      %v3160 = vadd.f32 %v2871, %v3159
      %v3161 = vpop.f32.mrb[0].mxu0
      %3162 = vmatprep.mubr.bf16.mxu0 %v1661
      %3163 = vmatmul.mubr.bf16.gmra.mrb[0].mxu0 %v1660
      %v3164 = vpop.f32.mrb[0].mxu0
      %v3165 = vadd.f32 %v2876, %v3164
      %v3166 = vpop.f32.mrb[0].mxu0
      %v3167 = vpop.f32.mrb[0].mxu0
      %v3168 = vadd.f32 %v2879, %v3167
      %v3169 = vpop.f32.mrb[0].mxu0
      %3170 = vmatprep.mubr.bf16.mxu0 %v1669
      %3171 = vmatmul.mubr.bf16.gmra.mrb[0].mxu0 %v1668
      %v3172 = vpop.f32.mrb[0].mxu0
      %v3173 = vadd.f32 %v2884, %v3172
      %v3174 = vpop.f32.mrb[0].mxu0
      %v3175 = vpop.f32.mrb[0].mxu0
      %v3176 = vadd.f32 %v2887, %v3175
      %v3177 = vpop.f32.mrb[0].mxu0
      %3178 = vmatprep.mubr.bf16.mxu0 %v1677
      %3179 = vmatmul.mubr.bf16.gmra.mrb[0].mxu0 %v1676
      %v3180 = vpop.f32.mrb[0].mxu0
      %v3181 = vadd.f32 %v2892, %v3180
      %v3182 = vpop.f32.mrb[0].mxu0
      %v3183 = vpop.f32.mrb[0].mxu0
      %v3184 = vadd.f32 %v2895, %v3183
      %v3185 = vpop.f32.mrb[0].mxu0
      %3186 = vmatprep.mubr.bf16.mxu0 %v1685
      %3187 = vmatmul.mubr.bf16.gmra.mrb[0].mxu0 %v1684
      %v3188 = vpop.f32.mrb[0].mxu0
      %v3189 = vadd.f32 %v2900, %v3188
      %v3190 = vpop.f32.mrb[0].mxu0
      %v3191 = vpop.f32.mrb[0].mxu0
      %v3192 = vadd.f32 %v2903, %v3191
      %v3193 = vpop.f32.mrb[0].mxu0
      %3194 = vmatprep.mubr.bf16.mxu0 %v1693
      %3195 = vmatmul.mubr.bf16.gmra.mrb[0].mxu0 %v1692
      %v3196 = vpop.f32.mrb[0].mxu0
      %v3197 = vadd.f32 %v2908, %v3196
      %v3198 = vpop.f32.mrb[0].mxu0
      %v3199 = vpop.f32.mrb[0].mxu0
      %v3200 = vadd.f32 %v2911, %v3199
      %v3201 = vpop.f32.mrb[0].mxu0
      %3202 = vmatprep.mubr.bf16.mxu0 %v1701
      %3203 = vmatmul.mubr.bf16.gmra.mrb[0].mxu0 %v1700
      %v3204 = vpop.f32.mrb[0].mxu0
      %v3205 = vadd.f32 %v2916, %v3204
      %v3206 = vpop.f32.mrb[0].mxu0
      %v3207 = vpop.f32.mrb[0].mxu0
      %v3208 = vadd.f32 %v2919, %v3207
      %v3209 = vpop.f32.mrb[0].mxu0
      %3210 = vmatprep.mubr.bf16.mxu0 %v1709
      %3211 = vmatmul.mubr.bf16.gmra.mrb[0].mxu0 %v1708
      %v3212 = vpop.f32.mrb[0].mxu0
      %v3213 = vadd.f32 %v2924, %v3212
      %v3214 = vpop.f32.mrb[0].mxu0
      %v3215 = vpop.f32.mrb[0].mxu0
      %v3216 = vadd.f32 %v2927, %v3215
      %v3217 = vpop.f32.mrb[0].mxu0
      %3218 = vmatprep.mubr.bf16.mxu0 %v1717
      %3219 = vmatmul.mubr.bf16.gmra.mrb[0].mxu0 %v1716
      %v3220 = vpop.f32.mrb[0].mxu0
      %v3221 = vadd.f32 %v2932, %v3220
      %v3222 = vpop.f32.mrb[0].mxu0
      %v3223 = vpop.f32.mrb[0].mxu0
      %v3224 = vadd.f32 %v2935, %v3223
      %v3225 = vpop.f32.mrb[0].mxu0
      %3226 = vmatprep.mubr.bf16.mxu0 %v1725
      %3227 = vmatmul.mubr.bf16.gmra.mrb[0].mxu0 %v1724
      %v3228 = vpop.f32.mrb[0].mxu0
      %v3229 = vadd.f32 %v2940, %v3228
      %v3230 = vpop.f32.mrb[0].mxu0
      %v3231 = vpop.f32.mrb[0].mxu0
      %v3232 = vadd.f32 %v2943, %v3231
      %v3233 = vpop.f32.mrb[0].mxu0
      %3234 = vmatprep.mubr.bf16.mxu0 %v1733
      %3235 = vmatmul.mubr.bf16.gmra.mrb[0].mxu0 %v1732
      %v3236 = vpop.f32.mrb[0].mxu0
      %v3237 = vadd.f32 %v2948, %v3236
      %v3238 = vpop.f32.mrb[0].mxu0
      %v3239 = vpop.f32.mrb[0].mxu0
      %v3240 = vadd.f32 %v2951, %v3239
      %v3241 = vpop.f32.mrb[0].mxu0
      %3242 = vmatprep.mubr.bf16.mxu0 %v1741
      %3243 = vmatmul.mubr.bf16.gmra.mrb[0].mxu0 %v1740
      %v3244 = vpop.f32.mrb[0].mxu0
      %v3245 = vadd.f32 %v2956, %v3244
      %v3246 = vpop.f32.mrb[0].mxu0
      %v3247 = vpop.f32.mrb[0].mxu0
      %v3248 = vadd.f32 %v2959, %v3247
      %v3249 = vpop.f32.mrb[0].mxu0
      %3250 = vmatprep.mubr.bf16.mxu0 %v1749
      %3251 = vmatmul.mubr.bf16.gmra.mrb[0].mxu0 %v1748
      %v3252 = vpop.f32.mrb[0].mxu0
      %v3253 = vadd.f32 %v2964, %v3252
      %v3254 = vpop.f32.mrb[0].mxu0
      %v3255 = vpop.f32.mrb[0].mxu0
      %v3256 = vadd.f32 %v2967, %v3255
      %v3257 = vpop.f32.mrb[0].mxu0
      %3258 = vdwg.mxu0
      %3259 = vmatprep.subr.bf16.mxu0 0
      %3260 = vmatpush1.bf16.msra.mxu0 %v2312
      %3261 = vmatprep.subr.bf16.mxu0 0
      %3262 = vmatpush1.bf16.msra.mxu0 %v2313
      %3263 = vmatprep.subr.bf16.mxu0 0
      %3264 = vmatpush1.bf16.msra.mxu0 %v2314
      %3265 = vmatprep.subr.bf16.mxu0 0
      %3266 = vmatpush1.bf16.msra.mxu0 %v2315
      %3267 = vmatprep.subr.bf16.mxu0 0
      %3268 = vmatpush1.bf16.msra.mxu0 %v2316
      %3269 = vmatprep.subr.bf16.mxu0 0
      %3270 = vmatpush1.bf16.msra.mxu0 %v2317
      %3271 = vmatprep.subr.bf16.mxu0 0
      %3272 = vmatpush1.bf16.msra.mxu0 %v2318
      %3273 = vmatprep.subr.bf16.mxu0 0
      %3274 = vmatpush1.bf16.msra.mxu0 %v2319
      %3275 = vmatprep.subr.bf16.mxu0 0
      %3276 = vmatpush1.bf16.msra.mxu0 %v2320
      %3277 = vmatprep.subr.bf16.mxu0 0
      %3278 = vmatpush1.bf16.msra.mxu0 %v2321
      %3279 = vmatprep.subr.bf16.mxu0 0
      %3280 = vmatpush1.bf16.msra.mxu0 %v2322
      %3281 = vmatprep.subr.bf16.mxu0 0
      %3282 = vmatpush1.bf16.msra.mxu0 %v2323
      %3283 = vmatprep.subr.bf16.mxu0 0
      %3284 = vmatpush1.bf16.msra.mxu0 %v2324
      %3285 = vmatprep.subr.bf16.mxu0 0
      %3286 = vmatpush1.bf16.msra.mxu0 %v2325
      %3287 = vmatprep.subr.bf16.mxu0 0
      %3288 = vmatpush1.bf16.msra.mxu0 %v2326
      %3289 = vmatprep.subr.bf16.mxu0 0
      %3290 = vmatpush1.bf16.msra.mxu0 %v2327
      %3291 = vmatprep.mubr.bf16.mxu0 %v1503
      %3292 = vmatmul.mubr.bf16.gmra.mrb[0].mxu0 %v1502
      %v3293 = vpop.f32.mrb[0].mxu0
      %v3294 = vadd.f32 %v3005, %v3293
      %v3295 = vpop.f32.mrb[0].mxu0
      %v3296 = vpop.f32.mrb[0].mxu0
      %v3297 = vadd.f32 %v3008, %v3296
      %v3298 = vpop.f32.mrb[0].mxu0
      %3299 = vmatprep.mubr.bf16.mxu0 %v1511
      %3300 = vmatmul.mubr.bf16.gmra.mrb[0].mxu0 %v1510
      %v3301 = vpop.f32.mrb[0].mxu0
      %v3302 = vadd.f32 %v3013, %v3301
      %v3303 = vpop.f32.mrb[0].mxu0
      %v3304 = vpop.f32.mrb[0].mxu0
      %v3305 = vadd.f32 %v3016, %v3304
      %v3306 = vpop.f32.mrb[0].mxu0
      %3307 = vmatprep.mubr.bf16.mxu0 %v1519
      %3308 = vmatmul.mubr.bf16.gmra.mrb[0].mxu0 %v1518
      %v3309 = vpop.f32.mrb[0].mxu0
      %v3310 = vadd.f32 %v3021, %v3309
      %v3311 = vpop.f32.mrb[0].mxu0
      %v3312 = vpop.f32.mrb[0].mxu0
      %v3313 = vadd.f32 %v3024, %v3312
      %v3314 = vpop.f32.mrb[0].mxu0
      %3315 = vmatprep.mubr.bf16.mxu0 %v1527
      %3316 = vmatmul.mubr.bf16.gmra.mrb[0].mxu0 %v1526
      %v3317 = vpop.f32.mrb[0].mxu0
      %v3318 = vadd.f32 %v3029, %v3317
      %v3319 = vpop.f32.mrb[0].mxu0
      %v3320 = vpop.f32.mrb[0].mxu0
      %v3321 = vadd.f32 %v3032, %v3320
      %v3322 = vpop.f32.mrb[0].mxu0
      %3323 = vmatprep.mubr.bf16.mxu0 %v1535
      %3324 = vmatmul.mubr.bf16.gmra.mrb[0].mxu0 %v1534
      %v3325 = vpop.f32.mrb[0].mxu0
      %v3326 = vadd.f32 %v3037, %v3325
      %v3327 = vpop.f32.mrb[0].mxu0
      %v3328 = vpop.f32.mrb[0].mxu0
      %v3329 = vadd.f32 %v3040, %v3328
      %v3330 = vpop.f32.mrb[0].mxu0
      %3331 = vmatprep.mubr.bf16.mxu0 %v1543
      %3332 = vmatmul.mubr.bf16.gmra.mrb[0].mxu0 %v1542
      %v3333 = vpop.f32.mrb[0].mxu0
      %v3334 = vadd.f32 %v3045, %v3333
      %v3335 = vpop.f32.mrb[0].mxu0
      %v3336 = vpop.f32.mrb[0].mxu0
      %v3337 = vadd.f32 %v3048, %v3336
      %v3338 = vpop.f32.mrb[0].mxu0
      %3339 = vmatprep.mubr.bf16.mxu0 %v1551
      %3340 = vmatmul.mubr.bf16.gmra.mrb[0].mxu0 %v1550
      %v3341 = vpop.f32.mrb[0].mxu0
      %v3342 = vadd.f32 %v3053, %v3341
      %v3343 = vpop.f32.mrb[0].mxu0
      %v3344 = vpop.f32.mrb[0].mxu0
      %v3345 = vadd.f32 %v3056, %v3344
      %v3346 = vpop.f32.mrb[0].mxu0
      %3347 = vmatprep.mubr.bf16.mxu0 %v1559
      %3348 = vmatmul.mubr.bf16.gmra.mrb[0].mxu0 %v1558
      %v3349 = vpop.f32.mrb[0].mxu0
      %v3350 = vadd.f32 %v3061, %v3349
      %v3351 = vpop.f32.mrb[0].mxu0
      %v3352 = vpop.f32.mrb[0].mxu0
      %v3353 = vadd.f32 %v3064, %v3352
      %v3354 = vpop.f32.mrb[0].mxu0
      %3355 = vmatprep.mubr.bf16.mxu0 %v1567
      %3356 = vmatmul.mubr.bf16.gmra.mrb[0].mxu0 %v1566
      %v3357 = vpop.f32.mrb[0].mxu0
      %v3358 = vadd.f32 %v3069, %v3357
      %v3359 = vpop.f32.mrb[0].mxu0
      %v3360 = vpop.f32.mrb[0].mxu0
      %v3361 = vadd.f32 %v3072, %v3360
      %v3362 = vpop.f32.mrb[0].mxu0
      %3363 = vmatprep.mubr.bf16.mxu0 %v1575
      %3364 = vmatmul.mubr.bf16.gmra.mrb[0].mxu0 %v1574
      %v3365 = vpop.f32.mrb[0].mxu0
      %v3366 = vadd.f32 %v3077, %v3365
      %v3367 = vpop.f32.mrb[0].mxu0
      %v3368 = vpop.f32.mrb[0].mxu0
      %v3369 = vadd.f32 %v3080, %v3368
      %v3370 = vpop.f32.mrb[0].mxu0
      %3371 = vmatprep.mubr.bf16.mxu0 %v1583
      %3372 = vmatmul.mubr.bf16.gmra.mrb[0].mxu0 %v1582
      %v3373 = vpop.f32.mrb[0].mxu0
      %v3374 = vadd.f32 %v3085, %v3373
      %v3375 = vpop.f32.mrb[0].mxu0
      %v3376 = vpop.f32.mrb[0].mxu0
      %v3377 = vadd.f32 %v3088, %v3376
      %v3378 = vpop.f32.mrb[0].mxu0
      %3379 = vmatprep.mubr.bf16.mxu0 %v1591
      %3380 = vmatmul.mubr.bf16.gmra.mrb[0].mxu0 %v1590
      %v3381 = vpop.f32.mrb[0].mxu0
      %v3382 = vadd.f32 %v3093, %v3381
      %v3383 = vpop.f32.mrb[0].mxu0
      %v3384 = vpop.f32.mrb[0].mxu0
      %v3385 = vadd.f32 %v3096, %v3384
      %v3386 = vpop.f32.mrb[0].mxu0
      %3387 = vmatprep.mubr.bf16.mxu0 %v1599
      %3388 = vmatmul.mubr.bf16.gmra.mrb[0].mxu0 %v1598
      %v3389 = vpop.f32.mrb[0].mxu0
      %v3390 = vadd.f32 %v3101, %v3389
      %v3391 = vpop.f32.mrb[0].mxu0
      %v3392 = vpop.f32.mrb[0].mxu0
      %v3393 = vadd.f32 %v3104, %v3392
      %v3394 = vpop.f32.mrb[0].mxu0
      %3395 = vmatprep.mubr.bf16.mxu0 %v1607
      %3396 = vmatmul.mubr.bf16.gmra.mrb[0].mxu0 %v1606
      %v3397 = vpop.f32.mrb[0].mxu0
      %v3398 = vadd.f32 %v3109, %v3397
      %v3399 = vpop.f32.mrb[0].mxu0
      %v3400 = vpop.f32.mrb[0].mxu0
      %v3401 = vadd.f32 %v3112, %v3400
      %v3402 = vpop.f32.mrb[0].mxu0
      %3403 = vmatprep.mubr.bf16.mxu0 %v1615
      %3404 = vmatmul.mubr.bf16.gmra.mrb[0].mxu0 %v1614
      %v3405 = vpop.f32.mrb[0].mxu0
      %v3406 = vadd.f32 %v3117, %v3405
      %v3407 = vpop.f32.mrb[0].mxu0
      %v3408 = vpop.f32.mrb[0].mxu0
      %v3409 = vadd.f32 %v3120, %v3408
      %v3410 = vpop.f32.mrb[0].mxu0
      %3411 = vmatprep.mubr.bf16.mxu0 %v1623
      %3412 = vmatmul.mubr.bf16.gmra.mrb[0].mxu0 %v1622
      %v3413 = vpop.f32.mrb[0].mxu0
      %v3414 = vadd.f32 %v3125, %v3413
      %v3415 = vpop.f32.mrb[0].mxu0
      %v3416 = vpop.f32.mrb[0].mxu0
      %v3417 = vadd.f32 %v3128, %v3416
      %v3418 = vpop.f32.mrb[0].mxu0
      %3419 = vmatprep.mubr.bf16.mxu0 %v1631
      %3420 = vmatmul.mubr.bf16.gmra.mrb[0].mxu0 %v1630
      %v3421 = vpop.f32.mrb[0].mxu0
      %v3422 = vadd.f32 %v3133, %v3421
      %v3423 = vpop.f32.mrb[0].mxu0
      %v3424 = vpop.f32.mrb[0].mxu0
      %v3425 = vadd.f32 %v3136, %v3424
      %v3426 = vpop.f32.mrb[0].mxu0
      %3427 = vmatprep.mubr.bf16.mxu0 %v1639
      %3428 = vmatmul.mubr.bf16.gmra.mrb[0].mxu0 %v1638
      %v3429 = vpop.f32.mrb[0].mxu0
      %v3430 = vadd.f32 %v3141, %v3429
      %v3431 = vpop.f32.mrb[0].mxu0
      %v3432 = vpop.f32.mrb[0].mxu0
      %v3433 = vadd.f32 %v3144, %v3432
      %v3434 = vpop.f32.mrb[0].mxu0
      %3435 = vmatprep.mubr.bf16.mxu0 %v1647
      %3436 = vmatmul.mubr.bf16.gmra.mrb[0].mxu0 %v1646
      %v3437 = vpop.f32.mrb[0].mxu0
      %v3438 = vadd.f32 %v3149, %v3437
      %v3439 = vpop.f32.mrb[0].mxu0
      %v3440 = vpop.f32.mrb[0].mxu0
      %v3441 = vadd.f32 %v3152, %v3440
      %v3442 = vpop.f32.mrb[0].mxu0
      %3443 = vmatprep.mubr.bf16.mxu0 %v1655
      %3444 = vmatmul.mubr.bf16.gmra.mrb[0].mxu0 %v1654
      %v3445 = vpop.f32.mrb[0].mxu0
      %v3446 = vadd.f32 %v3157, %v3445
      %v3447 = vpop.f32.mrb[0].mxu0
      %v3448 = vpop.f32.mrb[0].mxu0
      %v3449 = vadd.f32 %v3160, %v3448
      %v3450 = vpop.f32.mrb[0].mxu0
      %3451 = vmatprep.mubr.bf16.mxu0 %v1663
      %3452 = vmatmul.mubr.bf16.gmra.mrb[0].mxu0 %v1662
      %v3453 = vpop.f32.mrb[0].mxu0
      %v3454 = vadd.f32 %v3165, %v3453
      %v3455 = vpop.f32.mrb[0].mxu0
      %v3456 = vpop.f32.mrb[0].mxu0
      %v3457 = vadd.f32 %v3168, %v3456
      %v3458 = vpop.f32.mrb[0].mxu0
      %3459 = vmatprep.mubr.bf16.mxu0 %v1671
      %3460 = vmatmul.mubr.bf16.gmra.mrb[0].mxu0 %v1670
      %v3461 = vpop.f32.mrb[0].mxu0
      %v3462 = vadd.f32 %v3173, %v3461
      %v3463 = vpop.f32.mrb[0].mxu0
      %v3464 = vpop.f32.mrb[0].mxu0
      %v3465 = vadd.f32 %v3176, %v3464
      %v3466 = vpop.f32.mrb[0].mxu0
      %3467 = vmatprep.mubr.bf16.mxu0 %v1679
      %3468 = vmatmul.mubr.bf16.gmra.mrb[0].mxu0 %v1678
      %v3469 = vpop.f32.mrb[0].mxu0
      %v3470 = vadd.f32 %v3181, %v3469
      %v3471 = vpop.f32.mrb[0].mxu0
      %v3472 = vpop.f32.mrb[0].mxu0
      %v3473 = vadd.f32 %v3184, %v3472
      %v3474 = vpop.f32.mrb[0].mxu0
      %3475 = vmatprep.mubr.bf16.mxu0 %v1687
      %3476 = vmatmul.mubr.bf16.gmra.mrb[0].mxu0 %v1686
      %v3477 = vpop.f32.mrb[0].mxu0
      %v3478 = vadd.f32 %v3189, %v3477
      %v3479 = vpop.f32.mrb[0].mxu0
      %v3480 = vpop.f32.mrb[0].mxu0
      %v3481 = vadd.f32 %v3192, %v3480
      %v3482 = vpop.f32.mrb[0].mxu0
      %3483 = vmatprep.mubr.bf16.mxu0 %v1695
      %3484 = vmatmul.mubr.bf16.gmra.mrb[0].mxu0 %v1694
      %v3485 = vpop.f32.mrb[0].mxu0
      %v3486 = vadd.f32 %v3197, %v3485
      %v3487 = vpop.f32.mrb[0].mxu0
      %v3488 = vpop.f32.mrb[0].mxu0
      %v3489 = vadd.f32 %v3200, %v3488
      %v3490 = vpop.f32.mrb[0].mxu0
      %3491 = vmatprep.mubr.bf16.mxu0 %v1703
      %3492 = vmatmul.mubr.bf16.gmra.mrb[0].mxu0 %v1702
      %v3493 = vpop.f32.mrb[0].mxu0
      %v3494 = vadd.f32 %v3205, %v3493
      %v3495 = vpop.f32.mrb[0].mxu0
      %v3496 = vpop.f32.mrb[0].mxu0
      %v3497 = vadd.f32 %v3208, %v3496
      %v3498 = vpop.f32.mrb[0].mxu0
      %3499 = vmatprep.mubr.bf16.mxu0 %v1711
      %3500 = vmatmul.mubr.bf16.gmra.mrb[0].mxu0 %v1710
      %v3501 = vpop.f32.mrb[0].mxu0
      %v3502 = vadd.f32 %v3213, %v3501
      %v3503 = vpop.f32.mrb[0].mxu0
      %v3504 = vpop.f32.mrb[0].mxu0
      %v3505 = vadd.f32 %v3216, %v3504
      %v3506 = vpop.f32.mrb[0].mxu0
      %3507 = vmatprep.mubr.bf16.mxu0 %v1719
      %3508 = vmatmul.mubr.bf16.gmra.mrb[0].mxu0 %v1718
      %v3509 = vpop.f32.mrb[0].mxu0
      %v3510 = vadd.f32 %v3221, %v3509
      %v3511 = vpop.f32.mrb[0].mxu0
      %v3512 = vpop.f32.mrb[0].mxu0
      %v3513 = vadd.f32 %v3224, %v3512
      %v3514 = vpop.f32.mrb[0].mxu0
      %3515 = vmatprep.mubr.bf16.mxu0 %v1727
      %3516 = vmatmul.mubr.bf16.gmra.mrb[0].mxu0 %v1726
      %v3517 = vpop.f32.mrb[0].mxu0
      %v3518 = vadd.f32 %v3229, %v3517
      %v3519 = vpop.f32.mrb[0].mxu0
      %v3520 = vpop.f32.mrb[0].mxu0
      %v3521 = vadd.f32 %v3232, %v3520
      %v3522 = vpop.f32.mrb[0].mxu0
      %3523 = vmatprep.mubr.bf16.mxu0 %v1735
      %3524 = vmatmul.mubr.bf16.gmra.mrb[0].mxu0 %v1734
      %v3525 = vpop.f32.mrb[0].mxu0
      %v3526 = vadd.f32 %v3237, %v3525
      %v3527 = vpop.f32.mrb[0].mxu0
      %v3528 = vpop.f32.mrb[0].mxu0
      %v3529 = vadd.f32 %v3240, %v3528
      %v3530 = vpop.f32.mrb[0].mxu0
      %3531 = vmatprep.mubr.bf16.mxu0 %v1743
      %3532 = vmatmul.mubr.bf16.gmra.mrb[0].mxu0 %v1742
      %v3533 = vpop.f32.mrb[0].mxu0
      %v3534 = vadd.f32 %v3245, %v3533
      %v3535 = vpop.f32.mrb[0].mxu0
      %v3536 = vpop.f32.mrb[0].mxu0
      %v3537 = vadd.f32 %v3248, %v3536
      %v3538 = vpop.f32.mrb[0].mxu0
      %3539 = vmatprep.mubr.bf16.mxu0 %v1751
      %3540 = vmatmul.mubr.bf16.gmra.mrb[0].mxu0 %v1750
      %v3541 = vpop.f32.mrb[0].mxu0
      %v3542 = vadd.f32 %v3253, %v3541
      %v3543 = vpop.f32.mrb[0].mxu0
      %v3544 = vpop.f32.mrb[0].mxu0
      %v3545 = vadd.f32 %v3256, %v3544
      %v3546 = vpop.f32.mrb[0].mxu0
      %3547 = vdwg.mxu0
      %v3548 = vld [vmem:[%s323] sm:$0xff]
      %v3549 = vld [vmem:[%s323 + $0x8] sm:$0xff]
      %v3550 = vld [vmem:[%s323 + $0x10] sm:$0xff]
      %v3551 = vld [vmem:[%s323 + $0x18] sm:$0xff]
      %v3552 = vld [vmem:[%s323 + $0x20] sm:$0xff]
      %v3553 = vld [vmem:[%s323 + $0x28] sm:$0xff]
      %v3554 = vld [vmem:[%s323 + $0x30] sm:$0xff]
      %v3555 = vld [vmem:[%s323 + $0x38] sm:$0xff]
      %v3556 = vld [vmem:[%s323 + $0x40] sm:$0xff]
      %v3557 = vld [vmem:[%s323 + $0x48] sm:$0xff]
      %v3558 = vld [vmem:[%s323 + $0x50] sm:$0xff]
      %v3559 = vld [vmem:[%s323 + $0x58] sm:$0xff]
      %v3560 = vld [vmem:[%s323 + $0x60] sm:$0xff]
      %v3561 = vld [vmem:[%s323 + $0x68] sm:$0xff]
      %v3562 = vld [vmem:[%s323 + $0x70] sm:$0xff]
      %v3563 = vld [vmem:[%s323 + $0x78] sm:$0xff]
      %v3564 = vld [vmem:[%s323 + $0x80] sm:$0xff]
      %v3565 = vld [vmem:[%s323 + $0x88] sm:$0xff]
      %v3566 = vld [vmem:[%s323 + $0x90] sm:$0xff]
      %v3567 = vld [vmem:[%s323 + $0x98] sm:$0xff]
      %v3568 = vld [vmem:[%s323 + $0xa0] sm:$0xff]
      %v3569 = vld [vmem:[%s323 + $0xa8] sm:$0xff]
      %v3570 = vld [vmem:[%s323 + $0xb0] sm:$0xff]
      %v3571 = vld [vmem:[%s323 + $0xb8] sm:$0xff]
      %v3572 = vld [vmem:[%s323 + $0xc0] sm:$0xff]
      %v3573 = vld [vmem:[%s323 + $0xc8] sm:$0xff]
      %v3574 = vld [vmem:[%s323 + $0xd0] sm:$0xff]
      %v3575 = vld [vmem:[%s323 + $0xd8] sm:$0xff]
      %v3576 = vld [vmem:[%s323 + $0xe0] sm:$0xff]
      %v3577 = vld [vmem:[%s323 + $0xe8] sm:$0xff]
      %v3578 = vld [vmem:[%s323 + $0xf0] sm:$0xff]
      %v3579 = vld [vmem:[%s323 + $0xf8] sm:$0xff]
      %v3580 = vld [vmem:[%s323 + $0x100] sm:$0xff]
      %v3581 = vld [vmem:[%s323 + $0x108] sm:$0xff]
      %v3582 = vld [vmem:[%s323 + $0x110] sm:$0xff]
      %v3583 = vld [vmem:[%s323 + $0x118] sm:$0xff]
      %v3584 = vld [vmem:[%s323 + $0x120] sm:$0xff]
      %v3585 = vld [vmem:[%s323 + $0x128] sm:$0xff]
      %v3586 = vld [vmem:[%s323 + $0x130] sm:$0xff]
      %v3587 = vld [vmem:[%s323 + $0x138] sm:$0xff]
      %v3588 = vld [vmem:[%s323 + $0x140] sm:$0xff]
      %v3589 = vld [vmem:[%s323 + $0x148] sm:$0xff]
      %v3590 = vld [vmem:[%s323 + $0x150] sm:$0xff]
      %v3591 = vld [vmem:[%s323 + $0x158] sm:$0xff]
      %v3592 = vld [vmem:[%s323 + $0x160] sm:$0xff]
      %v3593 = vld [vmem:[%s323 + $0x168] sm:$0xff]
      %v3594 = vld [vmem:[%s323 + $0x170] sm:$0xff]
      %v3595 = vld [vmem:[%s323 + $0x178] sm:$0xff]
      %v3596 = vld [vmem:[%s323 + $0x180] sm:$0xff]
      %v3597 = vld [vmem:[%s323 + $0x188] sm:$0xff]
      %v3598 = vld [vmem:[%s323 + $0x190] sm:$0xff]
      %v3599 = vld [vmem:[%s323 + $0x198] sm:$0xff]
      %v3600 = vld [vmem:[%s323 + $0x1a0] sm:$0xff]
      %v3601 = vld [vmem:[%s323 + $0x1a8] sm:$0xff]
      %v3602 = vld [vmem:[%s323 + $0x1b0] sm:$0xff]
      %v3603 = vld [vmem:[%s323 + $0x1b8] sm:$0xff]
      %v3604 = vld [vmem:[%s323 + $0x1c0] sm:$0xff]
      %v3605 = vld [vmem:[%s323 + $0x1c8] sm:$0xff]
      %v3606 = vld [vmem:[%s323 + $0x1d0] sm:$0xff]
      %v3607 = vld [vmem:[%s323 + $0x1d8] sm:$0xff]
      %v3608 = vld [vmem:[%s323 + $0x1e0] sm:$0xff]
      %v3609 = vld [vmem:[%s323 + $0x1e8] sm:$0xff]
      %v3610 = vld [vmem:[%s323 + $0x1f0] sm:$0xff]
      %v3611 = vld [vmem:[%s323 + $0x1f8] sm:$0xff]
      %3613 = vset.pattern.permute.xlu0 0
      %3614 = vperm.xlu0 %3613, %v3548
      %v3615 = vpop.permute.xlu0 %3614
      %3618 = vset.pattern.permute.xlu0 0
      %3619 = vperm.xlu0 %3618, %v3549
      %v3620 = vpop.permute.xlu0 %3619
      %3623 = vset.pattern.permute.xlu0 0
      %3624 = vperm.xlu0 %3623, %v3550
      %v3625 = vpop.permute.xlu0 %3624
      %3628 = vset.pattern.permute.xlu0 0
      %3629 = vperm.xlu0 %3628, %v3551
      %v3630 = vpop.permute.xlu0 %3629
      %3633 = vset.pattern.permute.xlu0 0
      %3634 = vperm.xlu0 %3633, %v3552
      %v3635 = vpop.permute.xlu0 %3634
      %3638 = vset.pattern.permute.xlu0 0
      %3639 = vperm.xlu0 %3638, %v3553
      %v3640 = vpop.permute.xlu0 %3639
      %3643 = vset.pattern.permute.xlu0 0
      %3644 = vperm.xlu0 %3643, %v3554
      %v3645 = vpop.permute.xlu0 %3644
      %3648 = vset.pattern.permute.xlu0 0
      %3649 = vperm.xlu0 %3648, %v3555
      %v3650 = vpop.permute.xlu0 %3649
      %3653 = vset.pattern.permute.xlu0 0
      %3654 = vperm.xlu0 %3653, %v3556
      %v3655 = vpop.permute.xlu0 %3654
      %3658 = vset.pattern.permute.xlu0 0
      %3659 = vperm.xlu0 %3658, %v3557
      %v3660 = vpop.permute.xlu0 %3659
      %3663 = vset.pattern.permute.xlu0 0
      %3664 = vperm.xlu0 %3663, %v3558
      %v3665 = vpop.permute.xlu0 %3664
      %3668 = vset.pattern.permute.xlu0 0
      %3669 = vperm.xlu0 %3668, %v3559
      %v3670 = vpop.permute.xlu0 %3669
      %3673 = vset.pattern.permute.xlu0 0
      %3674 = vperm.xlu0 %3673, %v3560
      %v3675 = vpop.permute.xlu0 %3674
      %3678 = vset.pattern.permute.xlu0 0
      %3679 = vperm.xlu0 %3678, %v3561
      %v3680 = vpop.permute.xlu0 %3679
      %3683 = vset.pattern.permute.xlu0 0
      %3684 = vperm.xlu0 %3683, %v3562
      %v3685 = vpop.permute.xlu0 %3684
      %3688 = vset.pattern.permute.xlu0 0
      %3689 = vperm.xlu0 %3688, %v3563
      %v3690 = vpop.permute.xlu0 %3689
      %3693 = vset.pattern.permute.xlu0 0
      %3694 = vperm.xlu0 %3693, %v3564
      %v3695 = vpop.permute.xlu0 %3694
      %3698 = vset.pattern.permute.xlu0 0
      %3699 = vperm.xlu0 %3698, %v3565
      %v3700 = vpop.permute.xlu0 %3699
      %3703 = vset.pattern.permute.xlu0 0
      %3704 = vperm.xlu0 %3703, %v3566
      %v3705 = vpop.permute.xlu0 %3704
      %3708 = vset.pattern.permute.xlu0 0
      %3709 = vperm.xlu0 %3708, %v3567
      %v3710 = vpop.permute.xlu0 %3709
      %3713 = vset.pattern.permute.xlu0 0
      %3714 = vperm.xlu0 %3713, %v3568
      %v3715 = vpop.permute.xlu0 %3714
      %3718 = vset.pattern.permute.xlu0 0
      %3719 = vperm.xlu0 %3718, %v3569
      %v3720 = vpop.permute.xlu0 %3719
      %3723 = vset.pattern.permute.xlu0 0
      %3724 = vperm.xlu0 %3723, %v3570
      %v3725 = vpop.permute.xlu0 %3724
      %3728 = vset.pattern.permute.xlu0 0
      %3729 = vperm.xlu0 %3728, %v3571
      %v3730 = vpop.permute.xlu0 %3729
      %3733 = vset.pattern.permute.xlu0 0
      %3734 = vperm.xlu0 %3733, %v3572
      %v3735 = vpop.permute.xlu0 %3734
      %3738 = vset.pattern.permute.xlu0 0
      %3739 = vperm.xlu0 %3738, %v3573
      %v3740 = vpop.permute.xlu0 %3739
      %3743 = vset.pattern.permute.xlu0 0
      %3744 = vperm.xlu0 %3743, %v3574
      %v3745 = vpop.permute.xlu0 %3744
      %3748 = vset.pattern.permute.xlu0 0
      %3749 = vperm.xlu0 %3748, %v3575
      %v3750 = vpop.permute.xlu0 %3749
      %3753 = vset.pattern.permute.xlu0 0
      %3754 = vperm.xlu0 %3753, %v3576
      %v3755 = vpop.permute.xlu0 %3754
      %3758 = vset.pattern.permute.xlu0 0
      %3759 = vperm.xlu0 %3758, %v3577
      %v3760 = vpop.permute.xlu0 %3759
      %3763 = vset.pattern.permute.xlu0 0
      %3764 = vperm.xlu0 %3763, %v3578
      %v3765 = vpop.permute.xlu0 %3764
      %3768 = vset.pattern.permute.xlu0 0
      %3769 = vperm.xlu0 %3768, %v3579
      %v3770 = vpop.permute.xlu0 %3769
      %3773 = vset.pattern.permute.xlu0 0
      %3774 = vperm.xlu0 %3773, %v3580
      %v3775 = vpop.permute.xlu0 %3774
      %3778 = vset.pattern.permute.xlu0 0
      %3779 = vperm.xlu0 %3778, %v3581
      %v3780 = vpop.permute.xlu0 %3779
      %3783 = vset.pattern.permute.xlu0 0
      %3784 = vperm.xlu0 %3783, %v3582
      %v3785 = vpop.permute.xlu0 %3784
      %3788 = vset.pattern.permute.xlu0 0
      %3789 = vperm.xlu0 %3788, %v3583
      %v3790 = vpop.permute.xlu0 %3789
      %3793 = vset.pattern.permute.xlu0 0
      %3794 = vperm.xlu0 %3793, %v3584
      %v3795 = vpop.permute.xlu0 %3794
      %3798 = vset.pattern.permute.xlu0 0
      %3799 = vperm.xlu0 %3798, %v3585
      %v3800 = vpop.permute.xlu0 %3799
      %3803 = vset.pattern.permute.xlu0 0
      %3804 = vperm.xlu0 %3803, %v3586
      %v3805 = vpop.permute.xlu0 %3804
      %3808 = vset.pattern.permute.xlu0 0
      %3809 = vperm.xlu0 %3808, %v3587
      %v3810 = vpop.permute.xlu0 %3809
      %3813 = vset.pattern.permute.xlu0 0
      %3814 = vperm.xlu0 %3813, %v3588
      %v3815 = vpop.permute.xlu0 %3814
      %3818 = vset.pattern.permute.xlu0 0
      %3819 = vperm.xlu0 %3818, %v3589
      %v3820 = vpop.permute.xlu0 %3819
      %3823 = vset.pattern.permute.xlu0 0
      %3824 = vperm.xlu0 %3823, %v3590
      %v3825 = vpop.permute.xlu0 %3824
      %3828 = vset.pattern.permute.xlu0 0
      %3829 = vperm.xlu0 %3828, %v3591
      %v3830 = vpop.permute.xlu0 %3829
      %3833 = vset.pattern.permute.xlu0 0
      %3834 = vperm.xlu0 %3833, %v3592
      %v3835 = vpop.permute.xlu0 %3834
      %3838 = vset.pattern.permute.xlu0 0
      %3839 = vperm.xlu0 %3838, %v3593
      %v3840 = vpop.permute.xlu0 %3839
      %3843 = vset.pattern.permute.xlu0 0
      %3844 = vperm.xlu0 %3843, %v3594
      %v3845 = vpop.permute.xlu0 %3844
      %3848 = vset.pattern.permute.xlu0 0
      %3849 = vperm.xlu0 %3848, %v3595
      %v3850 = vpop.permute.xlu0 %3849
      %3853 = vset.pattern.permute.xlu0 0
      %3854 = vperm.xlu0 %3853, %v3596
      %v3855 = vpop.permute.xlu0 %3854
      %3858 = vset.pattern.permute.xlu0 0
      %3859 = vperm.xlu0 %3858, %v3597
      %v3860 = vpop.permute.xlu0 %3859
      %3863 = vset.pattern.permute.xlu0 0
      %3864 = vperm.xlu0 %3863, %v3598
      %v3865 = vpop.permute.xlu0 %3864
      %3868 = vset.pattern.permute.xlu0 0
      %3869 = vperm.xlu0 %3868, %v3599
      %v3870 = vpop.permute.xlu0 %3869
      %3873 = vset.pattern.permute.xlu0 0
      %3874 = vperm.xlu0 %3873, %v3600
      %v3875 = vpop.permute.xlu0 %3874
      %3878 = vset.pattern.permute.xlu0 0
      %3879 = vperm.xlu0 %3878, %v3601
      %v3880 = vpop.permute.xlu0 %3879
      %3883 = vset.pattern.permute.xlu0 0
      %3884 = vperm.xlu0 %3883, %v3602
      %v3885 = vpop.permute.xlu0 %3884
      %3888 = vset.pattern.permute.xlu0 0
      %3889 = vperm.xlu0 %3888, %v3603
      %v3890 = vpop.permute.xlu0 %3889
      %3893 = vset.pattern.permute.xlu0 0
      %3894 = vperm.xlu0 %3893, %v3604
      %v3895 = vpop.permute.xlu0 %3894
      %3898 = vset.pattern.permute.xlu0 0
      %3899 = vperm.xlu0 %3898, %v3605
      %v3900 = vpop.permute.xlu0 %3899
      %3903 = vset.pattern.permute.xlu0 0
      %3904 = vperm.xlu0 %3903, %v3606
      %v3905 = vpop.permute.xlu0 %3904
      %3908 = vset.pattern.permute.xlu0 0
      %3909 = vperm.xlu0 %3908, %v3607
      %v3910 = vpop.permute.xlu0 %3909
      %3913 = vset.pattern.permute.xlu0 0
      %3914 = vperm.xlu0 %3913, %v3608
      %v3915 = vpop.permute.xlu0 %3914
      %3918 = vset.pattern.permute.xlu0 0
      %3919 = vperm.xlu0 %3918, %v3609
      %v3920 = vpop.permute.xlu0 %3919
      %3923 = vset.pattern.permute.xlu0 0
      %3924 = vperm.xlu0 %3923, %v3610
      %v3925 = vpop.permute.xlu0 %3924
      %3928 = vset.pattern.permute.xlu0 0
      %3929 = vperm.xlu0 %3928, %v3611
      %v3930 = vpop.permute.xlu0 %3929
      %v3932 = vmul.f32 %v3294, %v3615
      %v3933 = vmul.f32 %v3297, %v3620
      %v3934 = vmul.f32 %v3302, %v3625
      %v3935 = vmul.f32 %v3305, %v3630
      %v3936 = vmul.f32 %v3310, %v3635
      %v3937 = vmul.f32 %v3313, %v3640
      %v3938 = vmul.f32 %v3318, %v3645
      %v3939 = vmul.f32 %v3321, %v3650
      %v3940 = vmul.f32 %v3326, %v3655
      %v3941 = vmul.f32 %v3329, %v3660
      %v3942 = vmul.f32 %v3334, %v3665
      %v3943 = vmul.f32 %v3337, %v3670
      %v3944 = vmul.f32 %v3342, %v3675
      %v3945 = vmul.f32 %v3345, %v3680
      %v3946 = vmul.f32 %v3350, %v3685
      %v3947 = vmul.f32 %v3353, %v3690
      %v3948 = vmul.f32 %v3358, %v3695
      %v3949 = vmul.f32 %v3361, %v3700
      %v3950 = vmul.f32 %v3366, %v3705
      %v3951 = vmul.f32 %v3369, %v3710
      %v3952 = vmul.f32 %v3374, %v3715
      %v3953 = vmul.f32 %v3377, %v3720
      %v3954 = vmul.f32 %v3382, %v3725
      %v3955 = vmul.f32 %v3385, %v3730
      %v3956 = vmul.f32 %v3390, %v3735
      %v3957 = vmul.f32 %v3393, %v3740
      %v3958 = vmul.f32 %v3398, %v3745
      %v3959 = vmul.f32 %v3401, %v3750
      %v3960 = vmul.f32 %v3406, %v3755
      %v3961 = vmul.f32 %v3409, %v3760
      %v3962 = vmul.f32 %v3414, %v3765
      %v3963 = vmul.f32 %v3417, %v3770
      %v3964 = vmul.f32 %v3422, %v3775
      %v3965 = vmul.f32 %v3425, %v3780
      %v3966 = vmul.f32 %v3430, %v3785
      %v3967 = vmul.f32 %v3433, %v3790
      %v3968 = vmul.f32 %v3438, %v3795
      %v3969 = vmul.f32 %v3441, %v3800
      %v3970 = vmul.f32 %v3446, %v3805
      %v3971 = vmul.f32 %v3449, %v3810
      %v3972 = vmul.f32 %v3454, %v3815
      %v3973 = vmul.f32 %v3457, %v3820
      %v3974 = vmul.f32 %v3462, %v3825
      %v3975 = vmul.f32 %v3465, %v3830
      %v3976 = vmul.f32 %v3470, %v3835
      %v3977 = vmul.f32 %v3473, %v3840
      %v3978 = vmul.f32 %v3478, %v3845
      %v3979 = vmul.f32 %v3481, %v3850
      %v3980 = vmul.f32 %v3486, %v3855
      %v3981 = vmul.f32 %v3489, %v3860
      %v3982 = vmul.f32 %v3494, %v3865
      %v3983 = vmul.f32 %v3497, %v3870
      %v3984 = vmul.f32 %v3502, %v3875
      %v3985 = vmul.f32 %v3505, %v3880
      %v3986 = vmul.f32 %v3510, %v3885
      %v3987 = vmul.f32 %v3513, %v3890
      %v3988 = vmul.f32 %v3518, %v3895
      %v3989 = vmul.f32 %v3521, %v3900
      %v3990 = vmul.f32 %v3526, %v3905
      %v3991 = vmul.f32 %v3529, %v3910
      %v3992 = vmul.f32 %v3534, %v3915
      %v3993 = vmul.f32 %v3537, %v3920
      %v3994 = vmul.f32 %v3542, %v3925
      %v3995 = vmul.f32 %v3545, %v3930
      %v3996 = vld [vmem:[%s329] sm:$0xff]
      %v3997 = vld [vmem:[%s329 + $0x8] sm:$0xff]
      %v3998 = vld [vmem:[%s329 + $0x10] sm:$0xff]
      %v3999 = vld [vmem:[%s329 + $0x18] sm:$0xff]
      %v4000 = vld [vmem:[%s329 + $0x20] sm:$0xff]
      %v4001 = vld [vmem:[%s329 + $0x28] sm:$0xff]
      %v4002 = vld [vmem:[%s329 + $0x30] sm:$0xff]
      %v4003 = vld [vmem:[%s329 + $0x38] sm:$0xff]
      %v4004 = vld [vmem:[%s329 + $0x40] sm:$0xff]
      %v4005 = vld [vmem:[%s329 + $0x48] sm:$0xff]
      %v4006 = vld [vmem:[%s329 + $0x50] sm:$0xff]
      %v4007 = vld [vmem:[%s329 + $0x58] sm:$0xff]
      %v4008 = vld [vmem:[%s329 + $0x60] sm:$0xff]
      %v4009 = vld [vmem:[%s329 + $0x68] sm:$0xff]
      %v4010 = vld [vmem:[%s329 + $0x70] sm:$0xff]
      %v4011 = vld [vmem:[%s329 + $0x78] sm:$0xff]
      %v4012 = vld [vmem:[%s329 + $0x80] sm:$0xff]
      %v4013 = vld [vmem:[%s329 + $0x88] sm:$0xff]
      %v4014 = vld [vmem:[%s329 + $0x90] sm:$0xff]
      %v4015 = vld [vmem:[%s329 + $0x98] sm:$0xff]
      %v4016 = vld [vmem:[%s329 + $0xa0] sm:$0xff]
      %v4017 = vld [vmem:[%s329 + $0xa8] sm:$0xff]
      %v4018 = vld [vmem:[%s329 + $0xb0] sm:$0xff]
      %v4019 = vld [vmem:[%s329 + $0xb8] sm:$0xff]
      %v4020 = vld [vmem:[%s329 + $0xc0] sm:$0xff]
      %v4021 = vld [vmem:[%s329 + $0xc8] sm:$0xff]
      %v4022 = vld [vmem:[%s329 + $0xd0] sm:$0xff]
      %v4023 = vld [vmem:[%s329 + $0xd8] sm:$0xff]
      %v4024 = vld [vmem:[%s329 + $0xe0] sm:$0xff]
      %v4025 = vld [vmem:[%s329 + $0xe8] sm:$0xff]
      %v4026 = vld [vmem:[%s329 + $0xf0] sm:$0xff]
      %v4027 = vld [vmem:[%s329 + $0xf8] sm:$0xff]
      %v4028 = vld [vmem:[%s329 + $0x100] sm:$0xff]
      %v4029 = vld [vmem:[%s329 + $0x108] sm:$0xff]
      %v4030 = vld [vmem:[%s329 + $0x110] sm:$0xff]
      %v4031 = vld [vmem:[%s329 + $0x118] sm:$0xff]
      %v4032 = vld [vmem:[%s329 + $0x120] sm:$0xff]
      %v4033 = vld [vmem:[%s329 + $0x128] sm:$0xff]
      %v4034 = vld [vmem:[%s329 + $0x130] sm:$0xff]
      %v4035 = vld [vmem:[%s329 + $0x138] sm:$0xff]
      %v4036 = vld [vmem:[%s329 + $0x140] sm:$0xff]
      %v4037 = vld [vmem:[%s329 + $0x148] sm:$0xff]
      %v4038 = vld [vmem:[%s329 + $0x150] sm:$0xff]
      %v4039 = vld [vmem:[%s329 + $0x158] sm:$0xff]
      %v4040 = vld [vmem:[%s329 + $0x160] sm:$0xff]
      %v4041 = vld [vmem:[%s329 + $0x168] sm:$0xff]
      %v4042 = vld [vmem:[%s329 + $0x170] sm:$0xff]
      %v4043 = vld [vmem:[%s329 + $0x178] sm:$0xff]
      %v4044 = vld [vmem:[%s329 + $0x180] sm:$0xff]
      %v4045 = vld [vmem:[%s329 + $0x188] sm:$0xff]
      %v4046 = vld [vmem:[%s329 + $0x190] sm:$0xff]
      %v4047 = vld [vmem:[%s329 + $0x198] sm:$0xff]
      %v4048 = vld [vmem:[%s329 + $0x1a0] sm:$0xff]
      %v4049 = vld [vmem:[%s329 + $0x1a8] sm:$0xff]
      %v4050 = vld [vmem:[%s329 + $0x1b0] sm:$0xff]
      %v4051 = vld [vmem:[%s329 + $0x1b8] sm:$0xff]
      %v4052 = vld [vmem:[%s329 + $0x1c0] sm:$0xff]
      %v4053 = vld [vmem:[%s329 + $0x1c8] sm:$0xff]
      %v4054 = vld [vmem:[%s329 + $0x1d0] sm:$0xff]
      %v4055 = vld [vmem:[%s329 + $0x1d8] sm:$0xff]
      %v4056 = vld [vmem:[%s329 + $0x1e0] sm:$0xff]
      %v4057 = vld [vmem:[%s329 + $0x1e8] sm:$0xff]
      %v4058 = vld [vmem:[%s329 + $0x1f0] sm:$0xff]
      %v4059 = vld [vmem:[%s329 + $0x1f8] sm:$0xff]
      %v4060 = vadd.f32 %v3932, %v3996
      %v4061 = vadd.f32 %v3933, %v3997
      %v4062 = vadd.f32 %v3934, %v3998
      %v4063 = vadd.f32 %v3935, %v3999
      %v4064 = vadd.f32 %v3936, %v4000
      %v4065 = vadd.f32 %v3937, %v4001
      %v4066 = vadd.f32 %v3938, %v4002
      %v4067 = vadd.f32 %v3939, %v4003
      %v4068 = vadd.f32 %v3940, %v4004
      %v4069 = vadd.f32 %v3941, %v4005
      %v4070 = vadd.f32 %v3942, %v4006
      %v4071 = vadd.f32 %v3943, %v4007
      %v4072 = vadd.f32 %v3944, %v4008
      %v4073 = vadd.f32 %v3945, %v4009
      %v4074 = vadd.f32 %v3946, %v4010
      %v4075 = vadd.f32 %v3947, %v4011
      %v4076 = vadd.f32 %v3948, %v4012
      %v4077 = vadd.f32 %v3949, %v4013
      %v4078 = vadd.f32 %v3950, %v4014
      %v4079 = vadd.f32 %v3951, %v4015
      %v4080 = vadd.f32 %v3952, %v4016
      %v4081 = vadd.f32 %v3953, %v4017
      %v4082 = vadd.f32 %v3954, %v4018
      %v4083 = vadd.f32 %v3955, %v4019
      %v4084 = vadd.f32 %v3956, %v4020
      %v4085 = vadd.f32 %v3957, %v4021
      %v4086 = vadd.f32 %v3958, %v4022
      %v4087 = vadd.f32 %v3959, %v4023
      %v4088 = vadd.f32 %v3960, %v4024
      %v4089 = vadd.f32 %v3961, %v4025
      %v4090 = vadd.f32 %v3962, %v4026
      %v4091 = vadd.f32 %v3963, %v4027
      %v4092 = vadd.f32 %v3964, %v4028
      %v4093 = vadd.f32 %v3965, %v4029
      %v4094 = vadd.f32 %v3966, %v4030
      %v4095 = vadd.f32 %v3967, %v4031
      %v4096 = vadd.f32 %v3968, %v4032
      %v4097 = vadd.f32 %v3969, %v4033
      %v4098 = vadd.f32 %v3970, %v4034
      %v4099 = vadd.f32 %v3971, %v4035
      %v4100 = vadd.f32 %v3972, %v4036
      %v4101 = vadd.f32 %v3973, %v4037
      %v4102 = vadd.f32 %v3974, %v4038
      %v4103 = vadd.f32 %v3975, %v4039
      %v4104 = vadd.f32 %v3976, %v4040
      %v4105 = vadd.f32 %v3977, %v4041
      %v4106 = vadd.f32 %v3978, %v4042
      %v4107 = vadd.f32 %v3979, %v4043
      %v4108 = vadd.f32 %v3980, %v4044
      %v4109 = vadd.f32 %v3981, %v4045
      %v4110 = vadd.f32 %v3982, %v4046
      %v4111 = vadd.f32 %v3983, %v4047
      %v4112 = vadd.f32 %v3984, %v4048
      %v4113 = vadd.f32 %v3985, %v4049
      %v4114 = vadd.f32 %v3986, %v4050
      %v4115 = vadd.f32 %v3987, %v4051
      %v4116 = vadd.f32 %v3988, %v4052
      %v4117 = vadd.f32 %v3989, %v4053
      %v4118 = vadd.f32 %v3990, %v4054
      %v4119 = vadd.f32 %v3991, %v4055
      %v4120 = vadd.f32 %v3992, %v4056
      %v4121 = vadd.f32 %v3993, %v4057
      %v4122 = vadd.f32 %v3994, %v4058
      %v4123 = vadd.f32 %v3995, %v4059
      %v4124 = vld [vmem:[%s4] sm:$0x1]
      %v4126 = vlaneseq
      %v4127 = vshrl.u32 %v4126, 7
      %v4128 = vsub.s32 0, %v4127
      %v4129 = vrot.slane %v4124, %v4128
      %v4131 = vadd.f32 %v4060, %v4129
      %v4132 = vadd.f32 %v4061, %v4129
      %v4133 = vadd.f32 %v4062, %v4129
      %v4134 = vadd.f32 %v4063, %v4129
      %v4135 = vadd.f32 %v4064, %v4129
      %v4136 = vadd.f32 %v4065, %v4129
      %v4137 = vadd.f32 %v4066, %v4129
      %v4138 = vadd.f32 %v4067, %v4129
      %v4139 = vadd.f32 %v4068, %v4129
      %v4140 = vadd.f32 %v4069, %v4129
      %v4141 = vadd.f32 %v4070, %v4129
      %v4142 = vadd.f32 %v4071, %v4129
      %v4143 = vadd.f32 %v4072, %v4129
      %v4144 = vadd.f32 %v4073, %v4129
      %v4145 = vadd.f32 %v4074, %v4129
      %v4146 = vadd.f32 %v4075, %v4129
      %v4147 = vadd.f32 %v4076, %v4129
      %v4148 = vadd.f32 %v4077, %v4129
      %v4149 = vadd.f32 %v4078, %v4129
      %v4150 = vadd.f32 %v4079, %v4129
      %v4151 = vadd.f32 %v4080, %v4129
      %v4152 = vadd.f32 %v4081, %v4129
      %v4153 = vadd.f32 %v4082, %v4129
      %v4154 = vadd.f32 %v4083, %v4129
      %v4155 = vadd.f32 %v4084, %v4129
      %v4156 = vadd.f32 %v4085, %v4129
      %v4157 = vadd.f32 %v4086, %v4129
      %v4158 = vadd.f32 %v4087, %v4129
      %v4159 = vadd.f32 %v4088, %v4129
      %v4160 = vadd.f32 %v4089, %v4129
      %v4161 = vadd.f32 %v4090, %v4129
      %v4162 = vadd.f32 %v4091, %v4129
      %v4163 = vadd.f32 %v4092, %v4129
      %v4164 = vadd.f32 %v4093, %v4129
      %v4165 = vadd.f32 %v4094, %v4129
      %v4166 = vadd.f32 %v4095, %v4129
      %v4167 = vadd.f32 %v4096, %v4129
      %v4168 = vadd.f32 %v4097, %v4129
      %v4169 = vadd.f32 %v4098, %v4129
      %v4170 = vadd.f32 %v4099, %v4129
      %v4171 = vadd.f32 %v4100, %v4129
      %v4172 = vadd.f32 %v4101, %v4129
      %v4173 = vadd.f32 %v4102, %v4129
      %v4174 = vadd.f32 %v4103, %v4129
      %v4175 = vadd.f32 %v4104, %v4129
      %v4176 = vadd.f32 %v4105, %v4129
      %v4177 = vadd.f32 %v4106, %v4129
      %v4178 = vadd.f32 %v4107, %v4129
      %v4179 = vadd.f32 %v4108, %v4129
      %v4180 = vadd.f32 %v4109, %v4129
      %v4181 = vadd.f32 %v4110, %v4129
      %v4182 = vadd.f32 %v4111, %v4129
      %v4183 = vadd.f32 %v4112, %v4129
      %v4184 = vadd.f32 %v4113, %v4129
      %v4185 = vadd.f32 %v4114, %v4129
      %v4186 = vadd.f32 %v4115, %v4129
      %v4187 = vadd.f32 %v4116, %v4129
      %v4188 = vadd.f32 %v4117, %v4129
      %v4189 = vadd.f32 %v4118, %v4129
      %v4190 = vadd.f32 %v4119, %v4129
      %v4191 = vadd.f32 %v4120, %v4129
      %v4192 = vadd.f32 %v4121, %v4129
      %v4193 = vadd.f32 %v4122, %v4129
      %v4194 = vadd.f32 %v4123, %v4129
      %v4195 = vmax.f32 %v4131, 0.0
      %v4196 = vmax.f32 %v4132, 0.0
      %v4197 = vmax.f32 %v4133, 0.0
      %v4198 = vmax.f32 %v4134, 0.0
      %v4199 = vmax.f32 %v4135, 0.0
      %v4200 = vmax.f32 %v4136, 0.0
      %v4201 = vmax.f32 %v4137, 0.0
      %v4202 = vmax.f32 %v4138, 0.0
      %v4203 = vmax.f32 %v4139, 0.0
      %v4204 = vmax.f32 %v4140, 0.0
      %v4205 = vmax.f32 %v4141, 0.0
      %v4206 = vmax.f32 %v4142, 0.0
      %v4207 = vmax.f32 %v4143, 0.0
      %v4208 = vmax.f32 %v4144, 0.0
      %v4209 = vmax.f32 %v4145, 0.0
      %v4210 = vmax.f32 %v4146, 0.0
      %v4211 = vmax.f32 %v4147, 0.0
      %v4212 = vmax.f32 %v4148, 0.0
      %v4213 = vmax.f32 %v4149, 0.0
      %v4214 = vmax.f32 %v4150, 0.0
      %v4215 = vmax.f32 %v4151, 0.0
      %v4216 = vmax.f32 %v4152, 0.0
      %v4217 = vmax.f32 %v4153, 0.0
      %v4218 = vmax.f32 %v4154, 0.0
      %v4219 = vmax.f32 %v4155, 0.0
      %v4220 = vmax.f32 %v4156, 0.0
      %v4221 = vmax.f32 %v4157, 0.0
      %v4222 = vmax.f32 %v4158, 0.0
      %v4223 = vmax.f32 %v4159, 0.0
      %v4224 = vmax.f32 %v4160, 0.0
      %v4225 = vmax.f32 %v4161, 0.0
      %v4226 = vmax.f32 %v4162, 0.0
      %v4227 = vmax.f32 %v4163, 0.0
      %v4228 = vmax.f32 %v4164, 0.0
      %v4229 = vmax.f32 %v4165, 0.0
      %v4230 = vmax.f32 %v4166, 0.0
      %v4231 = vmax.f32 %v4167, 0.0
      %v4232 = vmax.f32 %v4168, 0.0
      %v4233 = vmax.f32 %v4169, 0.0
      %v4234 = vmax.f32 %v4170, 0.0
      %v4235 = vmax.f32 %v4171, 0.0
      %v4236 = vmax.f32 %v4172, 0.0
      %v4237 = vmax.f32 %v4173, 0.0
      %v4238 = vmax.f32 %v4174, 0.0
      %v4239 = vmax.f32 %v4175, 0.0
      %v4240 = vmax.f32 %v4176, 0.0
      %v4241 = vmax.f32 %v4177, 0.0
      %v4242 = vmax.f32 %v4178, 0.0
      %v4243 = vmax.f32 %v4179, 0.0
      %v4244 = vmax.f32 %v4180, 0.0
      %v4245 = vmax.f32 %v4181, 0.0
      %v4246 = vmax.f32 %v4182, 0.0
      %v4247 = vmax.f32 %v4183, 0.0
      %v4248 = vmax.f32 %v4184, 0.0
      %v4249 = vmax.f32 %v4185, 0.0
      %v4250 = vmax.f32 %v4186, 0.0
      %v4251 = vmax.f32 %v4187, 0.0
      %v4252 = vmax.f32 %v4188, 0.0
      %v4253 = vmax.f32 %v4189, 0.0
      %v4254 = vmax.f32 %v4190, 0.0
      %v4255 = vmax.f32 %v4191, 0.0
      %v4256 = vmax.f32 %v4192, 0.0
      %v4257 = vmax.f32 %v4193, 0.0
      %v4258 = vmax.f32 %v4194, 0.0
      %v4259 = vld [vmem:[%s5] sm:$0xff]
      %v4260 = vld [vmem:[%s5 + $0x8] sm:$0xff]
      %vm4261 = vcmask 130048
      %v4263 = vsel %vm4261, %v4195, 0
      %v4266 = vsel %vm4261, %v4196, 0
      %v4269 = vsel %vm4261, %v4197, 0
      %v4272 = vsel %vm4261, %v4198, 0
      %v4275 = vsel %vm4261, %v4199, 0
      %v4278 = vsel %vm4261, %v4200, 0
      %v4281 = vsel %vm4261, %v4201, 0
      %v4284 = vsel %vm4261, %v4202, 0
      %v4287 = vsel %vm4261, %v4203, 0
      %v4290 = vsel %vm4261, %v4204, 0
      %v4293 = vsel %vm4261, %v4205, 0
      %v4296 = vsel %vm4261, %v4206, 0
      %v4299 = vsel %vm4261, %v4207, 0
      %v4302 = vsel %vm4261, %v4208, 0
      %v4305 = vsel %vm4261, %v4209, 0
      %v4308 = vsel %vm4261, %v4210, 0
      %v4311 = vsel %vm4261, %v4211, 0
      %v4314 = vsel %vm4261, %v4212, 0
      %v4317 = vsel %vm4261, %v4213, 0
      %v4320 = vsel %vm4261, %v4214, 0
      %v4323 = vsel %vm4261, %v4215, 0
      %v4326 = vsel %vm4261, %v4216, 0
      %v4329 = vsel %vm4261, %v4217, 0
      %v4332 = vsel %vm4261, %v4218, 0
      %v4335 = vsel %vm4261, %v4219, 0
      %v4338 = vsel %vm4261, %v4220, 0
      %v4341 = vsel %vm4261, %v4221, 0
      %v4344 = vsel %vm4261, %v4222, 0
      %v4347 = vsel %vm4261, %v4223, 0
      %v4350 = vsel %vm4261, %v4224, 0
      %v4353 = vsel %vm4261, %v4225, 0
      %v4356 = vsel %vm4261, %v4226, 0
      %v4359 = vsel %vm4261, %v4227, 0
      %v4362 = vsel %vm4261, %v4228, 0
      %v4365 = vsel %vm4261, %v4229, 0
      %v4368 = vsel %vm4261, %v4230, 0
      %v4371 = vsel %vm4261, %v4231, 0
      %v4374 = vsel %vm4261, %v4232, 0
      %v4377 = vsel %vm4261, %v4233, 0
      %v4380 = vsel %vm4261, %v4234, 0
      %v4383 = vsel %vm4261, %v4235, 0
      %v4386 = vsel %vm4261, %v4236, 0
      %v4389 = vsel %vm4261, %v4237, 0
      %v4392 = vsel %vm4261, %v4238, 0
      %v4395 = vsel %vm4261, %v4239, 0
      %v4398 = vsel %vm4261, %v4240, 0
      %v4401 = vsel %vm4261, %v4241, 0
      %v4404 = vsel %vm4261, %v4242, 0
      %v4407 = vsel %vm4261, %v4243, 0
      %v4410 = vsel %vm4261, %v4244, 0
      %v4413 = vsel %vm4261, %v4245, 0
      %v4416 = vsel %vm4261, %v4246, 0
      %v4419 = vsel %vm4261, %v4247, 0
      %v4422 = vsel %vm4261, %v4248, 0
      %v4425 = vsel %vm4261, %v4249, 0
      %v4428 = vsel %vm4261, %v4250, 0
      %v4431 = vsel %vm4261, %v4251, 0
      %v4434 = vsel %vm4261, %v4252, 0
      %v4437 = vsel %vm4261, %v4253, 0
      %v4440 = vsel %vm4261, %v4254, 0
      %v4443 = vsel %vm4261, %v4255, 0
      %v4446 = vsel %vm4261, %v4256, 0
      %v4449 = vsel %vm4261, %v4257, 0
      %v4452 = vsel %vm4261, %v4258, 0
      %4454 = vmatprep.subr.mxu0 0.0
      %4455 = vmatpush1.msra.mxu0 %v4259
      %4456 = vmatprep.subr.mxu0 0.0
      %4457 = vmatpush1.msra.mxu0 %v4260
      %4458 = vmatprep.subr.mxu0 0.0
      %4459 = vmatpush1.msra.mxu0 0.0
      %4460 = vmatprep.subr.mxu0 0.0
      %4461 = vmatpush1.msra.mxu0 0.0
      %4462 = vmatprep.subr.mxu0 0.0
      %4463 = vmatpush1.msra.mxu0 0.0
      %4464 = vmatprep.subr.mxu0 0.0
      %4465 = vmatpush1.msra.mxu0 0.0
      %4466 = vmatprep.subr.mxu0 0.0
      %4467 = vmatpush1.msra.mxu0 0.0
      %4468 = vmatprep.subr.mxu0 0.0
      %4469 = vmatpush1.msra.mxu0 0.0
      %4470 = vmatprep.subr.mxu0 0.0
      %4471 = vmatpush1.msra.mxu0 0.0
      %4472 = vmatprep.subr.mxu0 0.0
      %4473 = vmatpush1.msra.mxu0 0.0
      %4474 = vmatprep.subr.mxu0 0.0
      %4475 = vmatpush1.msra.mxu0 0.0
      %4476 = vmatprep.subr.mxu0 0.0
      %4477 = vmatpush1.msra.mxu0 0.0
      %4478 = vmatprep.subr.mxu0 0.0
      %4479 = vmatpush1.msra.mxu0 0.0
      %4480 = vmatprep.subr.mxu0 0.0
      %4481 = vmatpush1.msra.mxu0 0.0
      %4482 = vmatprep.subr.mxu0 0.0
      %4483 = vmatpush1.msra.mxu0 0.0
      %4484 = vmatprep.subr.mxu0 0.0
      %4485 = vmatpush1.msra.mxu0 0.0
      %4486 = vmatprep.subr.mxu0 0.0
      %4487 = vmatpush1.msra.mxu0 0.0
      %4488 = vmatprep.subr.mxu0 0.0
      %4489 = vmatpush1.msra.mxu0 0.0
      %4490 = vmatprep.subr.mxu0 0.0
      %4491 = vmatpush1.msra.mxu0 0.0
      %4492 = vmatprep.subr.mxu0 0.0
      %4493 = vmatpush1.msra.mxu0 0.0
      %4494 = vmatprep.subr.mxu0 0.0
      %4495 = vmatpush1.msra.mxu0 0.0
      %4496 = vmatprep.subr.mxu0 0.0
      %4497 = vmatpush1.msra.mxu0 0.0
      %4498 = vmatprep.subr.mxu0 0.0
      %4499 = vmatpush1.msra.mxu0 0.0
      %4500 = vmatprep.subr.mxu0 0.0
      %4501 = vmatpush1.msra.mxu0 0.0
      %4502 = vmatprep.subr.mxu0 0.0
      %4503 = vmatpush1.msra.mxu0 0.0
      %4504 = vmatprep.subr.mxu0 0.0
      %4505 = vmatpush1.msra.mxu0 0.0
      %4506 = vmatprep.subr.mxu0 0.0
      %4507 = vmatpush1.msra.mxu0 0.0
      %4508 = vmatprep.subr.mxu0 0.0
      %4509 = vmatpush1.msra.mxu0 0.0
      %4510 = vmatprep.subr.mxu0 0.0
      %4511 = vmatpush1.msra.mxu0 0.0
      %4512 = vmatprep.subr.mxu0 0.0
      %4513 = vmatpush1.msra.mxu0 0.0
      %4514 = vmatprep.subr.mxu0 0.0
      %4515 = vmatpush1.msra.mxu0 0.0
      %4516 = vmatprep.subr.mxu0 0.0
      %4517 = vmatpush1.msra.mxu0 0.0
      %4518 = vmatprep.mubr.f32.mxu0 0.0
      %4519 = vmatmul.mubr.f32.gmra.mrb[0].mxu0 %v4263
      %v4520 = vpop.f32.mrb[0].mxu0
      %v4521 = vadd.f32 0.0, %v4520
      %v4522 = vpop.f32.mrb[0].mxu0
      %4523 = vmatprep.mubr.f32.mxu0 0.0
      %4524 = vmatmul.mubr.f32.gmra.mrb[0].mxu0 %v4266
      %v4525 = vpop.f32.mrb[0].mxu0
      %v4526 = vadd.f32 0.0, %v4525
      %v4527 = vpop.f32.mrb[0].mxu0
      %4528 = vmatprep.mubr.f32.mxu0 0.0
      %4529 = vmatmul.mubr.f32.gmra.mrb[0].mxu0 %v4269
      %v4530 = vpop.f32.mrb[0].mxu0
      %v4531 = vadd.f32 0.0, %v4530
      %v4532 = vpop.f32.mrb[0].mxu0
      %4533 = vmatprep.mubr.f32.mxu0 0.0
      %4534 = vmatmul.mubr.f32.gmra.mrb[0].mxu0 %v4272
      %v4535 = vpop.f32.mrb[0].mxu0
      %v4536 = vadd.f32 0.0, %v4535
      %v4537 = vpop.f32.mrb[0].mxu0
      %4538 = vmatprep.mubr.f32.mxu0 0.0
      %4539 = vmatmul.mubr.f32.gmra.mrb[0].mxu0 %v4275
      %v4540 = vpop.f32.mrb[0].mxu0
      %v4541 = vadd.f32 0.0, %v4540
      %v4542 = vpop.f32.mrb[0].mxu0
      %4543 = vmatprep.mubr.f32.mxu0 0.0
      %4544 = vmatmul.mubr.f32.gmra.mrb[0].mxu0 %v4278
      %v4545 = vpop.f32.mrb[0].mxu0
      %v4546 = vadd.f32 0.0, %v4545
      %v4547 = vpop.f32.mrb[0].mxu0
      %4548 = vmatprep.mubr.f32.mxu0 0.0
      %4549 = vmatmul.mubr.f32.gmra.mrb[0].mxu0 %v4281
      %v4550 = vpop.f32.mrb[0].mxu0
      %v4551 = vadd.f32 0.0, %v4550
      %v4552 = vpop.f32.mrb[0].mxu0
      %4553 = vmatprep.mubr.f32.mxu0 0.0
      %4554 = vmatmul.mubr.f32.gmra.mrb[0].mxu0 %v4284
      %v4555 = vpop.f32.mrb[0].mxu0
      %v4556 = vadd.f32 0.0, %v4555
      %v4557 = vpop.f32.mrb[0].mxu0
      %4558 = vmatprep.mubr.f32.mxu0 0.0
      %4559 = vmatmul.mubr.f32.gmra.mrb[0].mxu0 %v4287
      %v4560 = vpop.f32.mrb[0].mxu0
      %v4561 = vadd.f32 0.0, %v4560
      %v4562 = vpop.f32.mrb[0].mxu0
      %4563 = vmatprep.mubr.f32.mxu0 0.0
      %4564 = vmatmul.mubr.f32.gmra.mrb[0].mxu0 %v4290
      %v4565 = vpop.f32.mrb[0].mxu0
      %v4566 = vadd.f32 0.0, %v4565
      %v4567 = vpop.f32.mrb[0].mxu0
      %4568 = vmatprep.mubr.f32.mxu0 0.0
      %4569 = vmatmul.mubr.f32.gmra.mrb[0].mxu0 %v4293
      %v4570 = vpop.f32.mrb[0].mxu0
      %v4571 = vadd.f32 0.0, %v4570
      %v4572 = vpop.f32.mrb[0].mxu0
      %4573 = vmatprep.mubr.f32.mxu0 0.0
      %4574 = vmatmul.mubr.f32.gmra.mrb[0].mxu0 %v4296
      %v4575 = vpop.f32.mrb[0].mxu0
      %v4576 = vadd.f32 0.0, %v4575
      %v4577 = vpop.f32.mrb[0].mxu0
      %4578 = vmatprep.mubr.f32.mxu0 0.0
      %4579 = vmatmul.mubr.f32.gmra.mrb[0].mxu0 %v4299
      %v4580 = vpop.f32.mrb[0].mxu0
      %v4581 = vadd.f32 0.0, %v4580
      %v4582 = vpop.f32.mrb[0].mxu0
      %4583 = vmatprep.mubr.f32.mxu0 0.0
      %4584 = vmatmul.mubr.f32.gmra.mrb[0].mxu0 %v4302
      %v4585 = vpop.f32.mrb[0].mxu0
      %v4586 = vadd.f32 0.0, %v4585
      %v4587 = vpop.f32.mrb[0].mxu0
      %4588 = vmatprep.mubr.f32.mxu0 0.0
      %4589 = vmatmul.mubr.f32.gmra.mrb[0].mxu0 %v4305
      %v4590 = vpop.f32.mrb[0].mxu0
      %v4591 = vadd.f32 0.0, %v4590
      %v4592 = vpop.f32.mrb[0].mxu0
      %4593 = vmatprep.mubr.f32.mxu0 0.0
      %4594 = vmatmul.mubr.f32.gmra.mrb[0].mxu0 %v4308
      %v4595 = vpop.f32.mrb[0].mxu0
      %v4596 = vadd.f32 0.0, %v4595
      %v4597 = vpop.f32.mrb[0].mxu0
      %4598 = vmatprep.mubr.f32.mxu0 0.0
      %4599 = vmatmul.mubr.f32.gmra.mrb[0].mxu0 %v4311
      %v4600 = vpop.f32.mrb[0].mxu0
      %v4601 = vadd.f32 0.0, %v4600
      %v4602 = vpop.f32.mrb[0].mxu0
      %4603 = vmatprep.mubr.f32.mxu0 0.0
      %4604 = vmatmul.mubr.f32.gmra.mrb[0].mxu0 %v4314
      %v4605 = vpop.f32.mrb[0].mxu0
      %v4606 = vadd.f32 0.0, %v4605
      %v4607 = vpop.f32.mrb[0].mxu0
      %4608 = vmatprep.mubr.f32.mxu0 0.0
      %4609 = vmatmul.mubr.f32.gmra.mrb[0].mxu0 %v4317
      %v4610 = vpop.f32.mrb[0].mxu0
      %v4611 = vadd.f32 0.0, %v4610
      %v4612 = vpop.f32.mrb[0].mxu0
      %4613 = vmatprep.mubr.f32.mxu0 0.0
      %4614 = vmatmul.mubr.f32.gmra.mrb[0].mxu0 %v4320
      %v4615 = vpop.f32.mrb[0].mxu0
      %v4616 = vadd.f32 0.0, %v4615
      %v4617 = vpop.f32.mrb[0].mxu0
      %4618 = vmatprep.mubr.f32.mxu0 0.0
      %4619 = vmatmul.mubr.f32.gmra.mrb[0].mxu0 %v4323
      %v4620 = vpop.f32.mrb[0].mxu0
      %v4621 = vadd.f32 0.0, %v4620
      %v4622 = vpop.f32.mrb[0].mxu0
      %4623 = vmatprep.mubr.f32.mxu0 0.0
      %4624 = vmatmul.mubr.f32.gmra.mrb[0].mxu0 %v4326
      %v4625 = vpop.f32.mrb[0].mxu0
      %v4626 = vadd.f32 0.0, %v4625
      %v4627 = vpop.f32.mrb[0].mxu0
      %4628 = vmatprep.mubr.f32.mxu0 0.0
      %4629 = vmatmul.mubr.f32.gmra.mrb[0].mxu0 %v4329
      %v4630 = vpop.f32.mrb[0].mxu0
      %v4631 = vadd.f32 0.0, %v4630
      %v4632 = vpop.f32.mrb[0].mxu0
      %4633 = vmatprep.mubr.f32.mxu0 0.0
      %4634 = vmatmul.mubr.f32.gmra.mrb[0].mxu0 %v4332
      %v4635 = vpop.f32.mrb[0].mxu0
      %v4636 = vadd.f32 0.0, %v4635
      %v4637 = vpop.f32.mrb[0].mxu0
      %4638 = vmatprep.mubr.f32.mxu0 0.0
      %4639 = vmatmul.mubr.f32.gmra.mrb[0].mxu0 %v4335
      %v4640 = vpop.f32.mrb[0].mxu0
      %v4641 = vadd.f32 0.0, %v4640
      %v4642 = vpop.f32.mrb[0].mxu0
      %4643 = vmatprep.mubr.f32.mxu0 0.0
      %4644 = vmatmul.mubr.f32.gmra.mrb[0].mxu0 %v4338
      %v4645 = vpop.f32.mrb[0].mxu0
      %v4646 = vadd.f32 0.0, %v4645
      %v4647 = vpop.f32.mrb[0].mxu0
      %4648 = vmatprep.mubr.f32.mxu0 0.0
      %4649 = vmatmul.mubr.f32.gmra.mrb[0].mxu0 %v4341
      %v4650 = vpop.f32.mrb[0].mxu0
      %v4651 = vadd.f32 0.0, %v4650
      %v4652 = vpop.f32.mrb[0].mxu0
      %4653 = vmatprep.mubr.f32.mxu0 0.0
      %4654 = vmatmul.mubr.f32.gmra.mrb[0].mxu0 %v4344
      %v4655 = vpop.f32.mrb[0].mxu0
      %v4656 = vadd.f32 0.0, %v4655
      %v4657 = vpop.f32.mrb[0].mxu0
      %4658 = vmatprep.mubr.f32.mxu0 0.0
      %4659 = vmatmul.mubr.f32.gmra.mrb[0].mxu0 %v4347
      %v4660 = vpop.f32.mrb[0].mxu0
      %v4661 = vadd.f32 0.0, %v4660
      %v4662 = vpop.f32.mrb[0].mxu0
      %4663 = vmatprep.mubr.f32.mxu0 0.0
      %4664 = vmatmul.mubr.f32.gmra.mrb[0].mxu0 %v4350
      %v4665 = vpop.f32.mrb[0].mxu0
      %v4666 = vadd.f32 0.0, %v4665
      %v4667 = vpop.f32.mrb[0].mxu0
      %4668 = vmatprep.mubr.f32.mxu0 0.0
      %4669 = vmatmul.mubr.f32.gmra.mrb[0].mxu0 %v4353
      %v4670 = vpop.f32.mrb[0].mxu0
      %v4671 = vadd.f32 0.0, %v4670
      %v4672 = vpop.f32.mrb[0].mxu0
      %4673 = vmatprep.mubr.f32.mxu0 0.0
      %4674 = vmatmul.mubr.f32.gmra.mrb[0].mxu0 %v4356
      %v4675 = vpop.f32.mrb[0].mxu0
      %v4676 = vadd.f32 0.0, %v4675
      %v4677 = vpop.f32.mrb[0].mxu0
      %4678 = vmatprep.mubr.f32.mxu0 0.0
      %4679 = vmatmul.mubr.f32.gmra.mrb[0].mxu0 %v4359
      %v4680 = vpop.f32.mrb[0].mxu0
      %v4681 = vadd.f32 0.0, %v4680
      %v4682 = vpop.f32.mrb[0].mxu0
      %4683 = vmatprep.mubr.f32.mxu0 0.0
      %4684 = vmatmul.mubr.f32.gmra.mrb[0].mxu0 %v4362
      %v4685 = vpop.f32.mrb[0].mxu0
      %v4686 = vadd.f32 0.0, %v4685
      %v4687 = vpop.f32.mrb[0].mxu0
      %4688 = vmatprep.mubr.f32.mxu0 0.0
      %4689 = vmatmul.mubr.f32.gmra.mrb[0].mxu0 %v4365
      %v4690 = vpop.f32.mrb[0].mxu0
      %v4691 = vadd.f32 0.0, %v4690
      %v4692 = vpop.f32.mrb[0].mxu0
      %4693 = vmatprep.mubr.f32.mxu0 0.0
      %4694 = vmatmul.mubr.f32.gmra.mrb[0].mxu0 %v4368
      %v4695 = vpop.f32.mrb[0].mxu0
      %v4696 = vadd.f32 0.0, %v4695
      %v4697 = vpop.f32.mrb[0].mxu0
      %4698 = vmatprep.mubr.f32.mxu0 0.0
      %4699 = vmatmul.mubr.f32.gmra.mrb[0].mxu0 %v4371
      %v4700 = vpop.f32.mrb[0].mxu0
      %v4701 = vadd.f32 0.0, %v4700
      %v4702 = vpop.f32.mrb[0].mxu0
      %4703 = vmatprep.mubr.f32.mxu0 0.0
      %4704 = vmatmul.mubr.f32.gmra.mrb[0].mxu0 %v4374
      %v4705 = vpop.f32.mrb[0].mxu0
      %v4706 = vadd.f32 0.0, %v4705
      %v4707 = vpop.f32.mrb[0].mxu0
      %4708 = vmatprep.mubr.f32.mxu0 0.0
      %4709 = vmatmul.mubr.f32.gmra.mrb[0].mxu0 %v4377
      %v4710 = vpop.f32.mrb[0].mxu0
      %v4711 = vadd.f32 0.0, %v4710
      %v4712 = vpop.f32.mrb[0].mxu0
      %4713 = vmatprep.mubr.f32.mxu0 0.0
      %4714 = vmatmul.mubr.f32.gmra.mrb[0].mxu0 %v4380
      %v4715 = vpop.f32.mrb[0].mxu0
      %v4716 = vadd.f32 0.0, %v4715
      %v4717 = vpop.f32.mrb[0].mxu0
      %4718 = vmatprep.mubr.f32.mxu0 0.0
      %4719 = vmatmul.mubr.f32.gmra.mrb[0].mxu0 %v4383
      %v4720 = vpop.f32.mrb[0].mxu0
      %v4721 = vadd.f32 0.0, %v4720
      %v4722 = vpop.f32.mrb[0].mxu0
      %4723 = vmatprep.mubr.f32.mxu0 0.0
      %4724 = vmatmul.mubr.f32.gmra.mrb[0].mxu0 %v4386
      %v4725 = vpop.f32.mrb[0].mxu0
      %v4726 = vadd.f32 0.0, %v4725
      %v4727 = vpop.f32.mrb[0].mxu0
      %4728 = vmatprep.mubr.f32.mxu0 0.0
      %4729 = vmatmul.mubr.f32.gmra.mrb[0].mxu0 %v4389
      %v4730 = vpop.f32.mrb[0].mxu0
      %v4731 = vadd.f32 0.0, %v4730
      %v4732 = vpop.f32.mrb[0].mxu0
      %4733 = vmatprep.mubr.f32.mxu0 0.0
      %4734 = vmatmul.mubr.f32.gmra.mrb[0].mxu0 %v4392
      %v4735 = vpop.f32.mrb[0].mxu0
      %v4736 = vadd.f32 0.0, %v4735
      %v4737 = vpop.f32.mrb[0].mxu0
      %4738 = vmatprep.mubr.f32.mxu0 0.0
      %4739 = vmatmul.mubr.f32.gmra.mrb[0].mxu0 %v4395
      %v4740 = vpop.f32.mrb[0].mxu0
      %v4741 = vadd.f32 0.0, %v4740
      %v4742 = vpop.f32.mrb[0].mxu0
      %4743 = vmatprep.mubr.f32.mxu0 0.0
      %4744 = vmatmul.mubr.f32.gmra.mrb[0].mxu0 %v4398
      %v4745 = vpop.f32.mrb[0].mxu0
      %v4746 = vadd.f32 0.0, %v4745
      %v4747 = vpop.f32.mrb[0].mxu0
      %4748 = vmatprep.mubr.f32.mxu0 0.0
      %4749 = vmatmul.mubr.f32.gmra.mrb[0].mxu0 %v4401
      %v4750 = vpop.f32.mrb[0].mxu0
      %v4751 = vadd.f32 0.0, %v4750
      %v4752 = vpop.f32.mrb[0].mxu0
      %4753 = vmatprep.mubr.f32.mxu0 0.0
      %4754 = vmatmul.mubr.f32.gmra.mrb[0].mxu0 %v4404
      %v4755 = vpop.f32.mrb[0].mxu0
      %v4756 = vadd.f32 0.0, %v4755
      %v4757 = vpop.f32.mrb[0].mxu0
      %4758 = vmatprep.mubr.f32.mxu0 0.0
      %4759 = vmatmul.mubr.f32.gmra.mrb[0].mxu0 %v4407
      %v4760 = vpop.f32.mrb[0].mxu0
      %v4761 = vadd.f32 0.0, %v4760
      %v4762 = vpop.f32.mrb[0].mxu0
      %4763 = vmatprep.mubr.f32.mxu0 0.0
      %4764 = vmatmul.mubr.f32.gmra.mrb[0].mxu0 %v4410
      %v4765 = vpop.f32.mrb[0].mxu0
      %v4766 = vadd.f32 0.0, %v4765
      %v4767 = vpop.f32.mrb[0].mxu0
      %4768 = vmatprep.mubr.f32.mxu0 0.0
      %4769 = vmatmul.mubr.f32.gmra.mrb[0].mxu0 %v4413
      %v4770 = vpop.f32.mrb[0].mxu0
      %v4771 = vadd.f32 0.0, %v4770
      %v4772 = vpop.f32.mrb[0].mxu0
      %4773 = vmatprep.mubr.f32.mxu0 0.0
      %4774 = vmatmul.mubr.f32.gmra.mrb[0].mxu0 %v4416
      %v4775 = vpop.f32.mrb[0].mxu0
      %v4776 = vadd.f32 0.0, %v4775
      %v4777 = vpop.f32.mrb[0].mxu0
      %4778 = vmatprep.mubr.f32.mxu0 0.0
      %4779 = vmatmul.mubr.f32.gmra.mrb[0].mxu0 %v4419
      %v4780 = vpop.f32.mrb[0].mxu0
      %v4781 = vadd.f32 0.0, %v4780
      %v4782 = vpop.f32.mrb[0].mxu0
      %4783 = vmatprep.mubr.f32.mxu0 0.0
      %4784 = vmatmul.mubr.f32.gmra.mrb[0].mxu0 %v4422
      %v4785 = vpop.f32.mrb[0].mxu0
      %v4786 = vadd.f32 0.0, %v4785
      %v4787 = vpop.f32.mrb[0].mxu0
      %4788 = vmatprep.mubr.f32.mxu0 0.0
      %4789 = vmatmul.mubr.f32.gmra.mrb[0].mxu0 %v4425
      %v4790 = vpop.f32.mrb[0].mxu0
      %v4791 = vadd.f32 0.0, %v4790
      %v4792 = vpop.f32.mrb[0].mxu0
      %4793 = vmatprep.mubr.f32.mxu0 0.0
      %4794 = vmatmul.mubr.f32.gmra.mrb[0].mxu0 %v4428
      %v4795 = vpop.f32.mrb[0].mxu0
      %v4796 = vadd.f32 0.0, %v4795
      %v4797 = vpop.f32.mrb[0].mxu0
      %4798 = vmatprep.mubr.f32.mxu0 0.0
      %4799 = vmatmul.mubr.f32.gmra.mrb[0].mxu0 %v4431
      %v4800 = vpop.f32.mrb[0].mxu0
      %v4801 = vadd.f32 0.0, %v4800
      %v4802 = vpop.f32.mrb[0].mxu0
      %4803 = vmatprep.mubr.f32.mxu0 0.0
      %4804 = vmatmul.mubr.f32.gmra.mrb[0].mxu0 %v4434
      %v4805 = vpop.f32.mrb[0].mxu0
      %v4806 = vadd.f32 0.0, %v4805
      %v4807 = vpop.f32.mrb[0].mxu0
      %4808 = vmatprep.mubr.f32.mxu0 0.0
      %4809 = vmatmul.mubr.f32.gmra.mrb[0].mxu0 %v4437
      %v4810 = vpop.f32.mrb[0].mxu0
      %v4811 = vadd.f32 0.0, %v4810
      %v4812 = vpop.f32.mrb[0].mxu0
      %4813 = vmatprep.mubr.f32.mxu0 0.0
      %4814 = vmatmul.mubr.f32.gmra.mrb[0].mxu0 %v4440
      %v4815 = vpop.f32.mrb[0].mxu0
      %v4816 = vadd.f32 0.0, %v4815
      %v4817 = vpop.f32.mrb[0].mxu0
      %4818 = vmatprep.mubr.f32.mxu0 0.0
      %4819 = vmatmul.mubr.f32.gmra.mrb[0].mxu0 %v4443
      %v4820 = vpop.f32.mrb[0].mxu0
      %v4821 = vadd.f32 0.0, %v4820
      %v4822 = vpop.f32.mrb[0].mxu0
      %4823 = vmatprep.mubr.f32.mxu0 0.0
      %4824 = vmatmul.mubr.f32.gmra.mrb[0].mxu0 %v4446
      %v4825 = vpop.f32.mrb[0].mxu0
      %v4826 = vadd.f32 0.0, %v4825
      %v4827 = vpop.f32.mrb[0].mxu0
      %4828 = vmatprep.mubr.f32.mxu0 0.0
      %4829 = vmatmul.mubr.f32.gmra.mrb[0].mxu0 %v4449
      %v4830 = vpop.f32.mrb[0].mxu0
      %v4831 = vadd.f32 0.0, %v4830
      %v4832 = vpop.f32.mrb[0].mxu0
      %4833 = vmatprep.mubr.f32.mxu0 0.0
      %4834 = vmatmul.mubr.f32.gmra.mrb[0].mxu0 %v4452
      %v4835 = vpop.f32.mrb[0].mxu0
      %v4836 = vadd.f32 0.0, %v4835
      %v4837 = vpop.f32.mrb[0].mxu0
      %4838 = vdwg.mxu0
      %v4839 = vpack.c.bf16 %v4526, %v4521
      %v4840 = vpack.c.bf16 %v4536, %v4531
      %v4841 = vpack.c.bf16 %v4546, %v4541
      %v4842 = vpack.c.bf16 %v4556, %v4551
      %v4843 = vpack.c.bf16 %v4566, %v4561
      %v4844 = vpack.c.bf16 %v4576, %v4571
      %v4845 = vpack.c.bf16 %v4586, %v4581
      %v4846 = vpack.c.bf16 %v4596, %v4591
      %v4847 = vpack.c.bf16 %v4606, %v4601
      %v4848 = vpack.c.bf16 %v4616, %v4611
      %v4849 = vpack.c.bf16 %v4626, %v4621
      %v4850 = vpack.c.bf16 %v4636, %v4631
      %v4851 = vpack.c.bf16 %v4646, %v4641
      %v4852 = vpack.c.bf16 %v4656, %v4651
      %v4853 = vpack.c.bf16 %v4666, %v4661
      %v4854 = vpack.c.bf16 %v4676, %v4671
      %v4855 = vpack.c.bf16 %v4686, %v4681
      %v4856 = vpack.c.bf16 %v4696, %v4691
      %v4857 = vpack.c.bf16 %v4706, %v4701
      %v4858 = vpack.c.bf16 %v4716, %v4711
      %v4859 = vpack.c.bf16 %v4726, %v4721
      %v4860 = vpack.c.bf16 %v4736, %v4731
      %v4861 = vpack.c.bf16 %v4746, %v4741
      %v4862 = vpack.c.bf16 %v4756, %v4751
      %v4863 = vpack.c.bf16 %v4766, %v4761
      %v4864 = vpack.c.bf16 %v4776, %v4771
      %v4865 = vpack.c.bf16 %v4786, %v4781
      %v4866 = vpack.c.bf16 %v4796, %v4791
      %v4867 = vpack.c.bf16 %v4806, %v4801
      %v4868 = vpack.c.bf16 %v4816, %v4811
      %v4869 = vpack.c.bf16 %v4826, %v4821
      %v4870 = vpack.c.bf16 %v4836, %v4831
      %v4903 = vunpack.c.l.b16 %v4839
      %v4904 = vunpack.c.h.b16 %v4839
      %v4905 = vunpack.c.l.b16 %v4840
      %v4906 = vunpack.c.h.b16 %v4840
      %v4907 = vunpack.c.l.b16 %v4841
      %v4908 = vunpack.c.h.b16 %v4841
      %v4909 = vunpack.c.l.b16 %v4842
      %v4910 = vunpack.c.h.b16 %v4842
      %v4911 = vunpack.c.l.b16 %v4843
      %v4912 = vunpack.c.h.b16 %v4843
      %v4913 = vunpack.c.l.b16 %v4844
      %v4914 = vunpack.c.h.b16 %v4844
      %v4915 = vunpack.c.l.b16 %v4845
      %v4916 = vunpack.c.h.b16 %v4845
      %v4917 = vunpack.c.l.b16 %v4846
      %v4918 = vunpack.c.h.b16 %v4846
      %v4919 = vunpack.c.l.b16 %v4847
      %v4920 = vunpack.c.h.b16 %v4847
      %v4921 = vunpack.c.l.b16 %v4848
      %v4922 = vunpack.c.h.b16 %v4848
      %v4923 = vunpack.c.l.b16 %v4849
      %v4924 = vunpack.c.h.b16 %v4849
      %v4925 = vunpack.c.l.b16 %v4850
      %v4926 = vunpack.c.h.b16 %v4850
      %v4927 = vunpack.c.l.b16 %v4851
      %v4928 = vunpack.c.h.b16 %v4851
      %v4929 = vunpack.c.l.b16 %v4852
      %v4930 = vunpack.c.h.b16 %v4852
      %v4931 = vunpack.c.l.b16 %v4853
      %v4932 = vunpack.c.h.b16 %v4853
      %v4933 = vunpack.c.l.b16 %v4854
      %v4934 = vunpack.c.h.b16 %v4854
      %v4935 = vunpack.c.l.b16 %v4855
      %v4936 = vunpack.c.h.b16 %v4855
      %v4937 = vunpack.c.l.b16 %v4856
      %v4938 = vunpack.c.h.b16 %v4856
      %v4939 = vunpack.c.l.b16 %v4857
      %v4940 = vunpack.c.h.b16 %v4857
      %v4941 = vunpack.c.l.b16 %v4858
      %v4942 = vunpack.c.h.b16 %v4858
      %v4943 = vunpack.c.l.b16 %v4859
      %v4944 = vunpack.c.h.b16 %v4859
      %v4945 = vunpack.c.l.b16 %v4860
      %v4946 = vunpack.c.h.b16 %v4860
      %v4947 = vunpack.c.l.b16 %v4861
      %v4948 = vunpack.c.h.b16 %v4861
      %v4949 = vunpack.c.l.b16 %v4862
      %v4950 = vunpack.c.h.b16 %v4862
      %v4951 = vunpack.c.l.b16 %v4863
      %v4952 = vunpack.c.h.b16 %v4863
      %v4953 = vunpack.c.l.b16 %v4864
      %v4954 = vunpack.c.h.b16 %v4864
      %v4955 = vunpack.c.l.b16 %v4865
      %v4956 = vunpack.c.h.b16 %v4865
      %v4957 = vunpack.c.l.b16 %v4866
      %v4958 = vunpack.c.h.b16 %v4866
      %v4959 = vunpack.c.l.b16 %v4867
      %v4960 = vunpack.c.h.b16 %v4867
      %v4961 = vunpack.c.l.b16 %v4868
      %v4962 = vunpack.c.h.b16 %v4868
      %v4963 = vunpack.c.l.b16 %v4869
      %v4964 = vunpack.c.h.b16 %v4869
      %v4965 = vunpack.c.l.b16 %v4870
      %v4966 = vunpack.c.h.b16 %v4870
      %v4967 = vpack.c.b16 %v4903, %v4903
      %v4968 = vpack.c.b16 %v4904, %v4904
      %v4969 = vpack.c.b16 %v4905, %v4905
      %v4970 = vpack.c.b16 %v4906, %v4906
      %v4971 = vpack.c.b16 %v4907, %v4907
      %v4972 = vpack.c.b16 %v4908, %v4908
      %v4973 = vpack.c.b16 %v4909, %v4909
      %v4974 = vpack.c.b16 %v4910, %v4910
      %v4975 = vpack.c.b16 %v4911, %v4911
      %v4976 = vpack.c.b16 %v4912, %v4912
      %v4977 = vpack.c.b16 %v4913, %v4913
      %v4978 = vpack.c.b16 %v4914, %v4914
      %v4979 = vpack.c.b16 %v4915, %v4915
      %v4980 = vpack.c.b16 %v4916, %v4916
      %v4981 = vpack.c.b16 %v4917, %v4917
      %v4982 = vpack.c.b16 %v4918, %v4918
      %v4983 = vpack.c.b16 %v4919, %v4919
      %v4984 = vpack.c.b16 %v4920, %v4920
      %v4985 = vpack.c.b16 %v4921, %v4921
      %v4986 = vpack.c.b16 %v4922, %v4922
      %v4987 = vpack.c.b16 %v4923, %v4923
      %v4988 = vpack.c.b16 %v4924, %v4924
      %v4989 = vpack.c.b16 %v4925, %v4925
      %v4990 = vpack.c.b16 %v4926, %v4926
      %v4991 = vpack.c.b16 %v4927, %v4927
      %v4992 = vpack.c.b16 %v4928, %v4928
      %v4993 = vpack.c.b16 %v4929, %v4929
      %v4994 = vpack.c.b16 %v4930, %v4930
      %v4995 = vpack.c.b16 %v4931, %v4931
      %v4996 = vpack.c.b16 %v4932, %v4932
      %v4997 = vpack.c.b16 %v4933, %v4933
      %v4998 = vpack.c.b16 %v4934, %v4934
      %v4999 = vpack.c.b16 %v4935, %v4935
      %v5000 = vpack.c.b16 %v4936, %v4936
      %v5001 = vpack.c.b16 %v4937, %v4937
      %v5002 = vpack.c.b16 %v4938, %v4938
      %v5003 = vpack.c.b16 %v4939, %v4939
      %v5004 = vpack.c.b16 %v4940, %v4940
      %v5005 = vpack.c.b16 %v4941, %v4941
      %v5006 = vpack.c.b16 %v4942, %v4942
      %v5007 = vpack.c.b16 %v4943, %v4943
      %v5008 = vpack.c.b16 %v4944, %v4944
      %v5009 = vpack.c.b16 %v4945, %v4945
      %v5010 = vpack.c.b16 %v4946, %v4946
      %v5011 = vpack.c.b16 %v4947, %v4947
      %v5012 = vpack.c.b16 %v4948, %v4948
      %v5013 = vpack.c.b16 %v4949, %v4949
      %v5014 = vpack.c.b16 %v4950, %v4950
      %v5015 = vpack.c.b16 %v4951, %v4951
      %v5016 = vpack.c.b16 %v4952, %v4952
      %v5017 = vpack.c.b16 %v4953, %v4953
      %v5018 = vpack.c.b16 %v4954, %v4954
      %v5019 = vpack.c.b16 %v4955, %v4955
      %v5020 = vpack.c.b16 %v4956, %v4956
      %v5021 = vpack.c.b16 %v4957, %v4957
      %v5022 = vpack.c.b16 %v4958, %v4958
      %v5023 = vpack.c.b16 %v4959, %v4959
      %v5024 = vpack.c.b16 %v4960, %v4960
      %v5025 = vpack.c.b16 %v4961, %v4961
      %v5026 = vpack.c.b16 %v4962, %v4962
      %v5027 = vpack.c.b16 %v4963, %v4963
      %v5028 = vpack.c.b16 %v4964, %v4964
      %v5029 = vpack.c.b16 %v4965, %v4965
      %v5030 = vpack.c.b16 %v4966, %v4966
      %vm5095 = vcmask 60416
      %5096 = vst.msk [vmem:[%s335] sm:$0xf] %vm5095, %v4967
      %5097 = vst.msk [vmem:[%s335 + $0x4] sm:$0xf] %vm5095, %v4968
      %5098 = vst.msk [vmem:[%s335 + $0x8] sm:$0xf] %vm5095, %v4969
      %5099 = vst.msk [vmem:[%s335 + $0xc] sm:$0xf] %vm5095, %v4970
      %5100 = vst.msk [vmem:[%s335 + $0x10] sm:$0xf] %vm5095, %v4971
      %5101 = vst.msk [vmem:[%s335 + $0x14] sm:$0xf] %vm5095, %v4972
      %5102 = vst.msk [vmem:[%s335 + $0x18] sm:$0xf] %vm5095, %v4973
      %5103 = vst.msk [vmem:[%s335 + $0x1c] sm:$0xf] %vm5095, %v4974
      %5104 = vst.msk [vmem:[%s335 + $0x20] sm:$0xf] %vm5095, %v4975
      %5105 = vst.msk [vmem:[%s335 + $0x24] sm:$0xf] %vm5095, %v4976
      %5106 = vst.msk [vmem:[%s335 + $0x28] sm:$0xf] %vm5095, %v4977
      %5107 = vst.msk [vmem:[%s335 + $0x2c] sm:$0xf] %vm5095, %v4978
      %5108 = vst.msk [vmem:[%s335 + $0x30] sm:$0xf] %vm5095, %v4979
      %5109 = vst.msk [vmem:[%s335 + $0x34] sm:$0xf] %vm5095, %v4980
      %5110 = vst.msk [vmem:[%s335 + $0x38] sm:$0xf] %vm5095, %v4981
      %5111 = vst.msk [vmem:[%s335 + $0x3c] sm:$0xf] %vm5095, %v4982
      %5112 = vst.msk [vmem:[%s335 + $0x40] sm:$0xf] %vm5095, %v4983
      %5113 = vst.msk [vmem:[%s335 + $0x44] sm:$0xf] %vm5095, %v4984
      %5114 = vst.msk [vmem:[%s335 + $0x48] sm:$0xf] %vm5095, %v4985
      %5115 = vst.msk [vmem:[%s335 + $0x4c] sm:$0xf] %vm5095, %v4986
      %5116 = vst.msk [vmem:[%s335 + $0x50] sm:$0xf] %vm5095, %v4987
      %5117 = vst.msk [vmem:[%s335 + $0x54] sm:$0xf] %vm5095, %v4988
      %5118 = vst.msk [vmem:[%s335 + $0x58] sm:$0xf] %vm5095, %v4989
      %5119 = vst.msk [vmem:[%s335 + $0x5c] sm:$0xf] %vm5095, %v4990
      %5120 = vst.msk [vmem:[%s335 + $0x60] sm:$0xf] %vm5095, %v4991
      %5121 = vst.msk [vmem:[%s335 + $0x64] sm:$0xf] %vm5095, %v4992
      %5122 = vst.msk [vmem:[%s335 + $0x68] sm:$0xf] %vm5095, %v4993
      %5123 = vst.msk [vmem:[%s335 + $0x6c] sm:$0xf] %vm5095, %v4994
      %5124 = vst.msk [vmem:[%s335 + $0x70] sm:$0xf] %vm5095, %v4995
      %5125 = vst.msk [vmem:[%s335 + $0x74] sm:$0xf] %vm5095, %v4996
      %5126 = vst.msk [vmem:[%s335 + $0x78] sm:$0xf] %vm5095, %v4997
      %5127 = vst.msk [vmem:[%s335 + $0x7c] sm:$0xf] %vm5095, %v4998
      %5128 = vst.msk [vmem:[%s335 + $0x80] sm:$0xf] %vm5095, %v4999
      %5129 = vst.msk [vmem:[%s335 + $0x84] sm:$0xf] %vm5095, %v5000
      %5130 = vst.msk [vmem:[%s335 + $0x88] sm:$0xf] %vm5095, %v5001
      %5131 = vst.msk [vmem:[%s335 + $0x8c] sm:$0xf] %vm5095, %v5002
      %5132 = vst.msk [vmem:[%s335 + $0x90] sm:$0xf] %vm5095, %v5003
      %5133 = vst.msk [vmem:[%s335 + $0x94] sm:$0xf] %vm5095, %v5004
      %5134 = vst.msk [vmem:[%s335 + $0x98] sm:$0xf] %vm5095, %v5005
      %5135 = vst.msk [vmem:[%s335 + $0x9c] sm:$0xf] %vm5095, %v5006
      %5136 = vst.msk [vmem:[%s335 + $0xa0] sm:$0xf] %vm5095, %v5007
      %5137 = vst.msk [vmem:[%s335 + $0xa4] sm:$0xf] %vm5095, %v5008
      %5138 = vst.msk [vmem:[%s335 + $0xa8] sm:$0xf] %vm5095, %v5009
      %5139 = vst.msk [vmem:[%s335 + $0xac] sm:$0xf] %vm5095, %v5010
      %5140 = vst.msk [vmem:[%s335 + $0xb0] sm:$0xf] %vm5095, %v5011
      %5141 = vst.msk [vmem:[%s335 + $0xb4] sm:$0xf] %vm5095, %v5012
      %5142 = vst.msk [vmem:[%s335 + $0xb8] sm:$0xf] %vm5095, %v5013
      %5143 = vst.msk [vmem:[%s335 + $0xbc] sm:$0xf] %vm5095, %v5014
      %5144 = vst.msk [vmem:[%s335 + $0xc0] sm:$0xf] %vm5095, %v5015
      %5145 = vst.msk [vmem:[%s335 + $0xc4] sm:$0xf] %vm5095, %v5016
      %5146 = vst.msk [vmem:[%s335 + $0xc8] sm:$0xf] %vm5095, %v5017
      %5147 = vst.msk [vmem:[%s335 + $0xcc] sm:$0xf] %vm5095, %v5018
      %5148 = vst.msk [vmem:[%s335 + $0xd0] sm:$0xf] %vm5095, %v5019
      %5149 = vst.msk [vmem:[%s335 + $0xd4] sm:$0xf] %vm5095, %v5020
      %5150 = vst.msk [vmem:[%s335 + $0xd8] sm:$0xf] %vm5095, %v5021
      %5151 = vst.msk [vmem:[%s335 + $0xdc] sm:$0xf] %vm5095, %v5022
      %5152 = vst.msk [vmem:[%s335 + $0xe0] sm:$0xf] %vm5095, %v5023
      %5153 = vst.msk [vmem:[%s335 + $0xe4] sm:$0xf] %vm5095, %v5024
      %5154 = vst.msk [vmem:[%s335 + $0xe8] sm:$0xf] %vm5095, %v5025
      %5155 = vst.msk [vmem:[%s335 + $0xec] sm:$0xf] %vm5095, %v5026
      %5156 = vst.msk [vmem:[%s335 + $0xf0] sm:$0xf] %vm5095, %v5027
      %5157 = vst.msk [vmem:[%s335 + $0xf4] sm:$0xf] %vm5095, %v5028
      %5158 = vst.msk [vmem:[%s335 + $0xf8] sm:$0xf] %vm5095, %v5029
      %5159 = vst.msk [vmem:[%s335 + $0xfc] sm:$0xf] %vm5095, %v5030
      %5224 = vrot.lane.b32.xlu0 %v4521, 120
      %v5225 = vpop.permute.xlu0 %5224
      %5226 = vrot.lane.b32.xlu0 %v4526, 120
      %v5227 = vpop.permute.xlu0 %5226
      %5228 = vrot.lane.b32.xlu0 %v4531, 120
      %v5229 = vpop.permute.xlu0 %5228
      %5230 = vrot.lane.b32.xlu0 %v4536, 120
      %v5231 = vpop.permute.xlu0 %5230
      %5232 = vrot.lane.b32.xlu0 %v4541, 120
      %v5233 = vpop.permute.xlu0 %5232
      %5234 = vrot.lane.b32.xlu0 %v4546, 120
      %v5235 = vpop.permute.xlu0 %5234
      %5236 = vrot.lane.b32.xlu0 %v4551, 120
      %v5237 = vpop.permute.xlu0 %5236
      %5238 = vrot.lane.b32.xlu0 %v4556, 120
      %v5239 = vpop.permute.xlu0 %5238
      %5240 = vrot.lane.b32.xlu0 %v4561, 120
      %v5241 = vpop.permute.xlu0 %5240
      %5242 = vrot.lane.b32.xlu0 %v4566, 120
      %v5243 = vpop.permute.xlu0 %5242
      %5244 = vrot.lane.b32.xlu0 %v4571, 120
      %v5245 = vpop.permute.xlu0 %5244
      %5246 = vrot.lane.b32.xlu0 %v4576, 120
      %v5247 = vpop.permute.xlu0 %5246
      %5248 = vrot.lane.b32.xlu0 %v4581, 120
      %v5249 = vpop.permute.xlu0 %5248
      %5250 = vrot.lane.b32.xlu0 %v4586, 120
      %v5251 = vpop.permute.xlu0 %5250
      %5252 = vrot.lane.b32.xlu0 %v4591, 120
      %v5253 = vpop.permute.xlu0 %5252
      %5254 = vrot.lane.b32.xlu0 %v4596, 120
      %v5255 = vpop.permute.xlu0 %5254
      %5256 = vrot.lane.b32.xlu0 %v4601, 120
      %v5257 = vpop.permute.xlu0 %5256
      %5258 = vrot.lane.b32.xlu0 %v4606, 120
      %v5259 = vpop.permute.xlu0 %5258
      %5260 = vrot.lane.b32.xlu0 %v4611, 120
      %v5261 = vpop.permute.xlu0 %5260
      %5262 = vrot.lane.b32.xlu0 %v4616, 120
      %v5263 = vpop.permute.xlu0 %5262
      %5264 = vrot.lane.b32.xlu0 %v4621, 120
      %v5265 = vpop.permute.xlu0 %5264
      %5266 = vrot.lane.b32.xlu0 %v4626, 120
      %v5267 = vpop.permute.xlu0 %5266
      %5268 = vrot.lane.b32.xlu0 %v4631, 120
      %v5269 = vpop.permute.xlu0 %5268
      %5270 = vrot.lane.b32.xlu0 %v4636, 120
      %v5271 = vpop.permute.xlu0 %5270
      %5272 = vrot.lane.b32.xlu0 %v4641, 120
      %v5273 = vpop.permute.xlu0 %5272
      %5274 = vrot.lane.b32.xlu0 %v4646, 120
      %v5275 = vpop.permute.xlu0 %5274
      %5276 = vrot.lane.b32.xlu0 %v4651, 120
      %v5277 = vpop.permute.xlu0 %5276
      %5278 = vrot.lane.b32.xlu0 %v4656, 120
      %v5279 = vpop.permute.xlu0 %5278
      %5280 = vrot.lane.b32.xlu0 %v4661, 120
      %v5281 = vpop.permute.xlu0 %5280
      %5282 = vrot.lane.b32.xlu0 %v4666, 120
      %v5283 = vpop.permute.xlu0 %5282
      %5284 = vrot.lane.b32.xlu0 %v4671, 120
      %v5285 = vpop.permute.xlu0 %5284
      %5286 = vrot.lane.b32.xlu0 %v4676, 120
      %v5287 = vpop.permute.xlu0 %5286
      %5288 = vrot.lane.b32.xlu0 %v4681, 120
      %v5289 = vpop.permute.xlu0 %5288
      %5290 = vrot.lane.b32.xlu0 %v4686, 120
      %v5291 = vpop.permute.xlu0 %5290
      %5292 = vrot.lane.b32.xlu0 %v4691, 120
      %v5293 = vpop.permute.xlu0 %5292
      %5294 = vrot.lane.b32.xlu0 %v4696, 120
      %v5295 = vpop.permute.xlu0 %5294
      %5296 = vrot.lane.b32.xlu0 %v4701, 120
      %v5297 = vpop.permute.xlu0 %5296
      %5298 = vrot.lane.b32.xlu0 %v4706, 120
      %v5299 = vpop.permute.xlu0 %5298
      %5300 = vrot.lane.b32.xlu0 %v4711, 120
      %v5301 = vpop.permute.xlu0 %5300
      %5302 = vrot.lane.b32.xlu0 %v4716, 120
      %v5303 = vpop.permute.xlu0 %5302
      %5304 = vrot.lane.b32.xlu0 %v4721, 120
      %v5305 = vpop.permute.xlu0 %5304
      %5306 = vrot.lane.b32.xlu0 %v4726, 120
      %v5307 = vpop.permute.xlu0 %5306
      %5308 = vrot.lane.b32.xlu0 %v4731, 120
      %v5309 = vpop.permute.xlu0 %5308
      %5310 = vrot.lane.b32.xlu0 %v4736, 120
      %v5311 = vpop.permute.xlu0 %5310
      %5312 = vrot.lane.b32.xlu0 %v4741, 120
      %v5313 = vpop.permute.xlu0 %5312
      %5314 = vrot.lane.b32.xlu0 %v4746, 120
      %v5315 = vpop.permute.xlu0 %5314
      %5316 = vrot.lane.b32.xlu0 %v4751, 120
      %v5317 = vpop.permute.xlu0 %5316
      %5318 = vrot.lane.b32.xlu0 %v4756, 120
      %v5319 = vpop.permute.xlu0 %5318
      %5320 = vrot.lane.b32.xlu0 %v4761, 120
      %v5321 = vpop.permute.xlu0 %5320
      %5322 = vrot.lane.b32.xlu0 %v4766, 120
      %v5323 = vpop.permute.xlu0 %5322
      %5324 = vrot.lane.b32.xlu0 %v4771, 120
      %v5325 = vpop.permute.xlu0 %5324
      %5326 = vrot.lane.b32.xlu0 %v4776, 120
      %v5327 = vpop.permute.xlu0 %5326
      %5328 = vrot.lane.b32.xlu0 %v4781, 120
      %v5329 = vpop.permute.xlu0 %5328
      %5330 = vrot.lane.b32.xlu0 %v4786, 120
      %v5331 = vpop.permute.xlu0 %5330
      %5332 = vrot.lane.b32.xlu0 %v4791, 120
      %v5333 = vpop.permute.xlu0 %5332
      %5334 = vrot.lane.b32.xlu0 %v4796, 120
      %v5335 = vpop.permute.xlu0 %5334
      %5336 = vrot.lane.b32.xlu0 %v4801, 120
      %v5337 = vpop.permute.xlu0 %5336
      %5338 = vrot.lane.b32.xlu0 %v4806, 120
      %v5339 = vpop.permute.xlu0 %5338
      %5340 = vrot.lane.b32.xlu0 %v4811, 120
      %v5341 = vpop.permute.xlu0 %5340
      %5342 = vrot.lane.b32.xlu0 %v4816, 120
      %v5343 = vpop.permute.xlu0 %5342
      %5344 = vrot.lane.b32.xlu0 %v4821, 120
      %v5345 = vpop.permute.xlu0 %5344
      %5346 = vrot.lane.b32.xlu0 %v4826, 120
      %v5347 = vpop.permute.xlu0 %5346
      %5348 = vrot.lane.b32.xlu0 %v4831, 120
      %v5349 = vpop.permute.xlu0 %5348
      %5350 = vrot.lane.b32.xlu0 %v4836, 120
      %v5351 = vpop.permute.xlu0 %5350
      %vm5416 = vcmask 64512
      %5417 = vst.msk [vmem:[%s341] sm:$0xff] %vm5416, %v5225
      %5418 = vst.msk [vmem:[%s341 + $0x8] sm:$0xff] %vm5416, %v5227
      %5419 = vst.msk [vmem:[%s341 + $0x10] sm:$0xff] %vm5416, %v5229
      %5420 = vst.msk [vmem:[%s341 + $0x18] sm:$0xff] %vm5416, %v5231
      %5421 = vst.msk [vmem:[%s341 + $0x20] sm:$0xff] %vm5416, %v5233
      %5422 = vst.msk [vmem:[%s341 + $0x28] sm:$0xff] %vm5416, %v5235
      %5423 = vst.msk [vmem:[%s341 + $0x30] sm:$0xff] %vm5416, %v5237
      %5424 = vst.msk [vmem:[%s341 + $0x38] sm:$0xff] %vm5416, %v5239
      %5425 = vst.msk [vmem:[%s341 + $0x40] sm:$0xff] %vm5416, %v5241
      %5426 = vst.msk [vmem:[%s341 + $0x48] sm:$0xff] %vm5416, %v5243
      %5427 = vst.msk [vmem:[%s341 + $0x50] sm:$0xff] %vm5416, %v5245
      %5428 = vst.msk [vmem:[%s341 + $0x58] sm:$0xff] %vm5416, %v5247
      %5429 = vst.msk [vmem:[%s341 + $0x60] sm:$0xff] %vm5416, %v5249
      %5430 = vst.msk [vmem:[%s341 + $0x68] sm:$0xff] %vm5416, %v5251
      %5431 = vst.msk [vmem:[%s341 + $0x70] sm:$0xff] %vm5416, %v5253
      %5432 = vst.msk [vmem:[%s341 + $0x78] sm:$0xff] %vm5416, %v5255
      %5433 = vst.msk [vmem:[%s341 + $0x80] sm:$0xff] %vm5416, %v5257
      %5434 = vst.msk [vmem:[%s341 + $0x88] sm:$0xff] %vm5416, %v5259
      %5435 = vst.msk [vmem:[%s341 + $0x90] sm:$0xff] %vm5416, %v5261
      %5436 = vst.msk [vmem:[%s341 + $0x98] sm:$0xff] %vm5416, %v5263
      %5437 = vst.msk [vmem:[%s341 + $0xa0] sm:$0xff] %vm5416, %v5265
      %5438 = vst.msk [vmem:[%s341 + $0xa8] sm:$0xff] %vm5416, %v5267
      %5439 = vst.msk [vmem:[%s341 + $0xb0] sm:$0xff] %vm5416, %v5269
      %5440 = vst.msk [vmem:[%s341 + $0xb8] sm:$0xff] %vm5416, %v5271
      %5441 = vst.msk [vmem:[%s341 + $0xc0] sm:$0xff] %vm5416, %v5273
      %5442 = vst.msk [vmem:[%s341 + $0xc8] sm:$0xff] %vm5416, %v5275
      %5443 = vst.msk [vmem:[%s341 + $0xd0] sm:$0xff] %vm5416, %v5277
      %5444 = vst.msk [vmem:[%s341 + $0xd8] sm:$0xff] %vm5416, %v5279
      %5445 = vst.msk [vmem:[%s341 + $0xe0] sm:$0xff] %vm5416, %v5281
      %5446 = vst.msk [vmem:[%s341 + $0xe8] sm:$0xff] %vm5416, %v5283
      %5447 = vst.msk [vmem:[%s341 + $0xf0] sm:$0xff] %vm5416, %v5285
      %5448 = vst.msk [vmem:[%s341 + $0xf8] sm:$0xff] %vm5416, %v5287
      %5449 = vst.msk [vmem:[%s341 + $0x100] sm:$0xff] %vm5416, %v5289
      %5450 = vst.msk [vmem:[%s341 + $0x108] sm:$0xff] %vm5416, %v5291
      %5451 = vst.msk [vmem:[%s341 + $0x110] sm:$0xff] %vm5416, %v5293
      %5452 = vst.msk [vmem:[%s341 + $0x118] sm:$0xff] %vm5416, %v5295
      %5453 = vst.msk [vmem:[%s341 + $0x120] sm:$0xff] %vm5416, %v5297
      %5454 = vst.msk [vmem:[%s341 + $0x128] sm:$0xff] %vm5416, %v5299
      %5455 = vst.msk [vmem:[%s341 + $0x130] sm:$0xff] %vm5416, %v5301
      %5456 = vst.msk [vmem:[%s341 + $0x138] sm:$0xff] %vm5416, %v5303
      %5457 = vst.msk [vmem:[%s341 + $0x140] sm:$0xff] %vm5416, %v5305
      %5458 = vst.msk [vmem:[%s341 + $0x148] sm:$0xff] %vm5416, %v5307
      %5459 = vst.msk [vmem:[%s341 + $0x150] sm:$0xff] %vm5416, %v5309
      %5460 = vst.msk [vmem:[%s341 + $0x158] sm:$0xff] %vm5416, %v5311
      %5461 = vst.msk [vmem:[%s341 + $0x160] sm:$0xff] %vm5416, %v5313
      %5462 = vst.msk [vmem:[%s341 + $0x168] sm:$0xff] %vm5416, %v5315
      %5463 = vst.msk [vmem:[%s341 + $0x170] sm:$0xff] %vm5416, %v5317
      %5464 = vst.msk [vmem:[%s341 + $0x178] sm:$0xff] %vm5416, %v5319
      %5465 = vst.msk [vmem:[%s341 + $0x180] sm:$0xff] %vm5416, %v5321
      %5466 = vst.msk [vmem:[%s341 + $0x188] sm:$0xff] %vm5416, %v5323
      %5467 = vst.msk [vmem:[%s341 + $0x190] sm:$0xff] %vm5416, %v5325
      %5468 = vst.msk [vmem:[%s341 + $0x198] sm:$0xff] %vm5416, %v5327
      %5469 = vst.msk [vmem:[%s341 + $0x1a0] sm:$0xff] %vm5416, %v5329
      %5470 = vst.msk [vmem:[%s341 + $0x1a8] sm:$0xff] %vm5416, %v5331
      %5471 = vst.msk [vmem:[%s341 + $0x1b0] sm:$0xff] %vm5416, %v5333
      %5472 = vst.msk [vmem:[%s341 + $0x1b8] sm:$0xff] %vm5416, %v5335
      %5473 = vst.msk [vmem:[%s341 + $0x1c0] sm:$0xff] %vm5416, %v5337
      %5474 = vst.msk [vmem:[%s341 + $0x1c8] sm:$0xff] %vm5416, %v5339
      %5475 = vst.msk [vmem:[%s341 + $0x1d0] sm:$0xff] %vm5416, %v5341
      %5476 = vst.msk [vmem:[%s341 + $0x1d8] sm:$0xff] %vm5416, %v5343
      %5477 = vst.msk [vmem:[%s341 + $0x1e0] sm:$0xff] %vm5416, %v5345
      %5478 = vst.msk [vmem:[%s341 + $0x1e8] sm:$0xff] %vm5416, %v5347
      %5479 = vst.msk [vmem:[%s341 + $0x1f0] sm:$0xff] %vm5416, %v5349
      %5480 = vst.msk [vmem:[%s341 + $0x1f8] sm:$0xff] %vm5416, %v5351
      %s5481 = smul.u32 64, %s19
      %p5482 = scmp.lt.s32.totalorder %s5481, 127
      %s5483 = scalar_select %p5482, %s5481, 127
      %s5484 = smul.addr %s5483, 4
      %s5485 = scalar_lea.vmem %s6, %s5484
      %s5486 = smul.u32 64, %s19
      %p5487 = scmp.lt.s32.totalorder %s5486, 127
      %s5488 = scalar_select %p5487, %s5486, 127
      %s5489 = smul.addr %s5488, 8
      %s5490 = scalar_lea.vmem %s7, %s5489
      // Predicated region
      $region45: #{graphsage_forward.4} parent=43 // pred_check
        %p5491 = pneg %p178
      $region46: #{graphsage_forward.4} parent=43 // pred_check_branch
        %5493 = sbr.rel (%p5491) target = $region48
      $region47: #{graphsage_forward.4} parent=43 // pred_region
        %s5494 = smul.u32 64, %s19
      $region48: #{graphsage_forward.4} parent=43 // pred_fallthru
        _
      // Predicated region
      $region49: #{graphsage_forward.4} parent=43 // pred_check
        %p5495 = pneg %p204
      $region50: #{graphsage_forward.4} parent=43 // pred_check_branch
        %5497 = sbr.rel (%p5495) target = $region52
      $region51: #{graphsage_forward.4} parent=43 // pred_region
        %s5498 = smul.u32 64, %s19
      $region52: #{graphsage_forward.4} parent=43 // pred_fallthru
        _
    $region44: #{graphsage_forward.4} parent=5 // pred_fallthru
      _
    %p5499 = scmp.le.s32.totalorder 2, %s14
    // Predicated region
    $region53: #{graphsage_forward.4} parent=5 // pred_check
      %p5500 = pneg %p5499
    $region54: #{graphsage_forward.4} parent=5 // pred_check_branch
      %5502 = sbr.rel (%p5500) target = $region56
    $region55: #{graphsage_forward.4} parent=5 // pred_region
      %s5503 = ssub.s32 %s14, 2
      // Predicated region
      $region57: #{graphsage_forward.4} parent=55 // pred_check
        %p5504 = pneg %p184
      $region58: #{graphsage_forward.4} parent=55 // pred_check_branch
        %5506 = sbr.rel (%p5504) target = $region60
      $region59: #{graphsage_forward.4} parent=55 // pred_region
        %s5507 = smul.u32 64, %s20
        %p5508 = scmp.lt.s32.totalorder %s5507, 127
        %s5509 = scalar_select %p5508, %s5507, 127
        %s5510 = smul.addr %s5509, 4
        %s5511 = scalar_lea.vmem %s6, %s5510
      $region60: #{graphsage_forward.4} parent=55 // pred_fallthru
        _
      // Predicated region
      $region61: #{graphsage_forward.4} parent=55 // pred_check
        %p5512 = pneg %p210
      $region62: #{graphsage_forward.4} parent=55 // pred_check_branch
        %5514 = sbr.rel (%p5512) target = $region64
      $region63: #{graphsage_forward.4} parent=55 // pred_region
        %s5515 = smul.u32 64, %s20
        %p5516 = scmp.lt.s32.totalorder %s5515, 127
        %s5517 = scalar_select %p5516, %s5515, 127
        %s5518 = smul.addr %s5517, 8
        %s5519 = scalar_lea.vmem %s7, %s5518
      $region64: #{graphsage_forward.4} parent=55 // pred_fallthru
        _
    $region56: #{graphsage_forward.4} parent=5 // pred_fallthru
      _
  $region6: #{graphsage_forward.4} parent=0 // loop_footer
    %s18 = sadd.s32 1, %s14
  $region7: #{graphsage_forward.4} parent=0 // loop_footer_branch
    %13 = sbr.rel target = $region3
  $region8: #{graphsage_forward.4} parent=0 // loop_exit
    _

</llo_original>
